<compile_context>
chip_gen: v5e
topology: v5e:2x2
jax: 0.10.0
libtpu: 0.0.40
codegen_flags: <defaults>
</compile_context>

<pallas_src>
import numpy as np
import jax
import jax.numpy as jnp
from jax.experimental import pallas as pl
from jax.experimental.pallas import tpu as pltpu

KH = 5            # conv kernel size of both convs in CNNNetAAP
NUM_CLASSES = 10  # fc3 output size


def _round_up(v, m):
    return ((v + m - 1) // m) * m


# ------------------------------ Pallas kernel --------------------------------

def cnn_fused_kernel(x_ref, w1_ref, b1_ref, w2_ref, b2_ref, head_ref, sel_ref,
                     fcb_ref, o_ref, p1s):
    # x_ref   : (B*OH1, KH*W*4) bf16  im2col rows, grouped by (conv1 row mod 4)
    # w1_ref  : (KH*W*4, 2*NC1) bf16  banded conv1 weight, width-pool parities on N
    # b1_ref  : (1, NC1)        f32
    # w2_ref  : (KH, NC1, 2*NC2) bf16 banded conv2 weight (per kernel row)
    # b2_ref  : (1, NC2)        f32
    # head_ref: (NC2, 128)      bf16  AdaptiveAvgPool(1) + fc3 folded (/25)
    # sel_ref : (B, B*HP1//2)   f32   0/1 per-image row-sum selector
    # fcb_ref : (1, 128)        f32
    # o_ref   : (B, 128)        f32   logits (classes padded to 128 lanes)
    # p1s     : (2, B*HP1//2 + 8, NC1) f32 VMEM scratch (stage-1 pooled rows,
    #           split by row parity, +8 zero pad rows)
    f32 = jnp.float32
    bf16 = jnp.bfloat16
    BQ = sel_ref.shape[1]          # B * HP1//2 rows per parity region
    NC1 = b1_ref.shape[1]
    NC2 = b2_ref.shape[1]

    # Shifted stage-2 windows read up to 2 rows past the last image; keep those
    # pad rows finite (zero) so the 0-weighted selector rows stay finite.
    zero_rows = jnp.zeros((p1s.shape[1] - BQ, NC1), f32)
    p1s[0, BQ:, :] = zero_rows
    p1s[1, BQ:, :] = zero_rows

    # ---- stage 1: conv1(5x5) + bias + ReLU + 2x2 maxpool ---------------------
    # Row groups (0,1) pool to the even stage-1 rows, (2,3) to the odd ones.
    def conv1_group(g):
        a = jnp.dot(x_ref[pl.ds(g * BQ, BQ), :], w1_ref[...],
                    preferred_element_type=f32)            # (BQ, 2*NC1)
        return jnp.maximum(a[:, :NC1], a[:, NC1:])         # width-parity max

    z_e = jnp.maximum(jnp.maximum(conv1_group(0), conv1_group(1))
                      + b1_ref[...], 0.0)
    p1s[0, :BQ, :] = z_e
    z_o = jnp.maximum(jnp.maximum(conv1_group(2), conv1_group(3))
                      + b1_ref[...], 0.0)
    p1s[1, :BQ, :] = z_o

    # ---- stage 2: conv2(5x5) + bias + ReLU + 2x2 maxpool ---------------------
    # For conv2 output rows of parity s and kernel row r, the stage-1 rows live
    # in parity region (s+r)%2 at a contiguous window shifted by (s+r)//2.
    def conv2_set(s):
        acc = jnp.zeros((BQ, 2 * NC2), f32)
        for r in range(KH):
            par, sh = (s + r) % 2, (s + r) // 2
            lhs = p1s[par, pl.ds(sh, BQ), :].astype(bf16)
            acc = acc + jnp.dot(lhs, w2_ref[r], preferred_element_type=f32)
        return jnp.maximum(jnp.maximum(acc[:, :NC2], acc[:, NC2:])
                           + b2_ref[...], 0.0)

    z2e = conv2_set(0)                                   # conv2 rows 2m
    z2o = conv2_set(1)                                   # conv2 rows 2m+1
    p2 = jnp.maximum(z2e, z2o).astype(bf16)              # (BQ, NC2) pooled rows

    # ---- AdaptiveAvgPool2d(1) + fc3 (head) + per-image row gather ------------
    t = jnp.dot(p2, head_ref[...], preferred_element_type=f32)   # (BQ, 128)
    o_ref[...] = jnp.dot(sel_ref[...], t,
                         preferred_element_type=f32) + fcb_ref[...]


# --------------------------- one-time parameter prep -------------------------

def prepare_params(params, hin=32, win=32, block_b=8):
    """Host-side weight prep, done ONCE (hoisted out of the jitted forward)."""
    c1w, c1b, c2w, c2b, fcw, fcb = [np.asarray(p, np.float32) for p in params]
    C1, CIN = c1w.shape[0], c1w.shape[1]
    C2 = c2w.shape[0]
    NCLS = fcw.shape[0]
    assert block_b % 8 == 0, "block_b must be a multiple of 8"
    assert CIN <= 4

    CP = 4                                         # input channels padded 3 -> 4
    WC = win * CP                                  # 128
    OH1, OW1 = hin - KH + 1, win - KH + 1          # 28, 28
    HP1, WP1 = OH1 // 2, OW1 // 2                  # 14, 14
    OH2, OW2 = HP1 - KH + 1, WP1 - KH + 1          # 10, 10
    HP2, WP2 = OH2 // 2, OW2 // 2                  # 5, 5
    assert OH1 % 4 == 0 and OH2 % 2 == 0

    NC1 = _round_up(WP1 * C1, 128)                 # 256
    NC2 = _round_up(WP2 * C2, 128)                 # 256
    NCO = 128                                      # classes padded to 128 lanes

    # conv1: kernel rows stacked along K (matches wrapper im2col), width-pool
    # parities concatenated along N.
    w1 = np.zeros((KH, WC, 2, NC1), np.float32)
    for r in range(KH):
        for kcol in range(KH):
            for p in range(2):
                for j in range(WP1):
                    wi = 2 * j + p + kcol
                    w1[r, wi * CP:wi * CP + CIN, p, j * C1:(j + 1) * C1] = \
                        c1w[:, :, r, kcol].T
    w1 = w1.reshape(KH * WC, 2 * NC1)

    # conv2: banded per kernel row; K layout matches stage-1 output lanes.
    w2 = np.zeros((KH, NC1, 2, NC2), np.float32)
    for r in range(KH):
        for kcol in range(KH):
            for p in range(2):
                for j in range(WP2):
                    wi = 2 * j + p + kcol
                    w2[r, wi * C1:(wi + 1) * C1, p, j * C2:(j + 1) * C2] = \
                        c2w[:, :, r, kcol].T
    w2 = w2.reshape(KH, NC1, 2 * NC2)

    b1 = np.zeros((1, NC1), np.float32)
    for j in range(WP1):
        b1[0, j * C1:(j + 1) * C1] = c1b
    b2 = np.zeros((1, NC2), np.float32)
    for j in range(WP2):
        b2[0, j * C2:(j + 1) * C2] = c2b

    # AdaptiveAvgPool2d(1) + fc3 folded:  logits = rowsum(p2) @ head + fcb.
    head = np.zeros((NC2, NCO), np.float32)
    for j in range(WP2):
        head[j * C2:(j + 1) * C2, :NCLS] = fcw.T / float(HP2 * WP2)
    fcb_p = np.zeros((1, NCO), np.float32)
    fcb_p[0, :NCLS] = fcb

    # 0/1 selector: per image sum the HP2 valid pooled rows out of HP1//2 padded.
    kq = HP1 // 2
    sel = np.zeros((block_b, block_b * kq), np.float32)
    for b in range(block_b):
        sel[b, b * kq:b * kq + HP2] = 1.0

    return (jnp.asarray(w1, jnp.bfloat16), jnp.asarray(b1),
            jnp.asarray(w2, jnp.bfloat16), jnp.asarray(b2),
            jnp.asarray(head, jnp.bfloat16), jnp.asarray(fcb_p),
            jnp.asarray(sel))


# --------------------------------- forward -----------------------------------

@jax.jit
def cnn_net_aap_forward(x_nchw, prep):
    w1, b1, w2, b2, head, fcb, sel = prep
    B = sel.shape[0]
    BQ = sel.shape[1]
    n, cin, h, w = x_nchw.shape
    oh1 = h - KH + 1
    kq = oh1 // 4
    assert oh1 % 4 == 0 and BQ == B * kq, "prep does not match input geometry"

    # NCHW -> NHWC, zero-pad channels to 4, flatten (W, C) into lanes.
    x = jnp.transpose(x_nchw, (0, 2, 3, 1)).astype(jnp.bfloat16)
    x = jnp.pad(x, ((0, 0), (0, 0), (0, 0), (0, 4 - cin)))
    n_pad = ((n + B - 1) // B) * B
    if n_pad != n:
        x = jnp.pad(x, ((0, n_pad - n), (0, 0), (0, 0), (0, 0)))
    x = x.reshape(n_pad, h, w * 4)

    # im2col over the KH kernel rows (K = KH*W*4), then group each B-image
    # block's conv1-output rows by (row mod 4) so both 2x2 height pools reduce
    # to plain vreg maxes inside the kernel (no strided access).
    x1 = jnp.concatenate([x[:, r:r + oh1, :] for r in range(KH)], axis=-1)
    k1 = x1.shape[-1]
    assert k1 == w1.shape[0]
    x1 = x1.reshape(n_pad // B, B, kq, 4, k1)
    x1 = jnp.transpose(x1, (0, 3, 1, 2, 4)).reshape(n_pad * oh1, k1)

    nrows = B * oh1
    out = pl.pallas_call(
        cnn_fused_kernel,
        out_shape=jax.ShapeDtypeStruct((n_pad, head.shape[1]), jnp.float32),
        grid=(n_pad // B,),
        in_specs=[
            pl.BlockSpec((nrows, k1), lambda i: (i, 0)),
            pl.BlockSpec(w1.shape, lambda i: (0, 0)),
            pl.BlockSpec(b1.shape, lambda i: (0, 0)),
            pl.BlockSpec(w2.shape, lambda i: (0, 0, 0)),
            pl.BlockSpec(b2.shape, lambda i: (0, 0)),
            pl.BlockSpec(head.shape, lambda i: (0, 0)),
            pl.BlockSpec(sel.shape, lambda i: (0, 0)),
            pl.BlockSpec(fcb.shape, lambda i: (0, 0)),
        ],
        out_specs=pl.BlockSpec((B, head.shape[1]), lambda i: (i, 0)),
        scratch_shapes=[pltpu.VMEM((2, BQ + 8, b1.shape[1]), jnp.float32)],
        compiler_params=pltpu.CompilerParams(
            dimension_semantics=("parallel",),
            vmem_limit_bytes=32 * 1024 * 1024),
    )(x1, w1, b1, w2, b2, head, sel, fcb)
    return out[:n, :NUM_CLASSES]


# ---------------------------- pure-JAX reference -----------------------------

def reference_forward(x_nchw, params):
    c1w, c1b, c2w, c2b, fcw, fcb = params

    def conv(x, w, b):
        y = jax.lax.conv_general_dilated(
            x, w, window_strides=(1, 1), padding="VALID",
            dimension_numbers=("NCHW", "OIHW", "NCHW"))
        return y + b[None, :, None, None]

    def pool(x):
        return jax.lax.reduce_window(x, -jnp.inf, jax.lax.max,
                                     (1, 1, 2, 2), (1, 1, 2, 2), "VALID")

    y = pool(jax.nn.relu(conv(x_nchw, c1w, c1b)))
    y = pool(jax.nn.relu(conv(y, c2w, c2b)))
    y = jnp.mean(y, axis=(2, 3))
    return y @ fcw.T + fcb


# ------------------------------------ main ------------------------------------

if __name__ == "__main__":
    key = jax.random.PRNGKey(0)
    ks = jax.random.split(key, 7)
    # Deterministic synthetic parameters, shapes from CNNNetAAP.__init__.
    conv1_w = 0.10 * jax.random.normal(ks[0], (16, 3, 5, 5), jnp.float32)
    conv1_b = 0.10 * jax.random.normal(ks[1], (16,), jnp.float32)
    conv2_w = 0.05 * jax.random.normal(ks[2], (36, 16, 5, 5), jnp.float32)
    conv2_b = 0.05 * jax.random.normal(ks[3], (36,), jnp.float32)
    fc_w = 0.10 * jax.random.normal(ks[4], (10, 36), jnp.float32)
    fc_b = 0.10 * jax.random.normal(ks[5], (10,), jnp.float32)
    params = (conv1_w, conv1_b, conv2_w, conv2_b, fc_w, fc_b)

    # Input in PyTorch NCHW convention; 16 images -> grid of 2 blocks of 8.
    x = jax.random.normal(ks[6], (16, 3, 32, 32), jnp.float32)

    prep = prepare_params(params, hin=32, win=32, block_b=8)  # host-side, once
    out = jax.block_until_ready(cnn_net_aap_forward(x, prep))
    ref = jax.block_until_ready(reference_forward(x, params))

    assert out.shape == (16, 10), out.shape
    err = float(jnp.max(jnp.abs(out - ref)))
    # bf16 MXU operands with f32 accumulation -> bf16-level tolerance.
    assert err < 3e-2, f"max abs err {err}"
    print("KERNEL_OK")
</pallas_src>

<mosaic_0001>
module attributes {stable_mosaic.version = 11 : i64} {
  func.func @cnn_fused_kernel(%arg0: i32, %arg1: memref<224x640xbf16, #tpu.memory_space<vmem>>, %arg2: memref<640x512xbf16, #tpu.memory_space<vmem>>, %arg3: memref<1x256xf32, #tpu.memory_space<vmem>>, %arg4: memref<5x256x512xbf16, #tpu.memory_space<vmem>>, %arg5: memref<1x256xf32, #tpu.memory_space<vmem>>, %arg6: memref<256x128xbf16, #tpu.memory_space<vmem>>, %arg7: memref<8x56xf32, #tpu.memory_space<vmem>>, %arg8: memref<1x128xf32, #tpu.memory_space<vmem>>, %arg9: memref<8x128xf32, #tpu.memory_space<vmem>>, %arg10: memref<2x64x256xf32, #tpu.memory_space<vmem>>) attributes {dimension_semantics = [#tpu.dimension_semantics<parallel>], iteration_bounds = array<i64: 2>, scalar_prefetch = 0 : i64, scratch_operands = 1 : i64, tpu.core_type = #tpu.core_type<tc>, window_params = [{transform_indices = @transform_0, window_bounds = array<i64: 224, 640>}, {pipeline_mode = #tpu.pipeline_mode<synchronous>, transform_indices = @transform_1, window_bounds = array<i64: 640, 512>}, {pipeline_mode = #tpu.pipeline_mode<synchronous>, transform_indices = @transform_2, window_bounds = array<i64: 1, 256>}, {pipeline_mode = #tpu.pipeline_mode<synchronous>, transform_indices = @transform_3, window_bounds = array<i64: 5, 256, 512>}, {pipeline_mode = #tpu.pipeline_mode<synchronous>, transform_indices = @transform_4, window_bounds = array<i64: 1, 256>}, {pipeline_mode = #tpu.pipeline_mode<synchronous>, transform_indices = @transform_5, window_bounds = array<i64: 256, 128>}, {pipeline_mode = #tpu.pipeline_mode<synchronous>, transform_indices = @transform_6, window_bounds = array<i64: 8, 56>}, {pipeline_mode = #tpu.pipeline_mode<synchronous>, transform_indices = @transform_7, window_bounds = array<i64: 1, 128>}, {transform_indices = @transform_8, window_bounds = array<i64: 8, 128>}]} {
    %cst = arith.constant 0.000000e+00 : f32
    %0 = vector.broadcast %cst : f32 to vector<8x256xf32>
    %c0 = arith.constant 0 : index
    %c56 = arith.constant 56 : index
    %c0_0 = arith.constant 0 : index
    %1 = vector.load %arg10[%c0, %c56, %c0_0] : memref<2x64x256xf32, #tpu.memory_space<vmem>>, vector<1x8x256xf32>
    %2 = vector.shape_cast %1 : vector<1x8x256xf32> to vector<8x256xf32>
    %3 = vector.shape_cast %0 : vector<8x256xf32> to vector<1x8x256xf32>
    tpu.vector_store %arg10[%c0, %c56, %c0_0], %3 {strides = array<i32>} : memref<2x64x256xf32, #tpu.memory_space<vmem>>, vector<1x8x256xf32>,
    %c1 = arith.constant 1 : index
    %c56_1 = arith.constant 56 : index
    %c0_2 = arith.constant 0 : index
    %4 = vector.load %arg10[%c1, %c56_1, %c0_2] : memref<2x64x256xf32, #tpu.memory_space<vmem>>, vector<1x8x256xf32>
    %5 = vector.shape_cast %4 : vector<1x8x256xf32> to vector<8x256xf32>
    %6 = vector.shape_cast %0 : vector<8x256xf32> to vector<1x8x256xf32>
    tpu.vector_store %arg10[%c1, %c56_1, %c0_2], %6 {strides = array<i32>} : memref<2x64x256xf32, #tpu.memory_space<vmem>>, vector<1x8x256xf32>,
    %c0_3 = arith.constant 0 : index
    %c0_4 = arith.constant 0 : index
    %7 = vector.load %arg1[%c0_3, %c0_4] : memref<224x640xbf16, #tpu.memory_space<vmem>>, vector<56x640xbf16>
    %c0_5 = arith.constant 0 : index
    %c0_6 = arith.constant 0 : index
    %8 = vector.load %arg2[%c0_5, %c0_6] : memref<640x512xbf16, #tpu.memory_space<vmem>>, vector<640x512xbf16>
    %cst_7 = arith.constant dense<0.000000e+00> : vector<56x512xf32>
    %9 = tpu.matmul %7, %8, %cst_7 {dimension_numbers = #tpu.dot_dimension_numbers<[1], [0], [0], [1], [0, 0, 1, 1], [], []>} : vector<56x640xbf16>, vector<640x512xbf16>, vector<56x512xf32> -> vector<56x512xf32>
    %10 = vector.extract_strided_slice %9 {offsets = [0, 0], sizes = [56, 256], strides = [1, 1]} : vector<56x512xf32> to vector<56x256xf32>
    %11 = vector.extract_strided_slice %9 {offsets = [0, 256], sizes = [56, 256], strides = [1, 1]} : vector<56x512xf32> to vector<56x256xf32>
    %12 = arith.maximumf %10, %11 : vector<56x256xf32>
    %c56_8 = arith.constant 56 : index
    %c0_9 = arith.constant 0 : index
    %13 = vector.load %arg1[%c56_8, %c0_9] : memref<224x640xbf16, #tpu.memory_space<vmem>>, vector<56x640xbf16>
    %c0_10 = arith.constant 0 : index
    %c0_11 = arith.constant 0 : index
    %14 = vector.load %arg2[%c0_10, %c0_11] : memref<640x512xbf16, #tpu.memory_space<vmem>>, vector<640x512xbf16>
    %cst_12 = arith.constant dense<0.000000e+00> : vector<56x512xf32>
    %15 = tpu.matmul %13, %14, %cst_12 {dimension_numbers = #tpu.dot_dimension_numbers<[1], [0], [0], [1], [0, 0, 1, 1], [], []>} : vector<56x640xbf16>, vector<640x512xbf16>, vector<56x512xf32> -> vector<56x512xf32>
    %16 = vector.extract_strided_slice %15 {offsets = [0, 0], sizes = [56, 256], strides = [1, 1]} : vector<56x512xf32> to vector<56x256xf32>
    %17 = vector.extract_strided_slice %15 {offsets = [0, 256], sizes = [56, 256], strides = [1, 1]} : vector<56x512xf32> to vector<56x256xf32>
    %18 = arith.maximumf %16, %17 : vector<56x256xf32>
    %19 = arith.maximumf %12, %18 : vector<56x256xf32>
    %c0_13 = arith.constant 0 : index
    %c0_14 = arith.constant 0 : index
    %20 = vector.load %arg3[%c0_13, %c0_14] : memref<1x256xf32, #tpu.memory_space<vmem>>, vector<1x256xf32>
    %21 = vector.broadcast %20 : vector<1x256xf32> to vector<56x256xf32>
    %22 = arith.addf %19, %21 : vector<56x256xf32>
    %cst_15 = arith.constant 0.000000e+00 : f32
    %23 = vector.broadcast %cst_15 : f32 to vector<56x256xf32>
    %24 = arith.maximumf %22, %23 : vector<56x256xf32>
    %c0_16 = arith.constant 0 : index
    %c0_17 = arith.constant 0 : index
    %c0_18 = arith.constant 0 : index
    %25 = vector.load %arg10[%c0_16, %c0_17, %c0_18] : memref<2x64x256xf32, #tpu.memory_space<vmem>>, vector<1x56x256xf32>
    %26 = vector.shape_cast %25 : vector<1x56x256xf32> to vector<56x256xf32>
    %27 = vector.shape_cast %24 : vector<56x256xf32> to vector<1x56x256xf32>
    tpu.vector_store %arg10[%c0_16, %c0_17, %c0_18], %27 {strides = array<i32>} : memref<2x64x256xf32, #tpu.memory_space<vmem>>, vector<1x56x256xf32>,
    %c112 = arith.constant 112 : index
    %c0_19 = arith.constant 0 : index
    %28 = vector.load %arg1[%c112, %c0_19] : memref<224x640xbf16, #tpu.memory_space<vmem>>, vector<56x640xbf16>
    %c0_20 = arith.constant 0 : index
    %c0_21 = arith.constant 0 : index
    %29 = vector.load %arg2[%c0_20, %c0_21] : memref<640x512xbf16, #tpu.memory_space<vmem>>, vector<640x512xbf16>
    %cst_22 = arith.constant dense<0.000000e+00> : vector<56x512xf32>
    %30 = tpu.matmul %28, %29, %cst_22 {dimension_numbers = #tpu.dot_dimension_numbers<[1], [0], [0], [1], [0, 0, 1, 1], [], []>} : vector<56x640xbf16>, vector<640x512xbf16>, vector<56x512xf32> -> vector<56x512xf32>
    %31 = vector.extract_strided_slice %30 {offsets = [0, 0], sizes = [56, 256], strides = [1, 1]} : vector<56x512xf32> to vector<56x256xf32>
    %32 = vector.extract_strided_slice %30 {offsets = [0, 256], sizes = [56, 256], strides = [1, 1]} : vector<56x512xf32> to vector<56x256xf32>
    %33 = arith.maximumf %31, %32 : vector<56x256xf32>
    %c168 = arith.constant 168 : index
    %c0_23 = arith.constant 0 : index
    %34 = vector.load %arg1[%c168, %c0_23] : memref<224x640xbf16, #tpu.memory_space<vmem>>, vector<56x640xbf16>
    %c0_24 = arith.constant 0 : index
    %c0_25 = arith.constant 0 : index
    %35 = vector.load %arg2[%c0_24, %c0_25] : memref<640x512xbf16, #tpu.memory_space<vmem>>, vector<640x512xbf16>
    %cst_26 = arith.constant dense<0.000000e+00> : vector<56x512xf32>
    %36 = tpu.matmul %34, %35, %cst_26 {dimension_numbers = #tpu.dot_dimension_numbers<[1], [0], [0], [1], [0, 0, 1, 1], [], []>} : vector<56x640xbf16>, vector<640x512xbf16>, vector<56x512xf32> -> vector<56x512xf32>
    %37 = vector.extract_strided_slice %36 {offsets = [0, 0], sizes = [56, 256], strides = [1, 1]} : vector<56x512xf32> to vector<56x256xf32>
    %38 = vector.extract_strided_slice %36 {offsets = [0, 256], sizes = [56, 256], strides = [1, 1]} : vector<56x512xf32> to vector<56x256xf32>
    %39 = arith.maximumf %37, %38 : vector<56x256xf32>
    %40 = arith.maximumf %33, %39 : vector<56x256xf32>
    %c0_27 = arith.constant 0 : index
    %c0_28 = arith.constant 0 : index
    %41 = vector.load %arg3[%c0_27, %c0_28] : memref<1x256xf32, #tpu.memory_space<vmem>>, vector<1x256xf32>
    %42 = vector.broadcast %41 : vector<1x256xf32> to vector<56x256xf32>
    %43 = arith.addf %40, %42 : vector<56x256xf32>
    %cst_29 = arith.constant 0.000000e+00 : f32
    %44 = vector.broadcast %cst_29 : f32 to vector<56x256xf32>
    %45 = arith.maximumf %43, %44 : vector<56x256xf32>
    %c1_30 = arith.constant 1 : index
    %c0_31 = arith.constant 0 : index
    %c0_32 = arith.constant 0 : index
    %46 = vector.load %arg10[%c1_30, %c0_31, %c0_32] : memref<2x64x256xf32, #tpu.memory_space<vmem>>, vector<1x56x256xf32>
    %47 = vector.shape_cast %46 : vector<1x56x256xf32> to vector<56x256xf32>
    %48 = vector.shape_cast %45 : vector<56x256xf32> to vector<1x56x256xf32>
    tpu.vector_store %arg10[%c1_30, %c0_31, %c0_32], %48 {strides = array<i32>} : memref<2x64x256xf32, #tpu.memory_space<vmem>>, vector<1x56x256xf32>,
    %cst_33 = arith.constant 0.000000e+00 : f32
    %49 = vector.broadcast %cst_33 : f32 to vector<56x512xf32>
    %c0_34 = arith.constant 0 : index
    %c0_35 = arith.constant 0 : index
    %c0_36 = arith.constant 0 : index
    %50 = vector.load %arg10[%c0_34, %c0_35, %c0_36] : memref<2x64x256xf32, #tpu.memory_space<vmem>>, vector<1x56x256xf32>
    %51 = vector.shape_cast %50 : vector<1x56x256xf32> to vector<56x256xf32>
    %52 = arith.truncf %51 : vector<56x256xf32> to vector<56x256xbf16>
    %c0_37 = arith.constant 0 : index
    %c0_38 = arith.constant 0 : index
    %c0_39 = arith.constant 0 : index
    %53 = vector.load %arg4[%c0_37, %c0_38, %c0_39] : memref<5x256x512xbf16, #tpu.memory_space<vmem>>, vector<1x256x512xbf16>
    %54 = vector.shape_cast %53 : vector<1x256x512xbf16> to vector<256x512xbf16>
    %cst_40 = arith.constant dense<0.000000e+00> : vector<56x512xf32>
    %55 = tpu.matmul %52, %54, %cst_40 {dimension_numbers = #tpu.dot_dimension_numbers<[1], [0], [0], [1], [0, 0, 1, 1], [], []>} : vector<56x256xbf16>, vector<256x512xbf16>, vector<56x512xf32> -> vector<56x512xf32>
    %56 = arith.addf %49, %55 : vector<56x512xf32>
    %c1_41 = arith.constant 1 : index
    %c0_42 = arith.constant 0 : index
    %c0_43 = arith.constant 0 : index
    %57 = vector.load %arg10[%c1_41, %c0_42, %c0_43] : memref<2x64x256xf32, #tpu.memory_space<vmem>>, vector<1x56x256xf32>
    %58 = vector.shape_cast %57 : vector<1x56x256xf32> to vector<56x256xf32>
    %59 = arith.truncf %58 : vector<56x256xf32> to vector<56x256xbf16>
    %c1_44 = arith.constant 1 : index
    %c0_45 = arith.constant 0 : index
    %c0_46 = arith.constant 0 : index
    %60 = vector.load %arg4[%c1_44, %c0_45, %c0_46] : memref<5x256x512xbf16, #tpu.memory_space<vmem>>, vector<1x256x512xbf16>
    %61 = vector.shape_cast %60 : vector<1x256x512xbf16> to vector<256x512xbf16>
    %cst_47 = arith.constant dense<0.000000e+00> : vector<56x512xf32>
    %62 = tpu.matmul %59, %61, %cst_47 {dimension_numbers = #tpu.dot_dimension_numbers<[1], [0], [0], [1], [0, 0, 1, 1], [], []>} : vector<56x256xbf16>, vector<256x512xbf16>, vector<56x512xf32> -> vector<56x512xf32>
    %63 = arith.addf %56, %62 : vector<56x512xf32>
    %c0_48 = arith.constant 0 : index
    %c1_49 = arith.constant 1 : index
    %c0_50 = arith.constant 0 : index
    %64 = vector.load %arg10[%c0_48, %c1_49, %c0_50] : memref<2x64x256xf32, #tpu.memory_space<vmem>>, vector<1x56x256xf32>
    %65 = vector.shape_cast %64 : vector<1x56x256xf32> to vector<56x256xf32>
    %66 = arith.truncf %65 : vector<56x256xf32> to vector<56x256xbf16>
    %c2 = arith.constant 2 : index
    %c0_51 = arith.constant 0 : index
    %c0_52 = arith.constant 0 : index
    %67 = vector.load %arg4[%c2, %c0_51, %c0_52] : memref<5x256x512xbf16, #tpu.memory_space<vmem>>, vector<1x256x512xbf16>
    %68 = vector.shape_cast %67 : vector<1x256x512xbf16> to vector<256x512xbf16>
    %cst_53 = arith.constant dense<0.000000e+00> : vector<56x512xf32>
    %69 = tpu.matmul %66, %68, %cst_53 {dimension_numbers = #tpu.dot_dimension_numbers<[1], [0], [0], [1], [0, 0, 1, 1], [], []>} : vector<56x256xbf16>, vector<256x512xbf16>, vector<56x512xf32> -> vector<56x512xf32>
    %70 = arith.addf %63, %69 : vector<56x512xf32>
    %c1_54 = arith.constant 1 : index
    %c1_55 = arith.constant 1 : index
    %c0_56 = arith.constant 0 : index
    %71 = vector.load %arg10[%c1_54, %c1_55, %c0_56] : memref<2x64x256xf32, #tpu.memory_space<vmem>>, vector<1x56x256xf32>
    %72 = vector.shape_cast %71 : vector<1x56x256xf32> to vector<56x256xf32>
    %73 = arith.truncf %72 : vector<56x256xf32> to vector<56x256xbf16>
    %c3 = arith.constant 3 : index
    %c0_57 = arith.constant 0 : index
    %c0_58 = arith.constant 0 : index
    %74 = vector.load %arg4[%c3, %c0_57, %c0_58] : memref<5x256x512xbf16, #tpu.memory_space<vmem>>, vector<1x256x512xbf16>
    %75 = vector.shape_cast %74 : vector<1x256x512xbf16> to vector<256x512xbf16>
    %cst_59 = arith.constant dense<0.000000e+00> : vector<56x512xf32>
    %76 = tpu.matmul %73, %75, %cst_59 {dimension_numbers = #tpu.dot_dimension_numbers<[1], [0], [0], [1], [0, 0, 1, 1], [], []>} : vector<56x256xbf16>, vector<256x512xbf16>, vector<56x512xf32> -> vector<56x512xf32>
    %77 = arith.addf %70, %76 : vector<56x512xf32>
    %c0_60 = arith.constant 0 : index
    %c2_61 = arith.constant 2 : index
    %c0_62 = arith.constant 0 : index
    %78 = vector.load %arg10[%c0_60, %c2_61, %c0_62] : memref<2x64x256xf32, #tpu.memory_space<vmem>>, vector<1x56x256xf32>
    %79 = vector.shape_cast %78 : vector<1x56x256xf32> to vector<56x256xf32>
    %80 = arith.truncf %79 : vector<56x256xf32> to vector<56x256xbf16>
    %c4 = arith.constant 4 : index
    %c0_63 = arith.constant 0 : index
    %c0_64 = arith.constant 0 : index
    %81 = vector.load %arg4[%c4, %c0_63, %c0_64] : memref<5x256x512xbf16, #tpu.memory_space<vmem>>, vector<1x256x512xbf16>
    %82 = vector.shape_cast %81 : vector<1x256x512xbf16> to vector<256x512xbf16>
    %cst_65 = arith.constant dense<0.000000e+00> : vector<56x512xf32>
    %83 = tpu.matmul %80, %82, %cst_65 {dimension_numbers = #tpu.dot_dimension_numbers<[1], [0], [0], [1], [0, 0, 1, 1], [], []>} : vector<56x256xbf16>, vector<256x512xbf16>, vector<56x512xf32> -> vector<56x512xf32>
    %84 = arith.addf %77, %83 : vector<56x512xf32>
    %85 = vector.extract_strided_slice %84 {offsets = [0, 0], sizes = [56, 256], strides = [1, 1]} : vector<56x512xf32> to vector<56x256xf32>
    %86 = vector.extract_strided_slice %84 {offsets = [0, 256], sizes = [56, 256], strides = [1, 1]} : vector<56x512xf32> to vector<56x256xf32>
    %87 = arith.maximumf %85, %86 : vector<56x256xf32>
    %c0_66 = arith.constant 0 : index
    %c0_67 = arith.constant 0 : index
    %88 = vector.load %arg5[%c0_66, %c0_67] : memref<1x256xf32, #tpu.memory_space<vmem>>, vector<1x256xf32>
    %89 = vector.broadcast %88 : vector<1x256xf32> to vector<56x256xf32>
    %90 = arith.addf %87, %89 : vector<56x256xf32>
    %cst_68 = arith.constant 0.000000e+00 : f32
    %91 = vector.broadcast %cst_68 : f32 to vector<56x256xf32>
    %92 = arith.maximumf %90, %91 : vector<56x256xf32>
    %cst_69 = arith.constant 0.000000e+00 : f32
    %93 = vector.broadcast %cst_69 : f32 to vector<56x512xf32>
    %c1_70 = arith.constant 1 : index
    %c0_71 = arith.constant 0 : index
    %c0_72 = arith.constant 0 : index
    %94 = vector.load %arg10[%c1_70, %c0_71, %c0_72] : memref<2x64x256xf32, #tpu.memory_space<vmem>>, vector<1x56x256xf32>
    %95 = vector.shape_cast %94 : vector<1x56x256xf32> to vector<56x256xf32>
    %96 = arith.truncf %95 : vector<56x256xf32> to vector<56x256xbf16>
    %c0_73 = arith.constant 0 : index
    %c0_74 = arith.constant 0 : index
    %c0_75 = arith.constant 0 : index
    %97 = vector.load %arg4[%c0_73, %c0_74, %c0_75] : memref<5x256x512xbf16, #tpu.memory_space<vmem>>, vector<1x256x512xbf16>
    %98 = vector.shape_cast %97 : vector<1x256x512xbf16> to vector<256x512xbf16>
    %cst_76 = arith.constant dense<0.000000e+00> : vector<56x512xf32>
    %99 = tpu.matmul %96, %98, %cst_76 {dimension_numbers = #tpu.dot_dimension_numbers<[1], [0], [0], [1], [0, 0, 1, 1], [], []>} : vector<56x256xbf16>, vector<256x512xbf16>, vector<56x512xf32> -> vector<56x512xf32>
    %100 = arith.addf %93, %99 : vector<56x512xf32>
    %c0_77 = arith.constant 0 : index
    %c1_78 = arith.constant 1 : index
    %c0_79 = arith.constant 0 : index
    %101 = vector.load %arg10[%c0_77, %c1_78, %c0_79] : memref<2x64x256xf32, #tpu.memory_space<vmem>>, vector<1x56x256xf32>
    %102 = vector.shape_cast %101 : vector<1x56x256xf32> to vector<56x256xf32>
    %103 = arith.truncf %102 : vector<56x256xf32> to vector<56x256xbf16>
    %c1_80 = arith.constant 1 : index
    %c0_81 = arith.constant 0 : index
    %c0_82 = arith.constant 0 : index
    %104 = vector.load %arg4[%c1_80, %c0_81, %c0_82] : memref<5x256x512xbf16, #tpu.memory_space<vmem>>, vector<1x256x512xbf16>
    %105 = vector.shape_cast %104 : vector<1x256x512xbf16> to vector<256x512xbf16>
    %cst_83 = arith.constant dense<0.000000e+00> : vector<56x512xf32>
    %106 = tpu.matmul %103, %105, %cst_83 {dimension_numbers = #tpu.dot_dimension_numbers<[1], [0], [0], [1], [0, 0, 1, 1], [], []>} : vector<56x256xbf16>, vector<256x512xbf16>, vector<56x512xf32> -> vector<56x512xf32>
    %107 = arith.addf %100, %106 : vector<56x512xf32>
    %c1_84 = arith.constant 1 : index
    %c1_85 = arith.constant 1 : index
    %c0_86 = arith.constant 0 : index
    %108 = vector.load %arg10[%c1_84, %c1_85, %c0_86] : memref<2x64x256xf32, #tpu.memory_space<vmem>>, vector<1x56x256xf32>
    %109 = vector.shape_cast %108 : vector<1x56x256xf32> to vector<56x256xf32>
    %110 = arith.truncf %109 : vector<56x256xf32> to vector<56x256xbf16>
    %c2_87 = arith.constant 2 : index
    %c0_88 = arith.constant 0 : index
    %c0_89 = arith.constant 0 : index
    %111 = vector.load %arg4[%c2_87, %c0_88, %c0_89] : memref<5x256x512xbf16, #tpu.memory_space<vmem>>, vector<1x256x512xbf16>
    %112 = vector.shape_cast %111 : vector<1x256x512xbf16> to vector<256x512xbf16>
    %cst_90 = arith.constant dense<0.000000e+00> : vector<56x512xf32>
    %113 = tpu.matmul %110, %112, %cst_90 {dimension_numbers = #tpu.dot_dimension_numbers<[1], [0], [0], [1], [0, 0, 1, 1], [], []>} : vector<56x256xbf16>, vector<256x512xbf16>, vector<56x512xf32> -> vector<56x512xf32>
    %114 = arith.addf %107, %113 : vector<56x512xf32>
    %c0_91 = arith.constant 0 : index
    %c2_92 = arith.constant 2 : index
    %c0_93 = arith.constant 0 : index
    %115 = vector.load %arg10[%c0_91, %c2_92, %c0_93] : memref<2x64x256xf32, #tpu.memory_space<vmem>>, vector<1x56x256xf32>
    %116 = vector.shape_cast %115 : vector<1x56x256xf32> to vector<56x256xf32>
    %117 = arith.truncf %116 : vector<56x256xf32> to vector<56x256xbf16>
    %c3_94 = arith.constant 3 : index
    %c0_95 = arith.constant 0 : index
    %c0_96 = arith.constant 0 : index
    %118 = vector.load %arg4[%c3_94, %c0_95, %c0_96] : memref<5x256x512xbf16, #tpu.memory_space<vmem>>, vector<1x256x512xbf16>
    %119 = vector.shape_cast %118 : vector<1x256x512xbf16> to vector<256x512xbf16>
    %cst_97 = arith.constant dense<0.000000e+00> : vector<56x512xf32>
    %120 = tpu.matmul %117, %119, %cst_97 {dimension_numbers = #tpu.dot_dimension_numbers<[1], [0], [0], [1], [0, 0, 1, 1], [], []>} : vector<56x256xbf16>, vector<256x512xbf16>, vector<56x512xf32> -> vector<56x512xf32>
    %121 = arith.addf %114, %120 : vector<56x512xf32>
    %c1_98 = arith.constant 1 : index
    %c2_99 = arith.constant 2 : index
    %c0_100 = arith.constant 0 : index
    %122 = vector.load %arg10[%c1_98, %c2_99, %c0_100] : memref<2x64x256xf32, #tpu.memory_space<vmem>>, vector<1x56x256xf32>
    %123 = vector.shape_cast %122 : vector<1x56x256xf32> to vector<56x256xf32>
    %124 = arith.truncf %123 : vector<56x256xf32> to vector<56x256xbf16>
    %c4_101 = arith.constant 4 : index
    %c0_102 = arith.constant 0 : index
    %c0_103 = arith.constant 0 : index
    %125 = vector.load %arg4[%c4_101, %c0_102, %c0_103] : memref<5x256x512xbf16, #tpu.memory_space<vmem>>, vector<1x256x512xbf16>
    %126 = vector.shape_cast %125 : vector<1x256x512xbf16> to vector<256x512xbf16>
    %cst_104 = arith.constant dense<0.000000e+00> : vector<56x512xf32>
    %127 = tpu.matmul %124, %126, %cst_104 {dimension_numbers = #tpu.dot_dimension_numbers<[1], [0], [0], [1], [0, 0, 1, 1], [], []>} : vector<56x256xbf16>, vector<256x512xbf16>, vector<56x512xf32> -> vector<56x512xf32>
    %128 = arith.addf %121, %127 : vector<56x512xf32>
    %129 = vector.extract_strided_slice %128 {offsets = [0, 0], sizes = [56, 256], strides = [1, 1]} : vector<56x512xf32> to vector<56x256xf32>
    %130 = vector.extract_strided_slice %128 {offsets = [0, 256], sizes = [56, 256], strides = [1, 1]} : vector<56x512xf32> to vector<56x256xf32>
    %131 = arith.maximumf %129, %130 : vector<56x256xf32>
    %c0_105 = arith.constant 0 : index
    %c0_106 = arith.constant 0 : index
    %132 = vector.load %arg5[%c0_105, %c0_106] : memref<1x256xf32, #tpu.memory_space<vmem>>, vector<1x256xf32>
    %133 = vector.broadcast %132 : vector<1x256xf32> to vector<56x256xf32>
    %134 = arith.addf %131, %133 : vector<56x256xf32>
    %cst_107 = arith.constant 0.000000e+00 : f32
    %135 = vector.broadcast %cst_107 : f32 to vector<56x256xf32>
    %136 = arith.maximumf %134, %135 : vector<56x256xf32>
    %137 = arith.maximumf %92, %136 : vector<56x256xf32>
    %138 = arith.truncf %137 : vector<56x256xf32> to vector<56x256xbf16>
    %c0_108 = arith.constant 0 : index
    %c0_109 = arith.constant 0 : index
    %139 = vector.load %arg6[%c0_108, %c0_109] : memref<256x128xbf16, #tpu.memory_space<vmem>>, vector<256x128xbf16>
    %cst_110 = arith.constant dense<0.000000e+00> : vector<56x128xf32>
    %140 = tpu.matmul %138, %139, %cst_110 {dimension_numbers = #tpu.dot_dimension_numbers<[1], [0], [0], [1], [0, 0, 1, 1], [], []>} : vector<56x256xbf16>, vector<256x128xbf16>, vector<56x128xf32> -> vector<56x128xf32>
    %c0_111 = arith.constant 0 : index
    %c0_112 = arith.constant 0 : index
    %141 = vector.load %arg7[%c0_111, %c0_112] : memref<8x56xf32, #tpu.memory_space<vmem>>, vector<8x56xf32>
    %cst_113 = arith.constant dense<0.000000e+00> : vector<8x128xf32>
    %142 = tpu.matmul %141, %140, %cst_113 {dimension_numbers = #tpu.dot_dimension_numbers<[1], [0], [0], [1], [0, 0, 1, 1], [], []>} : vector<8x56xf32>, vector<56x128xf32>, vector<8x128xf32> -> vector<8x128xf32>
    %c0_114 = arith.constant 0 : index
    %c0_115 = arith.constant 0 : index
    %143 = vector.load %arg8[%c0_114, %c0_115] : memref<1x128xf32, #tpu.memory_space<vmem>>, vector<1x128xf32>
    %144 = vector.broadcast %143 : vector<1x128xf32> to vector<8x128xf32>
    %145 = arith.addf %142, %144 : vector<8x128xf32>
    %c0_116 = arith.constant 0 : index
    %c0_117 = arith.constant 0 : index
    %146 = vector.load %arg9[%c0_116, %c0_117] : memref<8x128xf32, #tpu.memory_space<vmem>>, vector<8x128xf32>
    tpu.vector_store %arg9[%c0_116, %c0_117], %145 {strides = array<i32>} : memref<8x128xf32, #tpu.memory_space<vmem>>, vector<8x128xf32>,
    return
  }
  func.func @transform_0(%arg0: i32) -> (i32, i32) {
    %c0_i32 = arith.constant 0 : i32
    %c0_i32_0 = arith.constant 0 : i32
    return %arg0, %c0_i32 : i32, i32
  }
  func.func @transform_1(%arg0: i32) -> (i32, i32) {
    %c0_i32 = arith.constant 0 : i32
    %c0_i32_0 = arith.constant 0 : i32
    %c0_i32_1 = arith.constant 0 : i32
    return %c0_i32, %c0_i32_0 : i32, i32
  }
  func.func @transform_2(%arg0: i32) -> (i32, i32) {
    %c0_i32 = arith.constant 0 : i32
    %c0_i32_0 = arith.constant 0 : i32
    %c0_i32_1 = arith.constant 0 : i32
    return %c0_i32, %c0_i32_0 : i32, i32
  }
  func.func @transform_3(%arg0: i32) -> (i32, i32, i32) {
    %c0_i32 = arith.constant 0 : i32
    %c0_i32_0 = arith.constant 0 : i32
    %c0_i32_1 = arith.constant 0 : i32
    %c0_i32_2 = arith.constant 0 : i32
    return %c0_i32, %c0_i32_0, %c0_i32_1 : i32, i32, i32
  }
  func.func @transform_4(%arg0: i32) -> (i32, i32) {
    %c0_i32 = arith.constant 0 : i32
    %c0_i32_0 = arith.constant 0 : i32
    %c0_i32_1 = arith.constant 0 : i32
    return %c0_i32, %c0_i32_0 : i32, i32
  }
  func.func @transform_5(%arg0: i32) -> (i32, i32) {
    %c0_i32 = arith.constant 0 : i32
    %c0_i32_0 = arith.constant 0 : i32
    %c0_i32_1 = arith.constant 0 : i32
    return %c0_i32, %c0_i32_0 : i32, i32
  }
  func.func @transform_6(%arg0: i32) -> (i32, i32) {
    %c0_i32 = arith.constant 0 : i32
    %c0_i32_0 = arith.constant 0 : i32
    %c0_i32_1 = arith.constant 0 : i32
    return %c0_i32, %c0_i32_0 : i32, i32
  }
  func.func @transform_7(%arg0: i32) -> (i32, i32) {
    %c0_i32 = arith.constant 0 : i32
    %c0_i32_0 = arith.constant 0 : i32
    %c0_i32_1 = arith.constant 0 : i32
    return %c0_i32, %c0_i32_0 : i32, i32
  }
  func.func @transform_8(%arg0: i32) -> (i32, i32) {
    %c0_i32 = arith.constant 0 : i32
    %c0_i32_0 = arith.constant 0 : i32
    return %arg0, %c0_i32 : i32, i32
  }
}

</mosaic_0001>

<llo_original>
// kernel: cnn_net_aap_forward.1
$region0: #{cnn_net_aap_forward.1}
  #allocation0 [shape = 'u32[]', space=smem, size = 0x4, offset = 0x4, fixed_abs, tag = 'smem constant byte address 0x4 - core index']
  #allocation1 [shape = 'u32[72,128]{1,0:T(1,128)}', space=vmem, size = 0x9000, scoped, tag = 'internal scratch']
  #allocation2 [shape = 'f32[2,64,256]{2,1,0:T(8,128)}', space=vmem, size = 0x20000, scoped, tag = 'scratch operand']
  %s0 = inlined_call_operand.vmem [shape: bf16[448,640], index: 0, kind: input, shape index: {}]
  %s1 = inlined_call_operand.vmem [shape: bf16[640,512], index: 1, kind: input, shape index: {}]
  %s2 = inlined_call_operand.vmem [shape: f32[1,256], index: 2, kind: input, shape index: {}]
  %s3 = inlined_call_operand.vmem [shape: bf16[5,256,512], index: 3, kind: input, shape index: {}]
  %s4 = inlined_call_operand.vmem [shape: f32[1,256], index: 4, kind: input, shape index: {}]
  %s5 = inlined_call_operand.vmem [shape: bf16[256,128], index: 5, kind: input, shape index: {}]
  %s6 = inlined_call_operand.vmem [shape: f32[8,56], index: 6, kind: input, shape index: {}]
  %s7 = inlined_call_operand.vmem [shape: f32[1,128], index: 7, kind: input, shape index: {}]
  %s8 = inlined_call_operand.hbm [shape: f32[16,128], index: 8, kind: output, shape index: {}]
  %s9 = sld [smem:[#allocation0]]
  $region65: #{cnn_net_aap_forward.1} parent=0
    _
  %s11 = ssub.s32 1, %s9
  %s12 = scalar_select 0, %s11, %s9
  $region1: #{cnn_net_aap_forward.1} parent=0
    #allocation3 [shape = 'u8[8192]{0}', space=vmem, size = 0x2000, scoped, tag = 'output window, operand 0']
    #allocation4 [shape = 's32[2]{0}', space=sflag, size = 0x8, scoped, tag = 'scoped memory for cnn_net_aap_forward.1']
    %13 = vsyncpa [#allocation4], 0
    %s14 = scalar_lea.sflag [#allocation4], 1
    %15 = vsyncpa %s14, 0
    loop: start=0, step=1, limit=4
    $region2: #{cnn_net_aap_forward.1} parent=1 // loop_pre_header
      _
    $region3: #{cnn_net_aap_forward.1} parent=1 // loop_header
      %s17 = sphi 0, %s21
      %p18 = scmp.ge.s32.totalorder %s17, 4
      %s27 = sphi 0, %s29
      %s30 = sphi 0, %s27
      %s31 = sphi 0, %s30
      %s47 = sphi 0, %s31
      %s51 = sphi 0, %s51
      %s53 = sphi 0, %s51
      %s54 = sphi 0, %s53
      %s68 = sphi 0, %s54
      %s72 = sphi 0, %s72
      %s74 = sphi 0, %s72
      %s75 = sphi 0, %s74
      %s89 = sphi 0, %s75
      %s93 = sphi 0, %s93
      %s95 = sphi 0, %s93
      %s96 = sphi 0, %s95
      %s110 = sphi 0, %s96
      %s114 = sphi 0, %s114
      %s116 = sphi 0, %s114
      %s117 = sphi 0, %s116
      %s131 = sphi 0, %s117
      %s135 = sphi 0, %s135
      %s137 = sphi 0, %s135
      %s138 = sphi 0, %s137
      %s152 = sphi 0, %s138
      %s156 = sphi 0, %s156
      %s158 = sphi 0, %s156
      %s159 = sphi 0, %s158
      %s173 = sphi 0, %s159
      %s177 = sphi 0, %s177
      %s179 = sphi 0, %s177
      %s180 = sphi 0, %s179
      %s194 = sphi 0, %s180
      %s200 = sphi 0, %s202
      %s203 = sphi 0, %s200
      %s204 = sphi 0, %s203
      %s220 = sphi 0, %s204
    $region4: #{cnn_net_aap_forward.1} parent=1 // loop_header_branch
      %20 = sbr.rel (%p18) target = $region8
    $region5: #{cnn_net_aap_forward.1} parent=1 // loop_body
      %s22 = ssub.s32 %s17, 1
      %s23 = ssub.s32 %s17, 2
      %s24 = sadd.s32 %s17, 1
      %s25 = ssub.s32 %s17, %s24
      %p26 = scmp.eq.s32.totalorder %s25, 0
      %s28 = sadd.s32 %s27, 1
      %s29 = scalar_select %p26, %s27, %s28
      %p32 = pneg %p26
      %p33 = scmp.eq.s32.totalorder %s17, 1
      %p34 = por %p32, %p33
      %p35 = scmp.ne.s32.totalorder %s27, %s30
      %p36 = scmp.eq.s32.totalorder %s17, 0
      %p37 = por %p35, %p36
      %p38 = scmp.ne.s32.totalorder %s27, %s30
      %p39 = scmp.eq.s32.totalorder %s22, 1
      %p40 = por %p38, %p39
      %p41 = scmp.ne.s32.totalorder %s30, %s31
      %p42 = scmp.eq.s32.totalorder %s22, 0
      %p43 = por %p41, %p42
      %p44 = scmp.ne.s32.totalorder %s30, %s31
      %p45 = scmp.eq.s32.totalorder %s23, 1
      %p46 = por %p44, %p45
      %p48 = scmp.ne.s32.totalorder %s31, %s47
      %p49 = scmp.eq.s32.totalorder %s23, 0
      %p50 = por %p48, %p49
      %s52 = sadd.s32 %s51, 1
      %p55 = scmp.eq.s32.totalorder %s17, 1
      %p56 = scmp.ne.s32.totalorder %s51, %s53
      %p57 = scmp.eq.s32.totalorder %s17, 0
      %p58 = por %p56, %p57
      %p59 = scmp.ne.s32.totalorder %s51, %s53
      %p60 = scmp.eq.s32.totalorder %s22, 1
      %p61 = por %p59, %p60
      %p62 = scmp.ne.s32.totalorder %s53, %s54
      %p63 = scmp.eq.s32.totalorder %s22, 0
      %p64 = por %p62, %p63
      %p65 = scmp.ne.s32.totalorder %s53, %s54
      %p66 = scmp.eq.s32.totalorder %s23, 1
      %p67 = por %p65, %p66
      %p69 = scmp.ne.s32.totalorder %s54, %s68
      %p70 = scmp.eq.s32.totalorder %s23, 0
      %p71 = por %p69, %p70
      %s73 = sadd.s32 %s72, 1
      %p76 = scmp.eq.s32.totalorder %s17, 1
      %p77 = scmp.ne.s32.totalorder %s72, %s74
      %p78 = scmp.eq.s32.totalorder %s17, 0
      %p79 = por %p77, %p78
      %p80 = scmp.ne.s32.totalorder %s72, %s74
      %p81 = scmp.eq.s32.totalorder %s22, 1
      %p82 = por %p80, %p81
      %p83 = scmp.ne.s32.totalorder %s74, %s75
      %p84 = scmp.eq.s32.totalorder %s22, 0
      %p85 = por %p83, %p84
      %p86 = scmp.ne.s32.totalorder %s74, %s75
      %p87 = scmp.eq.s32.totalorder %s23, 1
      %p88 = por %p86, %p87
      %p90 = scmp.ne.s32.totalorder %s75, %s89
      %p91 = scmp.eq.s32.totalorder %s23, 0
      %p92 = por %p90, %p91
      %s94 = sadd.s32 %s93, 1
      %p97 = scmp.eq.s32.totalorder %s17, 1
      %p98 = scmp.ne.s32.totalorder %s93, %s95
      %p99 = scmp.eq.s32.totalorder %s17, 0
      %p100 = por %p98, %p99
      %p101 = scmp.ne.s32.totalorder %s93, %s95
      %p102 = scmp.eq.s32.totalorder %s22, 1
      %p103 = por %p101, %p102
      %p104 = scmp.ne.s32.totalorder %s95, %s96
      %p105 = scmp.eq.s32.totalorder %s22, 0
      %p106 = por %p104, %p105
      %p107 = scmp.ne.s32.totalorder %s95, %s96
      %p108 = scmp.eq.s32.totalorder %s23, 1
      %p109 = por %p107, %p108
      %p111 = scmp.ne.s32.totalorder %s96, %s110
      %p112 = scmp.eq.s32.totalorder %s23, 0
      %p113 = por %p111, %p112
      %s115 = sadd.s32 %s114, 1
      %p118 = scmp.eq.s32.totalorder %s17, 1
      %p119 = scmp.ne.s32.totalorder %s114, %s116
      %p120 = scmp.eq.s32.totalorder %s17, 0
      %p121 = por %p119, %p120
      %p122 = scmp.ne.s32.totalorder %s114, %s116
      %p123 = scmp.eq.s32.totalorder %s22, 1
      %p124 = por %p122, %p123
      %p125 = scmp.ne.s32.totalorder %s116, %s117
      %p126 = scmp.eq.s32.totalorder %s22, 0
      %p127 = por %p125, %p126
      %p128 = scmp.ne.s32.totalorder %s116, %s117
      %p129 = scmp.eq.s32.totalorder %s23, 1
      %p130 = por %p128, %p129
      %p132 = scmp.ne.s32.totalorder %s117, %s131
      %p133 = scmp.eq.s32.totalorder %s23, 0
      %p134 = por %p132, %p133
      %s136 = sadd.s32 %s135, 1
      %p139 = scmp.eq.s32.totalorder %s17, 1
      %p140 = scmp.ne.s32.totalorder %s135, %s137
      %p141 = scmp.eq.s32.totalorder %s17, 0
      %p142 = por %p140, %p141
      %p143 = scmp.ne.s32.totalorder %s135, %s137
      %p144 = scmp.eq.s32.totalorder %s22, 1
      %p145 = por %p143, %p144
      %p146 = scmp.ne.s32.totalorder %s137, %s138
      %p147 = scmp.eq.s32.totalorder %s22, 0
      %p148 = por %p146, %p147
      %p149 = scmp.ne.s32.totalorder %s137, %s138
      %p150 = scmp.eq.s32.totalorder %s23, 1
      %p151 = por %p149, %p150
      %p153 = scmp.ne.s32.totalorder %s138, %s152
      %p154 = scmp.eq.s32.totalorder %s23, 0
      %p155 = por %p153, %p154
      %s157 = sadd.s32 %s156, 1
      %p160 = scmp.eq.s32.totalorder %s17, 1
      %p161 = scmp.ne.s32.totalorder %s156, %s158
      %p162 = scmp.eq.s32.totalorder %s17, 0
      %p163 = por %p161, %p162
      %p164 = scmp.ne.s32.totalorder %s156, %s158
      %p165 = scmp.eq.s32.totalorder %s22, 1
      %p166 = por %p164, %p165
      %p167 = scmp.ne.s32.totalorder %s158, %s159
      %p168 = scmp.eq.s32.totalorder %s22, 0
      %p169 = por %p167, %p168
      %p170 = scmp.ne.s32.totalorder %s158, %s159
      %p171 = scmp.eq.s32.totalorder %s23, 1
      %p172 = por %p170, %p171
      %p174 = scmp.ne.s32.totalorder %s159, %s173
      %p175 = scmp.eq.s32.totalorder %s23, 0
      %p176 = por %p174, %p175
      %s178 = sadd.s32 %s177, 1
      %p181 = scmp.eq.s32.totalorder %s17, 1
      %p182 = scmp.ne.s32.totalorder %s177, %s179
      %p183 = scmp.eq.s32.totalorder %s17, 0
      %p184 = por %p182, %p183
      %p185 = scmp.ne.s32.totalorder %s177, %s179
      %p186 = scmp.eq.s32.totalorder %s22, 1
      %p187 = por %p185, %p186
      %p188 = scmp.ne.s32.totalorder %s179, %s180
      %p189 = scmp.eq.s32.totalorder %s22, 0
      %p190 = por %p188, %p189
      %p191 = scmp.ne.s32.totalorder %s179, %s180
      %p192 = scmp.eq.s32.totalorder %s23, 1
      %p193 = por %p191, %p192
      %p195 = scmp.ne.s32.totalorder %s180, %s194
      %p196 = scmp.eq.s32.totalorder %s23, 0
      %p197 = por %p195, %p196
      %s198 = ssub.s32 %s17, %s24
      %p199 = scmp.eq.s32.totalorder %s198, 0
      %s201 = sadd.s32 %s200, 1
      %s202 = scalar_select %p199, %s200, %s201
      %p205 = pneg %p199
      %p206 = scmp.eq.s32.totalorder %s17, 1
      %p207 = por %p205, %p206
      %p208 = scmp.ne.s32.totalorder %s200, %s203
      %p209 = scmp.eq.s32.totalorder %s17, 0
      %p210 = por %p208, %p209
      %p211 = scmp.ne.s32.totalorder %s200, %s203
      %p212 = scmp.eq.s32.totalorder %s22, 1
      %p213 = por %p211, %p212
      %p214 = scmp.ne.s32.totalorder %s203, %s204
      %p215 = scmp.eq.s32.totalorder %s22, 0
      %p216 = por %p214, %p215
      %p217 = scmp.ne.s32.totalorder %s203, %s204
      %p218 = scmp.eq.s32.totalorder %s23, 1
      %p219 = por %p217, %p218
      %p221 = scmp.ne.s32.totalorder %s204, %s220
      %p222 = scmp.eq.s32.totalorder %s23, 0
      %p223 = por %p221, %p222
      %p224 = scmp.le.s32.totalorder 1, %s17
      %p225 = scmp.lt.s32.totalorder %s17, 3
      %p226 = pnand %p224, %p225
      %p227 = pneg %p226
      // Predicated region
      $region9: #{cnn_net_aap_forward.1} parent=5 // pred_check
        _
      $region10: #{cnn_net_aap_forward.1} parent=5 // pred_check_branch
        %229 = sbr.rel (%p226) target = $region12
      $region11: #{cnn_net_aap_forward.1} parent=5 // pred_region
        %s230 = ssub.s32 %s17, 1
        // Predicated region
        $region13: #{cnn_net_aap_forward.1} parent=11 // pred_check
          %p231 = pneg %p64
        $region14: #{cnn_net_aap_forward.1} parent=11 // pred_check_branch
          %233 = sbr.rel (%p231) target = $region16
        $region15: #{cnn_net_aap_forward.1} parent=11 // pred_region
          _
        $region16: #{cnn_net_aap_forward.1} parent=11 // pred_fallthru
          _
        // Predicated region
        $region17: #{cnn_net_aap_forward.1} parent=11 // pred_check
          %p234 = pneg %p85
        $region18: #{cnn_net_aap_forward.1} parent=11 // pred_check_branch
          %236 = sbr.rel (%p234) target = $region20
        $region19: #{cnn_net_aap_forward.1} parent=11 // pred_region
          _
        $region20: #{cnn_net_aap_forward.1} parent=11 // pred_fallthru
          _
        // Predicated region
        $region21: #{cnn_net_aap_forward.1} parent=11 // pred_check
          %p237 = pneg %p106
        $region22: #{cnn_net_aap_forward.1} parent=11 // pred_check_branch
          %239 = sbr.rel (%p237) target = $region24
        $region23: #{cnn_net_aap_forward.1} parent=11 // pred_region
          _
        $region24: #{cnn_net_aap_forward.1} parent=11 // pred_fallthru
          _
        // Predicated region
        $region25: #{cnn_net_aap_forward.1} parent=11 // pred_check
          %p240 = pneg %p127
        $region26: #{cnn_net_aap_forward.1} parent=11 // pred_check_branch
          %242 = sbr.rel (%p240) target = $region28
        $region27: #{cnn_net_aap_forward.1} parent=11 // pred_region
          _
        $region28: #{cnn_net_aap_forward.1} parent=11 // pred_fallthru
          _
        // Predicated region
        $region29: #{cnn_net_aap_forward.1} parent=11 // pred_check
          %p243 = pneg %p148
        $region30: #{cnn_net_aap_forward.1} parent=11 // pred_check_branch
          %245 = sbr.rel (%p243) target = $region32
        $region31: #{cnn_net_aap_forward.1} parent=11 // pred_region
          _
        $region32: #{cnn_net_aap_forward.1} parent=11 // pred_fallthru
          _
        // Predicated region
        $region33: #{cnn_net_aap_forward.1} parent=11 // pred_check
          %p246 = pneg %p169
        $region34: #{cnn_net_aap_forward.1} parent=11 // pred_check_branch
          %248 = sbr.rel (%p246) target = $region36
        $region35: #{cnn_net_aap_forward.1} parent=11 // pred_region
          _
        $region36: #{cnn_net_aap_forward.1} parent=11 // pred_fallthru
          _
        // Predicated region
        $region37: #{cnn_net_aap_forward.1} parent=11 // pred_check
          %p249 = pneg %p190
        $region38: #{cnn_net_aap_forward.1} parent=11 // pred_check_branch
          %251 = sbr.rel (%p249) target = $region40
        $region39: #{cnn_net_aap_forward.1} parent=11 // pred_region
          _
        $region40: #{cnn_net_aap_forward.1} parent=11 // pred_fallthru
          _
      $region12: #{cnn_net_aap_forward.1} parent=5 // pred_fallthru
        _
      %p252 = scmp.lt.s32.totalorder %s17, 2
      // Predicated region
      $region41: #{cnn_net_aap_forward.1} parent=5 // pred_check
        %p253 = pneg %p252
      $region42: #{cnn_net_aap_forward.1} parent=5 // pred_check_branch
        %255 = sbr.rel (%p253) target = $region44
      $region43: #{cnn_net_aap_forward.1} parent=5 // pred_region
        // Predicated region
        $region45: #{cnn_net_aap_forward.1} parent=43 // pred_check
          %p256 = pneg %p37
        $region46: #{cnn_net_aap_forward.1} parent=43 // pred_check_branch
          %258 = sbr.rel (%p256) target = $region48
        $region47: #{cnn_net_aap_forward.1} parent=43 // pred_region
          %s259 = smul.u32 28, %s17
          %p260 = scmp.lt.s32.totalorder %s259, 55
          %s261 = scalar_select %p260, %s259, 55
          %s262 = smul.addr %s261, 5
          %s263 = smul.addr %s262, 4
          %s264 = scalar_lea.vmem %s0, %s263
          %s265 = smul.u32 28, %s17
        $region48: #{cnn_net_aap_forward.1} parent=43 // pred_fallthru
          _
      $region44: #{cnn_net_aap_forward.1} parent=5 // pred_fallthru
        _
      %p266 = scmp.le.s32.totalorder 1, %s17
      %p267 = scmp.lt.s32.totalorder %s17, 3
      %p268 = pnand %p266, %p267
      %p269 = pneg %p268
      // Predicated region
      $region49: #{cnn_net_aap_forward.1} parent=5 // pred_check
        _
      $region50: #{cnn_net_aap_forward.1} parent=5 // pred_check_branch
        %271 = sbr.rel (%p268) target = $region52
      $region51: #{cnn_net_aap_forward.1} parent=5 // pred_region
        %s272 = ssub.s32 %s17, 1
        %s273 = smul.u32 28, %s22
        %p274 = scmp.lt.s32.totalorder %s273, 55
        %s275 = scalar_select %p274, %s273, 55
        %s276 = smul.addr %s275, 5
        %s277 = smul.addr %s276, 4
        %s278 = scalar_lea.vmem %s0, %s277
        %p279 = pneg %p43
        %p280 = pneg %p40
        %p281 = pneg %p64
        %p282 = pneg %p61
        %p283 = pneg %p85
        %p284 = pneg %p82
        %p285 = pneg %p106
        %p286 = pneg %p103
        %p287 = pneg %p127
        %p288 = pneg %p124
        %p289 = pneg %p148
        %p290 = pneg %p145
        %p291 = pneg %p169
        %p292 = pneg %p166
        %p293 = pneg %p190
        %p294 = pneg %p187
        %p295 = pneg %p216
        %p296 = pneg %p213
        %s297 = sand.u32 %s203, 1
        %s298 = scalar_lea.sflag [#allocation4], %s297
        %s299 = sand.u32 %s203, 1
        %s300 = smul.addr %s299, 8
        %s301 = scalar_lea.vmem [#allocation3], %s300
        %s302 = smul.u32 28, %s22
        %p303 = scmp.lt.s32.totalorder %s302, 55
        %s304 = scalar_select %p303, %s302, 55
        %s305 = smul.addr %s304, 5
        %s306 = smul.addr %s305, 4
        %s307 = scalar_lea.vmem %s0, %s306
        %s308 = smul.u32 28, %s22
        %309 = vst [vmem:[#allocation2 + $0x70] sm:$0xff] 0.0
        %310 = vst [vmem:[#allocation2 + $0x78] sm:$0xff] 0.0
        %s311 = scalar_lea.vmem [#allocation2], 128
        %312 = vst [vmem:[%s311 + $0x70] sm:$0xff] 0.0
        %313 = vst [vmem:[%s311 + $0x78] sm:$0xff] 0.0
        %v314 = vld [vmem:[%s307] sm:$0xff]
        %v315 = vld [vmem:[%s307 + $0x8] sm:$0xff]
        %v316 = vld [vmem:[%s307 + $0x10] sm:$0xf]
        %v317 = vld [vmem:[%s307 + $0x14] sm:$0xff]
        %v318 = vld [vmem:[%s307 + $0x1c] sm:$0xff]
        %v319 = vld [vmem:[%s307 + $0x24] sm:$0xf]
        %v320 = vld [vmem:[%s307 + $0x28] sm:$0xff]
        %v321 = vld [vmem:[%s307 + $0x30] sm:$0xff]
        %v322 = vld [vmem:[%s307 + $0x38] sm:$0xf]
        %v323 = vld [vmem:[%s307 + $0x3c] sm:$0xff]
        %v324 = vld [vmem:[%s307 + $0x44] sm:$0xff]
        %v325 = vld [vmem:[%s307 + $0x4c] sm:$0xf]
        %v326 = vld [vmem:[%s307 + $0x50] sm:$0xff]
        %v327 = vld [vmem:[%s307 + $0x58] sm:$0xff]
        %v328 = vld [vmem:[%s307 + $0x60] sm:$0xf]
        %v329 = vld [vmem:[%s307 + $0x64] sm:$0xff]
        %v330 = vld [vmem:[%s307 + $0x6c] sm:$0xff]
        %v331 = vld [vmem:[%s307 + $0x74] sm:$0xf]
        %v332 = vld [vmem:[%s307 + $0x78] sm:$0xff]
        %v333 = vld [vmem:[%s307 + $0x80] sm:$0xff]
        %v334 = vld [vmem:[%s307 + $0x88] sm:$0xf]
        %v335 = vld [vmem:[%s1] sm:$0xff]
        %v336 = vld [vmem:[%s1 + $0x8] sm:$0xff]
        %v337 = vld [vmem:[%s1 + $0x10] sm:$0xff]
        %v338 = vld [vmem:[%s1 + $0x18] sm:$0xff]
        %v339 = vld [vmem:[%s1 + $0x20] sm:$0xff]
        %v340 = vld [vmem:[%s1 + $0x28] sm:$0xff]
        %v341 = vld [vmem:[%s1 + $0x30] sm:$0xff]
        %v342 = vld [vmem:[%s1 + $0x38] sm:$0xff]
        %v343 = vld [vmem:[%s1 + $0x40] sm:$0xff]
        %v344 = vld [vmem:[%s1 + $0x48] sm:$0xff]
        %v345 = vld [vmem:[%s1 + $0x50] sm:$0xff]
        %v346 = vld [vmem:[%s1 + $0x58] sm:$0xff]
        %v347 = vld [vmem:[%s1 + $0x60] sm:$0xff]
        %v348 = vld [vmem:[%s1 + $0x68] sm:$0xff]
        %v349 = vld [vmem:[%s1 + $0x70] sm:$0xff]
        %v350 = vld [vmem:[%s1 + $0x78] sm:$0xff]
        %v351 = vld [vmem:[%s1 + $0x80] sm:$0xff]
        %v352 = vld [vmem:[%s1 + $0x88] sm:$0xff]
        %v353 = vld [vmem:[%s1 + $0x90] sm:$0xff]
        %v354 = vld [vmem:[%s1 + $0x98] sm:$0xff]
        %v355 = vld [vmem:[%s1 + $0xa0] sm:$0xff]
        %v356 = vld [vmem:[%s1 + $0xa8] sm:$0xff]
        %v357 = vld [vmem:[%s1 + $0xb0] sm:$0xff]
        %v358 = vld [vmem:[%s1 + $0xb8] sm:$0xff]
        %v359 = vld [vmem:[%s1 + $0xc0] sm:$0xff]
        %v360 = vld [vmem:[%s1 + $0xc8] sm:$0xff]
        %v361 = vld [vmem:[%s1 + $0xd0] sm:$0xff]
        %v362 = vld [vmem:[%s1 + $0xd8] sm:$0xff]
        %v363 = vld [vmem:[%s1 + $0xe0] sm:$0xff]
        %v364 = vld [vmem:[%s1 + $0xe8] sm:$0xff]
        %v365 = vld [vmem:[%s1 + $0xf0] sm:$0xff]
        %v366 = vld [vmem:[%s1 + $0xf8] sm:$0xff]
        %v367 = vld [vmem:[%s1 + $0x100] sm:$0xff]
        %v368 = vld [vmem:[%s1 + $0x108] sm:$0xff]
        %v369 = vld [vmem:[%s1 + $0x110] sm:$0xff]
        %v370 = vld [vmem:[%s1 + $0x118] sm:$0xff]
        %v371 = vld [vmem:[%s1 + $0x120] sm:$0xff]
        %v372 = vld [vmem:[%s1 + $0x128] sm:$0xff]
        %v373 = vld [vmem:[%s1 + $0x130] sm:$0xff]
        %v374 = vld [vmem:[%s1 + $0x138] sm:$0xff]
        %v375 = vld [vmem:[%s1 + $0x140] sm:$0xff]
        %v376 = vld [vmem:[%s1 + $0x148] sm:$0xff]
        %v377 = vld [vmem:[%s1 + $0x150] sm:$0xff]
        %v378 = vld [vmem:[%s1 + $0x158] sm:$0xff]
        %v379 = vld [vmem:[%s1 + $0x160] sm:$0xff]
        %v380 = vld [vmem:[%s1 + $0x168] sm:$0xff]
        %v381 = vld [vmem:[%s1 + $0x170] sm:$0xff]
        %v382 = vld [vmem:[%s1 + $0x178] sm:$0xff]
        %v383 = vld [vmem:[%s1 + $0x180] sm:$0xff]
        %v384 = vld [vmem:[%s1 + $0x188] sm:$0xff]
        %v385 = vld [vmem:[%s1 + $0x190] sm:$0xff]
        %v386 = vld [vmem:[%s1 + $0x198] sm:$0xff]
        %v387 = vld [vmem:[%s1 + $0x1a0] sm:$0xff]
        %v388 = vld [vmem:[%s1 + $0x1a8] sm:$0xff]
        %v389 = vld [vmem:[%s1 + $0x1b0] sm:$0xff]
        %v390 = vld [vmem:[%s1 + $0x1b8] sm:$0xff]
        %v391 = vld [vmem:[%s1 + $0x1c0] sm:$0xff]
        %v392 = vld [vmem:[%s1 + $0x1c8] sm:$0xff]
        %v393 = vld [vmem:[%s1 + $0x1d0] sm:$0xff]
        %v394 = vld [vmem:[%s1 + $0x1d8] sm:$0xff]
        %v395 = vld [vmem:[%s1 + $0x1e0] sm:$0xff]
        %v396 = vld [vmem:[%s1 + $0x1e8] sm:$0xff]
        %v397 = vld [vmem:[%s1 + $0x1f0] sm:$0xff]
        %v398 = vld [vmem:[%s1 + $0x1f8] sm:$0xff]
        %v399 = vld [vmem:[%s1 + $0x200] sm:$0xff]
        %v400 = vld [vmem:[%s1 + $0x208] sm:$0xff]
        %v401 = vld [vmem:[%s1 + $0x210] sm:$0xff]
        %v402 = vld [vmem:[%s1 + $0x218] sm:$0xff]
        %v403 = vld [vmem:[%s1 + $0x220] sm:$0xff]
        %v404 = vld [vmem:[%s1 + $0x228] sm:$0xff]
        %v405 = vld [vmem:[%s1 + $0x230] sm:$0xff]
        %v406 = vld [vmem:[%s1 + $0x238] sm:$0xff]
        %v407 = vld [vmem:[%s1 + $0x240] sm:$0xff]
        %v408 = vld [vmem:[%s1 + $0x248] sm:$0xff]
        %v409 = vld [vmem:[%s1 + $0x250] sm:$0xff]
        %v410 = vld [vmem:[%s1 + $0x258] sm:$0xff]
        %v411 = vld [vmem:[%s1 + $0x260] sm:$0xff]
        %v412 = vld [vmem:[%s1 + $0x268] sm:$0xff]
        %v413 = vld [vmem:[%s1 + $0x270] sm:$0xff]
        %v414 = vld [vmem:[%s1 + $0x278] sm:$0xff]
        %v415 = vld [vmem:[%s1 + $0x280] sm:$0xff]
        %v416 = vld [vmem:[%s1 + $0x288] sm:$0xff]
        %v417 = vld [vmem:[%s1 + $0x290] sm:$0xff]
        %v418 = vld [vmem:[%s1 + $0x298] sm:$0xff]
        %v419 = vld [vmem:[%s1 + $0x2a0] sm:$0xff]
        %v420 = vld [vmem:[%s1 + $0x2a8] sm:$0xff]
        %v421 = vld [vmem:[%s1 + $0x2b0] sm:$0xff]
        %v422 = vld [vmem:[%s1 + $0x2b8] sm:$0xff]
        %v423 = vld [vmem:[%s1 + $0x2c0] sm:$0xff]
        %v424 = vld [vmem:[%s1 + $0x2c8] sm:$0xff]
        %v425 = vld [vmem:[%s1 + $0x2d0] sm:$0xff]
        %v426 = vld [vmem:[%s1 + $0x2d8] sm:$0xff]
        %v427 = vld [vmem:[%s1 + $0x2e0] sm:$0xff]
        %v428 = vld [vmem:[%s1 + $0x2e8] sm:$0xff]
        %v429 = vld [vmem:[%s1 + $0x2f0] sm:$0xff]
        %v430 = vld [vmem:[%s1 + $0x2f8] sm:$0xff]
        %v431 = vld [vmem:[%s1 + $0x300] sm:$0xff]
        %v432 = vld [vmem:[%s1 + $0x308] sm:$0xff]
        %v433 = vld [vmem:[%s1 + $0x310] sm:$0xff]
        %v434 = vld [vmem:[%s1 + $0x318] sm:$0xff]
        %v435 = vld [vmem:[%s1 + $0x320] sm:$0xff]
        %v436 = vld [vmem:[%s1 + $0x328] sm:$0xff]
        %v437 = vld [vmem:[%s1 + $0x330] sm:$0xff]
        %v438 = vld [vmem:[%s1 + $0x338] sm:$0xff]
        %v439 = vld [vmem:[%s1 + $0x340] sm:$0xff]
        %v440 = vld [vmem:[%s1 + $0x348] sm:$0xff]
        %v441 = vld [vmem:[%s1 + $0x350] sm:$0xff]
        %v442 = vld [vmem:[%s1 + $0x358] sm:$0xff]
        %v443 = vld [vmem:[%s1 + $0x360] sm:$0xff]
        %v444 = vld [vmem:[%s1 + $0x368] sm:$0xff]
        %v445 = vld [vmem:[%s1 + $0x370] sm:$0xff]
        %v446 = vld [vmem:[%s1 + $0x378] sm:$0xff]
        %v447 = vld [vmem:[%s1 + $0x380] sm:$0xff]
        %v448 = vld [vmem:[%s1 + $0x388] sm:$0xff]
        %v449 = vld [vmem:[%s1 + $0x390] sm:$0xff]
        %v450 = vld [vmem:[%s1 + $0x398] sm:$0xff]
        %v451 = vld [vmem:[%s1 + $0x3a0] sm:$0xff]
        %v452 = vld [vmem:[%s1 + $0x3a8] sm:$0xff]
        %v453 = vld [vmem:[%s1 + $0x3b0] sm:$0xff]
        %v454 = vld [vmem:[%s1 + $0x3b8] sm:$0xff]
        %v455 = vld [vmem:[%s1 + $0x3c0] sm:$0xff]
        %v456 = vld [vmem:[%s1 + $0x3c8] sm:$0xff]
        %v457 = vld [vmem:[%s1 + $0x3d0] sm:$0xff]
        %v458 = vld [vmem:[%s1 + $0x3d8] sm:$0xff]
        %v459 = vld [vmem:[%s1 + $0x3e0] sm:$0xff]
        %v460 = vld [vmem:[%s1 + $0x3e8] sm:$0xff]
        %v461 = vld [vmem:[%s1 + $0x3f0] sm:$0xff]
        %v462 = vld [vmem:[%s1 + $0x3f8] sm:$0xff]
        %v463 = vld [vmem:[%s1 + $0x400] sm:$0xff]
        %v464 = vld [vmem:[%s1 + $0x408] sm:$0xff]
        %v465 = vld [vmem:[%s1 + $0x410] sm:$0xff]
        %v466 = vld [vmem:[%s1 + $0x418] sm:$0xff]
        %v467 = vld [vmem:[%s1 + $0x420] sm:$0xff]
        %v468 = vld [vmem:[%s1 + $0x428] sm:$0xff]
        %v469 = vld [vmem:[%s1 + $0x430] sm:$0xff]
        %v470 = vld [vmem:[%s1 + $0x438] sm:$0xff]
        %v471 = vld [vmem:[%s1 + $0x440] sm:$0xff]
        %v472 = vld [vmem:[%s1 + $0x448] sm:$0xff]
        %v473 = vld [vmem:[%s1 + $0x450] sm:$0xff]
        %v474 = vld [vmem:[%s1 + $0x458] sm:$0xff]
        %v475 = vld [vmem:[%s1 + $0x460] sm:$0xff]
        %v476 = vld [vmem:[%s1 + $0x468] sm:$0xff]
        %v477 = vld [vmem:[%s1 + $0x470] sm:$0xff]
        %v478 = vld [vmem:[%s1 + $0x478] sm:$0xff]
        %v479 = vld [vmem:[%s1 + $0x480] sm:$0xff]
        %v480 = vld [vmem:[%s1 + $0x488] sm:$0xff]
        %v481 = vld [vmem:[%s1 + $0x490] sm:$0xff]
        %v482 = vld [vmem:[%s1 + $0x498] sm:$0xff]
        %v483 = vld [vmem:[%s1 + $0x4a0] sm:$0xff]
        %v484 = vld [vmem:[%s1 + $0x4a8] sm:$0xff]
        %v485 = vld [vmem:[%s1 + $0x4b0] sm:$0xff]
        %v486 = vld [vmem:[%s1 + $0x4b8] sm:$0xff]
        %v487 = vld [vmem:[%s1 + $0x4c0] sm:$0xff]
        %v488 = vld [vmem:[%s1 + $0x4c8] sm:$0xff]
        %v489 = vld [vmem:[%s1 + $0x4d0] sm:$0xff]
        %v490 = vld [vmem:[%s1 + $0x4d8] sm:$0xff]
        %v491 = vld [vmem:[%s1 + $0x4e0] sm:$0xff]
        %v492 = vld [vmem:[%s1 + $0x4e8] sm:$0xff]
        %v493 = vld [vmem:[%s1 + $0x4f0] sm:$0xff]
        %v494 = vld [vmem:[%s1 + $0x4f8] sm:$0xff]
        %v516 = vunpack.c.l.b16 %v314
        %v517 = vunpack.c.h.b16 %v314
        %v518 = vunpack.c.l.b16 %v315
        %v519 = vunpack.c.h.b16 %v315
        %v520 = vunpack.c.l.b16 %v316
        %v521 = vunpack.c.l.b16 %v317
        %v522 = vunpack.c.h.b16 %v317
        %v523 = vunpack.c.l.b16 %v318
        %v524 = vunpack.c.h.b16 %v318
        %v525 = vunpack.c.l.b16 %v319
        %v526 = vunpack.c.l.b16 %v320
        %v527 = vunpack.c.h.b16 %v320
        %v528 = vunpack.c.l.b16 %v321
        %v529 = vunpack.c.h.b16 %v321
        %v530 = vunpack.c.l.b16 %v322
        %v531 = vunpack.c.l.b16 %v323
        %v532 = vunpack.c.h.b16 %v323
        %v533 = vunpack.c.l.b16 %v324
        %v534 = vunpack.c.h.b16 %v324
        %v535 = vunpack.c.l.b16 %v325
        %v536 = vunpack.c.l.b16 %v326
        %v537 = vunpack.c.h.b16 %v326
        %v538 = vunpack.c.l.b16 %v327
        %v539 = vunpack.c.h.b16 %v327
        %v540 = vunpack.c.l.b16 %v328
        %v541 = vunpack.c.l.b16 %v329
        %v542 = vunpack.c.h.b16 %v329
        %v543 = vunpack.c.l.b16 %v330
        %v544 = vunpack.c.h.b16 %v330
        %v545 = vunpack.c.l.b16 %v331
        %v546 = vunpack.c.l.b16 %v332
        %v547 = vunpack.c.h.b16 %v332
        %v548 = vunpack.c.l.b16 %v333
        %v549 = vunpack.c.h.b16 %v333
        %v550 = vunpack.c.l.b16 %v334
        %v551 = vpack.c.b16 %v521, %v516
        %v552 = vpack.c.b16 %v522, %v517
        %v553 = vpack.c.b16 %v523, %v518
        %v554 = vpack.c.b16 %v524, %v519
        %v555 = vpack.c.b16 %v525, %v520
        %v556 = vpack.c.b16 %v531, %v526
        %v557 = vpack.c.b16 %v532, %v527
        %v558 = vpack.c.b16 %v533, %v528
        %v559 = vpack.c.b16 %v534, %v529
        %v560 = vpack.c.b16 %v535, %v530
        %v561 = vpack.c.b16 %v541, %v536
        %v562 = vpack.c.b16 %v542, %v537
        %v563 = vpack.c.b16 %v543, %v538
        %v564 = vpack.c.b16 %v544, %v539
        %v565 = vpack.c.b16 %v545, %v540
        %v566 = vpack.c.b16 %v546, %v546
        %v567 = vpack.c.b16 %v547, %v547
        %v568 = vpack.c.b16 %v548, %v548
        %v569 = vpack.c.b16 %v549, %v549
        %v570 = vpack.c.b16 %v550, %v550
        %v751 = vunpack.c.l.b16 %v335
        %v752 = vunpack.c.h.b16 %v335
        %v753 = vunpack.c.l.b16 %v336
        %v754 = vunpack.c.h.b16 %v336
        %v755 = vunpack.c.l.b16 %v337
        %v756 = vunpack.c.h.b16 %v337
        %v757 = vunpack.c.l.b16 %v338
        %v758 = vunpack.c.h.b16 %v338
        %v759 = vunpack.c.l.b16 %v339
        %v760 = vunpack.c.h.b16 %v339
        %v761 = vunpack.c.l.b16 %v340
        %v762 = vunpack.c.h.b16 %v340
        %v763 = vunpack.c.l.b16 %v341
        %v764 = vunpack.c.h.b16 %v341
        %v765 = vunpack.c.l.b16 %v342
        %v766 = vunpack.c.h.b16 %v342
        %v767 = vunpack.c.l.b16 %v343
        %v768 = vunpack.c.h.b16 %v343
        %v769 = vunpack.c.l.b16 %v344
        %v770 = vunpack.c.h.b16 %v344
        %v771 = vunpack.c.l.b16 %v345
        %v772 = vunpack.c.h.b16 %v345
        %v773 = vunpack.c.l.b16 %v346
        %v774 = vunpack.c.h.b16 %v346
        %v775 = vunpack.c.l.b16 %v347
        %v776 = vunpack.c.h.b16 %v347
        %v777 = vunpack.c.l.b16 %v348
        %v778 = vunpack.c.h.b16 %v348
        %v779 = vunpack.c.l.b16 %v349
        %v780 = vunpack.c.h.b16 %v349
        %v781 = vunpack.c.l.b16 %v350
        %v782 = vunpack.c.h.b16 %v350
        %v783 = vunpack.c.l.b16 %v351
        %v784 = vunpack.c.h.b16 %v351
        %v785 = vunpack.c.l.b16 %v352
        %v786 = vunpack.c.h.b16 %v352
        %v787 = vunpack.c.l.b16 %v353
        %v788 = vunpack.c.h.b16 %v353
        %v789 = vunpack.c.l.b16 %v354
        %v790 = vunpack.c.h.b16 %v354
        %v791 = vunpack.c.l.b16 %v355
        %v792 = vunpack.c.h.b16 %v355
        %v793 = vunpack.c.l.b16 %v356
        %v794 = vunpack.c.h.b16 %v356
        %v795 = vunpack.c.l.b16 %v357
        %v796 = vunpack.c.h.b16 %v357
        %v797 = vunpack.c.l.b16 %v358
        %v798 = vunpack.c.h.b16 %v358
        %v799 = vunpack.c.l.b16 %v359
        %v800 = vunpack.c.h.b16 %v359
        %v801 = vunpack.c.l.b16 %v360
        %v802 = vunpack.c.h.b16 %v360
        %v803 = vunpack.c.l.b16 %v361
        %v804 = vunpack.c.h.b16 %v361
        %v805 = vunpack.c.l.b16 %v362
        %v806 = vunpack.c.h.b16 %v362
        %v807 = vunpack.c.l.b16 %v363
        %v808 = vunpack.c.h.b16 %v363
        %v809 = vunpack.c.l.b16 %v364
        %v810 = vunpack.c.h.b16 %v364
        %v811 = vunpack.c.l.b16 %v365
        %v812 = vunpack.c.h.b16 %v365
        %v813 = vunpack.c.l.b16 %v366
        %v814 = vunpack.c.h.b16 %v366
        %v815 = vunpack.c.l.b16 %v367
        %v816 = vunpack.c.h.b16 %v367
        %v817 = vunpack.c.l.b16 %v368
        %v818 = vunpack.c.h.b16 %v368
        %v819 = vunpack.c.l.b16 %v369
        %v820 = vunpack.c.h.b16 %v369
        %v821 = vunpack.c.l.b16 %v370
        %v822 = vunpack.c.h.b16 %v370
        %v823 = vunpack.c.l.b16 %v371
        %v824 = vunpack.c.h.b16 %v371
        %v825 = vunpack.c.l.b16 %v372
        %v826 = vunpack.c.h.b16 %v372
        %v827 = vunpack.c.l.b16 %v373
        %v828 = vunpack.c.h.b16 %v373
        %v829 = vunpack.c.l.b16 %v374
        %v830 = vunpack.c.h.b16 %v374
        %v831 = vunpack.c.l.b16 %v375
        %v832 = vunpack.c.h.b16 %v375
        %v833 = vunpack.c.l.b16 %v376
        %v834 = vunpack.c.h.b16 %v376
        %v835 = vunpack.c.l.b16 %v377
        %v836 = vunpack.c.h.b16 %v377
        %v837 = vunpack.c.l.b16 %v378
        %v838 = vunpack.c.h.b16 %v378
        %v839 = vunpack.c.l.b16 %v379
        %v840 = vunpack.c.h.b16 %v379
        %v841 = vunpack.c.l.b16 %v380
        %v842 = vunpack.c.h.b16 %v380
        %v843 = vunpack.c.l.b16 %v381
        %v844 = vunpack.c.h.b16 %v381
        %v845 = vunpack.c.l.b16 %v382
        %v846 = vunpack.c.h.b16 %v382
        %v847 = vunpack.c.l.b16 %v383
        %v848 = vunpack.c.h.b16 %v383
        %v849 = vunpack.c.l.b16 %v384
        %v850 = vunpack.c.h.b16 %v384
        %v851 = vunpack.c.l.b16 %v385
        %v852 = vunpack.c.h.b16 %v385
        %v853 = vunpack.c.l.b16 %v386
        %v854 = vunpack.c.h.b16 %v386
        %v855 = vunpack.c.l.b16 %v387
        %v856 = vunpack.c.h.b16 %v387
        %v857 = vunpack.c.l.b16 %v388
        %v858 = vunpack.c.h.b16 %v388
        %v859 = vunpack.c.l.b16 %v389
        %v860 = vunpack.c.h.b16 %v389
        %v861 = vunpack.c.l.b16 %v390
        %v862 = vunpack.c.h.b16 %v390
        %v863 = vunpack.c.l.b16 %v391
        %v864 = vunpack.c.h.b16 %v391
        %v865 = vunpack.c.l.b16 %v392
        %v866 = vunpack.c.h.b16 %v392
        %v867 = vunpack.c.l.b16 %v393
        %v868 = vunpack.c.h.b16 %v393
        %v869 = vunpack.c.l.b16 %v394
        %v870 = vunpack.c.h.b16 %v394
        %v871 = vunpack.c.l.b16 %v395
        %v872 = vunpack.c.h.b16 %v395
        %v873 = vunpack.c.l.b16 %v396
        %v874 = vunpack.c.h.b16 %v396
        %v875 = vunpack.c.l.b16 %v397
        %v876 = vunpack.c.h.b16 %v397
        %v877 = vunpack.c.l.b16 %v398
        %v878 = vunpack.c.h.b16 %v398
        %v879 = vunpack.c.l.b16 %v399
        %v880 = vunpack.c.h.b16 %v399
        %v881 = vunpack.c.l.b16 %v400
        %v882 = vunpack.c.h.b16 %v400
        %v883 = vunpack.c.l.b16 %v401
        %v884 = vunpack.c.h.b16 %v401
        %v885 = vunpack.c.l.b16 %v402
        %v886 = vunpack.c.h.b16 %v402
        %v887 = vunpack.c.l.b16 %v403
        %v888 = vunpack.c.h.b16 %v403
        %v889 = vunpack.c.l.b16 %v404
        %v890 = vunpack.c.h.b16 %v404
        %v891 = vunpack.c.l.b16 %v405
        %v892 = vunpack.c.h.b16 %v405
        %v893 = vunpack.c.l.b16 %v406
        %v894 = vunpack.c.h.b16 %v406
        %v895 = vunpack.c.l.b16 %v407
        %v896 = vunpack.c.h.b16 %v407
        %v897 = vunpack.c.l.b16 %v408
        %v898 = vunpack.c.h.b16 %v408
        %v899 = vunpack.c.l.b16 %v409
        %v900 = vunpack.c.h.b16 %v409
        %v901 = vunpack.c.l.b16 %v410
        %v902 = vunpack.c.h.b16 %v410
        %v903 = vunpack.c.l.b16 %v411
        %v904 = vunpack.c.h.b16 %v411
        %v905 = vunpack.c.l.b16 %v412
        %v906 = vunpack.c.h.b16 %v412
        %v907 = vunpack.c.l.b16 %v413
        %v908 = vunpack.c.h.b16 %v413
        %v909 = vunpack.c.l.b16 %v414
        %v910 = vunpack.c.h.b16 %v414
        %v911 = vunpack.c.l.b16 %v415
        %v912 = vunpack.c.h.b16 %v415
        %v913 = vunpack.c.l.b16 %v416
        %v914 = vunpack.c.h.b16 %v416
        %v915 = vunpack.c.l.b16 %v417
        %v916 = vunpack.c.h.b16 %v417
        %v917 = vunpack.c.l.b16 %v418
        %v918 = vunpack.c.h.b16 %v418
        %v919 = vunpack.c.l.b16 %v419
        %v920 = vunpack.c.h.b16 %v419
        %v921 = vunpack.c.l.b16 %v420
        %v922 = vunpack.c.h.b16 %v420
        %v923 = vunpack.c.l.b16 %v421
        %v924 = vunpack.c.h.b16 %v421
        %v925 = vunpack.c.l.b16 %v422
        %v926 = vunpack.c.h.b16 %v422
        %v927 = vunpack.c.l.b16 %v423
        %v928 = vunpack.c.h.b16 %v423
        %v929 = vunpack.c.l.b16 %v424
        %v930 = vunpack.c.h.b16 %v424
        %v931 = vunpack.c.l.b16 %v425
        %v932 = vunpack.c.h.b16 %v425
        %v933 = vunpack.c.l.b16 %v426
        %v934 = vunpack.c.h.b16 %v426
        %v935 = vunpack.c.l.b16 %v427
        %v936 = vunpack.c.h.b16 %v427
        %v937 = vunpack.c.l.b16 %v428
        %v938 = vunpack.c.h.b16 %v428
        %v939 = vunpack.c.l.b16 %v429
        %v940 = vunpack.c.h.b16 %v429
        %v941 = vunpack.c.l.b16 %v430
        %v942 = vunpack.c.h.b16 %v430
        %v943 = vunpack.c.l.b16 %v431
        %v944 = vunpack.c.h.b16 %v431
        %v945 = vunpack.c.l.b16 %v432
        %v946 = vunpack.c.h.b16 %v432
        %v947 = vunpack.c.l.b16 %v433
        %v948 = vunpack.c.h.b16 %v433
        %v949 = vunpack.c.l.b16 %v434
        %v950 = vunpack.c.h.b16 %v434
        %v951 = vunpack.c.l.b16 %v435
        %v952 = vunpack.c.h.b16 %v435
        %v953 = vunpack.c.l.b16 %v436
        %v954 = vunpack.c.h.b16 %v436
        %v955 = vunpack.c.l.b16 %v437
        %v956 = vunpack.c.h.b16 %v437
        %v957 = vunpack.c.l.b16 %v438
        %v958 = vunpack.c.h.b16 %v438
        %v959 = vunpack.c.l.b16 %v439
        %v960 = vunpack.c.h.b16 %v439
        %v961 = vunpack.c.l.b16 %v440
        %v962 = vunpack.c.h.b16 %v440
        %v963 = vunpack.c.l.b16 %v441
        %v964 = vunpack.c.h.b16 %v441
        %v965 = vunpack.c.l.b16 %v442
        %v966 = vunpack.c.h.b16 %v442
        %v967 = vunpack.c.l.b16 %v443
        %v968 = vunpack.c.h.b16 %v443
        %v969 = vunpack.c.l.b16 %v444
        %v970 = vunpack.c.h.b16 %v444
        %v971 = vunpack.c.l.b16 %v445
        %v972 = vunpack.c.h.b16 %v445
        %v973 = vunpack.c.l.b16 %v446
        %v974 = vunpack.c.h.b16 %v446
        %v975 = vunpack.c.l.b16 %v447
        %v976 = vunpack.c.h.b16 %v447
        %v977 = vunpack.c.l.b16 %v448
        %v978 = vunpack.c.h.b16 %v448
        %v979 = vunpack.c.l.b16 %v449
        %v980 = vunpack.c.h.b16 %v449
        %v981 = vunpack.c.l.b16 %v450
        %v982 = vunpack.c.h.b16 %v450
        %v983 = vunpack.c.l.b16 %v451
        %v984 = vunpack.c.h.b16 %v451
        %v985 = vunpack.c.l.b16 %v452
        %v986 = vunpack.c.h.b16 %v452
        %v987 = vunpack.c.l.b16 %v453
        %v988 = vunpack.c.h.b16 %v453
        %v989 = vunpack.c.l.b16 %v454
        %v990 = vunpack.c.h.b16 %v454
        %v991 = vunpack.c.l.b16 %v455
        %v992 = vunpack.c.h.b16 %v455
        %v993 = vunpack.c.l.b16 %v456
        %v994 = vunpack.c.h.b16 %v456
        %v995 = vunpack.c.l.b16 %v457
        %v996 = vunpack.c.h.b16 %v457
        %v997 = vunpack.c.l.b16 %v458
        %v998 = vunpack.c.h.b16 %v458
        %v999 = vunpack.c.l.b16 %v459
        %v1000 = vunpack.c.h.b16 %v459
        %v1001 = vunpack.c.l.b16 %v460
        %v1002 = vunpack.c.h.b16 %v460
        %v1003 = vunpack.c.l.b16 %v461
        %v1004 = vunpack.c.h.b16 %v461
        %v1005 = vunpack.c.l.b16 %v462
        %v1006 = vunpack.c.h.b16 %v462
        %v1007 = vunpack.c.l.b16 %v463
        %v1008 = vunpack.c.h.b16 %v463
        %v1009 = vunpack.c.l.b16 %v464
        %v1010 = vunpack.c.h.b16 %v464
        %v1011 = vunpack.c.l.b16 %v465
        %v1012 = vunpack.c.h.b16 %v465
        %v1013 = vunpack.c.l.b16 %v466
        %v1014 = vunpack.c.h.b16 %v466
        %v1015 = vunpack.c.l.b16 %v467
        %v1016 = vunpack.c.h.b16 %v467
        %v1017 = vunpack.c.l.b16 %v468
        %v1018 = vunpack.c.h.b16 %v468
        %v1019 = vunpack.c.l.b16 %v469
        %v1020 = vunpack.c.h.b16 %v469
        %v1021 = vunpack.c.l.b16 %v470
        %v1022 = vunpack.c.h.b16 %v470
        %v1023 = vunpack.c.l.b16 %v471
        %v1024 = vunpack.c.h.b16 %v471
        %v1025 = vunpack.c.l.b16 %v472
        %v1026 = vunpack.c.h.b16 %v472
        %v1027 = vunpack.c.l.b16 %v473
        %v1028 = vunpack.c.h.b16 %v473
        %v1029 = vunpack.c.l.b16 %v474
        %v1030 = vunpack.c.h.b16 %v474
        %v1031 = vunpack.c.l.b16 %v475
        %v1032 = vunpack.c.h.b16 %v475
        %v1033 = vunpack.c.l.b16 %v476
        %v1034 = vunpack.c.h.b16 %v476
        %v1035 = vunpack.c.l.b16 %v477
        %v1036 = vunpack.c.h.b16 %v477
        %v1037 = vunpack.c.l.b16 %v478
        %v1038 = vunpack.c.h.b16 %v478
        %v1039 = vunpack.c.l.b16 %v479
        %v1040 = vunpack.c.h.b16 %v479
        %v1041 = vunpack.c.l.b16 %v480
        %v1042 = vunpack.c.h.b16 %v480
        %v1043 = vunpack.c.l.b16 %v481
        %v1044 = vunpack.c.h.b16 %v481
        %v1045 = vunpack.c.l.b16 %v482
        %v1046 = vunpack.c.h.b16 %v482
        %v1047 = vunpack.c.l.b16 %v483
        %v1048 = vunpack.c.h.b16 %v483
        %v1049 = vunpack.c.l.b16 %v484
        %v1050 = vunpack.c.h.b16 %v484
        %v1051 = vunpack.c.l.b16 %v485
        %v1052 = vunpack.c.h.b16 %v485
        %v1053 = vunpack.c.l.b16 %v486
        %v1054 = vunpack.c.h.b16 %v486
        %v1055 = vunpack.c.l.b16 %v487
        %v1056 = vunpack.c.h.b16 %v487
        %v1057 = vunpack.c.l.b16 %v488
        %v1058 = vunpack.c.h.b16 %v488
        %v1059 = vunpack.c.l.b16 %v489
        %v1060 = vunpack.c.h.b16 %v489
        %v1061 = vunpack.c.l.b16 %v490
        %v1062 = vunpack.c.h.b16 %v490
        %v1063 = vunpack.c.l.b16 %v491
        %v1064 = vunpack.c.h.b16 %v491
        %v1065 = vunpack.c.l.b16 %v492
        %v1066 = vunpack.c.h.b16 %v492
        %v1067 = vunpack.c.l.b16 %v493
        %v1068 = vunpack.c.h.b16 %v493
        %v1069 = vunpack.c.l.b16 %v494
        %v1070 = vunpack.c.h.b16 %v494
        %v1071 = vpack.c.b16 %v755, %v751
        %v1072 = vpack.c.b16 %v756, %v752
        %v1073 = vpack.c.b16 %v757, %v753
        %v1074 = vpack.c.b16 %v758, %v754
        %v1075 = vpack.c.b16 %v763, %v759
        %v1076 = vpack.c.b16 %v764, %v760
        %v1077 = vpack.c.b16 %v765, %v761
        %v1078 = vpack.c.b16 %v766, %v762
        %v1079 = vpack.c.b16 %v771, %v767
        %v1080 = vpack.c.b16 %v772, %v768
        %v1081 = vpack.c.b16 %v773, %v769
        %v1082 = vpack.c.b16 %v774, %v770
        %v1083 = vpack.c.b16 %v779, %v775
        %v1084 = vpack.c.b16 %v780, %v776
        %v1085 = vpack.c.b16 %v781, %v777
        %v1086 = vpack.c.b16 %v782, %v778
        %v1087 = vpack.c.b16 %v787, %v783
        %v1088 = vpack.c.b16 %v788, %v784
        %v1089 = vpack.c.b16 %v789, %v785
        %v1090 = vpack.c.b16 %v790, %v786
        %v1091 = vpack.c.b16 %v795, %v791
        %v1092 = vpack.c.b16 %v796, %v792
        %v1093 = vpack.c.b16 %v797, %v793
        %v1094 = vpack.c.b16 %v798, %v794
        %v1095 = vpack.c.b16 %v803, %v799
        %v1096 = vpack.c.b16 %v804, %v800
        %v1097 = vpack.c.b16 %v805, %v801
        %v1098 = vpack.c.b16 %v806, %v802
        %v1099 = vpack.c.b16 %v811, %v807
        %v1100 = vpack.c.b16 %v812, %v808
        %v1101 = vpack.c.b16 %v813, %v809
        %v1102 = vpack.c.b16 %v814, %v810
        %v1103 = vpack.c.b16 %v819, %v815
        %v1104 = vpack.c.b16 %v820, %v816
        %v1105 = vpack.c.b16 %v821, %v817
        %v1106 = vpack.c.b16 %v822, %v818
        %v1107 = vpack.c.b16 %v827, %v823
        %v1108 = vpack.c.b16 %v828, %v824
        %v1109 = vpack.c.b16 %v829, %v825
        %v1110 = vpack.c.b16 %v830, %v826
        %v1111 = vpack.c.b16 %v835, %v831
        %v1112 = vpack.c.b16 %v836, %v832
        %v1113 = vpack.c.b16 %v837, %v833
        %v1114 = vpack.c.b16 %v838, %v834
        %v1115 = vpack.c.b16 %v843, %v839
        %v1116 = vpack.c.b16 %v844, %v840
        %v1117 = vpack.c.b16 %v845, %v841
        %v1118 = vpack.c.b16 %v846, %v842
        %v1119 = vpack.c.b16 %v851, %v847
        %v1120 = vpack.c.b16 %v852, %v848
        %v1121 = vpack.c.b16 %v853, %v849
        %v1122 = vpack.c.b16 %v854, %v850
        %v1123 = vpack.c.b16 %v859, %v855
        %v1124 = vpack.c.b16 %v860, %v856
        %v1125 = vpack.c.b16 %v861, %v857
        %v1126 = vpack.c.b16 %v862, %v858
        %v1127 = vpack.c.b16 %v867, %v863
        %v1128 = vpack.c.b16 %v868, %v864
        %v1129 = vpack.c.b16 %v869, %v865
        %v1130 = vpack.c.b16 %v870, %v866
        %v1131 = vpack.c.b16 %v875, %v871
        %v1132 = vpack.c.b16 %v876, %v872
        %v1133 = vpack.c.b16 %v877, %v873
        %v1134 = vpack.c.b16 %v878, %v874
        %v1135 = vpack.c.b16 %v883, %v879
        %v1136 = vpack.c.b16 %v884, %v880
        %v1137 = vpack.c.b16 %v885, %v881
        %v1138 = vpack.c.b16 %v886, %v882
        %v1139 = vpack.c.b16 %v891, %v887
        %v1140 = vpack.c.b16 %v892, %v888
        %v1141 = vpack.c.b16 %v893, %v889
        %v1142 = vpack.c.b16 %v894, %v890
        %v1143 = vpack.c.b16 %v899, %v895
        %v1144 = vpack.c.b16 %v900, %v896
        %v1145 = vpack.c.b16 %v901, %v897
        %v1146 = vpack.c.b16 %v902, %v898
        %v1147 = vpack.c.b16 %v907, %v903
        %v1148 = vpack.c.b16 %v908, %v904
        %v1149 = vpack.c.b16 %v909, %v905
        %v1150 = vpack.c.b16 %v910, %v906
        %v1151 = vpack.c.b16 %v915, %v911
        %v1152 = vpack.c.b16 %v916, %v912
        %v1153 = vpack.c.b16 %v917, %v913
        %v1154 = vpack.c.b16 %v918, %v914
        %v1155 = vpack.c.b16 %v923, %v919
        %v1156 = vpack.c.b16 %v924, %v920
        %v1157 = vpack.c.b16 %v925, %v921
        %v1158 = vpack.c.b16 %v926, %v922
        %v1159 = vpack.c.b16 %v931, %v927
        %v1160 = vpack.c.b16 %v932, %v928
        %v1161 = vpack.c.b16 %v933, %v929
        %v1162 = vpack.c.b16 %v934, %v930
        %v1163 = vpack.c.b16 %v939, %v935
        %v1164 = vpack.c.b16 %v940, %v936
        %v1165 = vpack.c.b16 %v941, %v937
        %v1166 = vpack.c.b16 %v942, %v938
        %v1167 = vpack.c.b16 %v947, %v943
        %v1168 = vpack.c.b16 %v948, %v944
        %v1169 = vpack.c.b16 %v949, %v945
        %v1170 = vpack.c.b16 %v950, %v946
        %v1171 = vpack.c.b16 %v955, %v951
        %v1172 = vpack.c.b16 %v956, %v952
        %v1173 = vpack.c.b16 %v957, %v953
        %v1174 = vpack.c.b16 %v958, %v954
        %v1175 = vpack.c.b16 %v963, %v959
        %v1176 = vpack.c.b16 %v964, %v960
        %v1177 = vpack.c.b16 %v965, %v961
        %v1178 = vpack.c.b16 %v966, %v962
        %v1179 = vpack.c.b16 %v971, %v967
        %v1180 = vpack.c.b16 %v972, %v968
        %v1181 = vpack.c.b16 %v973, %v969
        %v1182 = vpack.c.b16 %v974, %v970
        %v1183 = vpack.c.b16 %v979, %v975
        %v1184 = vpack.c.b16 %v980, %v976
        %v1185 = vpack.c.b16 %v981, %v977
        %v1186 = vpack.c.b16 %v982, %v978
        %v1187 = vpack.c.b16 %v987, %v983
        %v1188 = vpack.c.b16 %v988, %v984
        %v1189 = vpack.c.b16 %v989, %v985
        %v1190 = vpack.c.b16 %v990, %v986
        %v1191 = vpack.c.b16 %v995, %v991
        %v1192 = vpack.c.b16 %v996, %v992
        %v1193 = vpack.c.b16 %v997, %v993
        %v1194 = vpack.c.b16 %v998, %v994
        %v1195 = vpack.c.b16 %v1003, %v999
        %v1196 = vpack.c.b16 %v1004, %v1000
        %v1197 = vpack.c.b16 %v1005, %v1001
        %v1198 = vpack.c.b16 %v1006, %v1002
        %v1199 = vpack.c.b16 %v1011, %v1007
        %v1200 = vpack.c.b16 %v1012, %v1008
        %v1201 = vpack.c.b16 %v1013, %v1009
        %v1202 = vpack.c.b16 %v1014, %v1010
        %v1203 = vpack.c.b16 %v1019, %v1015
        %v1204 = vpack.c.b16 %v1020, %v1016
        %v1205 = vpack.c.b16 %v1021, %v1017
        %v1206 = vpack.c.b16 %v1022, %v1018
        %v1207 = vpack.c.b16 %v1027, %v1023
        %v1208 = vpack.c.b16 %v1028, %v1024
        %v1209 = vpack.c.b16 %v1029, %v1025
        %v1210 = vpack.c.b16 %v1030, %v1026
        %v1211 = vpack.c.b16 %v1035, %v1031
        %v1212 = vpack.c.b16 %v1036, %v1032
        %v1213 = vpack.c.b16 %v1037, %v1033
        %v1214 = vpack.c.b16 %v1038, %v1034
        %v1215 = vpack.c.b16 %v1043, %v1039
        %v1216 = vpack.c.b16 %v1044, %v1040
        %v1217 = vpack.c.b16 %v1045, %v1041
        %v1218 = vpack.c.b16 %v1046, %v1042
        %v1219 = vpack.c.b16 %v1051, %v1047
        %v1220 = vpack.c.b16 %v1052, %v1048
        %v1221 = vpack.c.b16 %v1053, %v1049
        %v1222 = vpack.c.b16 %v1054, %v1050
        %v1223 = vpack.c.b16 %v1059, %v1055
        %v1224 = vpack.c.b16 %v1060, %v1056
        %v1225 = vpack.c.b16 %v1061, %v1057
        %v1226 = vpack.c.b16 %v1062, %v1058
        %v1227 = vpack.c.b16 %v1067, %v1063
        %v1228 = vpack.c.b16 %v1068, %v1064
        %v1229 = vpack.c.b16 %v1069, %v1065
        %v1230 = vpack.c.b16 %v1070, %v1066
        %1391 = vmatpush.bf16.msra.mxu0 %v1099
        %1392 = vmatpush.bf16.msra.mxu0 %v1095
        %1393 = vmatpush.bf16.msra.mxu0 %v1091
        %1394 = vmatpush.bf16.msra.mxu0 %v1087
        %1395 = vmatpush.bf16.msra.mxu0 %v1083
        %1396 = vmatpush.bf16.msra.mxu0 %v1079
        %1397 = vmatpush.bf16.msra.mxu0 %v1075
        %1398 = vmatpush.bf16.msra.mxu0 %v1071
        %1399 = vmatmul.bf16.gmra.mxu0 %v551
        %v1400 = vpop.f32.mrf.mxu0
        %v1401 = vadd.f32 0.0, %v1400
        %v1402 = vpop.f32.mrf.mxu0
        %v1403 = vadd.f32 0.0, %v1402
        %1404 = vmatmul.bf16.gmra.mxu0 %v556
        %v1405 = vpop.f32.mrf.mxu0
        %v1406 = vadd.f32 0.0, %v1405
        %v1407 = vpop.f32.mrf.mxu0
        %v1408 = vadd.f32 0.0, %v1407
        %1409 = vmatmul.bf16.gmra.mxu0 %v561
        %v1410 = vpop.f32.mrf.mxu0
        %v1411 = vadd.f32 0.0, %v1410
        %v1412 = vpop.f32.mrf.mxu0
        %v1413 = vadd.f32 0.0, %v1412
        %1414 = vmatmul.bf16.gmra.mxu0 %v566
        %v1415 = vpop.f32.mrf.mxu0
        %v1416 = vadd.f32 0.0, %v1415
        %v1417 = vpop.f32.mrf.mxu0
        %1418 = vdwg.mxu0
        %1419 = vmatpush.bf16.msra.mxu0 %v1131
        %1420 = vmatpush.bf16.msra.mxu0 %v1127
        %1421 = vmatpush.bf16.msra.mxu0 %v1123
        %1422 = vmatpush.bf16.msra.mxu0 %v1119
        %1423 = vmatpush.bf16.msra.mxu0 %v1115
        %1424 = vmatpush.bf16.msra.mxu0 %v1111
        %1425 = vmatpush.bf16.msra.mxu0 %v1107
        %1426 = vmatpush.bf16.msra.mxu0 %v1103
        %1427 = vmatmul.bf16.gmra.mxu0 %v552
        %v1428 = vpop.f32.mrf.mxu0
        %v1429 = vadd.f32 %v1401, %v1428
        %v1430 = vpop.f32.mrf.mxu0
        %v1431 = vadd.f32 %v1403, %v1430
        %1432 = vmatmul.bf16.gmra.mxu0 %v557
        %v1433 = vpop.f32.mrf.mxu0
        %v1434 = vadd.f32 %v1406, %v1433
        %v1435 = vpop.f32.mrf.mxu0
        %v1436 = vadd.f32 %v1408, %v1435
        %1437 = vmatmul.bf16.gmra.mxu0 %v562
        %v1438 = vpop.f32.mrf.mxu0
        %v1439 = vadd.f32 %v1411, %v1438
        %v1440 = vpop.f32.mrf.mxu0
        %v1441 = vadd.f32 %v1413, %v1440
        %1442 = vmatmul.bf16.gmra.mxu0 %v567
        %v1443 = vpop.f32.mrf.mxu0
        %v1444 = vadd.f32 %v1416, %v1443
        %v1445 = vpop.f32.mrf.mxu0
        %1446 = vdwg.mxu0
        %1447 = vmatpush.bf16.msra.mxu0 %v1163
        %1448 = vmatpush.bf16.msra.mxu0 %v1159
        %1449 = vmatpush.bf16.msra.mxu0 %v1155
        %1450 = vmatpush.bf16.msra.mxu0 %v1151
        %1451 = vmatpush.bf16.msra.mxu0 %v1147
        %1452 = vmatpush.bf16.msra.mxu0 %v1143
        %1453 = vmatpush.bf16.msra.mxu0 %v1139
        %1454 = vmatpush.bf16.msra.mxu0 %v1135
        %1455 = vmatmul.bf16.gmra.mxu0 %v553
        %v1456 = vpop.f32.mrf.mxu0
        %v1457 = vadd.f32 %v1429, %v1456
        %v1458 = vpop.f32.mrf.mxu0
        %v1459 = vadd.f32 %v1431, %v1458
        %1460 = vmatmul.bf16.gmra.mxu0 %v558
        %v1461 = vpop.f32.mrf.mxu0
        %v1462 = vadd.f32 %v1434, %v1461
        %v1463 = vpop.f32.mrf.mxu0
        %v1464 = vadd.f32 %v1436, %v1463
        %1465 = vmatmul.bf16.gmra.mxu0 %v563
        %v1466 = vpop.f32.mrf.mxu0
        %v1467 = vadd.f32 %v1439, %v1466
        %v1468 = vpop.f32.mrf.mxu0
        %v1469 = vadd.f32 %v1441, %v1468
        %1470 = vmatmul.bf16.gmra.mxu0 %v568
        %v1471 = vpop.f32.mrf.mxu0
        %v1472 = vadd.f32 %v1444, %v1471
        %v1473 = vpop.f32.mrf.mxu0
        %1474 = vdwg.mxu0
        %1475 = vmatpush.bf16.msra.mxu0 %v1195
        %1476 = vmatpush.bf16.msra.mxu0 %v1191
        %1477 = vmatpush.bf16.msra.mxu0 %v1187
        %1478 = vmatpush.bf16.msra.mxu0 %v1183
        %1479 = vmatpush.bf16.msra.mxu0 %v1179
        %1480 = vmatpush.bf16.msra.mxu0 %v1175
        %1481 = vmatpush.bf16.msra.mxu0 %v1171
        %1482 = vmatpush.bf16.msra.mxu0 %v1167
        %1483 = vmatmul.bf16.gmra.mxu0 %v554
        %v1484 = vpop.f32.mrf.mxu0
        %v1485 = vadd.f32 %v1457, %v1484
        %v1486 = vpop.f32.mrf.mxu0
        %v1487 = vadd.f32 %v1459, %v1486
        %1488 = vmatmul.bf16.gmra.mxu0 %v559
        %v1489 = vpop.f32.mrf.mxu0
        %v1490 = vadd.f32 %v1462, %v1489
        %v1491 = vpop.f32.mrf.mxu0
        %v1492 = vadd.f32 %v1464, %v1491
        %1493 = vmatmul.bf16.gmra.mxu0 %v564
        %v1494 = vpop.f32.mrf.mxu0
        %v1495 = vadd.f32 %v1467, %v1494
        %v1496 = vpop.f32.mrf.mxu0
        %v1497 = vadd.f32 %v1469, %v1496
        %1498 = vmatmul.bf16.gmra.mxu0 %v569
        %v1499 = vpop.f32.mrf.mxu0
        %v1500 = vadd.f32 %v1472, %v1499
        %v1501 = vpop.f32.mrf.mxu0
        %1502 = vdwg.mxu0
        %1503 = vmatpush.bf16.msra.mxu0 %v1227
        %1504 = vmatpush.bf16.msra.mxu0 %v1223
        %1505 = vmatpush.bf16.msra.mxu0 %v1219
        %1506 = vmatpush.bf16.msra.mxu0 %v1215
        %1507 = vmatpush.bf16.msra.mxu0 %v1211
        %1508 = vmatpush.bf16.msra.mxu0 %v1207
        %1509 = vmatpush.bf16.msra.mxu0 %v1203
        %1510 = vmatpush.bf16.msra.mxu0 %v1199
        %1511 = vmatmul.bf16.gmra.mxu0 %v555
        %v1512 = vpop.f32.mrf.mxu0
        %v1513 = vadd.f32 %v1485, %v1512
        %v1514 = vpop.f32.mrf.mxu0
        %v1515 = vadd.f32 %v1487, %v1514
        %1516 = vmatmul.bf16.gmra.mxu0 %v560
        %v1517 = vpop.f32.mrf.mxu0
        %v1518 = vadd.f32 %v1490, %v1517
        %v1519 = vpop.f32.mrf.mxu0
        %v1520 = vadd.f32 %v1492, %v1519
        %1521 = vmatmul.bf16.gmra.mxu0 %v565
        %v1522 = vpop.f32.mrf.mxu0
        %v1523 = vadd.f32 %v1495, %v1522
        %v1524 = vpop.f32.mrf.mxu0
        %v1525 = vadd.f32 %v1497, %v1524
        %1526 = vmatmul.bf16.gmra.mxu0 %v570
        %v1527 = vpop.f32.mrf.mxu0
        %v1528 = vadd.f32 %v1500, %v1527
        %v1529 = vpop.f32.mrf.mxu0
        %1530 = vdwg.mxu0
        %1531 = vmatpush.bf16.msra.mxu0 %v1100
        %1532 = vmatpush.bf16.msra.mxu0 %v1096
        %1533 = vmatpush.bf16.msra.mxu0 %v1092
        %1534 = vmatpush.bf16.msra.mxu0 %v1088
        %1535 = vmatpush.bf16.msra.mxu0 %v1084
        %1536 = vmatpush.bf16.msra.mxu0 %v1080
        %1537 = vmatpush.bf16.msra.mxu0 %v1076
        %1538 = vmatpush.bf16.msra.mxu0 %v1072
        %1539 = vmatmul.bf16.gmra.mxu0 %v551
        %v1540 = vpop.f32.mrf.mxu0
        %v1541 = vadd.f32 0.0, %v1540
        %v1542 = vpop.f32.mrf.mxu0
        %v1543 = vadd.f32 0.0, %v1542
        %1544 = vmatmul.bf16.gmra.mxu0 %v556
        %v1545 = vpop.f32.mrf.mxu0
        %v1546 = vadd.f32 0.0, %v1545
        %v1547 = vpop.f32.mrf.mxu0
        %v1548 = vadd.f32 0.0, %v1547
        %1549 = vmatmul.bf16.gmra.mxu0 %v561
        %v1550 = vpop.f32.mrf.mxu0
        %v1551 = vadd.f32 0.0, %v1550
        %v1552 = vpop.f32.mrf.mxu0
        %v1553 = vadd.f32 0.0, %v1552
        %1554 = vmatmul.bf16.gmra.mxu0 %v566
        %v1555 = vpop.f32.mrf.mxu0
        %v1556 = vadd.f32 0.0, %v1555
        %v1557 = vpop.f32.mrf.mxu0
        %1558 = vdwg.mxu0
        %1559 = vmatpush.bf16.msra.mxu0 %v1132
        %1560 = vmatpush.bf16.msra.mxu0 %v1128
        %1561 = vmatpush.bf16.msra.mxu0 %v1124
        %1562 = vmatpush.bf16.msra.mxu0 %v1120
        %1563 = vmatpush.bf16.msra.mxu0 %v1116
        %1564 = vmatpush.bf16.msra.mxu0 %v1112
        %1565 = vmatpush.bf16.msra.mxu0 %v1108
        %1566 = vmatpush.bf16.msra.mxu0 %v1104
        %1567 = vmatmul.bf16.gmra.mxu0 %v552
        %v1568 = vpop.f32.mrf.mxu0
        %v1569 = vadd.f32 %v1541, %v1568
        %v1570 = vpop.f32.mrf.mxu0
        %v1571 = vadd.f32 %v1543, %v1570
        %1572 = vmatmul.bf16.gmra.mxu0 %v557
        %v1573 = vpop.f32.mrf.mxu0
        %v1574 = vadd.f32 %v1546, %v1573
        %v1575 = vpop.f32.mrf.mxu0
        %v1576 = vadd.f32 %v1548, %v1575
        %1577 = vmatmul.bf16.gmra.mxu0 %v562
        %v1578 = vpop.f32.mrf.mxu0
        %v1579 = vadd.f32 %v1551, %v1578
        %v1580 = vpop.f32.mrf.mxu0
        %v1581 = vadd.f32 %v1553, %v1580
        %1582 = vmatmul.bf16.gmra.mxu0 %v567
        %v1583 = vpop.f32.mrf.mxu0
        %v1584 = vadd.f32 %v1556, %v1583
        %v1585 = vpop.f32.mrf.mxu0
        %1586 = vdwg.mxu0
        %1587 = vmatpush.bf16.msra.mxu0 %v1164
        %1588 = vmatpush.bf16.msra.mxu0 %v1160
        %1589 = vmatpush.bf16.msra.mxu0 %v1156
        %1590 = vmatpush.bf16.msra.mxu0 %v1152
        %1591 = vmatpush.bf16.msra.mxu0 %v1148
        %1592 = vmatpush.bf16.msra.mxu0 %v1144
        %1593 = vmatpush.bf16.msra.mxu0 %v1140
        %1594 = vmatpush.bf16.msra.mxu0 %v1136
        %1595 = vmatmul.bf16.gmra.mxu0 %v553
        %v1596 = vpop.f32.mrf.mxu0
        %v1597 = vadd.f32 %v1569, %v1596
        %v1598 = vpop.f32.mrf.mxu0
        %v1599 = vadd.f32 %v1571, %v1598
        %1600 = vmatmul.bf16.gmra.mxu0 %v558
        %v1601 = vpop.f32.mrf.mxu0
        %v1602 = vadd.f32 %v1574, %v1601
        %v1603 = vpop.f32.mrf.mxu0
        %v1604 = vadd.f32 %v1576, %v1603
        %1605 = vmatmul.bf16.gmra.mxu0 %v563
        %v1606 = vpop.f32.mrf.mxu0
        %v1607 = vadd.f32 %v1579, %v1606
        %v1608 = vpop.f32.mrf.mxu0
        %v1609 = vadd.f32 %v1581, %v1608
        %1610 = vmatmul.bf16.gmra.mxu0 %v568
        %v1611 = vpop.f32.mrf.mxu0
        %v1612 = vadd.f32 %v1584, %v1611
        %v1613 = vpop.f32.mrf.mxu0
        %1614 = vdwg.mxu0
        %1615 = vmatpush.bf16.msra.mxu0 %v1196
        %1616 = vmatpush.bf16.msra.mxu0 %v1192
        %1617 = vmatpush.bf16.msra.mxu0 %v1188
        %1618 = vmatpush.bf16.msra.mxu0 %v1184
        %1619 = vmatpush.bf16.msra.mxu0 %v1180
        %1620 = vmatpush.bf16.msra.mxu0 %v1176
        %1621 = vmatpush.bf16.msra.mxu0 %v1172
        %1622 = vmatpush.bf16.msra.mxu0 %v1168
        %1623 = vmatmul.bf16.gmra.mxu0 %v554
        %v1624 = vpop.f32.mrf.mxu0
        %v1625 = vadd.f32 %v1597, %v1624
        %v1626 = vpop.f32.mrf.mxu0
        %v1627 = vadd.f32 %v1599, %v1626
        %1628 = vmatmul.bf16.gmra.mxu0 %v559
        %v1629 = vpop.f32.mrf.mxu0
        %v1630 = vadd.f32 %v1602, %v1629
        %v1631 = vpop.f32.mrf.mxu0
        %v1632 = vadd.f32 %v1604, %v1631
        %1633 = vmatmul.bf16.gmra.mxu0 %v564
        %v1634 = vpop.f32.mrf.mxu0
        %v1635 = vadd.f32 %v1607, %v1634
        %v1636 = vpop.f32.mrf.mxu0
        %v1637 = vadd.f32 %v1609, %v1636
        %1638 = vmatmul.bf16.gmra.mxu0 %v569
        %v1639 = vpop.f32.mrf.mxu0
        %v1640 = vadd.f32 %v1612, %v1639
        %v1641 = vpop.f32.mrf.mxu0
        %1642 = vdwg.mxu0
        %1643 = vmatpush.bf16.msra.mxu0 %v1228
        %1644 = vmatpush.bf16.msra.mxu0 %v1224
        %1645 = vmatpush.bf16.msra.mxu0 %v1220
        %1646 = vmatpush.bf16.msra.mxu0 %v1216
        %1647 = vmatpush.bf16.msra.mxu0 %v1212
        %1648 = vmatpush.bf16.msra.mxu0 %v1208
        %1649 = vmatpush.bf16.msra.mxu0 %v1204
        %1650 = vmatpush.bf16.msra.mxu0 %v1200
        %1651 = vmatmul.bf16.gmra.mxu0 %v555
        %v1652 = vpop.f32.mrf.mxu0
        %v1653 = vadd.f32 %v1625, %v1652
        %v1654 = vpop.f32.mrf.mxu0
        %v1655 = vadd.f32 %v1627, %v1654
        %1656 = vmatmul.bf16.gmra.mxu0 %v560
        %v1657 = vpop.f32.mrf.mxu0
        %v1658 = vadd.f32 %v1630, %v1657
        %v1659 = vpop.f32.mrf.mxu0
        %v1660 = vadd.f32 %v1632, %v1659
        %1661 = vmatmul.bf16.gmra.mxu0 %v565
        %v1662 = vpop.f32.mrf.mxu0
        %v1663 = vadd.f32 %v1635, %v1662
        %v1664 = vpop.f32.mrf.mxu0
        %v1665 = vadd.f32 %v1637, %v1664
        %1666 = vmatmul.bf16.gmra.mxu0 %v570
        %v1667 = vpop.f32.mrf.mxu0
        %v1668 = vadd.f32 %v1640, %v1667
        %v1669 = vpop.f32.mrf.mxu0
        %1670 = vdwg.mxu0
        %1671 = vmatpush.bf16.msra.mxu0 %v1101
        %1672 = vmatpush.bf16.msra.mxu0 %v1097
        %1673 = vmatpush.bf16.msra.mxu0 %v1093
        %1674 = vmatpush.bf16.msra.mxu0 %v1089
        %1675 = vmatpush.bf16.msra.mxu0 %v1085
        %1676 = vmatpush.bf16.msra.mxu0 %v1081
        %1677 = vmatpush.bf16.msra.mxu0 %v1077
        %1678 = vmatpush.bf16.msra.mxu0 %v1073
        %1679 = vmatmul.bf16.gmra.mxu0 %v551
        %v1680 = vpop.f32.mrf.mxu0
        %v1681 = vadd.f32 0.0, %v1680
        %v1682 = vpop.f32.mrf.mxu0
        %v1683 = vadd.f32 0.0, %v1682
        %1684 = vmatmul.bf16.gmra.mxu0 %v556
        %v1685 = vpop.f32.mrf.mxu0
        %v1686 = vadd.f32 0.0, %v1685
        %v1687 = vpop.f32.mrf.mxu0
        %v1688 = vadd.f32 0.0, %v1687
        %1689 = vmatmul.bf16.gmra.mxu0 %v561
        %v1690 = vpop.f32.mrf.mxu0
        %v1691 = vadd.f32 0.0, %v1690
        %v1692 = vpop.f32.mrf.mxu0
        %v1693 = vadd.f32 0.0, %v1692
        %1694 = vmatmul.bf16.gmra.mxu0 %v566
        %v1695 = vpop.f32.mrf.mxu0
        %v1696 = vadd.f32 0.0, %v1695
        %v1697 = vpop.f32.mrf.mxu0
        %1698 = vdwg.mxu0
        %1699 = vmatpush.bf16.msra.mxu0 %v1133
        %1700 = vmatpush.bf16.msra.mxu0 %v1129
        %1701 = vmatpush.bf16.msra.mxu0 %v1125
        %1702 = vmatpush.bf16.msra.mxu0 %v1121
        %1703 = vmatpush.bf16.msra.mxu0 %v1117
        %1704 = vmatpush.bf16.msra.mxu0 %v1113
        %1705 = vmatpush.bf16.msra.mxu0 %v1109
        %1706 = vmatpush.bf16.msra.mxu0 %v1105
        %1707 = vmatmul.bf16.gmra.mxu0 %v552
        %v1708 = vpop.f32.mrf.mxu0
        %v1709 = vadd.f32 %v1681, %v1708
        %v1710 = vpop.f32.mrf.mxu0
        %v1711 = vadd.f32 %v1683, %v1710
        %1712 = vmatmul.bf16.gmra.mxu0 %v557
        %v1713 = vpop.f32.mrf.mxu0
        %v1714 = vadd.f32 %v1686, %v1713
        %v1715 = vpop.f32.mrf.mxu0
        %v1716 = vadd.f32 %v1688, %v1715
        %1717 = vmatmul.bf16.gmra.mxu0 %v562
        %v1718 = vpop.f32.mrf.mxu0
        %v1719 = vadd.f32 %v1691, %v1718
        %v1720 = vpop.f32.mrf.mxu0
        %v1721 = vadd.f32 %v1693, %v1720
        %1722 = vmatmul.bf16.gmra.mxu0 %v567
        %v1723 = vpop.f32.mrf.mxu0
        %v1724 = vadd.f32 %v1696, %v1723
        %v1725 = vpop.f32.mrf.mxu0
        %1726 = vdwg.mxu0
        %1727 = vmatpush.bf16.msra.mxu0 %v1165
        %1728 = vmatpush.bf16.msra.mxu0 %v1161
        %1729 = vmatpush.bf16.msra.mxu0 %v1157
        %1730 = vmatpush.bf16.msra.mxu0 %v1153
        %1731 = vmatpush.bf16.msra.mxu0 %v1149
        %1732 = vmatpush.bf16.msra.mxu0 %v1145
        %1733 = vmatpush.bf16.msra.mxu0 %v1141
        %1734 = vmatpush.bf16.msra.mxu0 %v1137
        %1735 = vmatmul.bf16.gmra.mxu0 %v553
        %v1736 = vpop.f32.mrf.mxu0
        %v1737 = vadd.f32 %v1709, %v1736
        %v1738 = vpop.f32.mrf.mxu0
        %v1739 = vadd.f32 %v1711, %v1738
        %1740 = vmatmul.bf16.gmra.mxu0 %v558
        %v1741 = vpop.f32.mrf.mxu0
        %v1742 = vadd.f32 %v1714, %v1741
        %v1743 = vpop.f32.mrf.mxu0
        %v1744 = vadd.f32 %v1716, %v1743
        %1745 = vmatmul.bf16.gmra.mxu0 %v563
        %v1746 = vpop.f32.mrf.mxu0
        %v1747 = vadd.f32 %v1719, %v1746
        %v1748 = vpop.f32.mrf.mxu0
        %v1749 = vadd.f32 %v1721, %v1748
        %1750 = vmatmul.bf16.gmra.mxu0 %v568
        %v1751 = vpop.f32.mrf.mxu0
        %v1752 = vadd.f32 %v1724, %v1751
        %v1753 = vpop.f32.mrf.mxu0
        %1754 = vdwg.mxu0
        %1755 = vmatpush.bf16.msra.mxu0 %v1197
        %1756 = vmatpush.bf16.msra.mxu0 %v1193
        %1757 = vmatpush.bf16.msra.mxu0 %v1189
        %1758 = vmatpush.bf16.msra.mxu0 %v1185
        %1759 = vmatpush.bf16.msra.mxu0 %v1181
        %1760 = vmatpush.bf16.msra.mxu0 %v1177
        %1761 = vmatpush.bf16.msra.mxu0 %v1173
        %1762 = vmatpush.bf16.msra.mxu0 %v1169
        %1763 = vmatmul.bf16.gmra.mxu0 %v554
        %v1764 = vpop.f32.mrf.mxu0
        %v1765 = vadd.f32 %v1737, %v1764
        %v1766 = vpop.f32.mrf.mxu0
        %v1767 = vadd.f32 %v1739, %v1766
        %1768 = vmatmul.bf16.gmra.mxu0 %v559
        %v1769 = vpop.f32.mrf.mxu0
        %v1770 = vadd.f32 %v1742, %v1769
        %v1771 = vpop.f32.mrf.mxu0
        %v1772 = vadd.f32 %v1744, %v1771
        %1773 = vmatmul.bf16.gmra.mxu0 %v564
        %v1774 = vpop.f32.mrf.mxu0
        %v1775 = vadd.f32 %v1747, %v1774
        %v1776 = vpop.f32.mrf.mxu0
        %v1777 = vadd.f32 %v1749, %v1776
        %1778 = vmatmul.bf16.gmra.mxu0 %v569
        %v1779 = vpop.f32.mrf.mxu0
        %v1780 = vadd.f32 %v1752, %v1779
        %v1781 = vpop.f32.mrf.mxu0
        %1782 = vdwg.mxu0
        %1783 = vmatpush.bf16.msra.mxu0 %v1229
        %1784 = vmatpush.bf16.msra.mxu0 %v1225
        %1785 = vmatpush.bf16.msra.mxu0 %v1221
        %1786 = vmatpush.bf16.msra.mxu0 %v1217
        %1787 = vmatpush.bf16.msra.mxu0 %v1213
        %1788 = vmatpush.bf16.msra.mxu0 %v1209
        %1789 = vmatpush.bf16.msra.mxu0 %v1205
        %1790 = vmatpush.bf16.msra.mxu0 %v1201
        %1791 = vmatmul.bf16.gmra.mxu0 %v555
        %v1792 = vpop.f32.mrf.mxu0
        %v1793 = vadd.f32 %v1765, %v1792
        %v1794 = vpop.f32.mrf.mxu0
        %v1795 = vadd.f32 %v1767, %v1794
        %1796 = vmatmul.bf16.gmra.mxu0 %v560
        %v1797 = vpop.f32.mrf.mxu0
        %v1798 = vadd.f32 %v1770, %v1797
        %v1799 = vpop.f32.mrf.mxu0
        %v1800 = vadd.f32 %v1772, %v1799
        %1801 = vmatmul.bf16.gmra.mxu0 %v565
        %v1802 = vpop.f32.mrf.mxu0
        %v1803 = vadd.f32 %v1775, %v1802
        %v1804 = vpop.f32.mrf.mxu0
        %v1805 = vadd.f32 %v1777, %v1804
        %1806 = vmatmul.bf16.gmra.mxu0 %v570
        %v1807 = vpop.f32.mrf.mxu0
        %v1808 = vadd.f32 %v1780, %v1807
        %v1809 = vpop.f32.mrf.mxu0
        %1810 = vdwg.mxu0
        %1811 = vmatpush.bf16.msra.mxu0 %v1102
        %1812 = vmatpush.bf16.msra.mxu0 %v1098
        %1813 = vmatpush.bf16.msra.mxu0 %v1094
        %1814 = vmatpush.bf16.msra.mxu0 %v1090
        %1815 = vmatpush.bf16.msra.mxu0 %v1086
        %1816 = vmatpush.bf16.msra.mxu0 %v1082
        %1817 = vmatpush.bf16.msra.mxu0 %v1078
        %1818 = vmatpush.bf16.msra.mxu0 %v1074
        %1819 = vmatmul.bf16.gmra.mxu0 %v551
        %v1820 = vpop.f32.mrf.mxu0
        %v1821 = vadd.f32 0.0, %v1820
        %v1822 = vpop.f32.mrf.mxu0
        %v1823 = vadd.f32 0.0, %v1822
        %1824 = vmatmul.bf16.gmra.mxu0 %v556
        %v1825 = vpop.f32.mrf.mxu0
        %v1826 = vadd.f32 0.0, %v1825
        %v1827 = vpop.f32.mrf.mxu0
        %v1828 = vadd.f32 0.0, %v1827
        %1829 = vmatmul.bf16.gmra.mxu0 %v561
        %v1830 = vpop.f32.mrf.mxu0
        %v1831 = vadd.f32 0.0, %v1830
        %v1832 = vpop.f32.mrf.mxu0
        %v1833 = vadd.f32 0.0, %v1832
        %1834 = vmatmul.bf16.gmra.mxu0 %v566
        %v1835 = vpop.f32.mrf.mxu0
        %v1836 = vadd.f32 0.0, %v1835
        %v1837 = vpop.f32.mrf.mxu0
        %1838 = vdwg.mxu0
        %1839 = vmatpush.bf16.msra.mxu0 %v1134
        %1840 = vmatpush.bf16.msra.mxu0 %v1130
        %1841 = vmatpush.bf16.msra.mxu0 %v1126
        %1842 = vmatpush.bf16.msra.mxu0 %v1122
        %1843 = vmatpush.bf16.msra.mxu0 %v1118
        %1844 = vmatpush.bf16.msra.mxu0 %v1114
        %1845 = vmatpush.bf16.msra.mxu0 %v1110
        %1846 = vmatpush.bf16.msra.mxu0 %v1106
        %1847 = vmatmul.bf16.gmra.mxu0 %v552
        %v1848 = vpop.f32.mrf.mxu0
        %v1849 = vadd.f32 %v1821, %v1848
        %v1850 = vpop.f32.mrf.mxu0
        %v1851 = vadd.f32 %v1823, %v1850
        %1852 = vmatmul.bf16.gmra.mxu0 %v557
        %v1853 = vpop.f32.mrf.mxu0
        %v1854 = vadd.f32 %v1826, %v1853
        %v1855 = vpop.f32.mrf.mxu0
        %v1856 = vadd.f32 %v1828, %v1855
        %1857 = vmatmul.bf16.gmra.mxu0 %v562
        %v1858 = vpop.f32.mrf.mxu0
        %v1859 = vadd.f32 %v1831, %v1858
        %v1860 = vpop.f32.mrf.mxu0
        %v1861 = vadd.f32 %v1833, %v1860
        %1862 = vmatmul.bf16.gmra.mxu0 %v567
        %v1863 = vpop.f32.mrf.mxu0
        %v1864 = vadd.f32 %v1836, %v1863
        %v1865 = vpop.f32.mrf.mxu0
        %1866 = vdwg.mxu0
        %1867 = vmatpush.bf16.msra.mxu0 %v1166
        %1868 = vmatpush.bf16.msra.mxu0 %v1162
        %1869 = vmatpush.bf16.msra.mxu0 %v1158
        %1870 = vmatpush.bf16.msra.mxu0 %v1154
        %1871 = vmatpush.bf16.msra.mxu0 %v1150
        %1872 = vmatpush.bf16.msra.mxu0 %v1146
        %1873 = vmatpush.bf16.msra.mxu0 %v1142
        %1874 = vmatpush.bf16.msra.mxu0 %v1138
        %1875 = vmatmul.bf16.gmra.mxu0 %v553
        %v1876 = vpop.f32.mrf.mxu0
        %v1877 = vadd.f32 %v1849, %v1876
        %v1878 = vpop.f32.mrf.mxu0
        %v1879 = vadd.f32 %v1851, %v1878
        %1880 = vmatmul.bf16.gmra.mxu0 %v558
        %v1881 = vpop.f32.mrf.mxu0
        %v1882 = vadd.f32 %v1854, %v1881
        %v1883 = vpop.f32.mrf.mxu0
        %v1884 = vadd.f32 %v1856, %v1883
        %1885 = vmatmul.bf16.gmra.mxu0 %v563
        %v1886 = vpop.f32.mrf.mxu0
        %v1887 = vadd.f32 %v1859, %v1886
        %v1888 = vpop.f32.mrf.mxu0
        %v1889 = vadd.f32 %v1861, %v1888
        %1890 = vmatmul.bf16.gmra.mxu0 %v568
        %v1891 = vpop.f32.mrf.mxu0
        %v1892 = vadd.f32 %v1864, %v1891
        %v1893 = vpop.f32.mrf.mxu0
        %1894 = vdwg.mxu0
        %1895 = vmatpush.bf16.msra.mxu0 %v1198
        %1896 = vmatpush.bf16.msra.mxu0 %v1194
        %1897 = vmatpush.bf16.msra.mxu0 %v1190
        %1898 = vmatpush.bf16.msra.mxu0 %v1186
        %1899 = vmatpush.bf16.msra.mxu0 %v1182
        %1900 = vmatpush.bf16.msra.mxu0 %v1178
        %1901 = vmatpush.bf16.msra.mxu0 %v1174
        %1902 = vmatpush.bf16.msra.mxu0 %v1170
        %1903 = vmatmul.bf16.gmra.mxu0 %v554
        %v1904 = vpop.f32.mrf.mxu0
        %v1905 = vadd.f32 %v1877, %v1904
        %v1906 = vpop.f32.mrf.mxu0
        %v1907 = vadd.f32 %v1879, %v1906
        %1908 = vmatmul.bf16.gmra.mxu0 %v559
        %v1909 = vpop.f32.mrf.mxu0
        %v1910 = vadd.f32 %v1882, %v1909
        %v1911 = vpop.f32.mrf.mxu0
        %v1912 = vadd.f32 %v1884, %v1911
        %1913 = vmatmul.bf16.gmra.mxu0 %v564
        %v1914 = vpop.f32.mrf.mxu0
        %v1915 = vadd.f32 %v1887, %v1914
        %v1916 = vpop.f32.mrf.mxu0
        %v1917 = vadd.f32 %v1889, %v1916
        %1918 = vmatmul.bf16.gmra.mxu0 %v569
        %v1919 = vpop.f32.mrf.mxu0
        %v1920 = vadd.f32 %v1892, %v1919
        %v1921 = vpop.f32.mrf.mxu0
        %1922 = vdwg.mxu0
        %1923 = vmatpush.bf16.msra.mxu0 %v1230
        %1924 = vmatpush.bf16.msra.mxu0 %v1226
        %1925 = vmatpush.bf16.msra.mxu0 %v1222
        %1926 = vmatpush.bf16.msra.mxu0 %v1218
        %1927 = vmatpush.bf16.msra.mxu0 %v1214
        %1928 = vmatpush.bf16.msra.mxu0 %v1210
        %1929 = vmatpush.bf16.msra.mxu0 %v1206
        %1930 = vmatpush.bf16.msra.mxu0 %v1202
        %1931 = vmatmul.bf16.gmra.mxu0 %v555
        %v1932 = vpop.f32.mrf.mxu0
        %v1933 = vadd.f32 %v1905, %v1932
        %v1934 = vpop.f32.mrf.mxu0
        %v1935 = vadd.f32 %v1907, %v1934
        %1936 = vmatmul.bf16.gmra.mxu0 %v560
        %v1937 = vpop.f32.mrf.mxu0
        %v1938 = vadd.f32 %v1910, %v1937
        %v1939 = vpop.f32.mrf.mxu0
        %v1940 = vadd.f32 %v1912, %v1939
        %1941 = vmatmul.bf16.gmra.mxu0 %v565
        %v1942 = vpop.f32.mrf.mxu0
        %v1943 = vadd.f32 %v1915, %v1942
        %v1944 = vpop.f32.mrf.mxu0
        %v1945 = vadd.f32 %v1917, %v1944
        %1946 = vmatmul.bf16.gmra.mxu0 %v570
        %v1947 = vpop.f32.mrf.mxu0
        %v1948 = vadd.f32 %v1920, %v1947
        %v1949 = vpop.f32.mrf.mxu0
        %1950 = vdwg.mxu0
        %v1951 = vmax.f32 %v1513, %v1793
        %v1952 = vmax.f32 %v1653, %v1933
        %v1953 = vmax.f32 %v1515, %v1795
        %v1954 = vmax.f32 %v1655, %v1935
        %v1955 = vmax.f32 %v1518, %v1798
        %v1956 = vmax.f32 %v1658, %v1938
        %v1957 = vmax.f32 %v1520, %v1800
        %v1958 = vmax.f32 %v1660, %v1940
        %v1959 = vmax.f32 %v1523, %v1803
        %v1960 = vmax.f32 %v1663, %v1943
        %v1961 = vmax.f32 %v1525, %v1805
        %v1962 = vmax.f32 %v1665, %v1945
        %v1963 = vmax.f32 %v1528, %v1808
        %v1964 = vmax.f32 %v1668, %v1948
        %v1965 = vld [vmem:[%s307 + $0x8c] sm:$0xff]
        %v1966 = vld [vmem:[%s307 + $0x94] sm:$0xff]
        %v1967 = vld [vmem:[%s307 + $0x9c] sm:$0xf]
        %v1968 = vld [vmem:[%s307 + $0xa0] sm:$0xff]
        %v1969 = vld [vmem:[%s307 + $0xa8] sm:$0xff]
        %v1970 = vld [vmem:[%s307 + $0xb0] sm:$0xf]
        %v1971 = vld [vmem:[%s307 + $0xb4] sm:$0xff]
        %v1972 = vld [vmem:[%s307 + $0xbc] sm:$0xff]
        %v1973 = vld [vmem:[%s307 + $0xc4] sm:$0xf]
        %v1974 = vld [vmem:[%s307 + $0xc8] sm:$0xff]
        %v1975 = vld [vmem:[%s307 + $0xd0] sm:$0xff]
        %v1976 = vld [vmem:[%s307 + $0xd8] sm:$0xf]
        %v1977 = vld [vmem:[%s307 + $0xdc] sm:$0xff]
        %v1978 = vld [vmem:[%s307 + $0xe4] sm:$0xff]
        %v1979 = vld [vmem:[%s307 + $0xec] sm:$0xf]
        %v1980 = vld [vmem:[%s307 + $0xf0] sm:$0xff]
        %v1981 = vld [vmem:[%s307 + $0xf8] sm:$0xff]
        %v1982 = vld [vmem:[%s307 + $0x100] sm:$0xf]
        %v1983 = vld [vmem:[%s307 + $0x104] sm:$0xff]
        %v1984 = vld [vmem:[%s307 + $0x10c] sm:$0xff]
        %v1985 = vld [vmem:[%s307 + $0x114] sm:$0xf]
        %v2007 = vunpack.c.l.b16 %v1965
        %v2008 = vunpack.c.h.b16 %v1965
        %v2009 = vunpack.c.l.b16 %v1966
        %v2010 = vunpack.c.h.b16 %v1966
        %v2011 = vunpack.c.l.b16 %v1967
        %v2012 = vunpack.c.l.b16 %v1968
        %v2013 = vunpack.c.h.b16 %v1968
        %v2014 = vunpack.c.l.b16 %v1969
        %v2015 = vunpack.c.h.b16 %v1969
        %v2016 = vunpack.c.l.b16 %v1970
        %v2017 = vunpack.c.l.b16 %v1971
        %v2018 = vunpack.c.h.b16 %v1971
        %v2019 = vunpack.c.l.b16 %v1972
        %v2020 = vunpack.c.h.b16 %v1972
        %v2021 = vunpack.c.l.b16 %v1973
        %v2022 = vunpack.c.l.b16 %v1974
        %v2023 = vunpack.c.h.b16 %v1974
        %v2024 = vunpack.c.l.b16 %v1975
        %v2025 = vunpack.c.h.b16 %v1975
        %v2026 = vunpack.c.l.b16 %v1976
        %v2027 = vunpack.c.l.b16 %v1977
        %v2028 = vunpack.c.h.b16 %v1977
        %v2029 = vunpack.c.l.b16 %v1978
        %v2030 = vunpack.c.h.b16 %v1978
        %v2031 = vunpack.c.l.b16 %v1979
        %v2032 = vunpack.c.l.b16 %v1980
        %v2033 = vunpack.c.h.b16 %v1980
        %v2034 = vunpack.c.l.b16 %v1981
        %v2035 = vunpack.c.h.b16 %v1981
        %v2036 = vunpack.c.l.b16 %v1982
        %v2037 = vunpack.c.l.b16 %v1983
        %v2038 = vunpack.c.h.b16 %v1983
        %v2039 = vunpack.c.l.b16 %v1984
        %v2040 = vunpack.c.h.b16 %v1984
        %v2041 = vunpack.c.l.b16 %v1985
        %v2042 = vpack.c.b16 %v2012, %v2007
        %v2043 = vpack.c.b16 %v2013, %v2008
        %v2044 = vpack.c.b16 %v2014, %v2009
        %v2045 = vpack.c.b16 %v2015, %v2010
        %v2046 = vpack.c.b16 %v2016, %v2011
        %v2047 = vpack.c.b16 %v2022, %v2017
        %v2048 = vpack.c.b16 %v2023, %v2018
        %v2049 = vpack.c.b16 %v2024, %v2019
        %v2050 = vpack.c.b16 %v2025, %v2020
        %v2051 = vpack.c.b16 %v2026, %v2021
        %v2052 = vpack.c.b16 %v2032, %v2027
        %v2053 = vpack.c.b16 %v2033, %v2028
        %v2054 = vpack.c.b16 %v2034, %v2029
        %v2055 = vpack.c.b16 %v2035, %v2030
        %v2056 = vpack.c.b16 %v2036, %v2031
        %v2057 = vpack.c.b16 %v2037, %v2037
        %v2058 = vpack.c.b16 %v2038, %v2038
        %v2059 = vpack.c.b16 %v2039, %v2039
        %v2060 = vpack.c.b16 %v2040, %v2040
        %v2061 = vpack.c.b16 %v2041, %v2041
        %2082 = vmatpush.bf16.msra.mxu0 %v1099
        %2083 = vmatpush.bf16.msra.mxu0 %v1095
        %2084 = vmatpush.bf16.msra.mxu0 %v1091
        %2085 = vmatpush.bf16.msra.mxu0 %v1087
        %2086 = vmatpush.bf16.msra.mxu0 %v1083
        %2087 = vmatpush.bf16.msra.mxu0 %v1079
        %2088 = vmatpush.bf16.msra.mxu0 %v1075
        %2089 = vmatpush.bf16.msra.mxu0 %v1071
        %2090 = vmatmul.bf16.gmra.mxu0 %v2042
        %v2091 = vpop.f32.mrf.mxu0
        %v2092 = vadd.f32 0.0, %v2091
        %v2093 = vpop.f32.mrf.mxu0
        %v2094 = vadd.f32 0.0, %v2093
        %2095 = vmatmul.bf16.gmra.mxu0 %v2047
        %v2096 = vpop.f32.mrf.mxu0
        %v2097 = vadd.f32 0.0, %v2096
        %v2098 = vpop.f32.mrf.mxu0
        %v2099 = vadd.f32 0.0, %v2098
        %2100 = vmatmul.bf16.gmra.mxu0 %v2052
        %v2101 = vpop.f32.mrf.mxu0
        %v2102 = vadd.f32 0.0, %v2101
        %v2103 = vpop.f32.mrf.mxu0
        %v2104 = vadd.f32 0.0, %v2103
        %2105 = vmatmul.bf16.gmra.mxu0 %v2057
        %v2106 = vpop.f32.mrf.mxu0
        %v2107 = vadd.f32 0.0, %v2106
        %v2108 = vpop.f32.mrf.mxu0
        %2109 = vdwg.mxu0
        %2110 = vmatpush.bf16.msra.mxu0 %v1131
        %2111 = vmatpush.bf16.msra.mxu0 %v1127
        %2112 = vmatpush.bf16.msra.mxu0 %v1123
        %2113 = vmatpush.bf16.msra.mxu0 %v1119
        %2114 = vmatpush.bf16.msra.mxu0 %v1115
        %2115 = vmatpush.bf16.msra.mxu0 %v1111
        %2116 = vmatpush.bf16.msra.mxu0 %v1107
        %2117 = vmatpush.bf16.msra.mxu0 %v1103
        %2118 = vmatmul.bf16.gmra.mxu0 %v2043
        %v2119 = vpop.f32.mrf.mxu0
        %v2120 = vadd.f32 %v2092, %v2119
        %v2121 = vpop.f32.mrf.mxu0
        %v2122 = vadd.f32 %v2094, %v2121
        %2123 = vmatmul.bf16.gmra.mxu0 %v2048
        %v2124 = vpop.f32.mrf.mxu0
        %v2125 = vadd.f32 %v2097, %v2124
        %v2126 = vpop.f32.mrf.mxu0
        %v2127 = vadd.f32 %v2099, %v2126
        %2128 = vmatmul.bf16.gmra.mxu0 %v2053
        %v2129 = vpop.f32.mrf.mxu0
        %v2130 = vadd.f32 %v2102, %v2129
        %v2131 = vpop.f32.mrf.mxu0
        %v2132 = vadd.f32 %v2104, %v2131
        %2133 = vmatmul.bf16.gmra.mxu0 %v2058
        %v2134 = vpop.f32.mrf.mxu0
        %v2135 = vadd.f32 %v2107, %v2134
        %v2136 = vpop.f32.mrf.mxu0
        %2137 = vdwg.mxu0
        %2138 = vmatpush.bf16.msra.mxu0 %v1163
        %2139 = vmatpush.bf16.msra.mxu0 %v1159
        %2140 = vmatpush.bf16.msra.mxu0 %v1155
        %2141 = vmatpush.bf16.msra.mxu0 %v1151
        %2142 = vmatpush.bf16.msra.mxu0 %v1147
        %2143 = vmatpush.bf16.msra.mxu0 %v1143
        %2144 = vmatpush.bf16.msra.mxu0 %v1139
        %2145 = vmatpush.bf16.msra.mxu0 %v1135
        %2146 = vmatmul.bf16.gmra.mxu0 %v2044
        %v2147 = vpop.f32.mrf.mxu0
        %v2148 = vadd.f32 %v2120, %v2147
        %v2149 = vpop.f32.mrf.mxu0
        %v2150 = vadd.f32 %v2122, %v2149
        %2151 = vmatmul.bf16.gmra.mxu0 %v2049
        %v2152 = vpop.f32.mrf.mxu0
        %v2153 = vadd.f32 %v2125, %v2152
        %v2154 = vpop.f32.mrf.mxu0
        %v2155 = vadd.f32 %v2127, %v2154
        %2156 = vmatmul.bf16.gmra.mxu0 %v2054
        %v2157 = vpop.f32.mrf.mxu0
        %v2158 = vadd.f32 %v2130, %v2157
        %v2159 = vpop.f32.mrf.mxu0
        %v2160 = vadd.f32 %v2132, %v2159
        %2161 = vmatmul.bf16.gmra.mxu0 %v2059
        %v2162 = vpop.f32.mrf.mxu0
        %v2163 = vadd.f32 %v2135, %v2162
        %v2164 = vpop.f32.mrf.mxu0
        %2165 = vdwg.mxu0
        %2166 = vmatpush.bf16.msra.mxu0 %v1195
        %2167 = vmatpush.bf16.msra.mxu0 %v1191
        %2168 = vmatpush.bf16.msra.mxu0 %v1187
        %2169 = vmatpush.bf16.msra.mxu0 %v1183
        %2170 = vmatpush.bf16.msra.mxu0 %v1179
        %2171 = vmatpush.bf16.msra.mxu0 %v1175
        %2172 = vmatpush.bf16.msra.mxu0 %v1171
        %2173 = vmatpush.bf16.msra.mxu0 %v1167
        %2174 = vmatmul.bf16.gmra.mxu0 %v2045
        %v2175 = vpop.f32.mrf.mxu0
        %v2176 = vadd.f32 %v2148, %v2175
        %v2177 = vpop.f32.mrf.mxu0
        %v2178 = vadd.f32 %v2150, %v2177
        %2179 = vmatmul.bf16.gmra.mxu0 %v2050
        %v2180 = vpop.f32.mrf.mxu0
        %v2181 = vadd.f32 %v2153, %v2180
        %v2182 = vpop.f32.mrf.mxu0
        %v2183 = vadd.f32 %v2155, %v2182
        %2184 = vmatmul.bf16.gmra.mxu0 %v2055
        %v2185 = vpop.f32.mrf.mxu0
        %v2186 = vadd.f32 %v2158, %v2185
        %v2187 = vpop.f32.mrf.mxu0
        %v2188 = vadd.f32 %v2160, %v2187
        %2189 = vmatmul.bf16.gmra.mxu0 %v2060
        %v2190 = vpop.f32.mrf.mxu0
        %v2191 = vadd.f32 %v2163, %v2190
        %v2192 = vpop.f32.mrf.mxu0
        %2193 = vdwg.mxu0
        %2194 = vmatpush.bf16.msra.mxu0 %v1227
        %2195 = vmatpush.bf16.msra.mxu0 %v1223
        %2196 = vmatpush.bf16.msra.mxu0 %v1219
        %2197 = vmatpush.bf16.msra.mxu0 %v1215
        %2198 = vmatpush.bf16.msra.mxu0 %v1211
        %2199 = vmatpush.bf16.msra.mxu0 %v1207
        %2200 = vmatpush.bf16.msra.mxu0 %v1203
        %2201 = vmatpush.bf16.msra.mxu0 %v1199
        %2202 = vmatmul.bf16.gmra.mxu0 %v2046
        %v2203 = vpop.f32.mrf.mxu0
        %v2204 = vadd.f32 %v2176, %v2203
        %v2205 = vpop.f32.mrf.mxu0
        %v2206 = vadd.f32 %v2178, %v2205
        %2207 = vmatmul.bf16.gmra.mxu0 %v2051
        %v2208 = vpop.f32.mrf.mxu0
        %v2209 = vadd.f32 %v2181, %v2208
        %v2210 = vpop.f32.mrf.mxu0
        %v2211 = vadd.f32 %v2183, %v2210
        %2212 = vmatmul.bf16.gmra.mxu0 %v2056
        %v2213 = vpop.f32.mrf.mxu0
        %v2214 = vadd.f32 %v2186, %v2213
        %v2215 = vpop.f32.mrf.mxu0
        %v2216 = vadd.f32 %v2188, %v2215
        %2217 = vmatmul.bf16.gmra.mxu0 %v2061
        %v2218 = vpop.f32.mrf.mxu0
        %v2219 = vadd.f32 %v2191, %v2218
        %v2220 = vpop.f32.mrf.mxu0
        %2221 = vdwg.mxu0
        %2222 = vmatpush.bf16.msra.mxu0 %v1100
        %2223 = vmatpush.bf16.msra.mxu0 %v1096
        %2224 = vmatpush.bf16.msra.mxu0 %v1092
        %2225 = vmatpush.bf16.msra.mxu0 %v1088
        %2226 = vmatpush.bf16.msra.mxu0 %v1084
        %2227 = vmatpush.bf16.msra.mxu0 %v1080
        %2228 = vmatpush.bf16.msra.mxu0 %v1076
        %2229 = vmatpush.bf16.msra.mxu0 %v1072
        %2230 = vmatmul.bf16.gmra.mxu0 %v2042
        %v2231 = vpop.f32.mrf.mxu0
        %v2232 = vadd.f32 0.0, %v2231
        %v2233 = vpop.f32.mrf.mxu0
        %v2234 = vadd.f32 0.0, %v2233
        %2235 = vmatmul.bf16.gmra.mxu0 %v2047
        %v2236 = vpop.f32.mrf.mxu0
        %v2237 = vadd.f32 0.0, %v2236
        %v2238 = vpop.f32.mrf.mxu0
        %v2239 = vadd.f32 0.0, %v2238
        %2240 = vmatmul.bf16.gmra.mxu0 %v2052
        %v2241 = vpop.f32.mrf.mxu0
        %v2242 = vadd.f32 0.0, %v2241
        %v2243 = vpop.f32.mrf.mxu0
        %v2244 = vadd.f32 0.0, %v2243
        %2245 = vmatmul.bf16.gmra.mxu0 %v2057
        %v2246 = vpop.f32.mrf.mxu0
        %v2247 = vadd.f32 0.0, %v2246
        %v2248 = vpop.f32.mrf.mxu0
        %2249 = vdwg.mxu0
        %2250 = vmatpush.bf16.msra.mxu0 %v1132
        %2251 = vmatpush.bf16.msra.mxu0 %v1128
        %2252 = vmatpush.bf16.msra.mxu0 %v1124
        %2253 = vmatpush.bf16.msra.mxu0 %v1120
        %2254 = vmatpush.bf16.msra.mxu0 %v1116
        %2255 = vmatpush.bf16.msra.mxu0 %v1112
        %2256 = vmatpush.bf16.msra.mxu0 %v1108
        %2257 = vmatpush.bf16.msra.mxu0 %v1104
        %2258 = vmatmul.bf16.gmra.mxu0 %v2043
        %v2259 = vpop.f32.mrf.mxu0
        %v2260 = vadd.f32 %v2232, %v2259
        %v2261 = vpop.f32.mrf.mxu0
        %v2262 = vadd.f32 %v2234, %v2261
        %2263 = vmatmul.bf16.gmra.mxu0 %v2048
        %v2264 = vpop.f32.mrf.mxu0
        %v2265 = vadd.f32 %v2237, %v2264
        %v2266 = vpop.f32.mrf.mxu0
        %v2267 = vadd.f32 %v2239, %v2266
        %2268 = vmatmul.bf16.gmra.mxu0 %v2053
        %v2269 = vpop.f32.mrf.mxu0
        %v2270 = vadd.f32 %v2242, %v2269
        %v2271 = vpop.f32.mrf.mxu0
        %v2272 = vadd.f32 %v2244, %v2271
        %2273 = vmatmul.bf16.gmra.mxu0 %v2058
        %v2274 = vpop.f32.mrf.mxu0
        %v2275 = vadd.f32 %v2247, %v2274
        %v2276 = vpop.f32.mrf.mxu0
        %2277 = vdwg.mxu0
        %2278 = vmatpush.bf16.msra.mxu0 %v1164
        %2279 = vmatpush.bf16.msra.mxu0 %v1160
        %2280 = vmatpush.bf16.msra.mxu0 %v1156
        %2281 = vmatpush.bf16.msra.mxu0 %v1152
        %2282 = vmatpush.bf16.msra.mxu0 %v1148
        %2283 = vmatpush.bf16.msra.mxu0 %v1144
        %2284 = vmatpush.bf16.msra.mxu0 %v1140
        %2285 = vmatpush.bf16.msra.mxu0 %v1136
        %2286 = vmatmul.bf16.gmra.mxu0 %v2044
        %v2287 = vpop.f32.mrf.mxu0
        %v2288 = vadd.f32 %v2260, %v2287
        %v2289 = vpop.f32.mrf.mxu0
        %v2290 = vadd.f32 %v2262, %v2289
        %2291 = vmatmul.bf16.gmra.mxu0 %v2049
        %v2292 = vpop.f32.mrf.mxu0
        %v2293 = vadd.f32 %v2265, %v2292
        %v2294 = vpop.f32.mrf.mxu0
        %v2295 = vadd.f32 %v2267, %v2294
        %2296 = vmatmul.bf16.gmra.mxu0 %v2054
        %v2297 = vpop.f32.mrf.mxu0
        %v2298 = vadd.f32 %v2270, %v2297
        %v2299 = vpop.f32.mrf.mxu0
        %v2300 = vadd.f32 %v2272, %v2299
        %2301 = vmatmul.bf16.gmra.mxu0 %v2059
        %v2302 = vpop.f32.mrf.mxu0
        %v2303 = vadd.f32 %v2275, %v2302
        %v2304 = vpop.f32.mrf.mxu0
        %2305 = vdwg.mxu0
        %2306 = vmatpush.bf16.msra.mxu0 %v1196
        %2307 = vmatpush.bf16.msra.mxu0 %v1192
        %2308 = vmatpush.bf16.msra.mxu0 %v1188
        %2309 = vmatpush.bf16.msra.mxu0 %v1184
        %2310 = vmatpush.bf16.msra.mxu0 %v1180
        %2311 = vmatpush.bf16.msra.mxu0 %v1176
        %2312 = vmatpush.bf16.msra.mxu0 %v1172
        %2313 = vmatpush.bf16.msra.mxu0 %v1168
        %2314 = vmatmul.bf16.gmra.mxu0 %v2045
        %v2315 = vpop.f32.mrf.mxu0
        %v2316 = vadd.f32 %v2288, %v2315
        %v2317 = vpop.f32.mrf.mxu0
        %v2318 = vadd.f32 %v2290, %v2317
        %2319 = vmatmul.bf16.gmra.mxu0 %v2050
        %v2320 = vpop.f32.mrf.mxu0
        %v2321 = vadd.f32 %v2293, %v2320
        %v2322 = vpop.f32.mrf.mxu0
        %v2323 = vadd.f32 %v2295, %v2322
        %2324 = vmatmul.bf16.gmra.mxu0 %v2055
        %v2325 = vpop.f32.mrf.mxu0
        %v2326 = vadd.f32 %v2298, %v2325
        %v2327 = vpop.f32.mrf.mxu0
        %v2328 = vadd.f32 %v2300, %v2327
        %2329 = vmatmul.bf16.gmra.mxu0 %v2060
        %v2330 = vpop.f32.mrf.mxu0
        %v2331 = vadd.f32 %v2303, %v2330
        %v2332 = vpop.f32.mrf.mxu0
        %2333 = vdwg.mxu0
        %2334 = vmatpush.bf16.msra.mxu0 %v1228
        %2335 = vmatpush.bf16.msra.mxu0 %v1224
        %2336 = vmatpush.bf16.msra.mxu0 %v1220
        %2337 = vmatpush.bf16.msra.mxu0 %v1216
        %2338 = vmatpush.bf16.msra.mxu0 %v1212
        %2339 = vmatpush.bf16.msra.mxu0 %v1208
        %2340 = vmatpush.bf16.msra.mxu0 %v1204
        %2341 = vmatpush.bf16.msra.mxu0 %v1200
        %2342 = vmatmul.bf16.gmra.mxu0 %v2046
        %v2343 = vpop.f32.mrf.mxu0
        %v2344 = vadd.f32 %v2316, %v2343
        %v2345 = vpop.f32.mrf.mxu0
        %v2346 = vadd.f32 %v2318, %v2345
        %2347 = vmatmul.bf16.gmra.mxu0 %v2051
        %v2348 = vpop.f32.mrf.mxu0
        %v2349 = vadd.f32 %v2321, %v2348
        %v2350 = vpop.f32.mrf.mxu0
        %v2351 = vadd.f32 %v2323, %v2350
        %2352 = vmatmul.bf16.gmra.mxu0 %v2056
        %v2353 = vpop.f32.mrf.mxu0
        %v2354 = vadd.f32 %v2326, %v2353
        %v2355 = vpop.f32.mrf.mxu0
        %v2356 = vadd.f32 %v2328, %v2355
        %2357 = vmatmul.bf16.gmra.mxu0 %v2061
        %v2358 = vpop.f32.mrf.mxu0
        %v2359 = vadd.f32 %v2331, %v2358
        %v2360 = vpop.f32.mrf.mxu0
        %2361 = vdwg.mxu0
        %2362 = vmatpush.bf16.msra.mxu0 %v1101
        %2363 = vmatpush.bf16.msra.mxu0 %v1097
        %2364 = vmatpush.bf16.msra.mxu0 %v1093
        %2365 = vmatpush.bf16.msra.mxu0 %v1089
        %2366 = vmatpush.bf16.msra.mxu0 %v1085
        %2367 = vmatpush.bf16.msra.mxu0 %v1081
        %2368 = vmatpush.bf16.msra.mxu0 %v1077
        %2369 = vmatpush.bf16.msra.mxu0 %v1073
        %2370 = vmatmul.bf16.gmra.mxu0 %v2042
        %v2371 = vpop.f32.mrf.mxu0
        %v2372 = vadd.f32 0.0, %v2371
        %v2373 = vpop.f32.mrf.mxu0
        %v2374 = vadd.f32 0.0, %v2373
        %2375 = vmatmul.bf16.gmra.mxu0 %v2047
        %v2376 = vpop.f32.mrf.mxu0
        %v2377 = vadd.f32 0.0, %v2376
        %v2378 = vpop.f32.mrf.mxu0
        %v2379 = vadd.f32 0.0, %v2378
        %2380 = vmatmul.bf16.gmra.mxu0 %v2052
        %v2381 = vpop.f32.mrf.mxu0
        %v2382 = vadd.f32 0.0, %v2381
        %v2383 = vpop.f32.mrf.mxu0
        %v2384 = vadd.f32 0.0, %v2383
        %2385 = vmatmul.bf16.gmra.mxu0 %v2057
        %v2386 = vpop.f32.mrf.mxu0
        %v2387 = vadd.f32 0.0, %v2386
        %v2388 = vpop.f32.mrf.mxu0
        %2389 = vdwg.mxu0
        %2390 = vmatpush.bf16.msra.mxu0 %v1133
        %2391 = vmatpush.bf16.msra.mxu0 %v1129
        %2392 = vmatpush.bf16.msra.mxu0 %v1125
        %2393 = vmatpush.bf16.msra.mxu0 %v1121
        %2394 = vmatpush.bf16.msra.mxu0 %v1117
        %2395 = vmatpush.bf16.msra.mxu0 %v1113
        %2396 = vmatpush.bf16.msra.mxu0 %v1109
        %2397 = vmatpush.bf16.msra.mxu0 %v1105
        %2398 = vmatmul.bf16.gmra.mxu0 %v2043
        %v2399 = vpop.f32.mrf.mxu0
        %v2400 = vadd.f32 %v2372, %v2399
        %v2401 = vpop.f32.mrf.mxu0
        %v2402 = vadd.f32 %v2374, %v2401
        %2403 = vmatmul.bf16.gmra.mxu0 %v2048
        %v2404 = vpop.f32.mrf.mxu0
        %v2405 = vadd.f32 %v2377, %v2404
        %v2406 = vpop.f32.mrf.mxu0
        %v2407 = vadd.f32 %v2379, %v2406
        %2408 = vmatmul.bf16.gmra.mxu0 %v2053
        %v2409 = vpop.f32.mrf.mxu0
        %v2410 = vadd.f32 %v2382, %v2409
        %v2411 = vpop.f32.mrf.mxu0
        %v2412 = vadd.f32 %v2384, %v2411
        %2413 = vmatmul.bf16.gmra.mxu0 %v2058
        %v2414 = vpop.f32.mrf.mxu0
        %v2415 = vadd.f32 %v2387, %v2414
        %v2416 = vpop.f32.mrf.mxu0
        %2417 = vdwg.mxu0
        %2418 = vmatpush.bf16.msra.mxu0 %v1165
        %2419 = vmatpush.bf16.msra.mxu0 %v1161
        %2420 = vmatpush.bf16.msra.mxu0 %v1157
        %2421 = vmatpush.bf16.msra.mxu0 %v1153
        %2422 = vmatpush.bf16.msra.mxu0 %v1149
        %2423 = vmatpush.bf16.msra.mxu0 %v1145
        %2424 = vmatpush.bf16.msra.mxu0 %v1141
        %2425 = vmatpush.bf16.msra.mxu0 %v1137
        %2426 = vmatmul.bf16.gmra.mxu0 %v2044
        %v2427 = vpop.f32.mrf.mxu0
        %v2428 = vadd.f32 %v2400, %v2427
        %v2429 = vpop.f32.mrf.mxu0
        %v2430 = vadd.f32 %v2402, %v2429
        %2431 = vmatmul.bf16.gmra.mxu0 %v2049
        %v2432 = vpop.f32.mrf.mxu0
        %v2433 = vadd.f32 %v2405, %v2432
        %v2434 = vpop.f32.mrf.mxu0
        %v2435 = vadd.f32 %v2407, %v2434
        %2436 = vmatmul.bf16.gmra.mxu0 %v2054
        %v2437 = vpop.f32.mrf.mxu0
        %v2438 = vadd.f32 %v2410, %v2437
        %v2439 = vpop.f32.mrf.mxu0
        %v2440 = vadd.f32 %v2412, %v2439
        %2441 = vmatmul.bf16.gmra.mxu0 %v2059
        %v2442 = vpop.f32.mrf.mxu0
        %v2443 = vadd.f32 %v2415, %v2442
        %v2444 = vpop.f32.mrf.mxu0
        %2445 = vdwg.mxu0
        %2446 = vmatpush.bf16.msra.mxu0 %v1197
        %2447 = vmatpush.bf16.msra.mxu0 %v1193
        %2448 = vmatpush.bf16.msra.mxu0 %v1189
        %2449 = vmatpush.bf16.msra.mxu0 %v1185
        %2450 = vmatpush.bf16.msra.mxu0 %v1181
        %2451 = vmatpush.bf16.msra.mxu0 %v1177
        %2452 = vmatpush.bf16.msra.mxu0 %v1173
        %2453 = vmatpush.bf16.msra.mxu0 %v1169
        %2454 = vmatmul.bf16.gmra.mxu0 %v2045
        %v2455 = vpop.f32.mrf.mxu0
        %v2456 = vadd.f32 %v2428, %v2455
        %v2457 = vpop.f32.mrf.mxu0
        %v2458 = vadd.f32 %v2430, %v2457
        %2459 = vmatmul.bf16.gmra.mxu0 %v2050
        %v2460 = vpop.f32.mrf.mxu0
        %v2461 = vadd.f32 %v2433, %v2460
        %v2462 = vpop.f32.mrf.mxu0
        %v2463 = vadd.f32 %v2435, %v2462
        %2464 = vmatmul.bf16.gmra.mxu0 %v2055
        %v2465 = vpop.f32.mrf.mxu0
        %v2466 = vadd.f32 %v2438, %v2465
        %v2467 = vpop.f32.mrf.mxu0
        %v2468 = vadd.f32 %v2440, %v2467
        %2469 = vmatmul.bf16.gmra.mxu0 %v2060
        %v2470 = vpop.f32.mrf.mxu0
        %v2471 = vadd.f32 %v2443, %v2470
        %v2472 = vpop.f32.mrf.mxu0
        %2473 = vdwg.mxu0
        %2474 = vmatpush.bf16.msra.mxu0 %v1229
        %2475 = vmatpush.bf16.msra.mxu0 %v1225
        %2476 = vmatpush.bf16.msra.mxu0 %v1221
        %2477 = vmatpush.bf16.msra.mxu0 %v1217
        %2478 = vmatpush.bf16.msra.mxu0 %v1213
        %2479 = vmatpush.bf16.msra.mxu0 %v1209
        %2480 = vmatpush.bf16.msra.mxu0 %v1205
        %2481 = vmatpush.bf16.msra.mxu0 %v1201
        %2482 = vmatmul.bf16.gmra.mxu0 %v2046
        %v2483 = vpop.f32.mrf.mxu0
        %v2484 = vadd.f32 %v2456, %v2483
        %v2485 = vpop.f32.mrf.mxu0
        %v2486 = vadd.f32 %v2458, %v2485
        %2487 = vmatmul.bf16.gmra.mxu0 %v2051
        %v2488 = vpop.f32.mrf.mxu0
        %v2489 = vadd.f32 %v2461, %v2488
        %v2490 = vpop.f32.mrf.mxu0
        %v2491 = vadd.f32 %v2463, %v2490
        %2492 = vmatmul.bf16.gmra.mxu0 %v2056
        %v2493 = vpop.f32.mrf.mxu0
        %v2494 = vadd.f32 %v2466, %v2493
        %v2495 = vpop.f32.mrf.mxu0
        %v2496 = vadd.f32 %v2468, %v2495
        %2497 = vmatmul.bf16.gmra.mxu0 %v2061
        %v2498 = vpop.f32.mrf.mxu0
        %v2499 = vadd.f32 %v2471, %v2498
        %v2500 = vpop.f32.mrf.mxu0
        %2501 = vdwg.mxu0
        %2502 = vmatpush.bf16.msra.mxu0 %v1102
        %2503 = vmatpush.bf16.msra.mxu0 %v1098
        %2504 = vmatpush.bf16.msra.mxu0 %v1094
        %2505 = vmatpush.bf16.msra.mxu0 %v1090
        %2506 = vmatpush.bf16.msra.mxu0 %v1086
        %2507 = vmatpush.bf16.msra.mxu0 %v1082
        %2508 = vmatpush.bf16.msra.mxu0 %v1078
        %2509 = vmatpush.bf16.msra.mxu0 %v1074
        %2510 = vmatmul.bf16.gmra.mxu0 %v2042
        %v2511 = vpop.f32.mrf.mxu0
        %v2512 = vadd.f32 0.0, %v2511
        %v2513 = vpop.f32.mrf.mxu0
        %v2514 = vadd.f32 0.0, %v2513
        %2515 = vmatmul.bf16.gmra.mxu0 %v2047
        %v2516 = vpop.f32.mrf.mxu0
        %v2517 = vadd.f32 0.0, %v2516
        %v2518 = vpop.f32.mrf.mxu0
        %v2519 = vadd.f32 0.0, %v2518
        %2520 = vmatmul.bf16.gmra.mxu0 %v2052
        %v2521 = vpop.f32.mrf.mxu0
        %v2522 = vadd.f32 0.0, %v2521
        %v2523 = vpop.f32.mrf.mxu0
        %v2524 = vadd.f32 0.0, %v2523
        %2525 = vmatmul.bf16.gmra.mxu0 %v2057
        %v2526 = vpop.f32.mrf.mxu0
        %v2527 = vadd.f32 0.0, %v2526
        %v2528 = vpop.f32.mrf.mxu0
        %2529 = vdwg.mxu0
        %2530 = vmatpush.bf16.msra.mxu0 %v1134
        %2531 = vmatpush.bf16.msra.mxu0 %v1130
        %2532 = vmatpush.bf16.msra.mxu0 %v1126
        %2533 = vmatpush.bf16.msra.mxu0 %v1122
        %2534 = vmatpush.bf16.msra.mxu0 %v1118
        %2535 = vmatpush.bf16.msra.mxu0 %v1114
        %2536 = vmatpush.bf16.msra.mxu0 %v1110
        %2537 = vmatpush.bf16.msra.mxu0 %v1106
        %2538 = vmatmul.bf16.gmra.mxu0 %v2043
        %v2539 = vpop.f32.mrf.mxu0
        %v2540 = vadd.f32 %v2512, %v2539
        %v2541 = vpop.f32.mrf.mxu0
        %v2542 = vadd.f32 %v2514, %v2541
        %2543 = vmatmul.bf16.gmra.mxu0 %v2048
        %v2544 = vpop.f32.mrf.mxu0
        %v2545 = vadd.f32 %v2517, %v2544
        %v2546 = vpop.f32.mrf.mxu0
        %v2547 = vadd.f32 %v2519, %v2546
        %2548 = vmatmul.bf16.gmra.mxu0 %v2053
        %v2549 = vpop.f32.mrf.mxu0
        %v2550 = vadd.f32 %v2522, %v2549
        %v2551 = vpop.f32.mrf.mxu0
        %v2552 = vadd.f32 %v2524, %v2551
        %2553 = vmatmul.bf16.gmra.mxu0 %v2058
        %v2554 = vpop.f32.mrf.mxu0
        %v2555 = vadd.f32 %v2527, %v2554
        %v2556 = vpop.f32.mrf.mxu0
        %2557 = vdwg.mxu0
        %2558 = vmatpush.bf16.msra.mxu0 %v1166
        %2559 = vmatpush.bf16.msra.mxu0 %v1162
        %2560 = vmatpush.bf16.msra.mxu0 %v1158
        %2561 = vmatpush.bf16.msra.mxu0 %v1154
        %2562 = vmatpush.bf16.msra.mxu0 %v1150
        %2563 = vmatpush.bf16.msra.mxu0 %v1146
        %2564 = vmatpush.bf16.msra.mxu0 %v1142
        %2565 = vmatpush.bf16.msra.mxu0 %v1138
        %2566 = vmatmul.bf16.gmra.mxu0 %v2044
        %v2567 = vpop.f32.mrf.mxu0
        %v2568 = vadd.f32 %v2540, %v2567
        %v2569 = vpop.f32.mrf.mxu0
        %v2570 = vadd.f32 %v2542, %v2569
        %2571 = vmatmul.bf16.gmra.mxu0 %v2049
        %v2572 = vpop.f32.mrf.mxu0
        %v2573 = vadd.f32 %v2545, %v2572
        %v2574 = vpop.f32.mrf.mxu0
        %v2575 = vadd.f32 %v2547, %v2574
        %2576 = vmatmul.bf16.gmra.mxu0 %v2054
        %v2577 = vpop.f32.mrf.mxu0
        %v2578 = vadd.f32 %v2550, %v2577
        %v2579 = vpop.f32.mrf.mxu0
        %v2580 = vadd.f32 %v2552, %v2579
        %2581 = vmatmul.bf16.gmra.mxu0 %v2059
        %v2582 = vpop.f32.mrf.mxu0
        %v2583 = vadd.f32 %v2555, %v2582
        %v2584 = vpop.f32.mrf.mxu0
        %2585 = vdwg.mxu0
        %2586 = vmatpush.bf16.msra.mxu0 %v1198
        %2587 = vmatpush.bf16.msra.mxu0 %v1194
        %2588 = vmatpush.bf16.msra.mxu0 %v1190
        %2589 = vmatpush.bf16.msra.mxu0 %v1186
        %2590 = vmatpush.bf16.msra.mxu0 %v1182
        %2591 = vmatpush.bf16.msra.mxu0 %v1178
        %2592 = vmatpush.bf16.msra.mxu0 %v1174
        %2593 = vmatpush.bf16.msra.mxu0 %v1170
        %2594 = vmatmul.bf16.gmra.mxu0 %v2045
        %v2595 = vpop.f32.mrf.mxu0
        %v2596 = vadd.f32 %v2568, %v2595
        %v2597 = vpop.f32.mrf.mxu0
        %v2598 = vadd.f32 %v2570, %v2597
        %2599 = vmatmul.bf16.gmra.mxu0 %v2050
        %v2600 = vpop.f32.mrf.mxu0
        %v2601 = vadd.f32 %v2573, %v2600
        %v2602 = vpop.f32.mrf.mxu0
        %v2603 = vadd.f32 %v2575, %v2602
        %2604 = vmatmul.bf16.gmra.mxu0 %v2055
        %v2605 = vpop.f32.mrf.mxu0
        %v2606 = vadd.f32 %v2578, %v2605
        %v2607 = vpop.f32.mrf.mxu0
        %v2608 = vadd.f32 %v2580, %v2607
        %2609 = vmatmul.bf16.gmra.mxu0 %v2060
        %v2610 = vpop.f32.mrf.mxu0
        %v2611 = vadd.f32 %v2583, %v2610
        %v2612 = vpop.f32.mrf.mxu0
        %2613 = vdwg.mxu0
        %2614 = vmatpush.bf16.msra.mxu0 %v1230
        %2615 = vmatpush.bf16.msra.mxu0 %v1226
        %2616 = vmatpush.bf16.msra.mxu0 %v1222
        %2617 = vmatpush.bf16.msra.mxu0 %v1218
        %2618 = vmatpush.bf16.msra.mxu0 %v1214
        %2619 = vmatpush.bf16.msra.mxu0 %v1210
        %2620 = vmatpush.bf16.msra.mxu0 %v1206
        %2621 = vmatpush.bf16.msra.mxu0 %v1202
        %2622 = vmatmul.bf16.gmra.mxu0 %v2046
        %v2623 = vpop.f32.mrf.mxu0
        %v2624 = vadd.f32 %v2596, %v2623
        %v2625 = vpop.f32.mrf.mxu0
        %v2626 = vadd.f32 %v2598, %v2625
        %2627 = vmatmul.bf16.gmra.mxu0 %v2051
        %v2628 = vpop.f32.mrf.mxu0
        %v2629 = vadd.f32 %v2601, %v2628
        %v2630 = vpop.f32.mrf.mxu0
        %v2631 = vadd.f32 %v2603, %v2630
        %2632 = vmatmul.bf16.gmra.mxu0 %v2056
        %v2633 = vpop.f32.mrf.mxu0
        %v2634 = vadd.f32 %v2606, %v2633
        %v2635 = vpop.f32.mrf.mxu0
        %v2636 = vadd.f32 %v2608, %v2635
        %2637 = vmatmul.bf16.gmra.mxu0 %v2061
        %v2638 = vpop.f32.mrf.mxu0
        %v2639 = vadd.f32 %v2611, %v2638
        %v2640 = vpop.f32.mrf.mxu0
        %2641 = vdwg.mxu0
        %v2642 = vmax.f32 %v2204, %v2484
        %v2643 = vmax.f32 %v2344, %v2624
        %v2644 = vmax.f32 %v2206, %v2486
        %v2645 = vmax.f32 %v2346, %v2626
        %v2646 = vmax.f32 %v2209, %v2489
        %v2647 = vmax.f32 %v2349, %v2629
        %v2648 = vmax.f32 %v2211, %v2491
        %v2649 = vmax.f32 %v2351, %v2631
        %v2650 = vmax.f32 %v2214, %v2494
        %v2651 = vmax.f32 %v2354, %v2634
        %v2652 = vmax.f32 %v2216, %v2496
        %v2653 = vmax.f32 %v2356, %v2636
        %v2654 = vmax.f32 %v2219, %v2499
        %v2655 = vmax.f32 %v2359, %v2639
        %v2656 = vmax.f32 %v1951, %v2642
        %v2657 = vmax.f32 %v1952, %v2643
        %v2658 = vmax.f32 %v1953, %v2644
        %v2659 = vmax.f32 %v1954, %v2645
        %v2660 = vmax.f32 %v1955, %v2646
        %v2661 = vmax.f32 %v1956, %v2647
        %v2662 = vmax.f32 %v1957, %v2648
        %v2663 = vmax.f32 %v1958, %v2649
        %v2664 = vmax.f32 %v1959, %v2650
        %v2665 = vmax.f32 %v1960, %v2651
        %v2666 = vmax.f32 %v1961, %v2652
        %v2667 = vmax.f32 %v1962, %v2653
        %v2668 = vmax.f32 %v1963, %v2654
        %v2669 = vmax.f32 %v1964, %v2655
        %v2670 = vld [vmem:[%s2] sm:$0x3]
        %v2672 = vperm.slane %v2670, 0
        %v2673 = vperm.slane %v2670, 1
        %v2676 = vadd.f32 %v2656, %v2672
        %v2677 = vadd.f32 %v2657, %v2673
        %v2678 = vadd.f32 %v2658, %v2672
        %v2679 = vadd.f32 %v2659, %v2673
        %v2680 = vadd.f32 %v2660, %v2672
        %v2681 = vadd.f32 %v2661, %v2673
        %v2682 = vadd.f32 %v2662, %v2672
        %v2683 = vadd.f32 %v2663, %v2673
        %v2684 = vadd.f32 %v2664, %v2672
        %v2685 = vadd.f32 %v2665, %v2673
        %v2686 = vadd.f32 %v2666, %v2672
        %v2687 = vadd.f32 %v2667, %v2673
        %v2688 = vadd.f32 %v2668, %v2672
        %v2689 = vadd.f32 %v2669, %v2673
        %v2690 = vmax.f32 %v2676, 0.0
        %v2691 = vmax.f32 %v2677, 0.0
        %v2692 = vmax.f32 %v2678, 0.0
        %v2693 = vmax.f32 %v2679, 0.0
        %v2694 = vmax.f32 %v2680, 0.0
        %v2695 = vmax.f32 %v2681, 0.0
        %v2696 = vmax.f32 %v2682, 0.0
        %v2697 = vmax.f32 %v2683, 0.0
        %v2698 = vmax.f32 %v2684, 0.0
        %v2699 = vmax.f32 %v2685, 0.0
        %v2700 = vmax.f32 %v2686, 0.0
        %v2701 = vmax.f32 %v2687, 0.0
        %v2702 = vmax.f32 %v2688, 0.0
        %v2703 = vmax.f32 %v2689, 0.0
        %2704 = vst [vmem:[#allocation2] sm:$0xff] %v2690
        %2705 = vst [vmem:[#allocation2 + $0x8] sm:$0xff] %v2691
        %2706 = vst [vmem:[#allocation2 + $0x10] sm:$0xff] %v2692
        %2707 = vst [vmem:[#allocation2 + $0x18] sm:$0xff] %v2693
        %2708 = vst [vmem:[#allocation2 + $0x20] sm:$0xff] %v2694
        %2709 = vst [vmem:[#allocation2 + $0x28] sm:$0xff] %v2695
        %2710 = vst [vmem:[#allocation2 + $0x30] sm:$0xff] %v2696
        %2711 = vst [vmem:[#allocation2 + $0x38] sm:$0xff] %v2697
        %2712 = vst [vmem:[#allocation2 + $0x40] sm:$0xff] %v2698
        %2713 = vst [vmem:[#allocation2 + $0x48] sm:$0xff] %v2699
        %2714 = vst [vmem:[#allocation2 + $0x50] sm:$0xff] %v2700
        %2715 = vst [vmem:[#allocation2 + $0x58] sm:$0xff] %v2701
        %2716 = vst [vmem:[#allocation2 + $0x60] sm:$0xff] %v2702
        %2717 = vst [vmem:[#allocation2 + $0x68] sm:$0xff] %v2703
        %v2718 = vld [vmem:[%s307 + $0x118] sm:$0xff]
        %v2719 = vld [vmem:[%s307 + $0x120] sm:$0xff]
        %v2720 = vld [vmem:[%s307 + $0x128] sm:$0xf]
        %v2721 = vld [vmem:[%s307 + $0x12c] sm:$0xff]
        %v2722 = vld [vmem:[%s307 + $0x134] sm:$0xff]
        %v2723 = vld [vmem:[%s307 + $0x13c] sm:$0xf]
        %v2724 = vld [vmem:[%s307 + $0x140] sm:$0xff]
        %v2725 = vld [vmem:[%s307 + $0x148] sm:$0xff]
        %v2726 = vld [vmem:[%s307 + $0x150] sm:$0xf]
        %v2727 = vld [vmem:[%s307 + $0x154] sm:$0xff]
        %v2728 = vld [vmem:[%s307 + $0x15c] sm:$0xff]
        %v2729 = vld [vmem:[%s307 + $0x164] sm:$0xf]
        %v2730 = vld [vmem:[%s307 + $0x168] sm:$0xff]
        %v2731 = vld [vmem:[%s307 + $0x170] sm:$0xff]
        %v2732 = vld [vmem:[%s307 + $0x178] sm:$0xf]
        %v2733 = vld [vmem:[%s307 + $0x17c] sm:$0xff]
        %v2734 = vld [vmem:[%s307 + $0x184] sm:$0xff]
        %v2735 = vld [vmem:[%s307 + $0x18c] sm:$0xf]
        %v2736 = vld [vmem:[%s307 + $0x190] sm:$0xff]
        %v2737 = vld [vmem:[%s307 + $0x198] sm:$0xff]
        %v2738 = vld [vmem:[%s307 + $0x1a0] sm:$0xf]
        %v2739 = vld [vmem:[%s1] sm:$0xff]
        %v2740 = vld [vmem:[%s1 + $0x8] sm:$0xff]
        %v2741 = vld [vmem:[%s1 + $0x10] sm:$0xff]
        %v2742 = vld [vmem:[%s1 + $0x18] sm:$0xff]
        %v2743 = vld [vmem:[%s1 + $0x20] sm:$0xff]
        %v2744 = vld [vmem:[%s1 + $0x28] sm:$0xff]
        %v2745 = vld [vmem:[%s1 + $0x30] sm:$0xff]
        %v2746 = vld [vmem:[%s1 + $0x38] sm:$0xff]
        %v2747 = vld [vmem:[%s1 + $0x40] sm:$0xff]
        %v2748 = vld [vmem:[%s1 + $0x48] sm:$0xff]
        %v2749 = vld [vmem:[%s1 + $0x50] sm:$0xff]
        %v2750 = vld [vmem:[%s1 + $0x58] sm:$0xff]
        %v2751 = vld [vmem:[%s1 + $0x60] sm:$0xff]
        %v2752 = vld [vmem:[%s1 + $0x68] sm:$0xff]
        %v2753 = vld [vmem:[%s1 + $0x70] sm:$0xff]
        %v2754 = vld [vmem:[%s1 + $0x78] sm:$0xff]
        %v2755 = vld [vmem:[%s1 + $0x80] sm:$0xff]
        %v2756 = vld [vmem:[%s1 + $0x88] sm:$0xff]
        %v2757 = vld [vmem:[%s1 + $0x90] sm:$0xff]
        %v2758 = vld [vmem:[%s1 + $0x98] sm:$0xff]
        %v2759 = vld [vmem:[%s1 + $0xa0] sm:$0xff]
        %v2760 = vld [vmem:[%s1 + $0xa8] sm:$0xff]
        %v2761 = vld [vmem:[%s1 + $0xb0] sm:$0xff]
        %v2762 = vld [vmem:[%s1 + $0xb8] sm:$0xff]
        %v2763 = vld [vmem:[%s1 + $0xc0] sm:$0xff]
        %v2764 = vld [vmem:[%s1 + $0xc8] sm:$0xff]
        %v2765 = vld [vmem:[%s1 + $0xd0] sm:$0xff]
        %v2766 = vld [vmem:[%s1 + $0xd8] sm:$0xff]
        %v2767 = vld [vmem:[%s1 + $0xe0] sm:$0xff]
        %v2768 = vld [vmem:[%s1 + $0xe8] sm:$0xff]
        %v2769 = vld [vmem:[%s1 + $0xf0] sm:$0xff]
        %v2770 = vld [vmem:[%s1 + $0xf8] sm:$0xff]
        %v2771 = vld [vmem:[%s1 + $0x100] sm:$0xff]
        %v2772 = vld [vmem:[%s1 + $0x108] sm:$0xff]
        %v2773 = vld [vmem:[%s1 + $0x110] sm:$0xff]
        %v2774 = vld [vmem:[%s1 + $0x118] sm:$0xff]
        %v2775 = vld [vmem:[%s1 + $0x120] sm:$0xff]
        %v2776 = vld [vmem:[%s1 + $0x128] sm:$0xff]
        %v2777 = vld [vmem:[%s1 + $0x130] sm:$0xff]
        %v2778 = vld [vmem:[%s1 + $0x138] sm:$0xff]
        %v2779 = vld [vmem:[%s1 + $0x140] sm:$0xff]
        %v2780 = vld [vmem:[%s1 + $0x148] sm:$0xff]
        %v2781 = vld [vmem:[%s1 + $0x150] sm:$0xff]
        %v2782 = vld [vmem:[%s1 + $0x158] sm:$0xff]
        %v2783 = vld [vmem:[%s1 + $0x160] sm:$0xff]
        %v2784 = vld [vmem:[%s1 + $0x168] sm:$0xff]
        %v2785 = vld [vmem:[%s1 + $0x170] sm:$0xff]
        %v2786 = vld [vmem:[%s1 + $0x178] sm:$0xff]
        %v2787 = vld [vmem:[%s1 + $0x180] sm:$0xff]
        %v2788 = vld [vmem:[%s1 + $0x188] sm:$0xff]
        %v2789 = vld [vmem:[%s1 + $0x190] sm:$0xff]
        %v2790 = vld [vmem:[%s1 + $0x198] sm:$0xff]
        %v2791 = vld [vmem:[%s1 + $0x1a0] sm:$0xff]
        %v2792 = vld [vmem:[%s1 + $0x1a8] sm:$0xff]
        %v2793 = vld [vmem:[%s1 + $0x1b0] sm:$0xff]
        %v2794 = vld [vmem:[%s1 + $0x1b8] sm:$0xff]
        %v2795 = vld [vmem:[%s1 + $0x1c0] sm:$0xff]
        %v2796 = vld [vmem:[%s1 + $0x1c8] sm:$0xff]
        %v2797 = vld [vmem:[%s1 + $0x1d0] sm:$0xff]
        %v2798 = vld [vmem:[%s1 + $0x1d8] sm:$0xff]
        %v2799 = vld [vmem:[%s1 + $0x1e0] sm:$0xff]
        %v2800 = vld [vmem:[%s1 + $0x1e8] sm:$0xff]
        %v2801 = vld [vmem:[%s1 + $0x1f0] sm:$0xff]
        %v2802 = vld [vmem:[%s1 + $0x1f8] sm:$0xff]
        %v2803 = vld [vmem:[%s1 + $0x200] sm:$0xff]
        %v2804 = vld [vmem:[%s1 + $0x208] sm:$0xff]
        %v2805 = vld [vmem:[%s1 + $0x210] sm:$0xff]
        %v2806 = vld [vmem:[%s1 + $0x218] sm:$0xff]
        %v2807 = vld [vmem:[%s1 + $0x220] sm:$0xff]
        %v2808 = vld [vmem:[%s1 + $0x228] sm:$0xff]
        %v2809 = vld [vmem:[%s1 + $0x230] sm:$0xff]
        %v2810 = vld [vmem:[%s1 + $0x238] sm:$0xff]
        %v2811 = vld [vmem:[%s1 + $0x240] sm:$0xff]
        %v2812 = vld [vmem:[%s1 + $0x248] sm:$0xff]
        %v2813 = vld [vmem:[%s1 + $0x250] sm:$0xff]
        %v2814 = vld [vmem:[%s1 + $0x258] sm:$0xff]
        %v2815 = vld [vmem:[%s1 + $0x260] sm:$0xff]
        %v2816 = vld [vmem:[%s1 + $0x268] sm:$0xff]
        %v2817 = vld [vmem:[%s1 + $0x270] sm:$0xff]
        %v2818 = vld [vmem:[%s1 + $0x278] sm:$0xff]
        %v2819 = vld [vmem:[%s1 + $0x280] sm:$0xff]
        %v2820 = vld [vmem:[%s1 + $0x288] sm:$0xff]
        %v2821 = vld [vmem:[%s1 + $0x290] sm:$0xff]
        %v2822 = vld [vmem:[%s1 + $0x298] sm:$0xff]
        %v2823 = vld [vmem:[%s1 + $0x2a0] sm:$0xff]
        %v2824 = vld [vmem:[%s1 + $0x2a8] sm:$0xff]
        %v2825 = vld [vmem:[%s1 + $0x2b0] sm:$0xff]
        %v2826 = vld [vmem:[%s1 + $0x2b8] sm:$0xff]
        %v2827 = vld [vmem:[%s1 + $0x2c0] sm:$0xff]
        %v2828 = vld [vmem:[%s1 + $0x2c8] sm:$0xff]
        %v2829 = vld [vmem:[%s1 + $0x2d0] sm:$0xff]
        %v2830 = vld [vmem:[%s1 + $0x2d8] sm:$0xff]
        %v2831 = vld [vmem:[%s1 + $0x2e0] sm:$0xff]
        %v2832 = vld [vmem:[%s1 + $0x2e8] sm:$0xff]
        %v2833 = vld [vmem:[%s1 + $0x2f0] sm:$0xff]
        %v2834 = vld [vmem:[%s1 + $0x2f8] sm:$0xff]
        %v2835 = vld [vmem:[%s1 + $0x300] sm:$0xff]
        %v2836 = vld [vmem:[%s1 + $0x308] sm:$0xff]
        %v2837 = vld [vmem:[%s1 + $0x310] sm:$0xff]
        %v2838 = vld [vmem:[%s1 + $0x318] sm:$0xff]
        %v2839 = vld [vmem:[%s1 + $0x320] sm:$0xff]
        %v2840 = vld [vmem:[%s1 + $0x328] sm:$0xff]
        %v2841 = vld [vmem:[%s1 + $0x330] sm:$0xff]
        %v2842 = vld [vmem:[%s1 + $0x338] sm:$0xff]
        %v2843 = vld [vmem:[%s1 + $0x340] sm:$0xff]
        %v2844 = vld [vmem:[%s1 + $0x348] sm:$0xff]
        %v2845 = vld [vmem:[%s1 + $0x350] sm:$0xff]
        %v2846 = vld [vmem:[%s1 + $0x358] sm:$0xff]
        %v2847 = vld [vmem:[%s1 + $0x360] sm:$0xff]
        %v2848 = vld [vmem:[%s1 + $0x368] sm:$0xff]
        %v2849 = vld [vmem:[%s1 + $0x370] sm:$0xff]
        %v2850 = vld [vmem:[%s1 + $0x378] sm:$0xff]
        %v2851 = vld [vmem:[%s1 + $0x380] sm:$0xff]
        %v2852 = vld [vmem:[%s1 + $0x388] sm:$0xff]
        %v2853 = vld [vmem:[%s1 + $0x390] sm:$0xff]
        %v2854 = vld [vmem:[%s1 + $0x398] sm:$0xff]
        %v2855 = vld [vmem:[%s1 + $0x3a0] sm:$0xff]
        %v2856 = vld [vmem:[%s1 + $0x3a8] sm:$0xff]
        %v2857 = vld [vmem:[%s1 + $0x3b0] sm:$0xff]
        %v2858 = vld [vmem:[%s1 + $0x3b8] sm:$0xff]
        %v2859 = vld [vmem:[%s1 + $0x3c0] sm:$0xff]
        %v2860 = vld [vmem:[%s1 + $0x3c8] sm:$0xff]
        %v2861 = vld [vmem:[%s1 + $0x3d0] sm:$0xff]
        %v2862 = vld [vmem:[%s1 + $0x3d8] sm:$0xff]
        %v2863 = vld [vmem:[%s1 + $0x3e0] sm:$0xff]
        %v2864 = vld [vmem:[%s1 + $0x3e8] sm:$0xff]
        %v2865 = vld [vmem:[%s1 + $0x3f0] sm:$0xff]
        %v2866 = vld [vmem:[%s1 + $0x3f8] sm:$0xff]
        %v2867 = vld [vmem:[%s1 + $0x400] sm:$0xff]
        %v2868 = vld [vmem:[%s1 + $0x408] sm:$0xff]
        %v2869 = vld [vmem:[%s1 + $0x410] sm:$0xff]
        %v2870 = vld [vmem:[%s1 + $0x418] sm:$0xff]
        %v2871 = vld [vmem:[%s1 + $0x420] sm:$0xff]
        %v2872 = vld [vmem:[%s1 + $0x428] sm:$0xff]
        %v2873 = vld [vmem:[%s1 + $0x430] sm:$0xff]
        %v2874 = vld [vmem:[%s1 + $0x438] sm:$0xff]
        %v2875 = vld [vmem:[%s1 + $0x440] sm:$0xff]
        %v2876 = vld [vmem:[%s1 + $0x448] sm:$0xff]
        %v2877 = vld [vmem:[%s1 + $0x450] sm:$0xff]
        %v2878 = vld [vmem:[%s1 + $0x458] sm:$0xff]
        %v2879 = vld [vmem:[%s1 + $0x460] sm:$0xff]
        %v2880 = vld [vmem:[%s1 + $0x468] sm:$0xff]
        %v2881 = vld [vmem:[%s1 + $0x470] sm:$0xff]
        %v2882 = vld [vmem:[%s1 + $0x478] sm:$0xff]
        %v2883 = vld [vmem:[%s1 + $0x480] sm:$0xff]
        %v2884 = vld [vmem:[%s1 + $0x488] sm:$0xff]
        %v2885 = vld [vmem:[%s1 + $0x490] sm:$0xff]
        %v2886 = vld [vmem:[%s1 + $0x498] sm:$0xff]
        %v2887 = vld [vmem:[%s1 + $0x4a0] sm:$0xff]
        %v2888 = vld [vmem:[%s1 + $0x4a8] sm:$0xff]
        %v2889 = vld [vmem:[%s1 + $0x4b0] sm:$0xff]
        %v2890 = vld [vmem:[%s1 + $0x4b8] sm:$0xff]
        %v2891 = vld [vmem:[%s1 + $0x4c0] sm:$0xff]
        %v2892 = vld [vmem:[%s1 + $0x4c8] sm:$0xff]
        %v2893 = vld [vmem:[%s1 + $0x4d0] sm:$0xff]
        %v2894 = vld [vmem:[%s1 + $0x4d8] sm:$0xff]
        %v2895 = vld [vmem:[%s1 + $0x4e0] sm:$0xff]
        %v2896 = vld [vmem:[%s1 + $0x4e8] sm:$0xff]
        %v2897 = vld [vmem:[%s1 + $0x4f0] sm:$0xff]
        %v2898 = vld [vmem:[%s1 + $0x4f8] sm:$0xff]
        %v2920 = vunpack.c.l.b16 %v2718
        %v2921 = vunpack.c.h.b16 %v2718
        %v2922 = vunpack.c.l.b16 %v2719
        %v2923 = vunpack.c.h.b16 %v2719
        %v2924 = vunpack.c.l.b16 %v2720
        %v2925 = vunpack.c.l.b16 %v2721
        %v2926 = vunpack.c.h.b16 %v2721
        %v2927 = vunpack.c.l.b16 %v2722
        %v2928 = vunpack.c.h.b16 %v2722
        %v2929 = vunpack.c.l.b16 %v2723
        %v2930 = vunpack.c.l.b16 %v2724
        %v2931 = vunpack.c.h.b16 %v2724
        %v2932 = vunpack.c.l.b16 %v2725
        %v2933 = vunpack.c.h.b16 %v2725
        %v2934 = vunpack.c.l.b16 %v2726
        %v2935 = vunpack.c.l.b16 %v2727
        %v2936 = vunpack.c.h.b16 %v2727
        %v2937 = vunpack.c.l.b16 %v2728
        %v2938 = vunpack.c.h.b16 %v2728
        %v2939 = vunpack.c.l.b16 %v2729
        %v2940 = vunpack.c.l.b16 %v2730
        %v2941 = vunpack.c.h.b16 %v2730
        %v2942 = vunpack.c.l.b16 %v2731
        %v2943 = vunpack.c.h.b16 %v2731
        %v2944 = vunpack.c.l.b16 %v2732
        %v2945 = vunpack.c.l.b16 %v2733
        %v2946 = vunpack.c.h.b16 %v2733
        %v2947 = vunpack.c.l.b16 %v2734
        %v2948 = vunpack.c.h.b16 %v2734
        %v2949 = vunpack.c.l.b16 %v2735
        %v2950 = vunpack.c.l.b16 %v2736
        %v2951 = vunpack.c.h.b16 %v2736
        %v2952 = vunpack.c.l.b16 %v2737
        %v2953 = vunpack.c.h.b16 %v2737
        %v2954 = vunpack.c.l.b16 %v2738
        %v2955 = vpack.c.b16 %v2925, %v2920
        %v2956 = vpack.c.b16 %v2926, %v2921
        %v2957 = vpack.c.b16 %v2927, %v2922
        %v2958 = vpack.c.b16 %v2928, %v2923
        %v2959 = vpack.c.b16 %v2929, %v2924
        %v2960 = vpack.c.b16 %v2935, %v2930
        %v2961 = vpack.c.b16 %v2936, %v2931
        %v2962 = vpack.c.b16 %v2937, %v2932
        %v2963 = vpack.c.b16 %v2938, %v2933
        %v2964 = vpack.c.b16 %v2939, %v2934
        %v2965 = vpack.c.b16 %v2945, %v2940
        %v2966 = vpack.c.b16 %v2946, %v2941
        %v2967 = vpack.c.b16 %v2947, %v2942
        %v2968 = vpack.c.b16 %v2948, %v2943
        %v2969 = vpack.c.b16 %v2949, %v2944
        %v2970 = vpack.c.b16 %v2950, %v2950
        %v2971 = vpack.c.b16 %v2951, %v2951
        %v2972 = vpack.c.b16 %v2952, %v2952
        %v2973 = vpack.c.b16 %v2953, %v2953
        %v2974 = vpack.c.b16 %v2954, %v2954
        %v3155 = vunpack.c.l.b16 %v2739
        %v3156 = vunpack.c.h.b16 %v2739
        %v3157 = vunpack.c.l.b16 %v2740
        %v3158 = vunpack.c.h.b16 %v2740
        %v3159 = vunpack.c.l.b16 %v2741
        %v3160 = vunpack.c.h.b16 %v2741
        %v3161 = vunpack.c.l.b16 %v2742
        %v3162 = vunpack.c.h.b16 %v2742
        %v3163 = vunpack.c.l.b16 %v2743
        %v3164 = vunpack.c.h.b16 %v2743
        %v3165 = vunpack.c.l.b16 %v2744
        %v3166 = vunpack.c.h.b16 %v2744
        %v3167 = vunpack.c.l.b16 %v2745
        %v3168 = vunpack.c.h.b16 %v2745
        %v3169 = vunpack.c.l.b16 %v2746
        %v3170 = vunpack.c.h.b16 %v2746
        %v3171 = vunpack.c.l.b16 %v2747
        %v3172 = vunpack.c.h.b16 %v2747
        %v3173 = vunpack.c.l.b16 %v2748
        %v3174 = vunpack.c.h.b16 %v2748
        %v3175 = vunpack.c.l.b16 %v2749
        %v3176 = vunpack.c.h.b16 %v2749
        %v3177 = vunpack.c.l.b16 %v2750
        %v3178 = vunpack.c.h.b16 %v2750
        %v3179 = vunpack.c.l.b16 %v2751
        %v3180 = vunpack.c.h.b16 %v2751
        %v3181 = vunpack.c.l.b16 %v2752
        %v3182 = vunpack.c.h.b16 %v2752
        %v3183 = vunpack.c.l.b16 %v2753
        %v3184 = vunpack.c.h.b16 %v2753
        %v3185 = vunpack.c.l.b16 %v2754
        %v3186 = vunpack.c.h.b16 %v2754
        %v3187 = vunpack.c.l.b16 %v2755
        %v3188 = vunpack.c.h.b16 %v2755
        %v3189 = vunpack.c.l.b16 %v2756
        %v3190 = vunpack.c.h.b16 %v2756
        %v3191 = vunpack.c.l.b16 %v2757
        %v3192 = vunpack.c.h.b16 %v2757
        %v3193 = vunpack.c.l.b16 %v2758
        %v3194 = vunpack.c.h.b16 %v2758
        %v3195 = vunpack.c.l.b16 %v2759
        %v3196 = vunpack.c.h.b16 %v2759
        %v3197 = vunpack.c.l.b16 %v2760
        %v3198 = vunpack.c.h.b16 %v2760
        %v3199 = vunpack.c.l.b16 %v2761
        %v3200 = vunpack.c.h.b16 %v2761
        %v3201 = vunpack.c.l.b16 %v2762
        %v3202 = vunpack.c.h.b16 %v2762
        %v3203 = vunpack.c.l.b16 %v2763
        %v3204 = vunpack.c.h.b16 %v2763
        %v3205 = vunpack.c.l.b16 %v2764
        %v3206 = vunpack.c.h.b16 %v2764
        %v3207 = vunpack.c.l.b16 %v2765
        %v3208 = vunpack.c.h.b16 %v2765
        %v3209 = vunpack.c.l.b16 %v2766
        %v3210 = vunpack.c.h.b16 %v2766
        %v3211 = vunpack.c.l.b16 %v2767
        %v3212 = vunpack.c.h.b16 %v2767
        %v3213 = vunpack.c.l.b16 %v2768
        %v3214 = vunpack.c.h.b16 %v2768
        %v3215 = vunpack.c.l.b16 %v2769
        %v3216 = vunpack.c.h.b16 %v2769
        %v3217 = vunpack.c.l.b16 %v2770
        %v3218 = vunpack.c.h.b16 %v2770
        %v3219 = vunpack.c.l.b16 %v2771
        %v3220 = vunpack.c.h.b16 %v2771
        %v3221 = vunpack.c.l.b16 %v2772
        %v3222 = vunpack.c.h.b16 %v2772
        %v3223 = vunpack.c.l.b16 %v2773
        %v3224 = vunpack.c.h.b16 %v2773
        %v3225 = vunpack.c.l.b16 %v2774
        %v3226 = vunpack.c.h.b16 %v2774
        %v3227 = vunpack.c.l.b16 %v2775
        %v3228 = vunpack.c.h.b16 %v2775
        %v3229 = vunpack.c.l.b16 %v2776
        %v3230 = vunpack.c.h.b16 %v2776
        %v3231 = vunpack.c.l.b16 %v2777
        %v3232 = vunpack.c.h.b16 %v2777
        %v3233 = vunpack.c.l.b16 %v2778
        %v3234 = vunpack.c.h.b16 %v2778
        %v3235 = vunpack.c.l.b16 %v2779
        %v3236 = vunpack.c.h.b16 %v2779
        %v3237 = vunpack.c.l.b16 %v2780
        %v3238 = vunpack.c.h.b16 %v2780
        %v3239 = vunpack.c.l.b16 %v2781
        %v3240 = vunpack.c.h.b16 %v2781
        %v3241 = vunpack.c.l.b16 %v2782
        %v3242 = vunpack.c.h.b16 %v2782
        %v3243 = vunpack.c.l.b16 %v2783
        %v3244 = vunpack.c.h.b16 %v2783
        %v3245 = vunpack.c.l.b16 %v2784
        %v3246 = vunpack.c.h.b16 %v2784
        %v3247 = vunpack.c.l.b16 %v2785
        %v3248 = vunpack.c.h.b16 %v2785
        %v3249 = vunpack.c.l.b16 %v2786
        %v3250 = vunpack.c.h.b16 %v2786
        %v3251 = vunpack.c.l.b16 %v2787
        %v3252 = vunpack.c.h.b16 %v2787
        %v3253 = vunpack.c.l.b16 %v2788
        %v3254 = vunpack.c.h.b16 %v2788
        %v3255 = vunpack.c.l.b16 %v2789
        %v3256 = vunpack.c.h.b16 %v2789
        %v3257 = vunpack.c.l.b16 %v2790
        %v3258 = vunpack.c.h.b16 %v2790
        %v3259 = vunpack.c.l.b16 %v2791
        %v3260 = vunpack.c.h.b16 %v2791
        %v3261 = vunpack.c.l.b16 %v2792
        %v3262 = vunpack.c.h.b16 %v2792
        %v3263 = vunpack.c.l.b16 %v2793
        %v3264 = vunpack.c.h.b16 %v2793
        %v3265 = vunpack.c.l.b16 %v2794
        %v3266 = vunpack.c.h.b16 %v2794
        %v3267 = vunpack.c.l.b16 %v2795
        %v3268 = vunpack.c.h.b16 %v2795
        %v3269 = vunpack.c.l.b16 %v2796
        %v3270 = vunpack.c.h.b16 %v2796
        %v3271 = vunpack.c.l.b16 %v2797
        %v3272 = vunpack.c.h.b16 %v2797
        %v3273 = vunpack.c.l.b16 %v2798
        %v3274 = vunpack.c.h.b16 %v2798
        %v3275 = vunpack.c.l.b16 %v2799
        %v3276 = vunpack.c.h.b16 %v2799
        %v3277 = vunpack.c.l.b16 %v2800
        %v3278 = vunpack.c.h.b16 %v2800
        %v3279 = vunpack.c.l.b16 %v2801
        %v3280 = vunpack.c.h.b16 %v2801
        %v3281 = vunpack.c.l.b16 %v2802
        %v3282 = vunpack.c.h.b16 %v2802
        %v3283 = vunpack.c.l.b16 %v2803
        %v3284 = vunpack.c.h.b16 %v2803
        %v3285 = vunpack.c.l.b16 %v2804
        %v3286 = vunpack.c.h.b16 %v2804
        %v3287 = vunpack.c.l.b16 %v2805
        %v3288 = vunpack.c.h.b16 %v2805
        %v3289 = vunpack.c.l.b16 %v2806
        %v3290 = vunpack.c.h.b16 %v2806
        %v3291 = vunpack.c.l.b16 %v2807
        %v3292 = vunpack.c.h.b16 %v2807
        %v3293 = vunpack.c.l.b16 %v2808
        %v3294 = vunpack.c.h.b16 %v2808
        %v3295 = vunpack.c.l.b16 %v2809
        %v3296 = vunpack.c.h.b16 %v2809
        %v3297 = vunpack.c.l.b16 %v2810
        %v3298 = vunpack.c.h.b16 %v2810
        %v3299 = vunpack.c.l.b16 %v2811
        %v3300 = vunpack.c.h.b16 %v2811
        %v3301 = vunpack.c.l.b16 %v2812
        %v3302 = vunpack.c.h.b16 %v2812
        %v3303 = vunpack.c.l.b16 %v2813
        %v3304 = vunpack.c.h.b16 %v2813
        %v3305 = vunpack.c.l.b16 %v2814
        %v3306 = vunpack.c.h.b16 %v2814
        %v3307 = vunpack.c.l.b16 %v2815
        %v3308 = vunpack.c.h.b16 %v2815
        %v3309 = vunpack.c.l.b16 %v2816
        %v3310 = vunpack.c.h.b16 %v2816
        %v3311 = vunpack.c.l.b16 %v2817
        %v3312 = vunpack.c.h.b16 %v2817
        %v3313 = vunpack.c.l.b16 %v2818
        %v3314 = vunpack.c.h.b16 %v2818
        %v3315 = vunpack.c.l.b16 %v2819
        %v3316 = vunpack.c.h.b16 %v2819
        %v3317 = vunpack.c.l.b16 %v2820
        %v3318 = vunpack.c.h.b16 %v2820
        %v3319 = vunpack.c.l.b16 %v2821
        %v3320 = vunpack.c.h.b16 %v2821
        %v3321 = vunpack.c.l.b16 %v2822
        %v3322 = vunpack.c.h.b16 %v2822
        %v3323 = vunpack.c.l.b16 %v2823
        %v3324 = vunpack.c.h.b16 %v2823
        %v3325 = vunpack.c.l.b16 %v2824
        %v3326 = vunpack.c.h.b16 %v2824
        %v3327 = vunpack.c.l.b16 %v2825
        %v3328 = vunpack.c.h.b16 %v2825
        %v3329 = vunpack.c.l.b16 %v2826
        %v3330 = vunpack.c.h.b16 %v2826
        %v3331 = vunpack.c.l.b16 %v2827
        %v3332 = vunpack.c.h.b16 %v2827
        %v3333 = vunpack.c.l.b16 %v2828
        %v3334 = vunpack.c.h.b16 %v2828
        %v3335 = vunpack.c.l.b16 %v2829
        %v3336 = vunpack.c.h.b16 %v2829
        %v3337 = vunpack.c.l.b16 %v2830
        %v3338 = vunpack.c.h.b16 %v2830
        %v3339 = vunpack.c.l.b16 %v2831
        %v3340 = vunpack.c.h.b16 %v2831
        %v3341 = vunpack.c.l.b16 %v2832
        %v3342 = vunpack.c.h.b16 %v2832
        %v3343 = vunpack.c.l.b16 %v2833
        %v3344 = vunpack.c.h.b16 %v2833
        %v3345 = vunpack.c.l.b16 %v2834
        %v3346 = vunpack.c.h.b16 %v2834
        %v3347 = vunpack.c.l.b16 %v2835
        %v3348 = vunpack.c.h.b16 %v2835
        %v3349 = vunpack.c.l.b16 %v2836
        %v3350 = vunpack.c.h.b16 %v2836
        %v3351 = vunpack.c.l.b16 %v2837
        %v3352 = vunpack.c.h.b16 %v2837
        %v3353 = vunpack.c.l.b16 %v2838
        %v3354 = vunpack.c.h.b16 %v2838
        %v3355 = vunpack.c.l.b16 %v2839
        %v3356 = vunpack.c.h.b16 %v2839
        %v3357 = vunpack.c.l.b16 %v2840
        %v3358 = vunpack.c.h.b16 %v2840
        %v3359 = vunpack.c.l.b16 %v2841
        %v3360 = vunpack.c.h.b16 %v2841
        %v3361 = vunpack.c.l.b16 %v2842
        %v3362 = vunpack.c.h.b16 %v2842
        %v3363 = vunpack.c.l.b16 %v2843
        %v3364 = vunpack.c.h.b16 %v2843
        %v3365 = vunpack.c.l.b16 %v2844
        %v3366 = vunpack.c.h.b16 %v2844
        %v3367 = vunpack.c.l.b16 %v2845
        %v3368 = vunpack.c.h.b16 %v2845
        %v3369 = vunpack.c.l.b16 %v2846
        %v3370 = vunpack.c.h.b16 %v2846
        %v3371 = vunpack.c.l.b16 %v2847
        %v3372 = vunpack.c.h.b16 %v2847
        %v3373 = vunpack.c.l.b16 %v2848
        %v3374 = vunpack.c.h.b16 %v2848
        %v3375 = vunpack.c.l.b16 %v2849
        %v3376 = vunpack.c.h.b16 %v2849
        %v3377 = vunpack.c.l.b16 %v2850
        %v3378 = vunpack.c.h.b16 %v2850
        %v3379 = vunpack.c.l.b16 %v2851
        %v3380 = vunpack.c.h.b16 %v2851
        %v3381 = vunpack.c.l.b16 %v2852
        %v3382 = vunpack.c.h.b16 %v2852
        %v3383 = vunpack.c.l.b16 %v2853
        %v3384 = vunpack.c.h.b16 %v2853
        %v3385 = vunpack.c.l.b16 %v2854
        %v3386 = vunpack.c.h.b16 %v2854
        %v3387 = vunpack.c.l.b16 %v2855
        %v3388 = vunpack.c.h.b16 %v2855
        %v3389 = vunpack.c.l.b16 %v2856
        %v3390 = vunpack.c.h.b16 %v2856
        %v3391 = vunpack.c.l.b16 %v2857
        %v3392 = vunpack.c.h.b16 %v2857
        %v3393 = vunpack.c.l.b16 %v2858
        %v3394 = vunpack.c.h.b16 %v2858
        %v3395 = vunpack.c.l.b16 %v2859
        %v3396 = vunpack.c.h.b16 %v2859
        %v3397 = vunpack.c.l.b16 %v2860
        %v3398 = vunpack.c.h.b16 %v2860
        %v3399 = vunpack.c.l.b16 %v2861
        %v3400 = vunpack.c.h.b16 %v2861
        %v3401 = vunpack.c.l.b16 %v2862
        %v3402 = vunpack.c.h.b16 %v2862
        %v3403 = vunpack.c.l.b16 %v2863
        %v3404 = vunpack.c.h.b16 %v2863
        %v3405 = vunpack.c.l.b16 %v2864
        %v3406 = vunpack.c.h.b16 %v2864
        %v3407 = vunpack.c.l.b16 %v2865
        %v3408 = vunpack.c.h.b16 %v2865
        %v3409 = vunpack.c.l.b16 %v2866
        %v3410 = vunpack.c.h.b16 %v2866
        %v3411 = vunpack.c.l.b16 %v2867
        %v3412 = vunpack.c.h.b16 %v2867
        %v3413 = vunpack.c.l.b16 %v2868
        %v3414 = vunpack.c.h.b16 %v2868
        %v3415 = vunpack.c.l.b16 %v2869
        %v3416 = vunpack.c.h.b16 %v2869
        %v3417 = vunpack.c.l.b16 %v2870
        %v3418 = vunpack.c.h.b16 %v2870
        %v3419 = vunpack.c.l.b16 %v2871
        %v3420 = vunpack.c.h.b16 %v2871
        %v3421 = vunpack.c.l.b16 %v2872
        %v3422 = vunpack.c.h.b16 %v2872
        %v3423 = vunpack.c.l.b16 %v2873
        %v3424 = vunpack.c.h.b16 %v2873
        %v3425 = vunpack.c.l.b16 %v2874
        %v3426 = vunpack.c.h.b16 %v2874
        %v3427 = vunpack.c.l.b16 %v2875
        %v3428 = vunpack.c.h.b16 %v2875
        %v3429 = vunpack.c.l.b16 %v2876
        %v3430 = vunpack.c.h.b16 %v2876
        %v3431 = vunpack.c.l.b16 %v2877
        %v3432 = vunpack.c.h.b16 %v2877
        %v3433 = vunpack.c.l.b16 %v2878
        %v3434 = vunpack.c.h.b16 %v2878
        %v3435 = vunpack.c.l.b16 %v2879
        %v3436 = vunpack.c.h.b16 %v2879
        %v3437 = vunpack.c.l.b16 %v2880
        %v3438 = vunpack.c.h.b16 %v2880
        %v3439 = vunpack.c.l.b16 %v2881
        %v3440 = vunpack.c.h.b16 %v2881
        %v3441 = vunpack.c.l.b16 %v2882
        %v3442 = vunpack.c.h.b16 %v2882
        %v3443 = vunpack.c.l.b16 %v2883
        %v3444 = vunpack.c.h.b16 %v2883
        %v3445 = vunpack.c.l.b16 %v2884
        %v3446 = vunpack.c.h.b16 %v2884
        %v3447 = vunpack.c.l.b16 %v2885
        %v3448 = vunpack.c.h.b16 %v2885
        %v3449 = vunpack.c.l.b16 %v2886
        %v3450 = vunpack.c.h.b16 %v2886
        %v3451 = vunpack.c.l.b16 %v2887
        %v3452 = vunpack.c.h.b16 %v2887
        %v3453 = vunpack.c.l.b16 %v2888
        %v3454 = vunpack.c.h.b16 %v2888
        %v3455 = vunpack.c.l.b16 %v2889
        %v3456 = vunpack.c.h.b16 %v2889
        %v3457 = vunpack.c.l.b16 %v2890
        %v3458 = vunpack.c.h.b16 %v2890
        %v3459 = vunpack.c.l.b16 %v2891
        %v3460 = vunpack.c.h.b16 %v2891
        %v3461 = vunpack.c.l.b16 %v2892
        %v3462 = vunpack.c.h.b16 %v2892
        %v3463 = vunpack.c.l.b16 %v2893
        %v3464 = vunpack.c.h.b16 %v2893
        %v3465 = vunpack.c.l.b16 %v2894
        %v3466 = vunpack.c.h.b16 %v2894
        %v3467 = vunpack.c.l.b16 %v2895
        %v3468 = vunpack.c.h.b16 %v2895
        %v3469 = vunpack.c.l.b16 %v2896
        %v3470 = vunpack.c.h.b16 %v2896
        %v3471 = vunpack.c.l.b16 %v2897
        %v3472 = vunpack.c.h.b16 %v2897
        %v3473 = vunpack.c.l.b16 %v2898
        %v3474 = vunpack.c.h.b16 %v2898
        %v3475 = vpack.c.b16 %v3159, %v3155
        %v3476 = vpack.c.b16 %v3160, %v3156
        %v3477 = vpack.c.b16 %v3161, %v3157
        %v3478 = vpack.c.b16 %v3162, %v3158
        %v3479 = vpack.c.b16 %v3167, %v3163
        %v3480 = vpack.c.b16 %v3168, %v3164
        %v3481 = vpack.c.b16 %v3169, %v3165
        %v3482 = vpack.c.b16 %v3170, %v3166
        %v3483 = vpack.c.b16 %v3175, %v3171
        %v3484 = vpack.c.b16 %v3176, %v3172
        %v3485 = vpack.c.b16 %v3177, %v3173
        %v3486 = vpack.c.b16 %v3178, %v3174
        %v3487 = vpack.c.b16 %v3183, %v3179
        %v3488 = vpack.c.b16 %v3184, %v3180
        %v3489 = vpack.c.b16 %v3185, %v3181
        %v3490 = vpack.c.b16 %v3186, %v3182
        %v3491 = vpack.c.b16 %v3191, %v3187
        %v3492 = vpack.c.b16 %v3192, %v3188
        %v3493 = vpack.c.b16 %v3193, %v3189
        %v3494 = vpack.c.b16 %v3194, %v3190
        %v3495 = vpack.c.b16 %v3199, %v3195
        %v3496 = vpack.c.b16 %v3200, %v3196
        %v3497 = vpack.c.b16 %v3201, %v3197
        %v3498 = vpack.c.b16 %v3202, %v3198
        %v3499 = vpack.c.b16 %v3207, %v3203
        %v3500 = vpack.c.b16 %v3208, %v3204
        %v3501 = vpack.c.b16 %v3209, %v3205
        %v3502 = vpack.c.b16 %v3210, %v3206
        %v3503 = vpack.c.b16 %v3215, %v3211
        %v3504 = vpack.c.b16 %v3216, %v3212
        %v3505 = vpack.c.b16 %v3217, %v3213
        %v3506 = vpack.c.b16 %v3218, %v3214
        %v3507 = vpack.c.b16 %v3223, %v3219
        %v3508 = vpack.c.b16 %v3224, %v3220
        %v3509 = vpack.c.b16 %v3225, %v3221
        %v3510 = vpack.c.b16 %v3226, %v3222
        %v3511 = vpack.c.b16 %v3231, %v3227
        %v3512 = vpack.c.b16 %v3232, %v3228
        %v3513 = vpack.c.b16 %v3233, %v3229
        %v3514 = vpack.c.b16 %v3234, %v3230
        %v3515 = vpack.c.b16 %v3239, %v3235
        %v3516 = vpack.c.b16 %v3240, %v3236
        %v3517 = vpack.c.b16 %v3241, %v3237
        %v3518 = vpack.c.b16 %v3242, %v3238
        %v3519 = vpack.c.b16 %v3247, %v3243
        %v3520 = vpack.c.b16 %v3248, %v3244
        %v3521 = vpack.c.b16 %v3249, %v3245
        %v3522 = vpack.c.b16 %v3250, %v3246
        %v3523 = vpack.c.b16 %v3255, %v3251
        %v3524 = vpack.c.b16 %v3256, %v3252
        %v3525 = vpack.c.b16 %v3257, %v3253
        %v3526 = vpack.c.b16 %v3258, %v3254
        %v3527 = vpack.c.b16 %v3263, %v3259
        %v3528 = vpack.c.b16 %v3264, %v3260
        %v3529 = vpack.c.b16 %v3265, %v3261
        %v3530 = vpack.c.b16 %v3266, %v3262
        %v3531 = vpack.c.b16 %v3271, %v3267
        %v3532 = vpack.c.b16 %v3272, %v3268
        %v3533 = vpack.c.b16 %v3273, %v3269
        %v3534 = vpack.c.b16 %v3274, %v3270
        %v3535 = vpack.c.b16 %v3279, %v3275
        %v3536 = vpack.c.b16 %v3280, %v3276
        %v3537 = vpack.c.b16 %v3281, %v3277
        %v3538 = vpack.c.b16 %v3282, %v3278
        %v3539 = vpack.c.b16 %v3287, %v3283
        %v3540 = vpack.c.b16 %v3288, %v3284
        %v3541 = vpack.c.b16 %v3289, %v3285
        %v3542 = vpack.c.b16 %v3290, %v3286
        %v3543 = vpack.c.b16 %v3295, %v3291
        %v3544 = vpack.c.b16 %v3296, %v3292
        %v3545 = vpack.c.b16 %v3297, %v3293
        %v3546 = vpack.c.b16 %v3298, %v3294
        %v3547 = vpack.c.b16 %v3303, %v3299
        %v3548 = vpack.c.b16 %v3304, %v3300
        %v3549 = vpack.c.b16 %v3305, %v3301
        %v3550 = vpack.c.b16 %v3306, %v3302
        %v3551 = vpack.c.b16 %v3311, %v3307
        %v3552 = vpack.c.b16 %v3312, %v3308
        %v3553 = vpack.c.b16 %v3313, %v3309
        %v3554 = vpack.c.b16 %v3314, %v3310
        %v3555 = vpack.c.b16 %v3319, %v3315
        %v3556 = vpack.c.b16 %v3320, %v3316
        %v3557 = vpack.c.b16 %v3321, %v3317
        %v3558 = vpack.c.b16 %v3322, %v3318
        %v3559 = vpack.c.b16 %v3327, %v3323
        %v3560 = vpack.c.b16 %v3328, %v3324
        %v3561 = vpack.c.b16 %v3329, %v3325
        %v3562 = vpack.c.b16 %v3330, %v3326
        %v3563 = vpack.c.b16 %v3335, %v3331
        %v3564 = vpack.c.b16 %v3336, %v3332
        %v3565 = vpack.c.b16 %v3337, %v3333
        %v3566 = vpack.c.b16 %v3338, %v3334
        %v3567 = vpack.c.b16 %v3343, %v3339
        %v3568 = vpack.c.b16 %v3344, %v3340
        %v3569 = vpack.c.b16 %v3345, %v3341
        %v3570 = vpack.c.b16 %v3346, %v3342
        %v3571 = vpack.c.b16 %v3351, %v3347
        %v3572 = vpack.c.b16 %v3352, %v3348
        %v3573 = vpack.c.b16 %v3353, %v3349
        %v3574 = vpack.c.b16 %v3354, %v3350
        %v3575 = vpack.c.b16 %v3359, %v3355
        %v3576 = vpack.c.b16 %v3360, %v3356
        %v3577 = vpack.c.b16 %v3361, %v3357
        %v3578 = vpack.c.b16 %v3362, %v3358
        %v3579 = vpack.c.b16 %v3367, %v3363
        %v3580 = vpack.c.b16 %v3368, %v3364
        %v3581 = vpack.c.b16 %v3369, %v3365
        %v3582 = vpack.c.b16 %v3370, %v3366
        %v3583 = vpack.c.b16 %v3375, %v3371
        %v3584 = vpack.c.b16 %v3376, %v3372
        %v3585 = vpack.c.b16 %v3377, %v3373
        %v3586 = vpack.c.b16 %v3378, %v3374
        %v3587 = vpack.c.b16 %v3383, %v3379
        %v3588 = vpack.c.b16 %v3384, %v3380
        %v3589 = vpack.c.b16 %v3385, %v3381
        %v3590 = vpack.c.b16 %v3386, %v3382
        %v3591 = vpack.c.b16 %v3391, %v3387
        %v3592 = vpack.c.b16 %v3392, %v3388
        %v3593 = vpack.c.b16 %v3393, %v3389
        %v3594 = vpack.c.b16 %v3394, %v3390
        %v3595 = vpack.c.b16 %v3399, %v3395
        %v3596 = vpack.c.b16 %v3400, %v3396
        %v3597 = vpack.c.b16 %v3401, %v3397
        %v3598 = vpack.c.b16 %v3402, %v3398
        %v3599 = vpack.c.b16 %v3407, %v3403
        %v3600 = vpack.c.b16 %v3408, %v3404
        %v3601 = vpack.c.b16 %v3409, %v3405
        %v3602 = vpack.c.b16 %v3410, %v3406
        %v3603 = vpack.c.b16 %v3415, %v3411
        %v3604 = vpack.c.b16 %v3416, %v3412
        %v3605 = vpack.c.b16 %v3417, %v3413
        %v3606 = vpack.c.b16 %v3418, %v3414
        %v3607 = vpack.c.b16 %v3423, %v3419
        %v3608 = vpack.c.b16 %v3424, %v3420
        %v3609 = vpack.c.b16 %v3425, %v3421
        %v3610 = vpack.c.b16 %v3426, %v3422
        %v3611 = vpack.c.b16 %v3431, %v3427
        %v3612 = vpack.c.b16 %v3432, %v3428
        %v3613 = vpack.c.b16 %v3433, %v3429
        %v3614 = vpack.c.b16 %v3434, %v3430
        %v3615 = vpack.c.b16 %v3439, %v3435
        %v3616 = vpack.c.b16 %v3440, %v3436
        %v3617 = vpack.c.b16 %v3441, %v3437
        %v3618 = vpack.c.b16 %v3442, %v3438
        %v3619 = vpack.c.b16 %v3447, %v3443
        %v3620 = vpack.c.b16 %v3448, %v3444
        %v3621 = vpack.c.b16 %v3449, %v3445
        %v3622 = vpack.c.b16 %v3450, %v3446
        %v3623 = vpack.c.b16 %v3455, %v3451
        %v3624 = vpack.c.b16 %v3456, %v3452
        %v3625 = vpack.c.b16 %v3457, %v3453
        %v3626 = vpack.c.b16 %v3458, %v3454
        %v3627 = vpack.c.b16 %v3463, %v3459
        %v3628 = vpack.c.b16 %v3464, %v3460
        %v3629 = vpack.c.b16 %v3465, %v3461
        %v3630 = vpack.c.b16 %v3466, %v3462
        %v3631 = vpack.c.b16 %v3471, %v3467
        %v3632 = vpack.c.b16 %v3472, %v3468
        %v3633 = vpack.c.b16 %v3473, %v3469
        %v3634 = vpack.c.b16 %v3474, %v3470
        %3795 = vmatpush.bf16.msra.mxu0 %v3503
        %3796 = vmatpush.bf16.msra.mxu0 %v3499
        %3797 = vmatpush.bf16.msra.mxu0 %v3495
        %3798 = vmatpush.bf16.msra.mxu0 %v3491
        %3799 = vmatpush.bf16.msra.mxu0 %v3487
        %3800 = vmatpush.bf16.msra.mxu0 %v3483
        %3801 = vmatpush.bf16.msra.mxu0 %v3479
        %3802 = vmatpush.bf16.msra.mxu0 %v3475
        %3803 = vmatmul.bf16.gmra.mxu0 %v2955
        %v3804 = vpop.f32.mrf.mxu0
        %v3805 = vadd.f32 0.0, %v3804
        %v3806 = vpop.f32.mrf.mxu0
        %v3807 = vadd.f32 0.0, %v3806
        %3808 = vmatmul.bf16.gmra.mxu0 %v2960
        %v3809 = vpop.f32.mrf.mxu0
        %v3810 = vadd.f32 0.0, %v3809
        %v3811 = vpop.f32.mrf.mxu0
        %v3812 = vadd.f32 0.0, %v3811
        %3813 = vmatmul.bf16.gmra.mxu0 %v2965
        %v3814 = vpop.f32.mrf.mxu0
        %v3815 = vadd.f32 0.0, %v3814
        %v3816 = vpop.f32.mrf.mxu0
        %v3817 = vadd.f32 0.0, %v3816
        %3818 = vmatmul.bf16.gmra.mxu0 %v2970
        %v3819 = vpop.f32.mrf.mxu0
        %v3820 = vadd.f32 0.0, %v3819
        %v3821 = vpop.f32.mrf.mxu0
        %3822 = vdwg.mxu0
        %3823 = vmatpush.bf16.msra.mxu0 %v3535
        %3824 = vmatpush.bf16.msra.mxu0 %v3531
        %3825 = vmatpush.bf16.msra.mxu0 %v3527
        %3826 = vmatpush.bf16.msra.mxu0 %v3523
        %3827 = vmatpush.bf16.msra.mxu0 %v3519
        %3828 = vmatpush.bf16.msra.mxu0 %v3515
        %3829 = vmatpush.bf16.msra.mxu0 %v3511
        %3830 = vmatpush.bf16.msra.mxu0 %v3507
        %3831 = vmatmul.bf16.gmra.mxu0 %v2956
        %v3832 = vpop.f32.mrf.mxu0
        %v3833 = vadd.f32 %v3805, %v3832
        %v3834 = vpop.f32.mrf.mxu0
        %v3835 = vadd.f32 %v3807, %v3834
        %3836 = vmatmul.bf16.gmra.mxu0 %v2961
        %v3837 = vpop.f32.mrf.mxu0
        %v3838 = vadd.f32 %v3810, %v3837
        %v3839 = vpop.f32.mrf.mxu0
        %v3840 = vadd.f32 %v3812, %v3839
        %3841 = vmatmul.bf16.gmra.mxu0 %v2966
        %v3842 = vpop.f32.mrf.mxu0
        %v3843 = vadd.f32 %v3815, %v3842
        %v3844 = vpop.f32.mrf.mxu0
        %v3845 = vadd.f32 %v3817, %v3844
        %3846 = vmatmul.bf16.gmra.mxu0 %v2971
        %v3847 = vpop.f32.mrf.mxu0
        %v3848 = vadd.f32 %v3820, %v3847
        %v3849 = vpop.f32.mrf.mxu0
        %3850 = vdwg.mxu0
        %3851 = vmatpush.bf16.msra.mxu0 %v3567
        %3852 = vmatpush.bf16.msra.mxu0 %v3563
        %3853 = vmatpush.bf16.msra.mxu0 %v3559
        %3854 = vmatpush.bf16.msra.mxu0 %v3555
        %3855 = vmatpush.bf16.msra.mxu0 %v3551
        %3856 = vmatpush.bf16.msra.mxu0 %v3547
        %3857 = vmatpush.bf16.msra.mxu0 %v3543
        %3858 = vmatpush.bf16.msra.mxu0 %v3539
        %3859 = vmatmul.bf16.gmra.mxu0 %v2957
        %v3860 = vpop.f32.mrf.mxu0
        %v3861 = vadd.f32 %v3833, %v3860
        %v3862 = vpop.f32.mrf.mxu0
        %v3863 = vadd.f32 %v3835, %v3862
        %3864 = vmatmul.bf16.gmra.mxu0 %v2962
        %v3865 = vpop.f32.mrf.mxu0
        %v3866 = vadd.f32 %v3838, %v3865
        %v3867 = vpop.f32.mrf.mxu0
        %v3868 = vadd.f32 %v3840, %v3867
        %3869 = vmatmul.bf16.gmra.mxu0 %v2967
        %v3870 = vpop.f32.mrf.mxu0
        %v3871 = vadd.f32 %v3843, %v3870
        %v3872 = vpop.f32.mrf.mxu0
        %v3873 = vadd.f32 %v3845, %v3872
        %3874 = vmatmul.bf16.gmra.mxu0 %v2972
        %v3875 = vpop.f32.mrf.mxu0
        %v3876 = vadd.f32 %v3848, %v3875
        %v3877 = vpop.f32.mrf.mxu0
        %3878 = vdwg.mxu0
        %3879 = vmatpush.bf16.msra.mxu0 %v3599
        %3880 = vmatpush.bf16.msra.mxu0 %v3595
        %3881 = vmatpush.bf16.msra.mxu0 %v3591
        %3882 = vmatpush.bf16.msra.mxu0 %v3587
        %3883 = vmatpush.bf16.msra.mxu0 %v3583
        %3884 = vmatpush.bf16.msra.mxu0 %v3579
        %3885 = vmatpush.bf16.msra.mxu0 %v3575
        %3886 = vmatpush.bf16.msra.mxu0 %v3571
        %3887 = vmatmul.bf16.gmra.mxu0 %v2958
        %v3888 = vpop.f32.mrf.mxu0
        %v3889 = vadd.f32 %v3861, %v3888
        %v3890 = vpop.f32.mrf.mxu0
        %v3891 = vadd.f32 %v3863, %v3890
        %3892 = vmatmul.bf16.gmra.mxu0 %v2963
        %v3893 = vpop.f32.mrf.mxu0
        %v3894 = vadd.f32 %v3866, %v3893
        %v3895 = vpop.f32.mrf.mxu0
        %v3896 = vadd.f32 %v3868, %v3895
        %3897 = vmatmul.bf16.gmra.mxu0 %v2968
        %v3898 = vpop.f32.mrf.mxu0
        %v3899 = vadd.f32 %v3871, %v3898
        %v3900 = vpop.f32.mrf.mxu0
        %v3901 = vadd.f32 %v3873, %v3900
        %3902 = vmatmul.bf16.gmra.mxu0 %v2973
        %v3903 = vpop.f32.mrf.mxu0
        %v3904 = vadd.f32 %v3876, %v3903
        %v3905 = vpop.f32.mrf.mxu0
        %3906 = vdwg.mxu0
        %3907 = vmatpush.bf16.msra.mxu0 %v3631
        %3908 = vmatpush.bf16.msra.mxu0 %v3627
        %3909 = vmatpush.bf16.msra.mxu0 %v3623
        %3910 = vmatpush.bf16.msra.mxu0 %v3619
        %3911 = vmatpush.bf16.msra.mxu0 %v3615
        %3912 = vmatpush.bf16.msra.mxu0 %v3611
        %3913 = vmatpush.bf16.msra.mxu0 %v3607
        %3914 = vmatpush.bf16.msra.mxu0 %v3603
        %3915 = vmatmul.bf16.gmra.mxu0 %v2959
        %v3916 = vpop.f32.mrf.mxu0
        %v3917 = vadd.f32 %v3889, %v3916
        %v3918 = vpop.f32.mrf.mxu0
        %v3919 = vadd.f32 %v3891, %v3918
        %3920 = vmatmul.bf16.gmra.mxu0 %v2964
        %v3921 = vpop.f32.mrf.mxu0
        %v3922 = vadd.f32 %v3894, %v3921
        %v3923 = vpop.f32.mrf.mxu0
        %v3924 = vadd.f32 %v3896, %v3923
        %3925 = vmatmul.bf16.gmra.mxu0 %v2969
        %v3926 = vpop.f32.mrf.mxu0
        %v3927 = vadd.f32 %v3899, %v3926
        %v3928 = vpop.f32.mrf.mxu0
        %v3929 = vadd.f32 %v3901, %v3928
        %3930 = vmatmul.bf16.gmra.mxu0 %v2974
        %v3931 = vpop.f32.mrf.mxu0
        %v3932 = vadd.f32 %v3904, %v3931
        %v3933 = vpop.f32.mrf.mxu0
        %3934 = vdwg.mxu0
        %3935 = vmatpush.bf16.msra.mxu0 %v3504
        %3936 = vmatpush.bf16.msra.mxu0 %v3500
        %3937 = vmatpush.bf16.msra.mxu0 %v3496
        %3938 = vmatpush.bf16.msra.mxu0 %v3492
        %3939 = vmatpush.bf16.msra.mxu0 %v3488
        %3940 = vmatpush.bf16.msra.mxu0 %v3484
        %3941 = vmatpush.bf16.msra.mxu0 %v3480
        %3942 = vmatpush.bf16.msra.mxu0 %v3476
        %3943 = vmatmul.bf16.gmra.mxu0 %v2955
        %v3944 = vpop.f32.mrf.mxu0
        %v3945 = vadd.f32 0.0, %v3944
        %v3946 = vpop.f32.mrf.mxu0
        %v3947 = vadd.f32 0.0, %v3946
        %3948 = vmatmul.bf16.gmra.mxu0 %v2960
        %v3949 = vpop.f32.mrf.mxu0
        %v3950 = vadd.f32 0.0, %v3949
        %v3951 = vpop.f32.mrf.mxu0
        %v3952 = vadd.f32 0.0, %v3951
        %3953 = vmatmul.bf16.gmra.mxu0 %v2965
        %v3954 = vpop.f32.mrf.mxu0
        %v3955 = vadd.f32 0.0, %v3954
        %v3956 = vpop.f32.mrf.mxu0
        %v3957 = vadd.f32 0.0, %v3956
        %3958 = vmatmul.bf16.gmra.mxu0 %v2970
        %v3959 = vpop.f32.mrf.mxu0
        %v3960 = vadd.f32 0.0, %v3959
        %v3961 = vpop.f32.mrf.mxu0
        %3962 = vdwg.mxu0
        %3963 = vmatpush.bf16.msra.mxu0 %v3536
        %3964 = vmatpush.bf16.msra.mxu0 %v3532
        %3965 = vmatpush.bf16.msra.mxu0 %v3528
        %3966 = vmatpush.bf16.msra.mxu0 %v3524
        %3967 = vmatpush.bf16.msra.mxu0 %v3520
        %3968 = vmatpush.bf16.msra.mxu0 %v3516
        %3969 = vmatpush.bf16.msra.mxu0 %v3512
        %3970 = vmatpush.bf16.msra.mxu0 %v3508
        %3971 = vmatmul.bf16.gmra.mxu0 %v2956
        %v3972 = vpop.f32.mrf.mxu0
        %v3973 = vadd.f32 %v3945, %v3972
        %v3974 = vpop.f32.mrf.mxu0
        %v3975 = vadd.f32 %v3947, %v3974
        %3976 = vmatmul.bf16.gmra.mxu0 %v2961
        %v3977 = vpop.f32.mrf.mxu0
        %v3978 = vadd.f32 %v3950, %v3977
        %v3979 = vpop.f32.mrf.mxu0
        %v3980 = vadd.f32 %v3952, %v3979
        %3981 = vmatmul.bf16.gmra.mxu0 %v2966
        %v3982 = vpop.f32.mrf.mxu0
        %v3983 = vadd.f32 %v3955, %v3982
        %v3984 = vpop.f32.mrf.mxu0
        %v3985 = vadd.f32 %v3957, %v3984
        %3986 = vmatmul.bf16.gmra.mxu0 %v2971
        %v3987 = vpop.f32.mrf.mxu0
        %v3988 = vadd.f32 %v3960, %v3987
        %v3989 = vpop.f32.mrf.mxu0
        %3990 = vdwg.mxu0
        %3991 = vmatpush.bf16.msra.mxu0 %v3568
        %3992 = vmatpush.bf16.msra.mxu0 %v3564
        %3993 = vmatpush.bf16.msra.mxu0 %v3560
        %3994 = vmatpush.bf16.msra.mxu0 %v3556
        %3995 = vmatpush.bf16.msra.mxu0 %v3552
        %3996 = vmatpush.bf16.msra.mxu0 %v3548
        %3997 = vmatpush.bf16.msra.mxu0 %v3544
        %3998 = vmatpush.bf16.msra.mxu0 %v3540
        %3999 = vmatmul.bf16.gmra.mxu0 %v2957
        %v4000 = vpop.f32.mrf.mxu0
        %v4001 = vadd.f32 %v3973, %v4000
        %v4002 = vpop.f32.mrf.mxu0
        %v4003 = vadd.f32 %v3975, %v4002
        %4004 = vmatmul.bf16.gmra.mxu0 %v2962
        %v4005 = vpop.f32.mrf.mxu0
        %v4006 = vadd.f32 %v3978, %v4005
        %v4007 = vpop.f32.mrf.mxu0
        %v4008 = vadd.f32 %v3980, %v4007
        %4009 = vmatmul.bf16.gmra.mxu0 %v2967
        %v4010 = vpop.f32.mrf.mxu0
        %v4011 = vadd.f32 %v3983, %v4010
        %v4012 = vpop.f32.mrf.mxu0
        %v4013 = vadd.f32 %v3985, %v4012
        %4014 = vmatmul.bf16.gmra.mxu0 %v2972
        %v4015 = vpop.f32.mrf.mxu0
        %v4016 = vadd.f32 %v3988, %v4015
        %v4017 = vpop.f32.mrf.mxu0
        %4018 = vdwg.mxu0
        %4019 = vmatpush.bf16.msra.mxu0 %v3600
        %4020 = vmatpush.bf16.msra.mxu0 %v3596
        %4021 = vmatpush.bf16.msra.mxu0 %v3592
        %4022 = vmatpush.bf16.msra.mxu0 %v3588
        %4023 = vmatpush.bf16.msra.mxu0 %v3584
        %4024 = vmatpush.bf16.msra.mxu0 %v3580
        %4025 = vmatpush.bf16.msra.mxu0 %v3576
        %4026 = vmatpush.bf16.msra.mxu0 %v3572
        %4027 = vmatmul.bf16.gmra.mxu0 %v2958
        %v4028 = vpop.f32.mrf.mxu0
        %v4029 = vadd.f32 %v4001, %v4028
        %v4030 = vpop.f32.mrf.mxu0
        %v4031 = vadd.f32 %v4003, %v4030
        %4032 = vmatmul.bf16.gmra.mxu0 %v2963
        %v4033 = vpop.f32.mrf.mxu0
        %v4034 = vadd.f32 %v4006, %v4033
        %v4035 = vpop.f32.mrf.mxu0
        %v4036 = vadd.f32 %v4008, %v4035
        %4037 = vmatmul.bf16.gmra.mxu0 %v2968
        %v4038 = vpop.f32.mrf.mxu0
        %v4039 = vadd.f32 %v4011, %v4038
        %v4040 = vpop.f32.mrf.mxu0
        %v4041 = vadd.f32 %v4013, %v4040
        %4042 = vmatmul.bf16.gmra.mxu0 %v2973
        %v4043 = vpop.f32.mrf.mxu0
        %v4044 = vadd.f32 %v4016, %v4043
        %v4045 = vpop.f32.mrf.mxu0
        %4046 = vdwg.mxu0
        %4047 = vmatpush.bf16.msra.mxu0 %v3632
        %4048 = vmatpush.bf16.msra.mxu0 %v3628
        %4049 = vmatpush.bf16.msra.mxu0 %v3624
        %4050 = vmatpush.bf16.msra.mxu0 %v3620
        %4051 = vmatpush.bf16.msra.mxu0 %v3616
        %4052 = vmatpush.bf16.msra.mxu0 %v3612
        %4053 = vmatpush.bf16.msra.mxu0 %v3608
        %4054 = vmatpush.bf16.msra.mxu0 %v3604
        %4055 = vmatmul.bf16.gmra.mxu0 %v2959
        %v4056 = vpop.f32.mrf.mxu0
        %v4057 = vadd.f32 %v4029, %v4056
        %v4058 = vpop.f32.mrf.mxu0
        %v4059 = vadd.f32 %v4031, %v4058
        %4060 = vmatmul.bf16.gmra.mxu0 %v2964
        %v4061 = vpop.f32.mrf.mxu0
        %v4062 = vadd.f32 %v4034, %v4061
        %v4063 = vpop.f32.mrf.mxu0
        %v4064 = vadd.f32 %v4036, %v4063
        %4065 = vmatmul.bf16.gmra.mxu0 %v2969
        %v4066 = vpop.f32.mrf.mxu0
        %v4067 = vadd.f32 %v4039, %v4066
        %v4068 = vpop.f32.mrf.mxu0
        %v4069 = vadd.f32 %v4041, %v4068
        %4070 = vmatmul.bf16.gmra.mxu0 %v2974
        %v4071 = vpop.f32.mrf.mxu0
        %v4072 = vadd.f32 %v4044, %v4071
        %v4073 = vpop.f32.mrf.mxu0
        %4074 = vdwg.mxu0
        %4075 = vmatpush.bf16.msra.mxu0 %v3505
        %4076 = vmatpush.bf16.msra.mxu0 %v3501
        %4077 = vmatpush.bf16.msra.mxu0 %v3497
        %4078 = vmatpush.bf16.msra.mxu0 %v3493
        %4079 = vmatpush.bf16.msra.mxu0 %v3489
        %4080 = vmatpush.bf16.msra.mxu0 %v3485
        %4081 = vmatpush.bf16.msra.mxu0 %v3481
        %4082 = vmatpush.bf16.msra.mxu0 %v3477
        %4083 = vmatmul.bf16.gmra.mxu0 %v2955
        %v4084 = vpop.f32.mrf.mxu0
        %v4085 = vadd.f32 0.0, %v4084
        %v4086 = vpop.f32.mrf.mxu0
        %v4087 = vadd.f32 0.0, %v4086
        %4088 = vmatmul.bf16.gmra.mxu0 %v2960
        %v4089 = vpop.f32.mrf.mxu0
        %v4090 = vadd.f32 0.0, %v4089
        %v4091 = vpop.f32.mrf.mxu0
        %v4092 = vadd.f32 0.0, %v4091
        %4093 = vmatmul.bf16.gmra.mxu0 %v2965
        %v4094 = vpop.f32.mrf.mxu0
        %v4095 = vadd.f32 0.0, %v4094
        %v4096 = vpop.f32.mrf.mxu0
        %v4097 = vadd.f32 0.0, %v4096
        %4098 = vmatmul.bf16.gmra.mxu0 %v2970
        %v4099 = vpop.f32.mrf.mxu0
        %v4100 = vadd.f32 0.0, %v4099
        %v4101 = vpop.f32.mrf.mxu0
        %4102 = vdwg.mxu0
        %4103 = vmatpush.bf16.msra.mxu0 %v3537
        %4104 = vmatpush.bf16.msra.mxu0 %v3533
        %4105 = vmatpush.bf16.msra.mxu0 %v3529
        %4106 = vmatpush.bf16.msra.mxu0 %v3525
        %4107 = vmatpush.bf16.msra.mxu0 %v3521
        %4108 = vmatpush.bf16.msra.mxu0 %v3517
        %4109 = vmatpush.bf16.msra.mxu0 %v3513
        %4110 = vmatpush.bf16.msra.mxu0 %v3509
        %4111 = vmatmul.bf16.gmra.mxu0 %v2956
        %v4112 = vpop.f32.mrf.mxu0
        %v4113 = vadd.f32 %v4085, %v4112
        %v4114 = vpop.f32.mrf.mxu0
        %v4115 = vadd.f32 %v4087, %v4114
        %4116 = vmatmul.bf16.gmra.mxu0 %v2961
        %v4117 = vpop.f32.mrf.mxu0
        %v4118 = vadd.f32 %v4090, %v4117
        %v4119 = vpop.f32.mrf.mxu0
        %v4120 = vadd.f32 %v4092, %v4119
        %4121 = vmatmul.bf16.gmra.mxu0 %v2966
        %v4122 = vpop.f32.mrf.mxu0
        %v4123 = vadd.f32 %v4095, %v4122
        %v4124 = vpop.f32.mrf.mxu0
        %v4125 = vadd.f32 %v4097, %v4124
        %4126 = vmatmul.bf16.gmra.mxu0 %v2971
        %v4127 = vpop.f32.mrf.mxu0
        %v4128 = vadd.f32 %v4100, %v4127
        %v4129 = vpop.f32.mrf.mxu0
        %4130 = vdwg.mxu0
        %4131 = vmatpush.bf16.msra.mxu0 %v3569
        %4132 = vmatpush.bf16.msra.mxu0 %v3565
        %4133 = vmatpush.bf16.msra.mxu0 %v3561
        %4134 = vmatpush.bf16.msra.mxu0 %v3557
        %4135 = vmatpush.bf16.msra.mxu0 %v3553
        %4136 = vmatpush.bf16.msra.mxu0 %v3549
        %4137 = vmatpush.bf16.msra.mxu0 %v3545
        %4138 = vmatpush.bf16.msra.mxu0 %v3541
        %4139 = vmatmul.bf16.gmra.mxu0 %v2957
        %v4140 = vpop.f32.mrf.mxu0
        %v4141 = vadd.f32 %v4113, %v4140
        %v4142 = vpop.f32.mrf.mxu0
        %v4143 = vadd.f32 %v4115, %v4142
        %4144 = vmatmul.bf16.gmra.mxu0 %v2962
        %v4145 = vpop.f32.mrf.mxu0
        %v4146 = vadd.f32 %v4118, %v4145
        %v4147 = vpop.f32.mrf.mxu0
        %v4148 = vadd.f32 %v4120, %v4147
        %4149 = vmatmul.bf16.gmra.mxu0 %v2967
        %v4150 = vpop.f32.mrf.mxu0
        %v4151 = vadd.f32 %v4123, %v4150
        %v4152 = vpop.f32.mrf.mxu0
        %v4153 = vadd.f32 %v4125, %v4152
        %4154 = vmatmul.bf16.gmra.mxu0 %v2972
        %v4155 = vpop.f32.mrf.mxu0
        %v4156 = vadd.f32 %v4128, %v4155
        %v4157 = vpop.f32.mrf.mxu0
        %4158 = vdwg.mxu0
        %4159 = vmatpush.bf16.msra.mxu0 %v3601
        %4160 = vmatpush.bf16.msra.mxu0 %v3597
        %4161 = vmatpush.bf16.msra.mxu0 %v3593
        %4162 = vmatpush.bf16.msra.mxu0 %v3589
        %4163 = vmatpush.bf16.msra.mxu0 %v3585
        %4164 = vmatpush.bf16.msra.mxu0 %v3581
        %4165 = vmatpush.bf16.msra.mxu0 %v3577
        %4166 = vmatpush.bf16.msra.mxu0 %v3573
        %4167 = vmatmul.bf16.gmra.mxu0 %v2958
        %v4168 = vpop.f32.mrf.mxu0
        %v4169 = vadd.f32 %v4141, %v4168
        %v4170 = vpop.f32.mrf.mxu0
        %v4171 = vadd.f32 %v4143, %v4170
        %4172 = vmatmul.bf16.gmra.mxu0 %v2963
        %v4173 = vpop.f32.mrf.mxu0
        %v4174 = vadd.f32 %v4146, %v4173
        %v4175 = vpop.f32.mrf.mxu0
        %v4176 = vadd.f32 %v4148, %v4175
        %4177 = vmatmul.bf16.gmra.mxu0 %v2968
        %v4178 = vpop.f32.mrf.mxu0
        %v4179 = vadd.f32 %v4151, %v4178
        %v4180 = vpop.f32.mrf.mxu0
        %v4181 = vadd.f32 %v4153, %v4180
        %4182 = vmatmul.bf16.gmra.mxu0 %v2973
        %v4183 = vpop.f32.mrf.mxu0
        %v4184 = vadd.f32 %v4156, %v4183
        %v4185 = vpop.f32.mrf.mxu0
        %4186 = vdwg.mxu0
        %4187 = vmatpush.bf16.msra.mxu0 %v3633
        %4188 = vmatpush.bf16.msra.mxu0 %v3629
        %4189 = vmatpush.bf16.msra.mxu0 %v3625
        %4190 = vmatpush.bf16.msra.mxu0 %v3621
        %4191 = vmatpush.bf16.msra.mxu0 %v3617
        %4192 = vmatpush.bf16.msra.mxu0 %v3613
        %4193 = vmatpush.bf16.msra.mxu0 %v3609
        %4194 = vmatpush.bf16.msra.mxu0 %v3605
        %4195 = vmatmul.bf16.gmra.mxu0 %v2959
        %v4196 = vpop.f32.mrf.mxu0
        %v4197 = vadd.f32 %v4169, %v4196
        %v4198 = vpop.f32.mrf.mxu0
        %v4199 = vadd.f32 %v4171, %v4198
        %4200 = vmatmul.bf16.gmra.mxu0 %v2964
        %v4201 = vpop.f32.mrf.mxu0
        %v4202 = vadd.f32 %v4174, %v4201
        %v4203 = vpop.f32.mrf.mxu0
        %v4204 = vadd.f32 %v4176, %v4203
        %4205 = vmatmul.bf16.gmra.mxu0 %v2969
        %v4206 = vpop.f32.mrf.mxu0
        %v4207 = vadd.f32 %v4179, %v4206
        %v4208 = vpop.f32.mrf.mxu0
        %v4209 = vadd.f32 %v4181, %v4208
        %4210 = vmatmul.bf16.gmra.mxu0 %v2974
        %v4211 = vpop.f32.mrf.mxu0
        %v4212 = vadd.f32 %v4184, %v4211
        %v4213 = vpop.f32.mrf.mxu0
        %4214 = vdwg.mxu0
        %4215 = vmatpush.bf16.msra.mxu0 %v3506
        %4216 = vmatpush.bf16.msra.mxu0 %v3502
        %4217 = vmatpush.bf16.msra.mxu0 %v3498
        %4218 = vmatpush.bf16.msra.mxu0 %v3494
        %4219 = vmatpush.bf16.msra.mxu0 %v3490
        %4220 = vmatpush.bf16.msra.mxu0 %v3486
        %4221 = vmatpush.bf16.msra.mxu0 %v3482
        %4222 = vmatpush.bf16.msra.mxu0 %v3478
        %4223 = vmatmul.bf16.gmra.mxu0 %v2955
        %v4224 = vpop.f32.mrf.mxu0
        %v4225 = vadd.f32 0.0, %v4224
        %v4226 = vpop.f32.mrf.mxu0
        %v4227 = vadd.f32 0.0, %v4226
        %4228 = vmatmul.bf16.gmra.mxu0 %v2960
        %v4229 = vpop.f32.mrf.mxu0
        %v4230 = vadd.f32 0.0, %v4229
        %v4231 = vpop.f32.mrf.mxu0
        %v4232 = vadd.f32 0.0, %v4231
        %4233 = vmatmul.bf16.gmra.mxu0 %v2965
        %v4234 = vpop.f32.mrf.mxu0
        %v4235 = vadd.f32 0.0, %v4234
        %v4236 = vpop.f32.mrf.mxu0
        %v4237 = vadd.f32 0.0, %v4236
        %4238 = vmatmul.bf16.gmra.mxu0 %v2970
        %v4239 = vpop.f32.mrf.mxu0
        %v4240 = vadd.f32 0.0, %v4239
        %v4241 = vpop.f32.mrf.mxu0
        %4242 = vdwg.mxu0
        %4243 = vmatpush.bf16.msra.mxu0 %v3538
        %4244 = vmatpush.bf16.msra.mxu0 %v3534
        %4245 = vmatpush.bf16.msra.mxu0 %v3530
        %4246 = vmatpush.bf16.msra.mxu0 %v3526
        %4247 = vmatpush.bf16.msra.mxu0 %v3522
        %4248 = vmatpush.bf16.msra.mxu0 %v3518
        %4249 = vmatpush.bf16.msra.mxu0 %v3514
        %4250 = vmatpush.bf16.msra.mxu0 %v3510
        %4251 = vmatmul.bf16.gmra.mxu0 %v2956
        %v4252 = vpop.f32.mrf.mxu0
        %v4253 = vadd.f32 %v4225, %v4252
        %v4254 = vpop.f32.mrf.mxu0
        %v4255 = vadd.f32 %v4227, %v4254
        %4256 = vmatmul.bf16.gmra.mxu0 %v2961
        %v4257 = vpop.f32.mrf.mxu0
        %v4258 = vadd.f32 %v4230, %v4257
        %v4259 = vpop.f32.mrf.mxu0
        %v4260 = vadd.f32 %v4232, %v4259
        %4261 = vmatmul.bf16.gmra.mxu0 %v2966
        %v4262 = vpop.f32.mrf.mxu0
        %v4263 = vadd.f32 %v4235, %v4262
        %v4264 = vpop.f32.mrf.mxu0
        %v4265 = vadd.f32 %v4237, %v4264
        %4266 = vmatmul.bf16.gmra.mxu0 %v2971
        %v4267 = vpop.f32.mrf.mxu0
        %v4268 = vadd.f32 %v4240, %v4267
        %v4269 = vpop.f32.mrf.mxu0
        %4270 = vdwg.mxu0
        %4271 = vmatpush.bf16.msra.mxu0 %v3570
        %4272 = vmatpush.bf16.msra.mxu0 %v3566
        %4273 = vmatpush.bf16.msra.mxu0 %v3562
        %4274 = vmatpush.bf16.msra.mxu0 %v3558
        %4275 = vmatpush.bf16.msra.mxu0 %v3554
        %4276 = vmatpush.bf16.msra.mxu0 %v3550
        %4277 = vmatpush.bf16.msra.mxu0 %v3546
        %4278 = vmatpush.bf16.msra.mxu0 %v3542
        %4279 = vmatmul.bf16.gmra.mxu0 %v2957
        %v4280 = vpop.f32.mrf.mxu0
        %v4281 = vadd.f32 %v4253, %v4280
        %v4282 = vpop.f32.mrf.mxu0
        %v4283 = vadd.f32 %v4255, %v4282
        %4284 = vmatmul.bf16.gmra.mxu0 %v2962
        %v4285 = vpop.f32.mrf.mxu0
        %v4286 = vadd.f32 %v4258, %v4285
        %v4287 = vpop.f32.mrf.mxu0
        %v4288 = vadd.f32 %v4260, %v4287
        %4289 = vmatmul.bf16.gmra.mxu0 %v2967
        %v4290 = vpop.f32.mrf.mxu0
        %v4291 = vadd.f32 %v4263, %v4290
        %v4292 = vpop.f32.mrf.mxu0
        %v4293 = vadd.f32 %v4265, %v4292
        %4294 = vmatmul.bf16.gmra.mxu0 %v2972
        %v4295 = vpop.f32.mrf.mxu0
        %v4296 = vadd.f32 %v4268, %v4295
        %v4297 = vpop.f32.mrf.mxu0
        %4298 = vdwg.mxu0
        %4299 = vmatpush.bf16.msra.mxu0 %v3602
        %4300 = vmatpush.bf16.msra.mxu0 %v3598
        %4301 = vmatpush.bf16.msra.mxu0 %v3594
        %4302 = vmatpush.bf16.msra.mxu0 %v3590
        %4303 = vmatpush.bf16.msra.mxu0 %v3586
        %4304 = vmatpush.bf16.msra.mxu0 %v3582
        %4305 = vmatpush.bf16.msra.mxu0 %v3578
        %4306 = vmatpush.bf16.msra.mxu0 %v3574
        %4307 = vmatmul.bf16.gmra.mxu0 %v2958
        %v4308 = vpop.f32.mrf.mxu0
        %v4309 = vadd.f32 %v4281, %v4308
        %v4310 = vpop.f32.mrf.mxu0
        %v4311 = vadd.f32 %v4283, %v4310
        %4312 = vmatmul.bf16.gmra.mxu0 %v2963
        %v4313 = vpop.f32.mrf.mxu0
        %v4314 = vadd.f32 %v4286, %v4313
        %v4315 = vpop.f32.mrf.mxu0
        %v4316 = vadd.f32 %v4288, %v4315
        %4317 = vmatmul.bf16.gmra.mxu0 %v2968
        %v4318 = vpop.f32.mrf.mxu0
        %v4319 = vadd.f32 %v4291, %v4318
        %v4320 = vpop.f32.mrf.mxu0
        %v4321 = vadd.f32 %v4293, %v4320
        %4322 = vmatmul.bf16.gmra.mxu0 %v2973
        %v4323 = vpop.f32.mrf.mxu0
        %v4324 = vadd.f32 %v4296, %v4323
        %v4325 = vpop.f32.mrf.mxu0
        %4326 = vdwg.mxu0
        %4327 = vmatpush.bf16.msra.mxu0 %v3634
        %4328 = vmatpush.bf16.msra.mxu0 %v3630
        %4329 = vmatpush.bf16.msra.mxu0 %v3626
        %4330 = vmatpush.bf16.msra.mxu0 %v3622
        %4331 = vmatpush.bf16.msra.mxu0 %v3618
        %4332 = vmatpush.bf16.msra.mxu0 %v3614
        %4333 = vmatpush.bf16.msra.mxu0 %v3610
        %4334 = vmatpush.bf16.msra.mxu0 %v3606
        %4335 = vmatmul.bf16.gmra.mxu0 %v2959
        %v4336 = vpop.f32.mrf.mxu0
        %v4337 = vadd.f32 %v4309, %v4336
        %v4338 = vpop.f32.mrf.mxu0
        %v4339 = vadd.f32 %v4311, %v4338
        %4340 = vmatmul.bf16.gmra.mxu0 %v2964
        %v4341 = vpop.f32.mrf.mxu0
        %v4342 = vadd.f32 %v4314, %v4341
        %v4343 = vpop.f32.mrf.mxu0
        %v4344 = vadd.f32 %v4316, %v4343
        %4345 = vmatmul.bf16.gmra.mxu0 %v2969
        %v4346 = vpop.f32.mrf.mxu0
        %v4347 = vadd.f32 %v4319, %v4346
        %v4348 = vpop.f32.mrf.mxu0
        %v4349 = vadd.f32 %v4321, %v4348
        %4350 = vmatmul.bf16.gmra.mxu0 %v2974
        %v4351 = vpop.f32.mrf.mxu0
        %v4352 = vadd.f32 %v4324, %v4351
        %v4353 = vpop.f32.mrf.mxu0
        %4354 = vdwg.mxu0
        %v4355 = vmax.f32 %v3917, %v4197
        %v4356 = vmax.f32 %v4057, %v4337
        %v4357 = vmax.f32 %v3919, %v4199
        %v4358 = vmax.f32 %v4059, %v4339
        %v4359 = vmax.f32 %v3922, %v4202
        %v4360 = vmax.f32 %v4062, %v4342
        %v4361 = vmax.f32 %v3924, %v4204
        %v4362 = vmax.f32 %v4064, %v4344
        %v4363 = vmax.f32 %v3927, %v4207
        %v4364 = vmax.f32 %v4067, %v4347
        %v4365 = vmax.f32 %v3929, %v4209
        %v4366 = vmax.f32 %v4069, %v4349
        %v4367 = vmax.f32 %v3932, %v4212
        %v4368 = vmax.f32 %v4072, %v4352
        %v4369 = vld [vmem:[%s307 + $0x1a4] sm:$0xff]
        %v4370 = vld [vmem:[%s307 + $0x1ac] sm:$0xff]
        %v4371 = vld [vmem:[%s307 + $0x1b4] sm:$0xf]
        %v4372 = vld [vmem:[%s307 + $0x1b8] sm:$0xff]
        %v4373 = vld [vmem:[%s307 + $0x1c0] sm:$0xff]
        %v4374 = vld [vmem:[%s307 + $0x1c8] sm:$0xf]
        %v4375 = vld [vmem:[%s307 + $0x1cc] sm:$0xff]
        %v4376 = vld [vmem:[%s307 + $0x1d4] sm:$0xff]
        %v4377 = vld [vmem:[%s307 + $0x1dc] sm:$0xf]
        %v4378 = vld [vmem:[%s307 + $0x1e0] sm:$0xff]
        %v4379 = vld [vmem:[%s307 + $0x1e8] sm:$0xff]
        %v4380 = vld [vmem:[%s307 + $0x1f0] sm:$0xf]
        %v4381 = vld [vmem:[%s307 + $0x1f4] sm:$0xff]
        %v4382 = vld [vmem:[%s307 + $0x1fc] sm:$0xff]
        %v4383 = vld [vmem:[%s307 + $0x204] sm:$0xf]
        %v4384 = vld [vmem:[%s307 + $0x208] sm:$0xff]
        %v4385 = vld [vmem:[%s307 + $0x210] sm:$0xff]
        %v4386 = vld [vmem:[%s307 + $0x218] sm:$0xf]
        %v4387 = vld [vmem:[%s307 + $0x21c] sm:$0xff]
        %v4388 = vld [vmem:[%s307 + $0x224] sm:$0xff]
        %v4389 = vld [vmem:[%s307 + $0x22c] sm:$0xf]
        %v4411 = vunpack.c.l.b16 %v4369
        %v4412 = vunpack.c.h.b16 %v4369
        %v4413 = vunpack.c.l.b16 %v4370
        %v4414 = vunpack.c.h.b16 %v4370
        %v4415 = vunpack.c.l.b16 %v4371
        %v4416 = vunpack.c.l.b16 %v4372
        %v4417 = vunpack.c.h.b16 %v4372
        %v4418 = vunpack.c.l.b16 %v4373
        %v4419 = vunpack.c.h.b16 %v4373
        %v4420 = vunpack.c.l.b16 %v4374
        %v4421 = vunpack.c.l.b16 %v4375
        %v4422 = vunpack.c.h.b16 %v4375
        %v4423 = vunpack.c.l.b16 %v4376
        %v4424 = vunpack.c.h.b16 %v4376
        %v4425 = vunpack.c.l.b16 %v4377
        %v4426 = vunpack.c.l.b16 %v4378
        %v4427 = vunpack.c.h.b16 %v4378
        %v4428 = vunpack.c.l.b16 %v4379
        %v4429 = vunpack.c.h.b16 %v4379
        %v4430 = vunpack.c.l.b16 %v4380
        %v4431 = vunpack.c.l.b16 %v4381
        %v4432 = vunpack.c.h.b16 %v4381
        %v4433 = vunpack.c.l.b16 %v4382
        %v4434 = vunpack.c.h.b16 %v4382
        %v4435 = vunpack.c.l.b16 %v4383
        %v4436 = vunpack.c.l.b16 %v4384
        %v4437 = vunpack.c.h.b16 %v4384
        %v4438 = vunpack.c.l.b16 %v4385
        %v4439 = vunpack.c.h.b16 %v4385
        %v4440 = vunpack.c.l.b16 %v4386
        %v4441 = vunpack.c.l.b16 %v4387
        %v4442 = vunpack.c.h.b16 %v4387
        %v4443 = vunpack.c.l.b16 %v4388
        %v4444 = vunpack.c.h.b16 %v4388
        %v4445 = vunpack.c.l.b16 %v4389
        %v4446 = vpack.c.b16 %v4416, %v4411
        %v4447 = vpack.c.b16 %v4417, %v4412
        %v4448 = vpack.c.b16 %v4418, %v4413
        %v4449 = vpack.c.b16 %v4419, %v4414
        %v4450 = vpack.c.b16 %v4420, %v4415
        %v4451 = vpack.c.b16 %v4426, %v4421
        %v4452 = vpack.c.b16 %v4427, %v4422
        %v4453 = vpack.c.b16 %v4428, %v4423
        %v4454 = vpack.c.b16 %v4429, %v4424
        %v4455 = vpack.c.b16 %v4430, %v4425
        %v4456 = vpack.c.b16 %v4436, %v4431
        %v4457 = vpack.c.b16 %v4437, %v4432
        %v4458 = vpack.c.b16 %v4438, %v4433
        %v4459 = vpack.c.b16 %v4439, %v4434
        %v4460 = vpack.c.b16 %v4440, %v4435
        %v4461 = vpack.c.b16 %v4441, %v4441
        %v4462 = vpack.c.b16 %v4442, %v4442
        %v4463 = vpack.c.b16 %v4443, %v4443
        %v4464 = vpack.c.b16 %v4444, %v4444
        %v4465 = vpack.c.b16 %v4445, %v4445
        %4486 = vmatpush.bf16.msra.mxu0 %v3503
        %4487 = vmatpush.bf16.msra.mxu0 %v3499
        %4488 = vmatpush.bf16.msra.mxu0 %v3495
        %4489 = vmatpush.bf16.msra.mxu0 %v3491
        %4490 = vmatpush.bf16.msra.mxu0 %v3487
        %4491 = vmatpush.bf16.msra.mxu0 %v3483
        %4492 = vmatpush.bf16.msra.mxu0 %v3479
        %4493 = vmatpush.bf16.msra.mxu0 %v3475
        %4494 = vmatmul.bf16.gmra.mxu0 %v4446
        %v4495 = vpop.f32.mrf.mxu0
        %v4496 = vadd.f32 0.0, %v4495
        %v4497 = vpop.f32.mrf.mxu0
        %v4498 = vadd.f32 0.0, %v4497
        %4499 = vmatmul.bf16.gmra.mxu0 %v4451
        %v4500 = vpop.f32.mrf.mxu0
        %v4501 = vadd.f32 0.0, %v4500
        %v4502 = vpop.f32.mrf.mxu0
        %v4503 = vadd.f32 0.0, %v4502
        %4504 = vmatmul.bf16.gmra.mxu0 %v4456
        %v4505 = vpop.f32.mrf.mxu0
        %v4506 = vadd.f32 0.0, %v4505
        %v4507 = vpop.f32.mrf.mxu0
        %v4508 = vadd.f32 0.0, %v4507
        %4509 = vmatmul.bf16.gmra.mxu0 %v4461
        %v4510 = vpop.f32.mrf.mxu0
        %v4511 = vadd.f32 0.0, %v4510
        %v4512 = vpop.f32.mrf.mxu0
        %4513 = vdwg.mxu0
        %4514 = vmatpush.bf16.msra.mxu0 %v3535
        %4515 = vmatpush.bf16.msra.mxu0 %v3531
        %4516 = vmatpush.bf16.msra.mxu0 %v3527
        %4517 = vmatpush.bf16.msra.mxu0 %v3523
        %4518 = vmatpush.bf16.msra.mxu0 %v3519
        %4519 = vmatpush.bf16.msra.mxu0 %v3515
        %4520 = vmatpush.bf16.msra.mxu0 %v3511
        %4521 = vmatpush.bf16.msra.mxu0 %v3507
        %4522 = vmatmul.bf16.gmra.mxu0 %v4447
        %v4523 = vpop.f32.mrf.mxu0
        %v4524 = vadd.f32 %v4496, %v4523
        %v4525 = vpop.f32.mrf.mxu0
        %v4526 = vadd.f32 %v4498, %v4525
        %4527 = vmatmul.bf16.gmra.mxu0 %v4452
        %v4528 = vpop.f32.mrf.mxu0
        %v4529 = vadd.f32 %v4501, %v4528
        %v4530 = vpop.f32.mrf.mxu0
        %v4531 = vadd.f32 %v4503, %v4530
        %4532 = vmatmul.bf16.gmra.mxu0 %v4457
        %v4533 = vpop.f32.mrf.mxu0
        %v4534 = vadd.f32 %v4506, %v4533
        %v4535 = vpop.f32.mrf.mxu0
        %v4536 = vadd.f32 %v4508, %v4535
        %4537 = vmatmul.bf16.gmra.mxu0 %v4462
        %v4538 = vpop.f32.mrf.mxu0
        %v4539 = vadd.f32 %v4511, %v4538
        %v4540 = vpop.f32.mrf.mxu0
        %4541 = vdwg.mxu0
        %4542 = vmatpush.bf16.msra.mxu0 %v3567
        %4543 = vmatpush.bf16.msra.mxu0 %v3563
        %4544 = vmatpush.bf16.msra.mxu0 %v3559
        %4545 = vmatpush.bf16.msra.mxu0 %v3555
        %4546 = vmatpush.bf16.msra.mxu0 %v3551
        %4547 = vmatpush.bf16.msra.mxu0 %v3547
        %4548 = vmatpush.bf16.msra.mxu0 %v3543
        %4549 = vmatpush.bf16.msra.mxu0 %v3539
        %4550 = vmatmul.bf16.gmra.mxu0 %v4448
        %v4551 = vpop.f32.mrf.mxu0
        %v4552 = vadd.f32 %v4524, %v4551
        %v4553 = vpop.f32.mrf.mxu0
        %v4554 = vadd.f32 %v4526, %v4553
        %4555 = vmatmul.bf16.gmra.mxu0 %v4453
        %v4556 = vpop.f32.mrf.mxu0
        %v4557 = vadd.f32 %v4529, %v4556
        %v4558 = vpop.f32.mrf.mxu0
        %v4559 = vadd.f32 %v4531, %v4558
        %4560 = vmatmul.bf16.gmra.mxu0 %v4458
        %v4561 = vpop.f32.mrf.mxu0
        %v4562 = vadd.f32 %v4534, %v4561
        %v4563 = vpop.f32.mrf.mxu0
        %v4564 = vadd.f32 %v4536, %v4563
        %4565 = vmatmul.bf16.gmra.mxu0 %v4463
        %v4566 = vpop.f32.mrf.mxu0
        %v4567 = vadd.f32 %v4539, %v4566
        %v4568 = vpop.f32.mrf.mxu0
        %4569 = vdwg.mxu0
        %4570 = vmatpush.bf16.msra.mxu0 %v3599
        %4571 = vmatpush.bf16.msra.mxu0 %v3595
        %4572 = vmatpush.bf16.msra.mxu0 %v3591
        %4573 = vmatpush.bf16.msra.mxu0 %v3587
        %4574 = vmatpush.bf16.msra.mxu0 %v3583
        %4575 = vmatpush.bf16.msra.mxu0 %v3579
        %4576 = vmatpush.bf16.msra.mxu0 %v3575
        %4577 = vmatpush.bf16.msra.mxu0 %v3571
        %4578 = vmatmul.bf16.gmra.mxu0 %v4449
        %v4579 = vpop.f32.mrf.mxu0
        %v4580 = vadd.f32 %v4552, %v4579
        %v4581 = vpop.f32.mrf.mxu0
        %v4582 = vadd.f32 %v4554, %v4581
        %4583 = vmatmul.bf16.gmra.mxu0 %v4454
        %v4584 = vpop.f32.mrf.mxu0
        %v4585 = vadd.f32 %v4557, %v4584
        %v4586 = vpop.f32.mrf.mxu0
        %v4587 = vadd.f32 %v4559, %v4586
        %4588 = vmatmul.bf16.gmra.mxu0 %v4459
        %v4589 = vpop.f32.mrf.mxu0
        %v4590 = vadd.f32 %v4562, %v4589
        %v4591 = vpop.f32.mrf.mxu0
        %v4592 = vadd.f32 %v4564, %v4591
        %4593 = vmatmul.bf16.gmra.mxu0 %v4464
        %v4594 = vpop.f32.mrf.mxu0
        %v4595 = vadd.f32 %v4567, %v4594
        %v4596 = vpop.f32.mrf.mxu0
        %4597 = vdwg.mxu0
        %4598 = vmatpush.bf16.msra.mxu0 %v3631
        %4599 = vmatpush.bf16.msra.mxu0 %v3627
        %4600 = vmatpush.bf16.msra.mxu0 %v3623
        %4601 = vmatpush.bf16.msra.mxu0 %v3619
        %4602 = vmatpush.bf16.msra.mxu0 %v3615
        %4603 = vmatpush.bf16.msra.mxu0 %v3611
        %4604 = vmatpush.bf16.msra.mxu0 %v3607
        %4605 = vmatpush.bf16.msra.mxu0 %v3603
        %4606 = vmatmul.bf16.gmra.mxu0 %v4450
        %v4607 = vpop.f32.mrf.mxu0
        %v4608 = vadd.f32 %v4580, %v4607
        %v4609 = vpop.f32.mrf.mxu0
        %v4610 = vadd.f32 %v4582, %v4609
        %4611 = vmatmul.bf16.gmra.mxu0 %v4455
        %v4612 = vpop.f32.mrf.mxu0
        %v4613 = vadd.f32 %v4585, %v4612
        %v4614 = vpop.f32.mrf.mxu0
        %v4615 = vadd.f32 %v4587, %v4614
        %4616 = vmatmul.bf16.gmra.mxu0 %v4460
        %v4617 = vpop.f32.mrf.mxu0
        %v4618 = vadd.f32 %v4590, %v4617
        %v4619 = vpop.f32.mrf.mxu0
        %v4620 = vadd.f32 %v4592, %v4619
        %4621 = vmatmul.bf16.gmra.mxu0 %v4465
        %v4622 = vpop.f32.mrf.mxu0
        %v4623 = vadd.f32 %v4595, %v4622
        %v4624 = vpop.f32.mrf.mxu0
        %4625 = vdwg.mxu0
        %4626 = vmatpush.bf16.msra.mxu0 %v3504
        %4627 = vmatpush.bf16.msra.mxu0 %v3500
        %4628 = vmatpush.bf16.msra.mxu0 %v3496
        %4629 = vmatpush.bf16.msra.mxu0 %v3492
        %4630 = vmatpush.bf16.msra.mxu0 %v3488
        %4631 = vmatpush.bf16.msra.mxu0 %v3484
        %4632 = vmatpush.bf16.msra.mxu0 %v3480
        %4633 = vmatpush.bf16.msra.mxu0 %v3476
        %4634 = vmatmul.bf16.gmra.mxu0 %v4446
        %v4635 = vpop.f32.mrf.mxu0
        %v4636 = vadd.f32 0.0, %v4635
        %v4637 = vpop.f32.mrf.mxu0
        %v4638 = vadd.f32 0.0, %v4637
        %4639 = vmatmul.bf16.gmra.mxu0 %v4451
        %v4640 = vpop.f32.mrf.mxu0
        %v4641 = vadd.f32 0.0, %v4640
        %v4642 = vpop.f32.mrf.mxu0
        %v4643 = vadd.f32 0.0, %v4642
        %4644 = vmatmul.bf16.gmra.mxu0 %v4456
        %v4645 = vpop.f32.mrf.mxu0
        %v4646 = vadd.f32 0.0, %v4645
        %v4647 = vpop.f32.mrf.mxu0
        %v4648 = vadd.f32 0.0, %v4647
        %4649 = vmatmul.bf16.gmra.mxu0 %v4461
        %v4650 = vpop.f32.mrf.mxu0
        %v4651 = vadd.f32 0.0, %v4650
        %v4652 = vpop.f32.mrf.mxu0
        %4653 = vdwg.mxu0
        %4654 = vmatpush.bf16.msra.mxu0 %v3536
        %4655 = vmatpush.bf16.msra.mxu0 %v3532
        %4656 = vmatpush.bf16.msra.mxu0 %v3528
        %4657 = vmatpush.bf16.msra.mxu0 %v3524
        %4658 = vmatpush.bf16.msra.mxu0 %v3520
        %4659 = vmatpush.bf16.msra.mxu0 %v3516
        %4660 = vmatpush.bf16.msra.mxu0 %v3512
        %4661 = vmatpush.bf16.msra.mxu0 %v3508
        %4662 = vmatmul.bf16.gmra.mxu0 %v4447
        %v4663 = vpop.f32.mrf.mxu0
        %v4664 = vadd.f32 %v4636, %v4663
        %v4665 = vpop.f32.mrf.mxu0
        %v4666 = vadd.f32 %v4638, %v4665
        %4667 = vmatmul.bf16.gmra.mxu0 %v4452
        %v4668 = vpop.f32.mrf.mxu0
        %v4669 = vadd.f32 %v4641, %v4668
        %v4670 = vpop.f32.mrf.mxu0
        %v4671 = vadd.f32 %v4643, %v4670
        %4672 = vmatmul.bf16.gmra.mxu0 %v4457
        %v4673 = vpop.f32.mrf.mxu0
        %v4674 = vadd.f32 %v4646, %v4673
        %v4675 = vpop.f32.mrf.mxu0
        %v4676 = vadd.f32 %v4648, %v4675
        %4677 = vmatmul.bf16.gmra.mxu0 %v4462
        %v4678 = vpop.f32.mrf.mxu0
        %v4679 = vadd.f32 %v4651, %v4678
        %v4680 = vpop.f32.mrf.mxu0
        %4681 = vdwg.mxu0
        %4682 = vmatpush.bf16.msra.mxu0 %v3568
        %4683 = vmatpush.bf16.msra.mxu0 %v3564
        %4684 = vmatpush.bf16.msra.mxu0 %v3560
        %4685 = vmatpush.bf16.msra.mxu0 %v3556
        %4686 = vmatpush.bf16.msra.mxu0 %v3552
        %4687 = vmatpush.bf16.msra.mxu0 %v3548
        %4688 = vmatpush.bf16.msra.mxu0 %v3544
        %4689 = vmatpush.bf16.msra.mxu0 %v3540
        %4690 = vmatmul.bf16.gmra.mxu0 %v4448
        %v4691 = vpop.f32.mrf.mxu0
        %v4692 = vadd.f32 %v4664, %v4691
        %v4693 = vpop.f32.mrf.mxu0
        %v4694 = vadd.f32 %v4666, %v4693
        %4695 = vmatmul.bf16.gmra.mxu0 %v4453
        %v4696 = vpop.f32.mrf.mxu0
        %v4697 = vadd.f32 %v4669, %v4696
        %v4698 = vpop.f32.mrf.mxu0
        %v4699 = vadd.f32 %v4671, %v4698
        %4700 = vmatmul.bf16.gmra.mxu0 %v4458
        %v4701 = vpop.f32.mrf.mxu0
        %v4702 = vadd.f32 %v4674, %v4701
        %v4703 = vpop.f32.mrf.mxu0
        %v4704 = vadd.f32 %v4676, %v4703
        %4705 = vmatmul.bf16.gmra.mxu0 %v4463
        %v4706 = vpop.f32.mrf.mxu0
        %v4707 = vadd.f32 %v4679, %v4706
        %v4708 = vpop.f32.mrf.mxu0
        %4709 = vdwg.mxu0
        %4710 = vmatpush.bf16.msra.mxu0 %v3600
        %4711 = vmatpush.bf16.msra.mxu0 %v3596
        %4712 = vmatpush.bf16.msra.mxu0 %v3592
        %4713 = vmatpush.bf16.msra.mxu0 %v3588
        %4714 = vmatpush.bf16.msra.mxu0 %v3584
        %4715 = vmatpush.bf16.msra.mxu0 %v3580
        %4716 = vmatpush.bf16.msra.mxu0 %v3576
        %4717 = vmatpush.bf16.msra.mxu0 %v3572
        %4718 = vmatmul.bf16.gmra.mxu0 %v4449
        %v4719 = vpop.f32.mrf.mxu0
        %v4720 = vadd.f32 %v4692, %v4719
        %v4721 = vpop.f32.mrf.mxu0
        %v4722 = vadd.f32 %v4694, %v4721
        %4723 = vmatmul.bf16.gmra.mxu0 %v4454
        %v4724 = vpop.f32.mrf.mxu0
        %v4725 = vadd.f32 %v4697, %v4724
        %v4726 = vpop.f32.mrf.mxu0
        %v4727 = vadd.f32 %v4699, %v4726
        %4728 = vmatmul.bf16.gmra.mxu0 %v4459
        %v4729 = vpop.f32.mrf.mxu0
        %v4730 = vadd.f32 %v4702, %v4729
        %v4731 = vpop.f32.mrf.mxu0
        %v4732 = vadd.f32 %v4704, %v4731
        %4733 = vmatmul.bf16.gmra.mxu0 %v4464
        %v4734 = vpop.f32.mrf.mxu0
        %v4735 = vadd.f32 %v4707, %v4734
        %v4736 = vpop.f32.mrf.mxu0
        %4737 = vdwg.mxu0
        %4738 = vmatpush.bf16.msra.mxu0 %v3632
        %4739 = vmatpush.bf16.msra.mxu0 %v3628
        %4740 = vmatpush.bf16.msra.mxu0 %v3624
        %4741 = vmatpush.bf16.msra.mxu0 %v3620
        %4742 = vmatpush.bf16.msra.mxu0 %v3616
        %4743 = vmatpush.bf16.msra.mxu0 %v3612
        %4744 = vmatpush.bf16.msra.mxu0 %v3608
        %4745 = vmatpush.bf16.msra.mxu0 %v3604
        %4746 = vmatmul.bf16.gmra.mxu0 %v4450
        %v4747 = vpop.f32.mrf.mxu0
        %v4748 = vadd.f32 %v4720, %v4747
        %v4749 = vpop.f32.mrf.mxu0
        %v4750 = vadd.f32 %v4722, %v4749
        %4751 = vmatmul.bf16.gmra.mxu0 %v4455
        %v4752 = vpop.f32.mrf.mxu0
        %v4753 = vadd.f32 %v4725, %v4752
        %v4754 = vpop.f32.mrf.mxu0
        %v4755 = vadd.f32 %v4727, %v4754
        %4756 = vmatmul.bf16.gmra.mxu0 %v4460
        %v4757 = vpop.f32.mrf.mxu0
        %v4758 = vadd.f32 %v4730, %v4757
        %v4759 = vpop.f32.mrf.mxu0
        %v4760 = vadd.f32 %v4732, %v4759
        %4761 = vmatmul.bf16.gmra.mxu0 %v4465
        %v4762 = vpop.f32.mrf.mxu0
        %v4763 = vadd.f32 %v4735, %v4762
        %v4764 = vpop.f32.mrf.mxu0
        %4765 = vdwg.mxu0
        %4766 = vmatpush.bf16.msra.mxu0 %v3505
        %4767 = vmatpush.bf16.msra.mxu0 %v3501
        %4768 = vmatpush.bf16.msra.mxu0 %v3497
        %4769 = vmatpush.bf16.msra.mxu0 %v3493
        %4770 = vmatpush.bf16.msra.mxu0 %v3489
        %4771 = vmatpush.bf16.msra.mxu0 %v3485
        %4772 = vmatpush.bf16.msra.mxu0 %v3481
        %4773 = vmatpush.bf16.msra.mxu0 %v3477
        %4774 = vmatmul.bf16.gmra.mxu0 %v4446
        %v4775 = vpop.f32.mrf.mxu0
        %v4776 = vadd.f32 0.0, %v4775
        %v4777 = vpop.f32.mrf.mxu0
        %v4778 = vadd.f32 0.0, %v4777
        %4779 = vmatmul.bf16.gmra.mxu0 %v4451
        %v4780 = vpop.f32.mrf.mxu0
        %v4781 = vadd.f32 0.0, %v4780
        %v4782 = vpop.f32.mrf.mxu0
        %v4783 = vadd.f32 0.0, %v4782
        %4784 = vmatmul.bf16.gmra.mxu0 %v4456
        %v4785 = vpop.f32.mrf.mxu0
        %v4786 = vadd.f32 0.0, %v4785
        %v4787 = vpop.f32.mrf.mxu0
        %v4788 = vadd.f32 0.0, %v4787
        %4789 = vmatmul.bf16.gmra.mxu0 %v4461
        %v4790 = vpop.f32.mrf.mxu0
        %v4791 = vadd.f32 0.0, %v4790
        %v4792 = vpop.f32.mrf.mxu0
        %4793 = vdwg.mxu0
        %4794 = vmatpush.bf16.msra.mxu0 %v3537
        %4795 = vmatpush.bf16.msra.mxu0 %v3533
        %4796 = vmatpush.bf16.msra.mxu0 %v3529
        %4797 = vmatpush.bf16.msra.mxu0 %v3525
        %4798 = vmatpush.bf16.msra.mxu0 %v3521
        %4799 = vmatpush.bf16.msra.mxu0 %v3517
        %4800 = vmatpush.bf16.msra.mxu0 %v3513
        %4801 = vmatpush.bf16.msra.mxu0 %v3509
        %4802 = vmatmul.bf16.gmra.mxu0 %v4447
        %v4803 = vpop.f32.mrf.mxu0
        %v4804 = vadd.f32 %v4776, %v4803
        %v4805 = vpop.f32.mrf.mxu0
        %v4806 = vadd.f32 %v4778, %v4805
        %4807 = vmatmul.bf16.gmra.mxu0 %v4452
        %v4808 = vpop.f32.mrf.mxu0
        %v4809 = vadd.f32 %v4781, %v4808
        %v4810 = vpop.f32.mrf.mxu0
        %v4811 = vadd.f32 %v4783, %v4810
        %4812 = vmatmul.bf16.gmra.mxu0 %v4457
        %v4813 = vpop.f32.mrf.mxu0
        %v4814 = vadd.f32 %v4786, %v4813
        %v4815 = vpop.f32.mrf.mxu0
        %v4816 = vadd.f32 %v4788, %v4815
        %4817 = vmatmul.bf16.gmra.mxu0 %v4462
        %v4818 = vpop.f32.mrf.mxu0
        %v4819 = vadd.f32 %v4791, %v4818
        %v4820 = vpop.f32.mrf.mxu0
        %4821 = vdwg.mxu0
        %4822 = vmatpush.bf16.msra.mxu0 %v3569
        %4823 = vmatpush.bf16.msra.mxu0 %v3565
        %4824 = vmatpush.bf16.msra.mxu0 %v3561
        %4825 = vmatpush.bf16.msra.mxu0 %v3557
        %4826 = vmatpush.bf16.msra.mxu0 %v3553
        %4827 = vmatpush.bf16.msra.mxu0 %v3549
        %4828 = vmatpush.bf16.msra.mxu0 %v3545
        %4829 = vmatpush.bf16.msra.mxu0 %v3541
        %4830 = vmatmul.bf16.gmra.mxu0 %v4448
        %v4831 = vpop.f32.mrf.mxu0
        %v4832 = vadd.f32 %v4804, %v4831
        %v4833 = vpop.f32.mrf.mxu0
        %v4834 = vadd.f32 %v4806, %v4833
        %4835 = vmatmul.bf16.gmra.mxu0 %v4453
        %v4836 = vpop.f32.mrf.mxu0
        %v4837 = vadd.f32 %v4809, %v4836
        %v4838 = vpop.f32.mrf.mxu0
        %v4839 = vadd.f32 %v4811, %v4838
        %4840 = vmatmul.bf16.gmra.mxu0 %v4458
        %v4841 = vpop.f32.mrf.mxu0
        %v4842 = vadd.f32 %v4814, %v4841
        %v4843 = vpop.f32.mrf.mxu0
        %v4844 = vadd.f32 %v4816, %v4843
        %4845 = vmatmul.bf16.gmra.mxu0 %v4463
        %v4846 = vpop.f32.mrf.mxu0
        %v4847 = vadd.f32 %v4819, %v4846
        %v4848 = vpop.f32.mrf.mxu0
        %4849 = vdwg.mxu0
        %4850 = vmatpush.bf16.msra.mxu0 %v3601
        %4851 = vmatpush.bf16.msra.mxu0 %v3597
        %4852 = vmatpush.bf16.msra.mxu0 %v3593
        %4853 = vmatpush.bf16.msra.mxu0 %v3589
        %4854 = vmatpush.bf16.msra.mxu0 %v3585
        %4855 = vmatpush.bf16.msra.mxu0 %v3581
        %4856 = vmatpush.bf16.msra.mxu0 %v3577
        %4857 = vmatpush.bf16.msra.mxu0 %v3573
        %4858 = vmatmul.bf16.gmra.mxu0 %v4449
        %v4859 = vpop.f32.mrf.mxu0
        %v4860 = vadd.f32 %v4832, %v4859
        %v4861 = vpop.f32.mrf.mxu0
        %v4862 = vadd.f32 %v4834, %v4861
        %4863 = vmatmul.bf16.gmra.mxu0 %v4454
        %v4864 = vpop.f32.mrf.mxu0
        %v4865 = vadd.f32 %v4837, %v4864
        %v4866 = vpop.f32.mrf.mxu0
        %v4867 = vadd.f32 %v4839, %v4866
        %4868 = vmatmul.bf16.gmra.mxu0 %v4459
        %v4869 = vpop.f32.mrf.mxu0
        %v4870 = vadd.f32 %v4842, %v4869
        %v4871 = vpop.f32.mrf.mxu0
        %v4872 = vadd.f32 %v4844, %v4871
        %4873 = vmatmul.bf16.gmra.mxu0 %v4464
        %v4874 = vpop.f32.mrf.mxu0
        %v4875 = vadd.f32 %v4847, %v4874
        %v4876 = vpop.f32.mrf.mxu0
        %4877 = vdwg.mxu0
        %4878 = vmatpush.bf16.msra.mxu0 %v3633
        %4879 = vmatpush.bf16.msra.mxu0 %v3629
        %4880 = vmatpush.bf16.msra.mxu0 %v3625
        %4881 = vmatpush.bf16.msra.mxu0 %v3621
        %4882 = vmatpush.bf16.msra.mxu0 %v3617
        %4883 = vmatpush.bf16.msra.mxu0 %v3613
        %4884 = vmatpush.bf16.msra.mxu0 %v3609
        %4885 = vmatpush.bf16.msra.mxu0 %v3605
        %4886 = vmatmul.bf16.gmra.mxu0 %v4450
        %v4887 = vpop.f32.mrf.mxu0
        %v4888 = vadd.f32 %v4860, %v4887
        %v4889 = vpop.f32.mrf.mxu0
        %v4890 = vadd.f32 %v4862, %v4889
        %4891 = vmatmul.bf16.gmra.mxu0 %v4455
        %v4892 = vpop.f32.mrf.mxu0
        %v4893 = vadd.f32 %v4865, %v4892
        %v4894 = vpop.f32.mrf.mxu0
        %v4895 = vadd.f32 %v4867, %v4894
        %4896 = vmatmul.bf16.gmra.mxu0 %v4460
        %v4897 = vpop.f32.mrf.mxu0
        %v4898 = vadd.f32 %v4870, %v4897
        %v4899 = vpop.f32.mrf.mxu0
        %v4900 = vadd.f32 %v4872, %v4899
        %4901 = vmatmul.bf16.gmra.mxu0 %v4465
        %v4902 = vpop.f32.mrf.mxu0
        %v4903 = vadd.f32 %v4875, %v4902
        %v4904 = vpop.f32.mrf.mxu0
        %4905 = vdwg.mxu0
        %4906 = vmatpush.bf16.msra.mxu0 %v3506
        %4907 = vmatpush.bf16.msra.mxu0 %v3502
        %4908 = vmatpush.bf16.msra.mxu0 %v3498
        %4909 = vmatpush.bf16.msra.mxu0 %v3494
        %4910 = vmatpush.bf16.msra.mxu0 %v3490
        %4911 = vmatpush.bf16.msra.mxu0 %v3486
        %4912 = vmatpush.bf16.msra.mxu0 %v3482
        %4913 = vmatpush.bf16.msra.mxu0 %v3478
        %4914 = vmatmul.bf16.gmra.mxu0 %v4446
        %v4915 = vpop.f32.mrf.mxu0
        %v4916 = vadd.f32 0.0, %v4915
        %v4917 = vpop.f32.mrf.mxu0
        %v4918 = vadd.f32 0.0, %v4917
        %4919 = vmatmul.bf16.gmra.mxu0 %v4451
        %v4920 = vpop.f32.mrf.mxu0
        %v4921 = vadd.f32 0.0, %v4920
        %v4922 = vpop.f32.mrf.mxu0
        %v4923 = vadd.f32 0.0, %v4922
        %4924 = vmatmul.bf16.gmra.mxu0 %v4456
        %v4925 = vpop.f32.mrf.mxu0
        %v4926 = vadd.f32 0.0, %v4925
        %v4927 = vpop.f32.mrf.mxu0
        %v4928 = vadd.f32 0.0, %v4927
        %4929 = vmatmul.bf16.gmra.mxu0 %v4461
        %v4930 = vpop.f32.mrf.mxu0
        %v4931 = vadd.f32 0.0, %v4930
        %v4932 = vpop.f32.mrf.mxu0
        %4933 = vdwg.mxu0
        %4934 = vmatpush.bf16.msra.mxu0 %v3538
        %4935 = vmatpush.bf16.msra.mxu0 %v3534
        %4936 = vmatpush.bf16.msra.mxu0 %v3530
        %4937 = vmatpush.bf16.msra.mxu0 %v3526
        %4938 = vmatpush.bf16.msra.mxu0 %v3522
        %4939 = vmatpush.bf16.msra.mxu0 %v3518
        %4940 = vmatpush.bf16.msra.mxu0 %v3514
        %4941 = vmatpush.bf16.msra.mxu0 %v3510
        %4942 = vmatmul.bf16.gmra.mxu0 %v4447
        %v4943 = vpop.f32.mrf.mxu0
        %v4944 = vadd.f32 %v4916, %v4943
        %v4945 = vpop.f32.mrf.mxu0
        %v4946 = vadd.f32 %v4918, %v4945
        %4947 = vmatmul.bf16.gmra.mxu0 %v4452
        %v4948 = vpop.f32.mrf.mxu0
        %v4949 = vadd.f32 %v4921, %v4948
        %v4950 = vpop.f32.mrf.mxu0
        %v4951 = vadd.f32 %v4923, %v4950
        %4952 = vmatmul.bf16.gmra.mxu0 %v4457
        %v4953 = vpop.f32.mrf.mxu0
        %v4954 = vadd.f32 %v4926, %v4953
        %v4955 = vpop.f32.mrf.mxu0
        %v4956 = vadd.f32 %v4928, %v4955
        %4957 = vmatmul.bf16.gmra.mxu0 %v4462
        %v4958 = vpop.f32.mrf.mxu0
        %v4959 = vadd.f32 %v4931, %v4958
        %v4960 = vpop.f32.mrf.mxu0
        %4961 = vdwg.mxu0
        %4962 = vmatpush.bf16.msra.mxu0 %v3570
        %4963 = vmatpush.bf16.msra.mxu0 %v3566
        %4964 = vmatpush.bf16.msra.mxu0 %v3562
        %4965 = vmatpush.bf16.msra.mxu0 %v3558
        %4966 = vmatpush.bf16.msra.mxu0 %v3554
        %4967 = vmatpush.bf16.msra.mxu0 %v3550
        %4968 = vmatpush.bf16.msra.mxu0 %v3546
        %4969 = vmatpush.bf16.msra.mxu0 %v3542
        %4970 = vmatmul.bf16.gmra.mxu0 %v4448
        %v4971 = vpop.f32.mrf.mxu0
        %v4972 = vadd.f32 %v4944, %v4971
        %v4973 = vpop.f32.mrf.mxu0
        %v4974 = vadd.f32 %v4946, %v4973
        %4975 = vmatmul.bf16.gmra.mxu0 %v4453
        %v4976 = vpop.f32.mrf.mxu0
        %v4977 = vadd.f32 %v4949, %v4976
        %v4978 = vpop.f32.mrf.mxu0
        %v4979 = vadd.f32 %v4951, %v4978
        %4980 = vmatmul.bf16.gmra.mxu0 %v4458
        %v4981 = vpop.f32.mrf.mxu0
        %v4982 = vadd.f32 %v4954, %v4981
        %v4983 = vpop.f32.mrf.mxu0
        %v4984 = vadd.f32 %v4956, %v4983
        %4985 = vmatmul.bf16.gmra.mxu0 %v4463
        %v4986 = vpop.f32.mrf.mxu0
        %v4987 = vadd.f32 %v4959, %v4986
        %v4988 = vpop.f32.mrf.mxu0
        %4989 = vdwg.mxu0
        %4990 = vmatpush.bf16.msra.mxu0 %v3602
        %4991 = vmatpush.bf16.msra.mxu0 %v3598
        %4992 = vmatpush.bf16.msra.mxu0 %v3594
        %4993 = vmatpush.bf16.msra.mxu0 %v3590
        %4994 = vmatpush.bf16.msra.mxu0 %v3586
        %4995 = vmatpush.bf16.msra.mxu0 %v3582
        %4996 = vmatpush.bf16.msra.mxu0 %v3578
        %4997 = vmatpush.bf16.msra.mxu0 %v3574
        %4998 = vmatmul.bf16.gmra.mxu0 %v4449
        %v4999 = vpop.f32.mrf.mxu0
        %v5000 = vadd.f32 %v4972, %v4999
        %v5001 = vpop.f32.mrf.mxu0
        %v5002 = vadd.f32 %v4974, %v5001
        %5003 = vmatmul.bf16.gmra.mxu0 %v4454
        %v5004 = vpop.f32.mrf.mxu0
        %v5005 = vadd.f32 %v4977, %v5004
        %v5006 = vpop.f32.mrf.mxu0
        %v5007 = vadd.f32 %v4979, %v5006
        %5008 = vmatmul.bf16.gmra.mxu0 %v4459
        %v5009 = vpop.f32.mrf.mxu0
        %v5010 = vadd.f32 %v4982, %v5009
        %v5011 = vpop.f32.mrf.mxu0
        %v5012 = vadd.f32 %v4984, %v5011
        %5013 = vmatmul.bf16.gmra.mxu0 %v4464
        %v5014 = vpop.f32.mrf.mxu0
        %v5015 = vadd.f32 %v4987, %v5014
        %v5016 = vpop.f32.mrf.mxu0
        %5017 = vdwg.mxu0
        %5018 = vmatpush.bf16.msra.mxu0 %v3634
        %5019 = vmatpush.bf16.msra.mxu0 %v3630
        %5020 = vmatpush.bf16.msra.mxu0 %v3626
        %5021 = vmatpush.bf16.msra.mxu0 %v3622
        %5022 = vmatpush.bf16.msra.mxu0 %v3618
        %5023 = vmatpush.bf16.msra.mxu0 %v3614
        %5024 = vmatpush.bf16.msra.mxu0 %v3610
        %5025 = vmatpush.bf16.msra.mxu0 %v3606
        %5026 = vmatmul.bf16.gmra.mxu0 %v4450
        %v5027 = vpop.f32.mrf.mxu0
        %v5028 = vadd.f32 %v5000, %v5027
        %v5029 = vpop.f32.mrf.mxu0
        %v5030 = vadd.f32 %v5002, %v5029
        %5031 = vmatmul.bf16.gmra.mxu0 %v4455
        %v5032 = vpop.f32.mrf.mxu0
        %v5033 = vadd.f32 %v5005, %v5032
        %v5034 = vpop.f32.mrf.mxu0
        %v5035 = vadd.f32 %v5007, %v5034
        %5036 = vmatmul.bf16.gmra.mxu0 %v4460
        %v5037 = vpop.f32.mrf.mxu0
        %v5038 = vadd.f32 %v5010, %v5037
        %v5039 = vpop.f32.mrf.mxu0
        %v5040 = vadd.f32 %v5012, %v5039
        %5041 = vmatmul.bf16.gmra.mxu0 %v4465
        %v5042 = vpop.f32.mrf.mxu0
        %v5043 = vadd.f32 %v5015, %v5042
        %v5044 = vpop.f32.mrf.mxu0
        %5045 = vdwg.mxu0
        %v5046 = vmax.f32 %v4608, %v4888
        %v5047 = vmax.f32 %v4748, %v5028
        %v5048 = vmax.f32 %v4610, %v4890
        %v5049 = vmax.f32 %v4750, %v5030
        %v5050 = vmax.f32 %v4613, %v4893
        %v5051 = vmax.f32 %v4753, %v5033
        %v5052 = vmax.f32 %v4615, %v4895
        %v5053 = vmax.f32 %v4755, %v5035
        %v5054 = vmax.f32 %v4618, %v4898
        %v5055 = vmax.f32 %v4758, %v5038
        %v5056 = vmax.f32 %v4620, %v4900
        %v5057 = vmax.f32 %v4760, %v5040
        %v5058 = vmax.f32 %v4623, %v4903
        %v5059 = vmax.f32 %v4763, %v5043
        %v5060 = vmax.f32 %v4355, %v5046
        %v5061 = vmax.f32 %v4356, %v5047
        %v5062 = vmax.f32 %v4357, %v5048
        %v5063 = vmax.f32 %v4358, %v5049
        %v5064 = vmax.f32 %v4359, %v5050
        %v5065 = vmax.f32 %v4360, %v5051
        %v5066 = vmax.f32 %v4361, %v5052
        %v5067 = vmax.f32 %v4362, %v5053
        %v5068 = vmax.f32 %v4363, %v5054
        %v5069 = vmax.f32 %v4364, %v5055
        %v5070 = vmax.f32 %v4365, %v5056
        %v5071 = vmax.f32 %v4366, %v5057
        %v5072 = vmax.f32 %v4367, %v5058
        %v5073 = vmax.f32 %v4368, %v5059
        %v5074 = vld [vmem:[%s2] sm:$0x3]
        %v5076 = vperm.slane %v5074, 0
        %v5077 = vperm.slane %v5074, 1
        %v5080 = vadd.f32 %v5060, %v5076
        %v5081 = vadd.f32 %v5061, %v5077
        %v5082 = vadd.f32 %v5062, %v5076
        %v5083 = vadd.f32 %v5063, %v5077
        %v5084 = vadd.f32 %v5064, %v5076
        %v5085 = vadd.f32 %v5065, %v5077
        %v5086 = vadd.f32 %v5066, %v5076
        %v5087 = vadd.f32 %v5067, %v5077
        %v5088 = vadd.f32 %v5068, %v5076
        %v5089 = vadd.f32 %v5069, %v5077
        %v5090 = vadd.f32 %v5070, %v5076
        %v5091 = vadd.f32 %v5071, %v5077
        %v5092 = vadd.f32 %v5072, %v5076
        %v5093 = vadd.f32 %v5073, %v5077
        %v5094 = vmax.f32 %v5080, 0.0
        %v5095 = vmax.f32 %v5081, 0.0
        %v5096 = vmax.f32 %v5082, 0.0
        %v5097 = vmax.f32 %v5083, 0.0
        %v5098 = vmax.f32 %v5084, 0.0
        %v5099 = vmax.f32 %v5085, 0.0
        %v5100 = vmax.f32 %v5086, 0.0
        %v5101 = vmax.f32 %v5087, 0.0
        %v5102 = vmax.f32 %v5088, 0.0
        %v5103 = vmax.f32 %v5089, 0.0
        %v5104 = vmax.f32 %v5090, 0.0
        %v5105 = vmax.f32 %v5091, 0.0
        %v5106 = vmax.f32 %v5092, 0.0
        %v5107 = vmax.f32 %v5093, 0.0
        %5108 = vst [vmem:[%s311] sm:$0xff] %v5094
        %5109 = vst [vmem:[%s311 + $0x8] sm:$0xff] %v5095
        %5110 = vst [vmem:[%s311 + $0x10] sm:$0xff] %v5096
        %5111 = vst [vmem:[%s311 + $0x18] sm:$0xff] %v5097
        %5112 = vst [vmem:[%s311 + $0x20] sm:$0xff] %v5098
        %5113 = vst [vmem:[%s311 + $0x28] sm:$0xff] %v5099
        %5114 = vst [vmem:[%s311 + $0x30] sm:$0xff] %v5100
        %5115 = vst [vmem:[%s311 + $0x38] sm:$0xff] %v5101
        %5116 = vst [vmem:[%s311 + $0x40] sm:$0xff] %v5102
        %5117 = vst [vmem:[%s311 + $0x48] sm:$0xff] %v5103
        %5118 = vst [vmem:[%s311 + $0x50] sm:$0xff] %v5104
        %5119 = vst [vmem:[%s311 + $0x58] sm:$0xff] %v5105
        %5120 = vst [vmem:[%s311 + $0x60] sm:$0xff] %v5106
        %5121 = vst [vmem:[%s311 + $0x68] sm:$0xff] %v5107
        %v5122 = vld [vmem:[#allocation2] sm:$0xff]
        %v5123 = vld [vmem:[#allocation2 + $0x8] sm:$0xff]
        %v5124 = vld [vmem:[#allocation2 + $0x10] sm:$0xff]
        %v5125 = vld [vmem:[#allocation2 + $0x18] sm:$0xff]
        %v5126 = vld [vmem:[#allocation2 + $0x20] sm:$0xff]
        %v5127 = vld [vmem:[#allocation2 + $0x28] sm:$0xff]
        %v5128 = vld [vmem:[#allocation2 + $0x30] sm:$0xff]
        %v5129 = vld [vmem:[#allocation2 + $0x38] sm:$0xff]
        %v5130 = vld [vmem:[#allocation2 + $0x40] sm:$0xff]
        %v5131 = vld [vmem:[#allocation2 + $0x48] sm:$0xff]
        %v5132 = vld [vmem:[#allocation2 + $0x50] sm:$0xff]
        %v5133 = vld [vmem:[#allocation2 + $0x58] sm:$0xff]
        %v5134 = vld [vmem:[#allocation2 + $0x60] sm:$0xff]
        %v5135 = vld [vmem:[#allocation2 + $0x68] sm:$0xff]
        %v5136 = vpack.c.bf16 %v5124, %v5122
        %v5137 = vpack.c.bf16 %v5125, %v5123
        %v5138 = vpack.c.bf16 %v5128, %v5126
        %v5139 = vpack.c.bf16 %v5129, %v5127
        %v5140 = vpack.c.bf16 %v5132, %v5130
        %v5141 = vpack.c.bf16 %v5133, %v5131
        %v5142 = vpack.c.bf16 %v5134, %v5134
        %v5143 = vpack.c.bf16 %v5135, %v5135
        %v5144 = vld [vmem:[%s3] sm:$0xff]
        %v5145 = vld [vmem:[%s3 + $0x8] sm:$0xff]
        %v5146 = vld [vmem:[%s3 + $0x10] sm:$0xff]
        %v5147 = vld [vmem:[%s3 + $0x18] sm:$0xff]
        %v5148 = vld [vmem:[%s3 + $0x20] sm:$0xff]
        %v5149 = vld [vmem:[%s3 + $0x28] sm:$0xff]
        %v5150 = vld [vmem:[%s3 + $0x30] sm:$0xff]
        %v5151 = vld [vmem:[%s3 + $0x38] sm:$0xff]
        %v5152 = vld [vmem:[%s3 + $0x40] sm:$0xff]
        %v5153 = vld [vmem:[%s3 + $0x48] sm:$0xff]
        %v5154 = vld [vmem:[%s3 + $0x50] sm:$0xff]
        %v5155 = vld [vmem:[%s3 + $0x58] sm:$0xff]
        %v5156 = vld [vmem:[%s3 + $0x60] sm:$0xff]
        %v5157 = vld [vmem:[%s3 + $0x68] sm:$0xff]
        %v5158 = vld [vmem:[%s3 + $0x70] sm:$0xff]
        %v5159 = vld [vmem:[%s3 + $0x78] sm:$0xff]
        %v5160 = vld [vmem:[%s3 + $0x80] sm:$0xff]
        %v5161 = vld [vmem:[%s3 + $0x88] sm:$0xff]
        %v5162 = vld [vmem:[%s3 + $0x90] sm:$0xff]
        %v5163 = vld [vmem:[%s3 + $0x98] sm:$0xff]
        %v5164 = vld [vmem:[%s3 + $0xa0] sm:$0xff]
        %v5165 = vld [vmem:[%s3 + $0xa8] sm:$0xff]
        %v5166 = vld [vmem:[%s3 + $0xb0] sm:$0xff]
        %v5167 = vld [vmem:[%s3 + $0xb8] sm:$0xff]
        %v5168 = vld [vmem:[%s3 + $0xc0] sm:$0xff]
        %v5169 = vld [vmem:[%s3 + $0xc8] sm:$0xff]
        %v5170 = vld [vmem:[%s3 + $0xd0] sm:$0xff]
        %v5171 = vld [vmem:[%s3 + $0xd8] sm:$0xff]
        %v5172 = vld [vmem:[%s3 + $0xe0] sm:$0xff]
        %v5173 = vld [vmem:[%s3 + $0xe8] sm:$0xff]
        %v5174 = vld [vmem:[%s3 + $0xf0] sm:$0xff]
        %v5175 = vld [vmem:[%s3 + $0xf8] sm:$0xff]
        %v5176 = vld [vmem:[%s3 + $0x100] sm:$0xff]
        %v5177 = vld [vmem:[%s3 + $0x108] sm:$0xff]
        %v5178 = vld [vmem:[%s3 + $0x110] sm:$0xff]
        %v5179 = vld [vmem:[%s3 + $0x118] sm:$0xff]
        %v5180 = vld [vmem:[%s3 + $0x120] sm:$0xff]
        %v5181 = vld [vmem:[%s3 + $0x128] sm:$0xff]
        %v5182 = vld [vmem:[%s3 + $0x130] sm:$0xff]
        %v5183 = vld [vmem:[%s3 + $0x138] sm:$0xff]
        %v5184 = vld [vmem:[%s3 + $0x140] sm:$0xff]
        %v5185 = vld [vmem:[%s3 + $0x148] sm:$0xff]
        %v5186 = vld [vmem:[%s3 + $0x150] sm:$0xff]
        %v5187 = vld [vmem:[%s3 + $0x158] sm:$0xff]
        %v5188 = vld [vmem:[%s3 + $0x160] sm:$0xff]
        %v5189 = vld [vmem:[%s3 + $0x168] sm:$0xff]
        %v5190 = vld [vmem:[%s3 + $0x170] sm:$0xff]
        %v5191 = vld [vmem:[%s3 + $0x178] sm:$0xff]
        %v5192 = vld [vmem:[%s3 + $0x180] sm:$0xff]
        %v5193 = vld [vmem:[%s3 + $0x188] sm:$0xff]
        %v5194 = vld [vmem:[%s3 + $0x190] sm:$0xff]
        %v5195 = vld [vmem:[%s3 + $0x198] sm:$0xff]
        %v5196 = vld [vmem:[%s3 + $0x1a0] sm:$0xff]
        %v5197 = vld [vmem:[%s3 + $0x1a8] sm:$0xff]
        %v5198 = vld [vmem:[%s3 + $0x1b0] sm:$0xff]
        %v5199 = vld [vmem:[%s3 + $0x1b8] sm:$0xff]
        %v5200 = vld [vmem:[%s3 + $0x1c0] sm:$0xff]
        %v5201 = vld [vmem:[%s3 + $0x1c8] sm:$0xff]
        %v5202 = vld [vmem:[%s3 + $0x1d0] sm:$0xff]
        %v5203 = vld [vmem:[%s3 + $0x1d8] sm:$0xff]
        %v5204 = vld [vmem:[%s3 + $0x1e0] sm:$0xff]
        %v5205 = vld [vmem:[%s3 + $0x1e8] sm:$0xff]
        %v5206 = vld [vmem:[%s3 + $0x1f0] sm:$0xff]
        %v5207 = vld [vmem:[%s3 + $0x1f8] sm:$0xff]
        %v5208 = vld [vmem:[%s311] sm:$0xff]
        %v5209 = vld [vmem:[%s311 + $0x8] sm:$0xff]
        %v5210 = vld [vmem:[%s311 + $0x10] sm:$0xff]
        %v5211 = vld [vmem:[%s311 + $0x18] sm:$0xff]
        %v5212 = vld [vmem:[%s311 + $0x20] sm:$0xff]
        %v5213 = vld [vmem:[%s311 + $0x28] sm:$0xff]
        %v5214 = vld [vmem:[%s311 + $0x30] sm:$0xff]
        %v5215 = vld [vmem:[%s311 + $0x38] sm:$0xff]
        %v5216 = vld [vmem:[%s311 + $0x40] sm:$0xff]
        %v5217 = vld [vmem:[%s311 + $0x48] sm:$0xff]
        %v5218 = vld [vmem:[%s311 + $0x50] sm:$0xff]
        %v5219 = vld [vmem:[%s311 + $0x58] sm:$0xff]
        %v5220 = vld [vmem:[%s311 + $0x60] sm:$0xff]
        %v5221 = vld [vmem:[%s311 + $0x68] sm:$0xff]
        %v5222 = vpack.c.bf16 %v5210, %v5208
        %v5223 = vpack.c.bf16 %v5211, %v5209
        %v5224 = vpack.c.bf16 %v5214, %v5212
        %v5225 = vpack.c.bf16 %v5215, %v5213
        %v5226 = vpack.c.bf16 %v5218, %v5216
        %v5227 = vpack.c.bf16 %v5219, %v5217
        %v5228 = vpack.c.bf16 %v5220, %v5220
        %v5229 = vpack.c.bf16 %v5221, %v5221
        %s5230 = scalar_lea.vmem %s3, 512
        %v5231 = vld [vmem:[%s5230] sm:$0xff]
        %v5232 = vld [vmem:[%s5230 + $0x8] sm:$0xff]
        %v5233 = vld [vmem:[%s5230 + $0x10] sm:$0xff]
        %v5234 = vld [vmem:[%s5230 + $0x18] sm:$0xff]
        %v5235 = vld [vmem:[%s5230 + $0x20] sm:$0xff]
        %v5236 = vld [vmem:[%s5230 + $0x28] sm:$0xff]
        %v5237 = vld [vmem:[%s5230 + $0x30] sm:$0xff]
        %v5238 = vld [vmem:[%s5230 + $0x38] sm:$0xff]
        %v5239 = vld [vmem:[%s5230 + $0x40] sm:$0xff]
        %v5240 = vld [vmem:[%s5230 + $0x48] sm:$0xff]
        %v5241 = vld [vmem:[%s5230 + $0x50] sm:$0xff]
        %v5242 = vld [vmem:[%s5230 + $0x58] sm:$0xff]
        %v5243 = vld [vmem:[%s5230 + $0x60] sm:$0xff]
        %v5244 = vld [vmem:[%s5230 + $0x68] sm:$0xff]
        %v5245 = vld [vmem:[%s5230 + $0x70] sm:$0xff]
        %v5246 = vld [vmem:[%s5230 + $0x78] sm:$0xff]
        %v5247 = vld [vmem:[%s5230 + $0x80] sm:$0xff]
        %v5248 = vld [vmem:[%s5230 + $0x88] sm:$0xff]
        %v5249 = vld [vmem:[%s5230 + $0x90] sm:$0xff]
        %v5250 = vld [vmem:[%s5230 + $0x98] sm:$0xff]
        %v5251 = vld [vmem:[%s5230 + $0xa0] sm:$0xff]
        %v5252 = vld [vmem:[%s5230 + $0xa8] sm:$0xff]
        %v5253 = vld [vmem:[%s5230 + $0xb0] sm:$0xff]
        %v5254 = vld [vmem:[%s5230 + $0xb8] sm:$0xff]
        %v5255 = vld [vmem:[%s5230 + $0xc0] sm:$0xff]
        %v5256 = vld [vmem:[%s5230 + $0xc8] sm:$0xff]
        %v5257 = vld [vmem:[%s5230 + $0xd0] sm:$0xff]
        %v5258 = vld [vmem:[%s5230 + $0xd8] sm:$0xff]
        %v5259 = vld [vmem:[%s5230 + $0xe0] sm:$0xff]
        %v5260 = vld [vmem:[%s5230 + $0xe8] sm:$0xff]
        %v5261 = vld [vmem:[%s5230 + $0xf0] sm:$0xff]
        %v5262 = vld [vmem:[%s5230 + $0xf8] sm:$0xff]
        %v5263 = vld [vmem:[%s5230 + $0x100] sm:$0xff]
        %v5264 = vld [vmem:[%s5230 + $0x108] sm:$0xff]
        %v5265 = vld [vmem:[%s5230 + $0x110] sm:$0xff]
        %v5266 = vld [vmem:[%s5230 + $0x118] sm:$0xff]
        %v5267 = vld [vmem:[%s5230 + $0x120] sm:$0xff]
        %v5268 = vld [vmem:[%s5230 + $0x128] sm:$0xff]
        %v5269 = vld [vmem:[%s5230 + $0x130] sm:$0xff]
        %v5270 = vld [vmem:[%s5230 + $0x138] sm:$0xff]
        %v5271 = vld [vmem:[%s5230 + $0x140] sm:$0xff]
        %v5272 = vld [vmem:[%s5230 + $0x148] sm:$0xff]
        %v5273 = vld [vmem:[%s5230 + $0x150] sm:$0xff]
        %v5274 = vld [vmem:[%s5230 + $0x158] sm:$0xff]
        %v5275 = vld [vmem:[%s5230 + $0x160] sm:$0xff]
        %v5276 = vld [vmem:[%s5230 + $0x168] sm:$0xff]
        %v5277 = vld [vmem:[%s5230 + $0x170] sm:$0xff]
        %v5278 = vld [vmem:[%s5230 + $0x178] sm:$0xff]
        %v5279 = vld [vmem:[%s5230 + $0x180] sm:$0xff]
        %v5280 = vld [vmem:[%s5230 + $0x188] sm:$0xff]
        %v5281 = vld [vmem:[%s5230 + $0x190] sm:$0xff]
        %v5282 = vld [vmem:[%s5230 + $0x198] sm:$0xff]
        %v5283 = vld [vmem:[%s5230 + $0x1a0] sm:$0xff]
        %v5284 = vld [vmem:[%s5230 + $0x1a8] sm:$0xff]
        %v5285 = vld [vmem:[%s5230 + $0x1b0] sm:$0xff]
        %v5286 = vld [vmem:[%s5230 + $0x1b8] sm:$0xff]
        %v5287 = vld [vmem:[%s5230 + $0x1c0] sm:$0xff]
        %v5288 = vld [vmem:[%s5230 + $0x1c8] sm:$0xff]
        %v5289 = vld [vmem:[%s5230 + $0x1d0] sm:$0xff]
        %v5290 = vld [vmem:[%s5230 + $0x1d8] sm:$0xff]
        %v5291 = vld [vmem:[%s5230 + $0x1e0] sm:$0xff]
        %v5292 = vld [vmem:[%s5230 + $0x1e8] sm:$0xff]
        %v5293 = vld [vmem:[%s5230 + $0x1f0] sm:$0xff]
        %v5294 = vld [vmem:[%s5230 + $0x1f8] sm:$0xff]
        %v5359 = vunpack.c.l.b16 %v5231
        %v5360 = vunpack.c.h.b16 %v5231
        %v5361 = vunpack.c.l.b16 %v5232
        %v5362 = vunpack.c.h.b16 %v5232
        %v5363 = vunpack.c.l.b16 %v5233
        %v5364 = vunpack.c.h.b16 %v5233
        %v5365 = vunpack.c.l.b16 %v5234
        %v5366 = vunpack.c.h.b16 %v5234
        %v5367 = vunpack.c.l.b16 %v5235
        %v5368 = vunpack.c.h.b16 %v5235
        %v5369 = vunpack.c.l.b16 %v5236
        %v5370 = vunpack.c.h.b16 %v5236
        %v5371 = vunpack.c.l.b16 %v5237
        %v5372 = vunpack.c.h.b16 %v5237
        %v5373 = vunpack.c.l.b16 %v5238
        %v5374 = vunpack.c.h.b16 %v5238
        %v5375 = vunpack.c.l.b16 %v5239
        %v5376 = vunpack.c.h.b16 %v5239
        %v5377 = vunpack.c.l.b16 %v5240
        %v5378 = vunpack.c.h.b16 %v5240
        %v5379 = vunpack.c.l.b16 %v5241
        %v5380 = vunpack.c.h.b16 %v5241
        %v5381 = vunpack.c.l.b16 %v5242
        %v5382 = vunpack.c.h.b16 %v5242
        %v5383 = vunpack.c.l.b16 %v5243
        %v5384 = vunpack.c.h.b16 %v5243
        %v5385 = vunpack.c.l.b16 %v5244
        %v5386 = vunpack.c.h.b16 %v5244
        %v5387 = vunpack.c.l.b16 %v5245
        %v5388 = vunpack.c.h.b16 %v5245
        %v5389 = vunpack.c.l.b16 %v5246
        %v5390 = vunpack.c.h.b16 %v5246
        %v5391 = vunpack.c.l.b16 %v5247
        %v5392 = vunpack.c.h.b16 %v5247
        %v5393 = vunpack.c.l.b16 %v5248
        %v5394 = vunpack.c.h.b16 %v5248
        %v5395 = vunpack.c.l.b16 %v5249
        %v5396 = vunpack.c.h.b16 %v5249
        %v5397 = vunpack.c.l.b16 %v5250
        %v5398 = vunpack.c.h.b16 %v5250
        %v5399 = vunpack.c.l.b16 %v5251
        %v5400 = vunpack.c.h.b16 %v5251
        %v5401 = vunpack.c.l.b16 %v5252
        %v5402 = vunpack.c.h.b16 %v5252
        %v5403 = vunpack.c.l.b16 %v5253
        %v5404 = vunpack.c.h.b16 %v5253
        %v5405 = vunpack.c.l.b16 %v5254
        %v5406 = vunpack.c.h.b16 %v5254
        %v5407 = vunpack.c.l.b16 %v5255
        %v5408 = vunpack.c.h.b16 %v5255
        %v5409 = vunpack.c.l.b16 %v5256
        %v5410 = vunpack.c.h.b16 %v5256
        %v5411 = vunpack.c.l.b16 %v5257
        %v5412 = vunpack.c.h.b16 %v5257
        %v5413 = vunpack.c.l.b16 %v5258
        %v5414 = vunpack.c.h.b16 %v5258
        %v5415 = vunpack.c.l.b16 %v5259
        %v5416 = vunpack.c.h.b16 %v5259
        %v5417 = vunpack.c.l.b16 %v5260
        %v5418 = vunpack.c.h.b16 %v5260
        %v5419 = vunpack.c.l.b16 %v5261
        %v5420 = vunpack.c.h.b16 %v5261
        %v5421 = vunpack.c.l.b16 %v5262
        %v5422 = vunpack.c.h.b16 %v5262
        %v5423 = vunpack.c.l.b16 %v5263
        %v5424 = vunpack.c.h.b16 %v5263
        %v5425 = vunpack.c.l.b16 %v5264
        %v5426 = vunpack.c.h.b16 %v5264
        %v5427 = vunpack.c.l.b16 %v5265
        %v5428 = vunpack.c.h.b16 %v5265
        %v5429 = vunpack.c.l.b16 %v5266
        %v5430 = vunpack.c.h.b16 %v5266
        %v5431 = vunpack.c.l.b16 %v5267
        %v5432 = vunpack.c.h.b16 %v5267
        %v5433 = vunpack.c.l.b16 %v5268
        %v5434 = vunpack.c.h.b16 %v5268
        %v5435 = vunpack.c.l.b16 %v5269
        %v5436 = vunpack.c.h.b16 %v5269
        %v5437 = vunpack.c.l.b16 %v5270
        %v5438 = vunpack.c.h.b16 %v5270
        %v5439 = vunpack.c.l.b16 %v5271
        %v5440 = vunpack.c.h.b16 %v5271
        %v5441 = vunpack.c.l.b16 %v5272
        %v5442 = vunpack.c.h.b16 %v5272
        %v5443 = vunpack.c.l.b16 %v5273
        %v5444 = vunpack.c.h.b16 %v5273
        %v5445 = vunpack.c.l.b16 %v5274
        %v5446 = vunpack.c.h.b16 %v5274
        %v5447 = vunpack.c.l.b16 %v5275
        %v5448 = vunpack.c.h.b16 %v5275
        %v5449 = vunpack.c.l.b16 %v5276
        %v5450 = vunpack.c.h.b16 %v5276
        %v5451 = vunpack.c.l.b16 %v5277
        %v5452 = vunpack.c.h.b16 %v5277
        %v5453 = vunpack.c.l.b16 %v5278
        %v5454 = vunpack.c.h.b16 %v5278
        %v5455 = vunpack.c.l.b16 %v5279
        %v5456 = vunpack.c.h.b16 %v5279
        %v5457 = vunpack.c.l.b16 %v5280
        %v5458 = vunpack.c.h.b16 %v5280
        %v5459 = vunpack.c.l.b16 %v5281
        %v5460 = vunpack.c.h.b16 %v5281
        %v5461 = vunpack.c.l.b16 %v5282
        %v5462 = vunpack.c.h.b16 %v5282
        %v5463 = vunpack.c.l.b16 %v5283
        %v5464 = vunpack.c.h.b16 %v5283
        %v5465 = vunpack.c.l.b16 %v5284
        %v5466 = vunpack.c.h.b16 %v5284
        %v5467 = vunpack.c.l.b16 %v5285
        %v5468 = vunpack.c.h.b16 %v5285
        %v5469 = vunpack.c.l.b16 %v5286
        %v5470 = vunpack.c.h.b16 %v5286
        %v5471 = vunpack.c.l.b16 %v5287
        %v5472 = vunpack.c.h.b16 %v5287
        %v5473 = vunpack.c.l.b16 %v5288
        %v5474 = vunpack.c.h.b16 %v5288
        %v5475 = vunpack.c.l.b16 %v5289
        %v5476 = vunpack.c.h.b16 %v5289
        %v5477 = vunpack.c.l.b16 %v5290
        %v5478 = vunpack.c.h.b16 %v5290
        %v5479 = vunpack.c.l.b16 %v5291
        %v5480 = vunpack.c.h.b16 %v5291
        %v5481 = vunpack.c.l.b16 %v5292
        %v5482 = vunpack.c.h.b16 %v5292
        %v5483 = vunpack.c.l.b16 %v5293
        %v5484 = vunpack.c.h.b16 %v5293
        %v5485 = vunpack.c.l.b16 %v5294
        %v5486 = vunpack.c.h.b16 %v5294
        %v5487 = vpack.c.b16 %v5363, %v5359
        %v5488 = vpack.c.b16 %v5364, %v5360
        %v5489 = vpack.c.b16 %v5365, %v5361
        %v5490 = vpack.c.b16 %v5366, %v5362
        %v5491 = vpack.c.b16 %v5371, %v5367
        %v5492 = vpack.c.b16 %v5372, %v5368
        %v5493 = vpack.c.b16 %v5373, %v5369
        %v5494 = vpack.c.b16 %v5374, %v5370
        %v5495 = vpack.c.b16 %v5379, %v5375
        %v5496 = vpack.c.b16 %v5380, %v5376
        %v5497 = vpack.c.b16 %v5381, %v5377
        %v5498 = vpack.c.b16 %v5382, %v5378
        %v5499 = vpack.c.b16 %v5387, %v5383
        %v5500 = vpack.c.b16 %v5388, %v5384
        %v5501 = vpack.c.b16 %v5389, %v5385
        %v5502 = vpack.c.b16 %v5390, %v5386
        %v5503 = vpack.c.b16 %v5395, %v5391
        %v5504 = vpack.c.b16 %v5396, %v5392
        %v5505 = vpack.c.b16 %v5397, %v5393
        %v5506 = vpack.c.b16 %v5398, %v5394
        %v5507 = vpack.c.b16 %v5403, %v5399
        %v5508 = vpack.c.b16 %v5404, %v5400
        %v5509 = vpack.c.b16 %v5405, %v5401
        %v5510 = vpack.c.b16 %v5406, %v5402
        %v5511 = vpack.c.b16 %v5411, %v5407
        %v5512 = vpack.c.b16 %v5412, %v5408
        %v5513 = vpack.c.b16 %v5413, %v5409
        %v5514 = vpack.c.b16 %v5414, %v5410
        %v5515 = vpack.c.b16 %v5419, %v5415
        %v5516 = vpack.c.b16 %v5420, %v5416
        %v5517 = vpack.c.b16 %v5421, %v5417
        %v5518 = vpack.c.b16 %v5422, %v5418
        %v5519 = vpack.c.b16 %v5427, %v5423
        %v5520 = vpack.c.b16 %v5428, %v5424
        %v5521 = vpack.c.b16 %v5429, %v5425
        %v5522 = vpack.c.b16 %v5430, %v5426
        %v5523 = vpack.c.b16 %v5435, %v5431
        %v5524 = vpack.c.b16 %v5436, %v5432
        %v5525 = vpack.c.b16 %v5437, %v5433
        %v5526 = vpack.c.b16 %v5438, %v5434
        %v5527 = vpack.c.b16 %v5443, %v5439
        %v5528 = vpack.c.b16 %v5444, %v5440
        %v5529 = vpack.c.b16 %v5445, %v5441
        %v5530 = vpack.c.b16 %v5446, %v5442
        %v5531 = vpack.c.b16 %v5451, %v5447
        %v5532 = vpack.c.b16 %v5452, %v5448
        %v5533 = vpack.c.b16 %v5453, %v5449
        %v5534 = vpack.c.b16 %v5454, %v5450
        %v5535 = vpack.c.b16 %v5459, %v5455
        %v5536 = vpack.c.b16 %v5460, %v5456
        %v5537 = vpack.c.b16 %v5461, %v5457
        %v5538 = vpack.c.b16 %v5462, %v5458
        %v5539 = vpack.c.b16 %v5467, %v5463
        %v5540 = vpack.c.b16 %v5468, %v5464
        %v5541 = vpack.c.b16 %v5469, %v5465
        %v5542 = vpack.c.b16 %v5470, %v5466
        %v5543 = vpack.c.b16 %v5475, %v5471
        %v5544 = vpack.c.b16 %v5476, %v5472
        %v5545 = vpack.c.b16 %v5477, %v5473
        %v5546 = vpack.c.b16 %v5478, %v5474
        %v5547 = vpack.c.b16 %v5483, %v5479
        %v5548 = vpack.c.b16 %v5484, %v5480
        %v5549 = vpack.c.b16 %v5485, %v5481
        %v5550 = vpack.c.b16 %v5486, %v5482
        %5615 = vmatpush.bf16.msra.mxu0 %v5515
        %5616 = vmatpush.bf16.msra.mxu0 %v5511
        %5617 = vmatpush.bf16.msra.mxu0 %v5507
        %5618 = vmatpush.bf16.msra.mxu0 %v5503
        %5619 = vmatpush.bf16.msra.mxu0 %v5499
        %5620 = vmatpush.bf16.msra.mxu0 %v5495
        %5621 = vmatpush.bf16.msra.mxu0 %v5491
        %5622 = vmatpush.bf16.msra.mxu0 %v5487
        %5623 = vmatmul.bf16.gmra.mxu0 %v5222
        %v5624 = vpop.f32.mrf.mxu0
        %v5625 = vadd.f32 0.0, %v5624
        %v5626 = vpop.f32.mrf.mxu0
        %v5627 = vadd.f32 0.0, %v5626
        %5628 = vmatmul.bf16.gmra.mxu0 %v5224
        %v5629 = vpop.f32.mrf.mxu0
        %v5630 = vadd.f32 0.0, %v5629
        %v5631 = vpop.f32.mrf.mxu0
        %v5632 = vadd.f32 0.0, %v5631
        %5633 = vmatmul.bf16.gmra.mxu0 %v5226
        %v5634 = vpop.f32.mrf.mxu0
        %v5635 = vadd.f32 0.0, %v5634
        %v5636 = vpop.f32.mrf.mxu0
        %v5637 = vadd.f32 0.0, %v5636
        %5638 = vmatmul.bf16.gmra.mxu0 %v5228
        %v5639 = vpop.f32.mrf.mxu0
        %v5640 = vadd.f32 0.0, %v5639
        %v5641 = vpop.f32.mrf.mxu0
        %5642 = vdwg.mxu0
        %5643 = vmatpush.bf16.msra.mxu0 %v5547
        %5644 = vmatpush.bf16.msra.mxu0 %v5543
        %5645 = vmatpush.bf16.msra.mxu0 %v5539
        %5646 = vmatpush.bf16.msra.mxu0 %v5535
        %5647 = vmatpush.bf16.msra.mxu0 %v5531
        %5648 = vmatpush.bf16.msra.mxu0 %v5527
        %5649 = vmatpush.bf16.msra.mxu0 %v5523
        %5650 = vmatpush.bf16.msra.mxu0 %v5519
        %5651 = vmatmul.bf16.gmra.mxu0 %v5223
        %v5652 = vpop.f32.mrf.mxu0
        %v5653 = vadd.f32 %v5625, %v5652
        %v5654 = vpop.f32.mrf.mxu0
        %v5655 = vadd.f32 %v5627, %v5654
        %5656 = vmatmul.bf16.gmra.mxu0 %v5225
        %v5657 = vpop.f32.mrf.mxu0
        %v5658 = vadd.f32 %v5630, %v5657
        %v5659 = vpop.f32.mrf.mxu0
        %v5660 = vadd.f32 %v5632, %v5659
        %5661 = vmatmul.bf16.gmra.mxu0 %v5227
        %v5662 = vpop.f32.mrf.mxu0
        %v5663 = vadd.f32 %v5635, %v5662
        %v5664 = vpop.f32.mrf.mxu0
        %v5665 = vadd.f32 %v5637, %v5664
        %5666 = vmatmul.bf16.gmra.mxu0 %v5229
        %v5667 = vpop.f32.mrf.mxu0
        %v5668 = vadd.f32 %v5640, %v5667
        %v5669 = vpop.f32.mrf.mxu0
        %5670 = vdwg.mxu0
        %5671 = vmatpush.bf16.msra.mxu0 %v5516
        %5672 = vmatpush.bf16.msra.mxu0 %v5512
        %5673 = vmatpush.bf16.msra.mxu0 %v5508
        %5674 = vmatpush.bf16.msra.mxu0 %v5504
        %5675 = vmatpush.bf16.msra.mxu0 %v5500
        %5676 = vmatpush.bf16.msra.mxu0 %v5496
        %5677 = vmatpush.bf16.msra.mxu0 %v5492
        %5678 = vmatpush.bf16.msra.mxu0 %v5488
        %5679 = vmatmul.bf16.gmra.mxu0 %v5222
        %v5680 = vpop.f32.mrf.mxu0
        %v5681 = vadd.f32 0.0, %v5680
        %v5682 = vpop.f32.mrf.mxu0
        %v5683 = vadd.f32 0.0, %v5682
        %5684 = vmatmul.bf16.gmra.mxu0 %v5224
        %v5685 = vpop.f32.mrf.mxu0
        %v5686 = vadd.f32 0.0, %v5685
        %v5687 = vpop.f32.mrf.mxu0
        %v5688 = vadd.f32 0.0, %v5687
        %5689 = vmatmul.bf16.gmra.mxu0 %v5226
        %v5690 = vpop.f32.mrf.mxu0
        %v5691 = vadd.f32 0.0, %v5690
        %v5692 = vpop.f32.mrf.mxu0
        %v5693 = vadd.f32 0.0, %v5692
        %5694 = vmatmul.bf16.gmra.mxu0 %v5228
        %v5695 = vpop.f32.mrf.mxu0
        %v5696 = vadd.f32 0.0, %v5695
        %v5697 = vpop.f32.mrf.mxu0
        %5698 = vdwg.mxu0
        %5699 = vmatpush.bf16.msra.mxu0 %v5548
        %5700 = vmatpush.bf16.msra.mxu0 %v5544
        %5701 = vmatpush.bf16.msra.mxu0 %v5540
        %5702 = vmatpush.bf16.msra.mxu0 %v5536
        %5703 = vmatpush.bf16.msra.mxu0 %v5532
        %5704 = vmatpush.bf16.msra.mxu0 %v5528
        %5705 = vmatpush.bf16.msra.mxu0 %v5524
        %5706 = vmatpush.bf16.msra.mxu0 %v5520
        %5707 = vmatmul.bf16.gmra.mxu0 %v5223
        %v5708 = vpop.f32.mrf.mxu0
        %v5709 = vadd.f32 %v5681, %v5708
        %v5710 = vpop.f32.mrf.mxu0
        %v5711 = vadd.f32 %v5683, %v5710
        %5712 = vmatmul.bf16.gmra.mxu0 %v5225
        %v5713 = vpop.f32.mrf.mxu0
        %v5714 = vadd.f32 %v5686, %v5713
        %v5715 = vpop.f32.mrf.mxu0
        %v5716 = vadd.f32 %v5688, %v5715
        %5717 = vmatmul.bf16.gmra.mxu0 %v5227
        %v5718 = vpop.f32.mrf.mxu0
        %v5719 = vadd.f32 %v5691, %v5718
        %v5720 = vpop.f32.mrf.mxu0
        %v5721 = vadd.f32 %v5693, %v5720
        %5722 = vmatmul.bf16.gmra.mxu0 %v5229
        %v5723 = vpop.f32.mrf.mxu0
        %v5724 = vadd.f32 %v5696, %v5723
        %v5725 = vpop.f32.mrf.mxu0
        %5726 = vdwg.mxu0
        %5727 = vmatpush.bf16.msra.mxu0 %v5517
        %5728 = vmatpush.bf16.msra.mxu0 %v5513
        %5729 = vmatpush.bf16.msra.mxu0 %v5509
        %5730 = vmatpush.bf16.msra.mxu0 %v5505
        %5731 = vmatpush.bf16.msra.mxu0 %v5501
        %5732 = vmatpush.bf16.msra.mxu0 %v5497
        %5733 = vmatpush.bf16.msra.mxu0 %v5493
        %5734 = vmatpush.bf16.msra.mxu0 %v5489
        %5735 = vmatmul.bf16.gmra.mxu0 %v5222
        %v5736 = vpop.f32.mrf.mxu0
        %v5737 = vadd.f32 0.0, %v5736
        %v5738 = vpop.f32.mrf.mxu0
        %v5739 = vadd.f32 0.0, %v5738
        %5740 = vmatmul.bf16.gmra.mxu0 %v5224
        %v5741 = vpop.f32.mrf.mxu0
        %v5742 = vadd.f32 0.0, %v5741
        %v5743 = vpop.f32.mrf.mxu0
        %v5744 = vadd.f32 0.0, %v5743
        %5745 = vmatmul.bf16.gmra.mxu0 %v5226
        %v5746 = vpop.f32.mrf.mxu0
        %v5747 = vadd.f32 0.0, %v5746
        %v5748 = vpop.f32.mrf.mxu0
        %v5749 = vadd.f32 0.0, %v5748
        %5750 = vmatmul.bf16.gmra.mxu0 %v5228
        %v5751 = vpop.f32.mrf.mxu0
        %v5752 = vadd.f32 0.0, %v5751
        %v5753 = vpop.f32.mrf.mxu0
        %5754 = vdwg.mxu0
        %5755 = vmatpush.bf16.msra.mxu0 %v5549
        %5756 = vmatpush.bf16.msra.mxu0 %v5545
        %5757 = vmatpush.bf16.msra.mxu0 %v5541
        %5758 = vmatpush.bf16.msra.mxu0 %v5537
        %5759 = vmatpush.bf16.msra.mxu0 %v5533
        %5760 = vmatpush.bf16.msra.mxu0 %v5529
        %5761 = vmatpush.bf16.msra.mxu0 %v5525
        %5762 = vmatpush.bf16.msra.mxu0 %v5521
        %5763 = vmatmul.bf16.gmra.mxu0 %v5223
        %v5764 = vpop.f32.mrf.mxu0
        %v5765 = vadd.f32 %v5737, %v5764
        %v5766 = vpop.f32.mrf.mxu0
        %v5767 = vadd.f32 %v5739, %v5766
        %5768 = vmatmul.bf16.gmra.mxu0 %v5225
        %v5769 = vpop.f32.mrf.mxu0
        %v5770 = vadd.f32 %v5742, %v5769
        %v5771 = vpop.f32.mrf.mxu0
        %v5772 = vadd.f32 %v5744, %v5771
        %5773 = vmatmul.bf16.gmra.mxu0 %v5227
        %v5774 = vpop.f32.mrf.mxu0
        %v5775 = vadd.f32 %v5747, %v5774
        %v5776 = vpop.f32.mrf.mxu0
        %v5777 = vadd.f32 %v5749, %v5776
        %5778 = vmatmul.bf16.gmra.mxu0 %v5229
        %v5779 = vpop.f32.mrf.mxu0
        %v5780 = vadd.f32 %v5752, %v5779
        %v5781 = vpop.f32.mrf.mxu0
        %5782 = vdwg.mxu0
        %5783 = vmatpush.bf16.msra.mxu0 %v5518
        %5784 = vmatpush.bf16.msra.mxu0 %v5514
        %5785 = vmatpush.bf16.msra.mxu0 %v5510
        %5786 = vmatpush.bf16.msra.mxu0 %v5506
        %5787 = vmatpush.bf16.msra.mxu0 %v5502
        %5788 = vmatpush.bf16.msra.mxu0 %v5498
        %5789 = vmatpush.bf16.msra.mxu0 %v5494
        %5790 = vmatpush.bf16.msra.mxu0 %v5490
        %5791 = vmatmul.bf16.gmra.mxu0 %v5222
        %v5792 = vpop.f32.mrf.mxu0
        %v5793 = vadd.f32 0.0, %v5792
        %v5794 = vpop.f32.mrf.mxu0
        %v5795 = vadd.f32 0.0, %v5794
        %5796 = vmatmul.bf16.gmra.mxu0 %v5224
        %v5797 = vpop.f32.mrf.mxu0
        %v5798 = vadd.f32 0.0, %v5797
        %v5799 = vpop.f32.mrf.mxu0
        %v5800 = vadd.f32 0.0, %v5799
        %5801 = vmatmul.bf16.gmra.mxu0 %v5226
        %v5802 = vpop.f32.mrf.mxu0
        %v5803 = vadd.f32 0.0, %v5802
        %v5804 = vpop.f32.mrf.mxu0
        %v5805 = vadd.f32 0.0, %v5804
        %5806 = vmatmul.bf16.gmra.mxu0 %v5228
        %v5807 = vpop.f32.mrf.mxu0
        %v5808 = vadd.f32 0.0, %v5807
        %v5809 = vpop.f32.mrf.mxu0
        %5810 = vdwg.mxu0
        %5811 = vmatpush.bf16.msra.mxu0 %v5550
        %5812 = vmatpush.bf16.msra.mxu0 %v5546
        %5813 = vmatpush.bf16.msra.mxu0 %v5542
        %5814 = vmatpush.bf16.msra.mxu0 %v5538
        %5815 = vmatpush.bf16.msra.mxu0 %v5534
        %5816 = vmatpush.bf16.msra.mxu0 %v5530
        %5817 = vmatpush.bf16.msra.mxu0 %v5526
        %5818 = vmatpush.bf16.msra.mxu0 %v5522
        %5819 = vmatmul.bf16.gmra.mxu0 %v5223
        %v5820 = vpop.f32.mrf.mxu0
        %v5821 = vadd.f32 %v5793, %v5820
        %v5822 = vpop.f32.mrf.mxu0
        %v5823 = vadd.f32 %v5795, %v5822
        %5824 = vmatmul.bf16.gmra.mxu0 %v5225
        %v5825 = vpop.f32.mrf.mxu0
        %v5826 = vadd.f32 %v5798, %v5825
        %v5827 = vpop.f32.mrf.mxu0
        %v5828 = vadd.f32 %v5800, %v5827
        %5829 = vmatmul.bf16.gmra.mxu0 %v5227
        %v5830 = vpop.f32.mrf.mxu0
        %v5831 = vadd.f32 %v5803, %v5830
        %v5832 = vpop.f32.mrf.mxu0
        %v5833 = vadd.f32 %v5805, %v5832
        %5834 = vmatmul.bf16.gmra.mxu0 %v5229
        %v5835 = vpop.f32.mrf.mxu0
        %v5836 = vadd.f32 %v5808, %v5835
        %v5837 = vpop.f32.mrf.mxu0
        %5838 = vdwg.mxu0
        %v5903 = vunpack.c.l.b16 %v5144
        %v5904 = vunpack.c.h.b16 %v5144
        %v5905 = vunpack.c.l.b16 %v5145
        %v5906 = vunpack.c.h.b16 %v5145
        %v5907 = vunpack.c.l.b16 %v5146
        %v5908 = vunpack.c.h.b16 %v5146
        %v5909 = vunpack.c.l.b16 %v5147
        %v5910 = vunpack.c.h.b16 %v5147
        %v5911 = vunpack.c.l.b16 %v5148
        %v5912 = vunpack.c.h.b16 %v5148
        %v5913 = vunpack.c.l.b16 %v5149
        %v5914 = vunpack.c.h.b16 %v5149
        %v5915 = vunpack.c.l.b16 %v5150
        %v5916 = vunpack.c.h.b16 %v5150
        %v5917 = vunpack.c.l.b16 %v5151
        %v5918 = vunpack.c.h.b16 %v5151
        %v5919 = vunpack.c.l.b16 %v5152
        %v5920 = vunpack.c.h.b16 %v5152
        %v5921 = vunpack.c.l.b16 %v5153
        %v5922 = vunpack.c.h.b16 %v5153
        %v5923 = vunpack.c.l.b16 %v5154
        %v5924 = vunpack.c.h.b16 %v5154
        %v5925 = vunpack.c.l.b16 %v5155
        %v5926 = vunpack.c.h.b16 %v5155
        %v5927 = vunpack.c.l.b16 %v5156
        %v5928 = vunpack.c.h.b16 %v5156
        %v5929 = vunpack.c.l.b16 %v5157
        %v5930 = vunpack.c.h.b16 %v5157
        %v5931 = vunpack.c.l.b16 %v5158
        %v5932 = vunpack.c.h.b16 %v5158
        %v5933 = vunpack.c.l.b16 %v5159
        %v5934 = vunpack.c.h.b16 %v5159
        %v5935 = vunpack.c.l.b16 %v5160
        %v5936 = vunpack.c.h.b16 %v5160
        %v5937 = vunpack.c.l.b16 %v5161
        %v5938 = vunpack.c.h.b16 %v5161
        %v5939 = vunpack.c.l.b16 %v5162
        %v5940 = vunpack.c.h.b16 %v5162
        %v5941 = vunpack.c.l.b16 %v5163
        %v5942 = vunpack.c.h.b16 %v5163
        %v5943 = vunpack.c.l.b16 %v5164
        %v5944 = vunpack.c.h.b16 %v5164
        %v5945 = vunpack.c.l.b16 %v5165
        %v5946 = vunpack.c.h.b16 %v5165
        %v5947 = vunpack.c.l.b16 %v5166
        %v5948 = vunpack.c.h.b16 %v5166
        %v5949 = vunpack.c.l.b16 %v5167
        %v5950 = vunpack.c.h.b16 %v5167
        %v5951 = vunpack.c.l.b16 %v5168
        %v5952 = vunpack.c.h.b16 %v5168
        %v5953 = vunpack.c.l.b16 %v5169
        %v5954 = vunpack.c.h.b16 %v5169
        %v5955 = vunpack.c.l.b16 %v5170
        %v5956 = vunpack.c.h.b16 %v5170
        %v5957 = vunpack.c.l.b16 %v5171
        %v5958 = vunpack.c.h.b16 %v5171
        %v5959 = vunpack.c.l.b16 %v5172
        %v5960 = vunpack.c.h.b16 %v5172
        %v5961 = vunpack.c.l.b16 %v5173
        %v5962 = vunpack.c.h.b16 %v5173
        %v5963 = vunpack.c.l.b16 %v5174
        %v5964 = vunpack.c.h.b16 %v5174
        %v5965 = vunpack.c.l.b16 %v5175
        %v5966 = vunpack.c.h.b16 %v5175
        %v5967 = vunpack.c.l.b16 %v5176
        %v5968 = vunpack.c.h.b16 %v5176
        %v5969 = vunpack.c.l.b16 %v5177
        %v5970 = vunpack.c.h.b16 %v5177
        %v5971 = vunpack.c.l.b16 %v5178
        %v5972 = vunpack.c.h.b16 %v5178
        %v5973 = vunpack.c.l.b16 %v5179
        %v5974 = vunpack.c.h.b16 %v5179
        %v5975 = vunpack.c.l.b16 %v5180
        %v5976 = vunpack.c.h.b16 %v5180
        %v5977 = vunpack.c.l.b16 %v5181
        %v5978 = vunpack.c.h.b16 %v5181
        %v5979 = vunpack.c.l.b16 %v5182
        %v5980 = vunpack.c.h.b16 %v5182
        %v5981 = vunpack.c.l.b16 %v5183
        %v5982 = vunpack.c.h.b16 %v5183
        %v5983 = vunpack.c.l.b16 %v5184
        %v5984 = vunpack.c.h.b16 %v5184
        %v5985 = vunpack.c.l.b16 %v5185
        %v5986 = vunpack.c.h.b16 %v5185
        %v5987 = vunpack.c.l.b16 %v5186
        %v5988 = vunpack.c.h.b16 %v5186
        %v5989 = vunpack.c.l.b16 %v5187
        %v5990 = vunpack.c.h.b16 %v5187
        %v5991 = vunpack.c.l.b16 %v5188
        %v5992 = vunpack.c.h.b16 %v5188
        %v5993 = vunpack.c.l.b16 %v5189
        %v5994 = vunpack.c.h.b16 %v5189
        %v5995 = vunpack.c.l.b16 %v5190
        %v5996 = vunpack.c.h.b16 %v5190
        %v5997 = vunpack.c.l.b16 %v5191
        %v5998 = vunpack.c.h.b16 %v5191
        %v5999 = vunpack.c.l.b16 %v5192
        %v6000 = vunpack.c.h.b16 %v5192
        %v6001 = vunpack.c.l.b16 %v5193
        %v6002 = vunpack.c.h.b16 %v5193
        %v6003 = vunpack.c.l.b16 %v5194
        %v6004 = vunpack.c.h.b16 %v5194
        %v6005 = vunpack.c.l.b16 %v5195
        %v6006 = vunpack.c.h.b16 %v5195
        %v6007 = vunpack.c.l.b16 %v5196
        %v6008 = vunpack.c.h.b16 %v5196
        %v6009 = vunpack.c.l.b16 %v5197
        %v6010 = vunpack.c.h.b16 %v5197
        %v6011 = vunpack.c.l.b16 %v5198
        %v6012 = vunpack.c.h.b16 %v5198
        %v6013 = vunpack.c.l.b16 %v5199
        %v6014 = vunpack.c.h.b16 %v5199
        %v6015 = vunpack.c.l.b16 %v5200
        %v6016 = vunpack.c.h.b16 %v5200
        %v6017 = vunpack.c.l.b16 %v5201
        %v6018 = vunpack.c.h.b16 %v5201
        %v6019 = vunpack.c.l.b16 %v5202
        %v6020 = vunpack.c.h.b16 %v5202
        %v6021 = vunpack.c.l.b16 %v5203
        %v6022 = vunpack.c.h.b16 %v5203
        %v6023 = vunpack.c.l.b16 %v5204
        %v6024 = vunpack.c.h.b16 %v5204
        %v6025 = vunpack.c.l.b16 %v5205
        %v6026 = vunpack.c.h.b16 %v5205
        %v6027 = vunpack.c.l.b16 %v5206
        %v6028 = vunpack.c.h.b16 %v5206
        %v6029 = vunpack.c.l.b16 %v5207
        %v6030 = vunpack.c.h.b16 %v5207
        %v6031 = vpack.c.b16 %v5907, %v5903
        %v6032 = vpack.c.b16 %v5908, %v5904
        %v6033 = vpack.c.b16 %v5909, %v5905
        %v6034 = vpack.c.b16 %v5910, %v5906
        %v6035 = vpack.c.b16 %v5915, %v5911
        %v6036 = vpack.c.b16 %v5916, %v5912
        %v6037 = vpack.c.b16 %v5917, %v5913
        %v6038 = vpack.c.b16 %v5918, %v5914
        %v6039 = vpack.c.b16 %v5923, %v5919
        %v6040 = vpack.c.b16 %v5924, %v5920
        %v6041 = vpack.c.b16 %v5925, %v5921
        %v6042 = vpack.c.b16 %v5926, %v5922
        %v6043 = vpack.c.b16 %v5931, %v5927
        %v6044 = vpack.c.b16 %v5932, %v5928
        %v6045 = vpack.c.b16 %v5933, %v5929
        %v6046 = vpack.c.b16 %v5934, %v5930
        %v6047 = vpack.c.b16 %v5939, %v5935
        %v6048 = vpack.c.b16 %v5940, %v5936
        %v6049 = vpack.c.b16 %v5941, %v5937
        %v6050 = vpack.c.b16 %v5942, %v5938
        %v6051 = vpack.c.b16 %v5947, %v5943
        %v6052 = vpack.c.b16 %v5948, %v5944
        %v6053 = vpack.c.b16 %v5949, %v5945
        %v6054 = vpack.c.b16 %v5950, %v5946
        %v6055 = vpack.c.b16 %v5955, %v5951
        %v6056 = vpack.c.b16 %v5956, %v5952
        %v6057 = vpack.c.b16 %v5957, %v5953
        %v6058 = vpack.c.b16 %v5958, %v5954
        %v6059 = vpack.c.b16 %v5963, %v5959
        %v6060 = vpack.c.b16 %v5964, %v5960
        %v6061 = vpack.c.b16 %v5965, %v5961
        %v6062 = vpack.c.b16 %v5966, %v5962
        %v6063 = vpack.c.b16 %v5971, %v5967
        %v6064 = vpack.c.b16 %v5972, %v5968
        %v6065 = vpack.c.b16 %v5973, %v5969
        %v6066 = vpack.c.b16 %v5974, %v5970
        %v6067 = vpack.c.b16 %v5979, %v5975
        %v6068 = vpack.c.b16 %v5980, %v5976
        %v6069 = vpack.c.b16 %v5981, %v5977
        %v6070 = vpack.c.b16 %v5982, %v5978
        %v6071 = vpack.c.b16 %v5987, %v5983
        %v6072 = vpack.c.b16 %v5988, %v5984
        %v6073 = vpack.c.b16 %v5989, %v5985
        %v6074 = vpack.c.b16 %v5990, %v5986
        %v6075 = vpack.c.b16 %v5995, %v5991
        %v6076 = vpack.c.b16 %v5996, %v5992
        %v6077 = vpack.c.b16 %v5997, %v5993
        %v6078 = vpack.c.b16 %v5998, %v5994
        %v6079 = vpack.c.b16 %v6003, %v5999
        %v6080 = vpack.c.b16 %v6004, %v6000
        %v6081 = vpack.c.b16 %v6005, %v6001
        %v6082 = vpack.c.b16 %v6006, %v6002
        %v6083 = vpack.c.b16 %v6011, %v6007
        %v6084 = vpack.c.b16 %v6012, %v6008
        %v6085 = vpack.c.b16 %v6013, %v6009
        %v6086 = vpack.c.b16 %v6014, %v6010
        %v6087 = vpack.c.b16 %v6019, %v6015
        %v6088 = vpack.c.b16 %v6020, %v6016
        %v6089 = vpack.c.b16 %v6021, %v6017
        %v6090 = vpack.c.b16 %v6022, %v6018
        %v6091 = vpack.c.b16 %v6027, %v6023
        %v6092 = vpack.c.b16 %v6028, %v6024
        %v6093 = vpack.c.b16 %v6029, %v6025
        %v6094 = vpack.c.b16 %v6030, %v6026
        %6159 = vmatpush.bf16.msra.mxu0 %v6059
        %6160 = vmatpush.bf16.msra.mxu0 %v6055
        %6161 = vmatpush.bf16.msra.mxu0 %v6051
        %6162 = vmatpush.bf16.msra.mxu0 %v6047
        %6163 = vmatpush.bf16.msra.mxu0 %v6043
        %6164 = vmatpush.bf16.msra.mxu0 %v6039
        %6165 = vmatpush.bf16.msra.mxu0 %v6035
        %6166 = vmatpush.bf16.msra.mxu0 %v6031
        %6167 = vmatmul.bf16.gmra.mxu0 %v5136
        %v6168 = vpop.f32.mrf.mxu0
        %v6169 = vadd.f32 %v5653, %v6168
        %v6170 = vpop.f32.mrf.mxu0
        %v6171 = vadd.f32 %v5655, %v6170
        %6172 = vmatmul.bf16.gmra.mxu0 %v5138
        %v6173 = vpop.f32.mrf.mxu0
        %v6174 = vadd.f32 %v5658, %v6173
        %v6175 = vpop.f32.mrf.mxu0
        %v6176 = vadd.f32 %v5660, %v6175
        %6177 = vmatmul.bf16.gmra.mxu0 %v5140
        %v6178 = vpop.f32.mrf.mxu0
        %v6179 = vadd.f32 %v5663, %v6178
        %v6180 = vpop.f32.mrf.mxu0
        %v6181 = vadd.f32 %v5665, %v6180
        %6182 = vmatmul.bf16.gmra.mxu0 %v5142
        %v6183 = vpop.f32.mrf.mxu0
        %v6184 = vadd.f32 %v5668, %v6183
        %v6185 = vpop.f32.mrf.mxu0
        %6186 = vdwg.mxu0
        %6187 = vmatpush.bf16.msra.mxu0 %v6091
        %6188 = vmatpush.bf16.msra.mxu0 %v6087
        %6189 = vmatpush.bf16.msra.mxu0 %v6083
        %6190 = vmatpush.bf16.msra.mxu0 %v6079
        %6191 = vmatpush.bf16.msra.mxu0 %v6075
        %6192 = vmatpush.bf16.msra.mxu0 %v6071
        %6193 = vmatpush.bf16.msra.mxu0 %v6067
        %6194 = vmatpush.bf16.msra.mxu0 %v6063
        %6195 = vmatmul.bf16.gmra.mxu0 %v5137
        %v6196 = vpop.f32.mrf.mxu0
        %v6197 = vadd.f32 %v6169, %v6196
        %v6198 = vpop.f32.mrf.mxu0
        %v6199 = vadd.f32 %v6171, %v6198
        %6200 = vmatmul.bf16.gmra.mxu0 %v5139
        %v6201 = vpop.f32.mrf.mxu0
        %v6202 = vadd.f32 %v6174, %v6201
        %v6203 = vpop.f32.mrf.mxu0
        %v6204 = vadd.f32 %v6176, %v6203
        %6205 = vmatmul.bf16.gmra.mxu0 %v5141
        %v6206 = vpop.f32.mrf.mxu0
        %v6207 = vadd.f32 %v6179, %v6206
        %v6208 = vpop.f32.mrf.mxu0
        %v6209 = vadd.f32 %v6181, %v6208
        %6210 = vmatmul.bf16.gmra.mxu0 %v5143
        %v6211 = vpop.f32.mrf.mxu0
        %v6212 = vadd.f32 %v6184, %v6211
        %v6213 = vpop.f32.mrf.mxu0
        %6214 = vdwg.mxu0
        %6215 = vmatpush.bf16.msra.mxu0 %v6060
        %6216 = vmatpush.bf16.msra.mxu0 %v6056
        %6217 = vmatpush.bf16.msra.mxu0 %v6052
        %6218 = vmatpush.bf16.msra.mxu0 %v6048
        %6219 = vmatpush.bf16.msra.mxu0 %v6044
        %6220 = vmatpush.bf16.msra.mxu0 %v6040
        %6221 = vmatpush.bf16.msra.mxu0 %v6036
        %6222 = vmatpush.bf16.msra.mxu0 %v6032
        %6223 = vmatmul.bf16.gmra.mxu0 %v5136
        %v6224 = vpop.f32.mrf.mxu0
        %v6225 = vadd.f32 %v5709, %v6224
        %v6226 = vpop.f32.mrf.mxu0
        %v6227 = vadd.f32 %v5711, %v6226
        %6228 = vmatmul.bf16.gmra.mxu0 %v5138
        %v6229 = vpop.f32.mrf.mxu0
        %v6230 = vadd.f32 %v5714, %v6229
        %v6231 = vpop.f32.mrf.mxu0
        %v6232 = vadd.f32 %v5716, %v6231
        %6233 = vmatmul.bf16.gmra.mxu0 %v5140
        %v6234 = vpop.f32.mrf.mxu0
        %v6235 = vadd.f32 %v5719, %v6234
        %v6236 = vpop.f32.mrf.mxu0
        %v6237 = vadd.f32 %v5721, %v6236
        %6238 = vmatmul.bf16.gmra.mxu0 %v5142
        %v6239 = vpop.f32.mrf.mxu0
        %v6240 = vadd.f32 %v5724, %v6239
        %v6241 = vpop.f32.mrf.mxu0
        %6242 = vdwg.mxu0
        %6243 = vmatpush.bf16.msra.mxu0 %v6092
        %6244 = vmatpush.bf16.msra.mxu0 %v6088
        %6245 = vmatpush.bf16.msra.mxu0 %v6084
        %6246 = vmatpush.bf16.msra.mxu0 %v6080
        %6247 = vmatpush.bf16.msra.mxu0 %v6076
        %6248 = vmatpush.bf16.msra.mxu0 %v6072
        %6249 = vmatpush.bf16.msra.mxu0 %v6068
        %6250 = vmatpush.bf16.msra.mxu0 %v6064
        %6251 = vmatmul.bf16.gmra.mxu0 %v5137
        %v6252 = vpop.f32.mrf.mxu0
        %v6253 = vadd.f32 %v6225, %v6252
        %v6254 = vpop.f32.mrf.mxu0
        %v6255 = vadd.f32 %v6227, %v6254
        %6256 = vmatmul.bf16.gmra.mxu0 %v5139
        %v6257 = vpop.f32.mrf.mxu0
        %v6258 = vadd.f32 %v6230, %v6257
        %v6259 = vpop.f32.mrf.mxu0
        %v6260 = vadd.f32 %v6232, %v6259
        %6261 = vmatmul.bf16.gmra.mxu0 %v5141
        %v6262 = vpop.f32.mrf.mxu0
        %v6263 = vadd.f32 %v6235, %v6262
        %v6264 = vpop.f32.mrf.mxu0
        %v6265 = vadd.f32 %v6237, %v6264
        %6266 = vmatmul.bf16.gmra.mxu0 %v5143
        %v6267 = vpop.f32.mrf.mxu0
        %v6268 = vadd.f32 %v6240, %v6267
        %v6269 = vpop.f32.mrf.mxu0
        %6270 = vdwg.mxu0
        %6271 = vmatpush.bf16.msra.mxu0 %v6061
        %6272 = vmatpush.bf16.msra.mxu0 %v6057
        %6273 = vmatpush.bf16.msra.mxu0 %v6053
        %6274 = vmatpush.bf16.msra.mxu0 %v6049
        %6275 = vmatpush.bf16.msra.mxu0 %v6045
        %6276 = vmatpush.bf16.msra.mxu0 %v6041
        %6277 = vmatpush.bf16.msra.mxu0 %v6037
        %6278 = vmatpush.bf16.msra.mxu0 %v6033
        %6279 = vmatmul.bf16.gmra.mxu0 %v5136
        %v6280 = vpop.f32.mrf.mxu0
        %v6281 = vadd.f32 %v5765, %v6280
        %v6282 = vpop.f32.mrf.mxu0
        %v6283 = vadd.f32 %v5767, %v6282
        %6284 = vmatmul.bf16.gmra.mxu0 %v5138
        %v6285 = vpop.f32.mrf.mxu0
        %v6286 = vadd.f32 %v5770, %v6285
        %v6287 = vpop.f32.mrf.mxu0
        %v6288 = vadd.f32 %v5772, %v6287
        %6289 = vmatmul.bf16.gmra.mxu0 %v5140
        %v6290 = vpop.f32.mrf.mxu0
        %v6291 = vadd.f32 %v5775, %v6290
        %v6292 = vpop.f32.mrf.mxu0
        %v6293 = vadd.f32 %v5777, %v6292
        %6294 = vmatmul.bf16.gmra.mxu0 %v5142
        %v6295 = vpop.f32.mrf.mxu0
        %v6296 = vadd.f32 %v5780, %v6295
        %v6297 = vpop.f32.mrf.mxu0
        %6298 = vdwg.mxu0
        %6299 = vmatpush.bf16.msra.mxu0 %v6093
        %6300 = vmatpush.bf16.msra.mxu0 %v6089
        %6301 = vmatpush.bf16.msra.mxu0 %v6085
        %6302 = vmatpush.bf16.msra.mxu0 %v6081
        %6303 = vmatpush.bf16.msra.mxu0 %v6077
        %6304 = vmatpush.bf16.msra.mxu0 %v6073
        %6305 = vmatpush.bf16.msra.mxu0 %v6069
        %6306 = vmatpush.bf16.msra.mxu0 %v6065
        %6307 = vmatmul.bf16.gmra.mxu0 %v5137
        %v6308 = vpop.f32.mrf.mxu0
        %v6309 = vadd.f32 %v6281, %v6308
        %v6310 = vpop.f32.mrf.mxu0
        %v6311 = vadd.f32 %v6283, %v6310
        %6312 = vmatmul.bf16.gmra.mxu0 %v5139
        %v6313 = vpop.f32.mrf.mxu0
        %v6314 = vadd.f32 %v6286, %v6313
        %v6315 = vpop.f32.mrf.mxu0
        %v6316 = vadd.f32 %v6288, %v6315
        %6317 = vmatmul.bf16.gmra.mxu0 %v5141
        %v6318 = vpop.f32.mrf.mxu0
        %v6319 = vadd.f32 %v6291, %v6318
        %v6320 = vpop.f32.mrf.mxu0
        %v6321 = vadd.f32 %v6293, %v6320
        %6322 = vmatmul.bf16.gmra.mxu0 %v5143
        %v6323 = vpop.f32.mrf.mxu0
        %v6324 = vadd.f32 %v6296, %v6323
        %v6325 = vpop.f32.mrf.mxu0
        %6326 = vdwg.mxu0
        %6327 = vmatpush.bf16.msra.mxu0 %v6062
        %6328 = vmatpush.bf16.msra.mxu0 %v6058
        %6329 = vmatpush.bf16.msra.mxu0 %v6054
        %6330 = vmatpush.bf16.msra.mxu0 %v6050
        %6331 = vmatpush.bf16.msra.mxu0 %v6046
        %6332 = vmatpush.bf16.msra.mxu0 %v6042
        %6333 = vmatpush.bf16.msra.mxu0 %v6038
        %6334 = vmatpush.bf16.msra.mxu0 %v6034
        %6335 = vmatmul.bf16.gmra.mxu0 %v5136
        %v6336 = vpop.f32.mrf.mxu0
        %v6337 = vadd.f32 %v5821, %v6336
        %v6338 = vpop.f32.mrf.mxu0
        %v6339 = vadd.f32 %v5823, %v6338
        %6340 = vmatmul.bf16.gmra.mxu0 %v5138
        %v6341 = vpop.f32.mrf.mxu0
        %v6342 = vadd.f32 %v5826, %v6341
        %v6343 = vpop.f32.mrf.mxu0
        %v6344 = vadd.f32 %v5828, %v6343
        %6345 = vmatmul.bf16.gmra.mxu0 %v5140
        %v6346 = vpop.f32.mrf.mxu0
        %v6347 = vadd.f32 %v5831, %v6346
        %v6348 = vpop.f32.mrf.mxu0
        %v6349 = vadd.f32 %v5833, %v6348
        %6350 = vmatmul.bf16.gmra.mxu0 %v5142
        %v6351 = vpop.f32.mrf.mxu0
        %v6352 = vadd.f32 %v5836, %v6351
        %v6353 = vpop.f32.mrf.mxu0
        %6354 = vdwg.mxu0
        %6355 = vmatpush.bf16.msra.mxu0 %v6094
        %6356 = vmatpush.bf16.msra.mxu0 %v6090
        %6357 = vmatpush.bf16.msra.mxu0 %v6086
        %6358 = vmatpush.bf16.msra.mxu0 %v6082
        %6359 = vmatpush.bf16.msra.mxu0 %v6078
        %6360 = vmatpush.bf16.msra.mxu0 %v6074
        %6361 = vmatpush.bf16.msra.mxu0 %v6070
        %6362 = vmatpush.bf16.msra.mxu0 %v6066
        %6363 = vmatmul.bf16.gmra.mxu0 %v5137
        %v6364 = vpop.f32.mrf.mxu0
        %v6365 = vadd.f32 %v6337, %v6364
        %v6366 = vpop.f32.mrf.mxu0
        %v6367 = vadd.f32 %v6339, %v6366
        %6368 = vmatmul.bf16.gmra.mxu0 %v5139
        %v6369 = vpop.f32.mrf.mxu0
        %v6370 = vadd.f32 %v6342, %v6369
        %v6371 = vpop.f32.mrf.mxu0
        %v6372 = vadd.f32 %v6344, %v6371
        %6373 = vmatmul.bf16.gmra.mxu0 %v5141
        %v6374 = vpop.f32.mrf.mxu0
        %v6375 = vadd.f32 %v6347, %v6374
        %v6376 = vpop.f32.mrf.mxu0
        %v6377 = vadd.f32 %v6349, %v6376
        %6378 = vmatmul.bf16.gmra.mxu0 %v5143
        %v6379 = vpop.f32.mrf.mxu0
        %v6380 = vadd.f32 %v6352, %v6379
        %v6381 = vpop.f32.mrf.mxu0
        %6382 = vdwg.mxu0
        %v6383 = vld [vmem:[#allocation2] sm:$0xfe]
        %v6384 = vld [vmem:[#allocation2 + $0x8] sm:$0xfe]
        %v6385 = vld [vmem:[#allocation2 + $0x10] sm:$0xff]
        %v6386 = vld [vmem:[#allocation2 + $0x18] sm:$0xff]
        %v6387 = vld [vmem:[#allocation2 + $0x20] sm:$0xff]
        %v6388 = vld [vmem:[#allocation2 + $0x28] sm:$0xff]
        %v6389 = vld [vmem:[#allocation2 + $0x30] sm:$0xff]
        %v6390 = vld [vmem:[#allocation2 + $0x38] sm:$0xff]
        %v6391 = vld [vmem:[#allocation2 + $0x40] sm:$0xff]
        %v6392 = vld [vmem:[#allocation2 + $0x48] sm:$0xff]
        %v6393 = vld [vmem:[#allocation2 + $0x50] sm:$0xff]
        %v6394 = vld [vmem:[#allocation2 + $0x58] sm:$0xff]
        %v6395 = vld [vmem:[#allocation2 + $0x60] sm:$0xff]
        %v6396 = vld [vmem:[#allocation2 + $0x68] sm:$0xff]
        %v6397 = vld [vmem:[#allocation2 + $0x70] sm:$0x1]
        %v6398 = vld [vmem:[#allocation2 + $0x78] sm:$0x1]
        %v6399 = vpack.c.bf16 %v6385, %v6383
        %v6400 = vpack.c.bf16 %v6386, %v6384
        %v6401 = vpack.c.bf16 %v6389, %v6387
        %v6402 = vpack.c.bf16 %v6390, %v6388
        %v6403 = vpack.c.bf16 %v6393, %v6391
        %v6404 = vpack.c.bf16 %v6394, %v6392
        %v6405 = vpack.c.bf16 %v6397, %v6395
        %v6406 = vpack.c.bf16 %v6398, %v6396
        %s6407 = scalar_lea.vmem %s3, 1024
        %v6408 = vld [vmem:[%s6407] sm:$0xff]
        %v6409 = vld [vmem:[%s6407 + $0x8] sm:$0xff]
        %v6410 = vld [vmem:[%s6407 + $0x10] sm:$0xff]
        %v6411 = vld [vmem:[%s6407 + $0x18] sm:$0xff]
        %v6412 = vld [vmem:[%s6407 + $0x20] sm:$0xff]
        %v6413 = vld [vmem:[%s6407 + $0x28] sm:$0xff]
        %v6414 = vld [vmem:[%s6407 + $0x30] sm:$0xff]
        %v6415 = vld [vmem:[%s6407 + $0x38] sm:$0xff]
        %v6416 = vld [vmem:[%s6407 + $0x40] sm:$0xff]
        %v6417 = vld [vmem:[%s6407 + $0x48] sm:$0xff]
        %v6418 = vld [vmem:[%s6407 + $0x50] sm:$0xff]
        %v6419 = vld [vmem:[%s6407 + $0x58] sm:$0xff]
        %v6420 = vld [vmem:[%s6407 + $0x60] sm:$0xff]
        %v6421 = vld [vmem:[%s6407 + $0x68] sm:$0xff]
        %v6422 = vld [vmem:[%s6407 + $0x70] sm:$0xff]
        %v6423 = vld [vmem:[%s6407 + $0x78] sm:$0xff]
        %v6424 = vld [vmem:[%s6407 + $0x80] sm:$0xff]
        %v6425 = vld [vmem:[%s6407 + $0x88] sm:$0xff]
        %v6426 = vld [vmem:[%s6407 + $0x90] sm:$0xff]
        %v6427 = vld [vmem:[%s6407 + $0x98] sm:$0xff]
        %v6428 = vld [vmem:[%s6407 + $0xa0] sm:$0xff]
        %v6429 = vld [vmem:[%s6407 + $0xa8] sm:$0xff]
        %v6430 = vld [vmem:[%s6407 + $0xb0] sm:$0xff]
        %v6431 = vld [vmem:[%s6407 + $0xb8] sm:$0xff]
        %v6432 = vld [vmem:[%s6407 + $0xc0] sm:$0xff]
        %v6433 = vld [vmem:[%s6407 + $0xc8] sm:$0xff]
        %v6434 = vld [vmem:[%s6407 + $0xd0] sm:$0xff]
        %v6435 = vld [vmem:[%s6407 + $0xd8] sm:$0xff]
        %v6436 = vld [vmem:[%s6407 + $0xe0] sm:$0xff]
        %v6437 = vld [vmem:[%s6407 + $0xe8] sm:$0xff]
        %v6438 = vld [vmem:[%s6407 + $0xf0] sm:$0xff]
        %v6439 = vld [vmem:[%s6407 + $0xf8] sm:$0xff]
        %v6440 = vld [vmem:[%s6407 + $0x100] sm:$0xff]
        %v6441 = vld [vmem:[%s6407 + $0x108] sm:$0xff]
        %v6442 = vld [vmem:[%s6407 + $0x110] sm:$0xff]
        %v6443 = vld [vmem:[%s6407 + $0x118] sm:$0xff]
        %v6444 = vld [vmem:[%s6407 + $0x120] sm:$0xff]
        %v6445 = vld [vmem:[%s6407 + $0x128] sm:$0xff]
        %v6446 = vld [vmem:[%s6407 + $0x130] sm:$0xff]
        %v6447 = vld [vmem:[%s6407 + $0x138] sm:$0xff]
        %v6448 = vld [vmem:[%s6407 + $0x140] sm:$0xff]
        %v6449 = vld [vmem:[%s6407 + $0x148] sm:$0xff]
        %v6450 = vld [vmem:[%s6407 + $0x150] sm:$0xff]
        %v6451 = vld [vmem:[%s6407 + $0x158] sm:$0xff]
        %v6452 = vld [vmem:[%s6407 + $0x160] sm:$0xff]
        %v6453 = vld [vmem:[%s6407 + $0x168] sm:$0xff]
        %v6454 = vld [vmem:[%s6407 + $0x170] sm:$0xff]
        %v6455 = vld [vmem:[%s6407 + $0x178] sm:$0xff]
        %v6456 = vld [vmem:[%s6407 + $0x180] sm:$0xff]
        %v6457 = vld [vmem:[%s6407 + $0x188] sm:$0xff]
        %v6458 = vld [vmem:[%s6407 + $0x190] sm:$0xff]
        %v6459 = vld [vmem:[%s6407 + $0x198] sm:$0xff]
        %v6460 = vld [vmem:[%s6407 + $0x1a0] sm:$0xff]
        %v6461 = vld [vmem:[%s6407 + $0x1a8] sm:$0xff]
        %v6462 = vld [vmem:[%s6407 + $0x1b0] sm:$0xff]
        %v6463 = vld [vmem:[%s6407 + $0x1b8] sm:$0xff]
        %v6464 = vld [vmem:[%s6407 + $0x1c0] sm:$0xff]
        %v6465 = vld [vmem:[%s6407 + $0x1c8] sm:$0xff]
        %v6466 = vld [vmem:[%s6407 + $0x1d0] sm:$0xff]
        %v6467 = vld [vmem:[%s6407 + $0x1d8] sm:$0xff]
        %v6468 = vld [vmem:[%s6407 + $0x1e0] sm:$0xff]
        %v6469 = vld [vmem:[%s6407 + $0x1e8] sm:$0xff]
        %v6470 = vld [vmem:[%s6407 + $0x1f0] sm:$0xff]
        %v6471 = vld [vmem:[%s6407 + $0x1f8] sm:$0xff]
        %vm6472 = vsmask.f32 7424
        %v6474 = vshrl.u32 %v6399, 16
        %v6476 = vshll.u32 %v6399, 16
        %v6478 = vrot.slane %v6476, 1
        %v6479 = vor.u32 %v6474, %v6478
        %v6481 = vshll.u32 %v6401, 16
        %v6483 = vrot.slane %v6481, 1
        %v6484 = vsel %vm6472, %v6479, %v6483
        %v6486 = vshrl.u32 %v6400, 16
        %v6488 = vshll.u32 %v6400, 16
        %v6490 = vrot.slane %v6488, 1
        %v6491 = vor.u32 %v6486, %v6490
        %v6493 = vshll.u32 %v6402, 16
        %v6495 = vrot.slane %v6493, 1
        %v6496 = vsel %vm6472, %v6491, %v6495
        %v6497 = vshrl.u32 %v6401, 16
        %v6499 = vor.u32 %v6497, %v6483
        %v6501 = vshll.u32 %v6403, 16
        %v6503 = vrot.slane %v6501, 1
        %v6504 = vsel %vm6472, %v6499, %v6503
        %v6505 = vshrl.u32 %v6402, 16
        %v6507 = vor.u32 %v6505, %v6495
        %v6509 = vshll.u32 %v6404, 16
        %v6511 = vrot.slane %v6509, 1
        %v6512 = vsel %vm6472, %v6507, %v6511
        %v6513 = vshrl.u32 %v6403, 16
        %v6515 = vor.u32 %v6513, %v6503
        %v6517 = vshll.u32 %v6405, 16
        %v6519 = vrot.slane %v6517, 1
        %v6520 = vsel %vm6472, %v6515, %v6519
        %v6521 = vshrl.u32 %v6404, 16
        %v6523 = vor.u32 %v6521, %v6511
        %v6525 = vshll.u32 %v6406, 16
        %v6527 = vrot.slane %v6525, 1
        %v6528 = vsel %vm6472, %v6523, %v6527
        %v6529 = vshrl.u32 %v6405, 16
        %v6531 = vor.u32 %v6529, %v6519
        %v6532 = vshrl.u32 %v6406, 16
        %v6534 = vor.u32 %v6532, %v6527
        %v6607 = vunpack.c.l.b16 %v6408
        %v6608 = vunpack.c.h.b16 %v6408
        %v6609 = vunpack.c.l.b16 %v6409
        %v6610 = vunpack.c.h.b16 %v6409
        %v6611 = vunpack.c.l.b16 %v6410
        %v6612 = vunpack.c.h.b16 %v6410
        %v6613 = vunpack.c.l.b16 %v6411
        %v6614 = vunpack.c.h.b16 %v6411
        %v6615 = vunpack.c.l.b16 %v6412
        %v6616 = vunpack.c.h.b16 %v6412
        %v6617 = vunpack.c.l.b16 %v6413
        %v6618 = vunpack.c.h.b16 %v6413
        %v6619 = vunpack.c.l.b16 %v6414
        %v6620 = vunpack.c.h.b16 %v6414
        %v6621 = vunpack.c.l.b16 %v6415
        %v6622 = vunpack.c.h.b16 %v6415
        %v6623 = vunpack.c.l.b16 %v6416
        %v6624 = vunpack.c.h.b16 %v6416
        %v6625 = vunpack.c.l.b16 %v6417
        %v6626 = vunpack.c.h.b16 %v6417
        %v6627 = vunpack.c.l.b16 %v6418
        %v6628 = vunpack.c.h.b16 %v6418
        %v6629 = vunpack.c.l.b16 %v6419
        %v6630 = vunpack.c.h.b16 %v6419
        %v6631 = vunpack.c.l.b16 %v6420
        %v6632 = vunpack.c.h.b16 %v6420
        %v6633 = vunpack.c.l.b16 %v6421
        %v6634 = vunpack.c.h.b16 %v6421
        %v6635 = vunpack.c.l.b16 %v6422
        %v6636 = vunpack.c.h.b16 %v6422
        %v6637 = vunpack.c.l.b16 %v6423
        %v6638 = vunpack.c.h.b16 %v6423
        %v6639 = vunpack.c.l.b16 %v6424
        %v6640 = vunpack.c.h.b16 %v6424
        %v6641 = vunpack.c.l.b16 %v6425
        %v6642 = vunpack.c.h.b16 %v6425
        %v6643 = vunpack.c.l.b16 %v6426
        %v6644 = vunpack.c.h.b16 %v6426
        %v6645 = vunpack.c.l.b16 %v6427
        %v6646 = vunpack.c.h.b16 %v6427
        %v6647 = vunpack.c.l.b16 %v6428
        %v6648 = vunpack.c.h.b16 %v6428
        %v6649 = vunpack.c.l.b16 %v6429
        %v6650 = vunpack.c.h.b16 %v6429
        %v6651 = vunpack.c.l.b16 %v6430
        %v6652 = vunpack.c.h.b16 %v6430
        %v6653 = vunpack.c.l.b16 %v6431
        %v6654 = vunpack.c.h.b16 %v6431
        %v6655 = vunpack.c.l.b16 %v6432
        %v6656 = vunpack.c.h.b16 %v6432
        %v6657 = vunpack.c.l.b16 %v6433
        %v6658 = vunpack.c.h.b16 %v6433
        %v6659 = vunpack.c.l.b16 %v6434
        %v6660 = vunpack.c.h.b16 %v6434
        %v6661 = vunpack.c.l.b16 %v6435
        %v6662 = vunpack.c.h.b16 %v6435
        %v6663 = vunpack.c.l.b16 %v6436
        %v6664 = vunpack.c.h.b16 %v6436
        %v6665 = vunpack.c.l.b16 %v6437
        %v6666 = vunpack.c.h.b16 %v6437
        %v6667 = vunpack.c.l.b16 %v6438
        %v6668 = vunpack.c.h.b16 %v6438
        %v6669 = vunpack.c.l.b16 %v6439
        %v6670 = vunpack.c.h.b16 %v6439
        %v6671 = vunpack.c.l.b16 %v6440
        %v6672 = vunpack.c.h.b16 %v6440
        %v6673 = vunpack.c.l.b16 %v6441
        %v6674 = vunpack.c.h.b16 %v6441
        %v6675 = vunpack.c.l.b16 %v6442
        %v6676 = vunpack.c.h.b16 %v6442
        %v6677 = vunpack.c.l.b16 %v6443
        %v6678 = vunpack.c.h.b16 %v6443
        %v6679 = vunpack.c.l.b16 %v6444
        %v6680 = vunpack.c.h.b16 %v6444
        %v6681 = vunpack.c.l.b16 %v6445
        %v6682 = vunpack.c.h.b16 %v6445
        %v6683 = vunpack.c.l.b16 %v6446
        %v6684 = vunpack.c.h.b16 %v6446
        %v6685 = vunpack.c.l.b16 %v6447
        %v6686 = vunpack.c.h.b16 %v6447
        %v6687 = vunpack.c.l.b16 %v6448
        %v6688 = vunpack.c.h.b16 %v6448
        %v6689 = vunpack.c.l.b16 %v6449
        %v6690 = vunpack.c.h.b16 %v6449
        %v6691 = vunpack.c.l.b16 %v6450
        %v6692 = vunpack.c.h.b16 %v6450
        %v6693 = vunpack.c.l.b16 %v6451
        %v6694 = vunpack.c.h.b16 %v6451
        %v6695 = vunpack.c.l.b16 %v6452
        %v6696 = vunpack.c.h.b16 %v6452
        %v6697 = vunpack.c.l.b16 %v6453
        %v6698 = vunpack.c.h.b16 %v6453
        %v6699 = vunpack.c.l.b16 %v6454
        %v6700 = vunpack.c.h.b16 %v6454
        %v6701 = vunpack.c.l.b16 %v6455
        %v6702 = vunpack.c.h.b16 %v6455
        %v6703 = vunpack.c.l.b16 %v6456
        %v6704 = vunpack.c.h.b16 %v6456
        %v6705 = vunpack.c.l.b16 %v6457
        %v6706 = vunpack.c.h.b16 %v6457
        %v6707 = vunpack.c.l.b16 %v6458
        %v6708 = vunpack.c.h.b16 %v6458
        %v6709 = vunpack.c.l.b16 %v6459
        %v6710 = vunpack.c.h.b16 %v6459
        %v6711 = vunpack.c.l.b16 %v6460
        %v6712 = vunpack.c.h.b16 %v6460
        %v6713 = vunpack.c.l.b16 %v6461
        %v6714 = vunpack.c.h.b16 %v6461
        %v6715 = vunpack.c.l.b16 %v6462
        %v6716 = vunpack.c.h.b16 %v6462
        %v6717 = vunpack.c.l.b16 %v6463
        %v6718 = vunpack.c.h.b16 %v6463
        %v6719 = vunpack.c.l.b16 %v6464
        %v6720 = vunpack.c.h.b16 %v6464
        %v6721 = vunpack.c.l.b16 %v6465
        %v6722 = vunpack.c.h.b16 %v6465
        %v6723 = vunpack.c.l.b16 %v6466
        %v6724 = vunpack.c.h.b16 %v6466
        %v6725 = vunpack.c.l.b16 %v6467
        %v6726 = vunpack.c.h.b16 %v6467
        %v6727 = vunpack.c.l.b16 %v6468
        %v6728 = vunpack.c.h.b16 %v6468
        %v6729 = vunpack.c.l.b16 %v6469
        %v6730 = vunpack.c.h.b16 %v6469
        %v6731 = vunpack.c.l.b16 %v6470
        %v6732 = vunpack.c.h.b16 %v6470
        %v6733 = vunpack.c.l.b16 %v6471
        %v6734 = vunpack.c.h.b16 %v6471
        %v6735 = vpack.c.b16 %v6611, %v6607
        %v6736 = vpack.c.b16 %v6612, %v6608
        %v6737 = vpack.c.b16 %v6613, %v6609
        %v6738 = vpack.c.b16 %v6614, %v6610
        %v6739 = vpack.c.b16 %v6619, %v6615
        %v6740 = vpack.c.b16 %v6620, %v6616
        %v6741 = vpack.c.b16 %v6621, %v6617
        %v6742 = vpack.c.b16 %v6622, %v6618
        %v6743 = vpack.c.b16 %v6627, %v6623
        %v6744 = vpack.c.b16 %v6628, %v6624
        %v6745 = vpack.c.b16 %v6629, %v6625
        %v6746 = vpack.c.b16 %v6630, %v6626
        %v6747 = vpack.c.b16 %v6635, %v6631
        %v6748 = vpack.c.b16 %v6636, %v6632
        %v6749 = vpack.c.b16 %v6637, %v6633
        %v6750 = vpack.c.b16 %v6638, %v6634
        %v6751 = vpack.c.b16 %v6643, %v6639
        %v6752 = vpack.c.b16 %v6644, %v6640
        %v6753 = vpack.c.b16 %v6645, %v6641
        %v6754 = vpack.c.b16 %v6646, %v6642
        %v6755 = vpack.c.b16 %v6651, %v6647
        %v6756 = vpack.c.b16 %v6652, %v6648
        %v6757 = vpack.c.b16 %v6653, %v6649
        %v6758 = vpack.c.b16 %v6654, %v6650
        %v6759 = vpack.c.b16 %v6659, %v6655
        %v6760 = vpack.c.b16 %v6660, %v6656
        %v6761 = vpack.c.b16 %v6661, %v6657
        %v6762 = vpack.c.b16 %v6662, %v6658
        %v6763 = vpack.c.b16 %v6667, %v6663
        %v6764 = vpack.c.b16 %v6668, %v6664
        %v6765 = vpack.c.b16 %v6669, %v6665
        %v6766 = vpack.c.b16 %v6670, %v6666
        %v6767 = vpack.c.b16 %v6675, %v6671
        %v6768 = vpack.c.b16 %v6676, %v6672
        %v6769 = vpack.c.b16 %v6677, %v6673
        %v6770 = vpack.c.b16 %v6678, %v6674
        %v6771 = vpack.c.b16 %v6683, %v6679
        %v6772 = vpack.c.b16 %v6684, %v6680
        %v6773 = vpack.c.b16 %v6685, %v6681
        %v6774 = vpack.c.b16 %v6686, %v6682
        %v6775 = vpack.c.b16 %v6691, %v6687
        %v6776 = vpack.c.b16 %v6692, %v6688
        %v6777 = vpack.c.b16 %v6693, %v6689
        %v6778 = vpack.c.b16 %v6694, %v6690
        %v6779 = vpack.c.b16 %v6699, %v6695
        %v6780 = vpack.c.b16 %v6700, %v6696
        %v6781 = vpack.c.b16 %v6701, %v6697
        %v6782 = vpack.c.b16 %v6702, %v6698
        %v6783 = vpack.c.b16 %v6707, %v6703
        %v6784 = vpack.c.b16 %v6708, %v6704
        %v6785 = vpack.c.b16 %v6709, %v6705
        %v6786 = vpack.c.b16 %v6710, %v6706
        %v6787 = vpack.c.b16 %v6715, %v6711
        %v6788 = vpack.c.b16 %v6716, %v6712
        %v6789 = vpack.c.b16 %v6717, %v6713
        %v6790 = vpack.c.b16 %v6718, %v6714
        %v6791 = vpack.c.b16 %v6723, %v6719
        %v6792 = vpack.c.b16 %v6724, %v6720
        %v6793 = vpack.c.b16 %v6725, %v6721
        %v6794 = vpack.c.b16 %v6726, %v6722
        %v6795 = vpack.c.b16 %v6731, %v6727
        %v6796 = vpack.c.b16 %v6732, %v6728
        %v6797 = vpack.c.b16 %v6733, %v6729
        %v6798 = vpack.c.b16 %v6734, %v6730
        %6863 = vmatpush.bf16.msra.mxu0 %v6763
        %6864 = vmatpush.bf16.msra.mxu0 %v6759
        %6865 = vmatpush.bf16.msra.mxu0 %v6755
        %6866 = vmatpush.bf16.msra.mxu0 %v6751
        %6867 = vmatpush.bf16.msra.mxu0 %v6747
        %6868 = vmatpush.bf16.msra.mxu0 %v6743
        %6869 = vmatpush.bf16.msra.mxu0 %v6739
        %6870 = vmatpush.bf16.msra.mxu0 %v6735
        %6871 = vmatmul.bf16.gmra.mxu0 %v6484
        %v6872 = vpop.f32.mrf.mxu0
        %v6873 = vadd.f32 0.0, %v6872
        %v6874 = vpop.f32.mrf.mxu0
        %v6875 = vadd.f32 0.0, %v6874
        %6876 = vmatmul.bf16.gmra.mxu0 %v6504
        %v6877 = vpop.f32.mrf.mxu0
        %v6878 = vadd.f32 0.0, %v6877
        %v6879 = vpop.f32.mrf.mxu0
        %v6880 = vadd.f32 0.0, %v6879
        %6881 = vmatmul.bf16.gmra.mxu0 %v6520
        %v6882 = vpop.f32.mrf.mxu0
        %v6883 = vadd.f32 0.0, %v6882
        %v6884 = vpop.f32.mrf.mxu0
        %v6885 = vadd.f32 0.0, %v6884
        %6886 = vmatmul.bf16.gmra.mxu0 %v6531
        %v6887 = vpop.f32.mrf.mxu0
        %v6888 = vadd.f32 0.0, %v6887
        %v6889 = vpop.f32.mrf.mxu0
        %6890 = vdwg.mxu0
        %6891 = vmatpush.bf16.msra.mxu0 %v6795
        %6892 = vmatpush.bf16.msra.mxu0 %v6791
        %6893 = vmatpush.bf16.msra.mxu0 %v6787
        %6894 = vmatpush.bf16.msra.mxu0 %v6783
        %6895 = vmatpush.bf16.msra.mxu0 %v6779
        %6896 = vmatpush.bf16.msra.mxu0 %v6775
        %6897 = vmatpush.bf16.msra.mxu0 %v6771
        %6898 = vmatpush.bf16.msra.mxu0 %v6767
        %6899 = vmatmul.bf16.gmra.mxu0 %v6496
        %v6900 = vpop.f32.mrf.mxu0
        %v6901 = vadd.f32 %v6873, %v6900
        %v6902 = vpop.f32.mrf.mxu0
        %v6903 = vadd.f32 %v6875, %v6902
        %6904 = vmatmul.bf16.gmra.mxu0 %v6512
        %v6905 = vpop.f32.mrf.mxu0
        %v6906 = vadd.f32 %v6878, %v6905
        %v6907 = vpop.f32.mrf.mxu0
        %v6908 = vadd.f32 %v6880, %v6907
        %6909 = vmatmul.bf16.gmra.mxu0 %v6528
        %v6910 = vpop.f32.mrf.mxu0
        %v6911 = vadd.f32 %v6883, %v6910
        %v6912 = vpop.f32.mrf.mxu0
        %v6913 = vadd.f32 %v6885, %v6912
        %6914 = vmatmul.bf16.gmra.mxu0 %v6534
        %v6915 = vpop.f32.mrf.mxu0
        %v6916 = vadd.f32 %v6888, %v6915
        %v6917 = vpop.f32.mrf.mxu0
        %6918 = vdwg.mxu0
        %6919 = vmatpush.bf16.msra.mxu0 %v6764
        %6920 = vmatpush.bf16.msra.mxu0 %v6760
        %6921 = vmatpush.bf16.msra.mxu0 %v6756
        %6922 = vmatpush.bf16.msra.mxu0 %v6752
        %6923 = vmatpush.bf16.msra.mxu0 %v6748
        %6924 = vmatpush.bf16.msra.mxu0 %v6744
        %6925 = vmatpush.bf16.msra.mxu0 %v6740
        %6926 = vmatpush.bf16.msra.mxu0 %v6736
        %6927 = vmatmul.bf16.gmra.mxu0 %v6484
        %v6928 = vpop.f32.mrf.mxu0
        %v6929 = vadd.f32 0.0, %v6928
        %v6930 = vpop.f32.mrf.mxu0
        %v6931 = vadd.f32 0.0, %v6930
        %6932 = vmatmul.bf16.gmra.mxu0 %v6504
        %v6933 = vpop.f32.mrf.mxu0
        %v6934 = vadd.f32 0.0, %v6933
        %v6935 = vpop.f32.mrf.mxu0
        %v6936 = vadd.f32 0.0, %v6935
        %6937 = vmatmul.bf16.gmra.mxu0 %v6520
        %v6938 = vpop.f32.mrf.mxu0
        %v6939 = vadd.f32 0.0, %v6938
        %v6940 = vpop.f32.mrf.mxu0
        %v6941 = vadd.f32 0.0, %v6940
        %6942 = vmatmul.bf16.gmra.mxu0 %v6531
        %v6943 = vpop.f32.mrf.mxu0
        %v6944 = vadd.f32 0.0, %v6943
        %v6945 = vpop.f32.mrf.mxu0
        %6946 = vdwg.mxu0
        %6947 = vmatpush.bf16.msra.mxu0 %v6796
        %6948 = vmatpush.bf16.msra.mxu0 %v6792
        %6949 = vmatpush.bf16.msra.mxu0 %v6788
        %6950 = vmatpush.bf16.msra.mxu0 %v6784
        %6951 = vmatpush.bf16.msra.mxu0 %v6780
        %6952 = vmatpush.bf16.msra.mxu0 %v6776
        %6953 = vmatpush.bf16.msra.mxu0 %v6772
        %6954 = vmatpush.bf16.msra.mxu0 %v6768
        %6955 = vmatmul.bf16.gmra.mxu0 %v6496
        %v6956 = vpop.f32.mrf.mxu0
        %v6957 = vadd.f32 %v6929, %v6956
        %v6958 = vpop.f32.mrf.mxu0
        %v6959 = vadd.f32 %v6931, %v6958
        %6960 = vmatmul.bf16.gmra.mxu0 %v6512
        %v6961 = vpop.f32.mrf.mxu0
        %v6962 = vadd.f32 %v6934, %v6961
        %v6963 = vpop.f32.mrf.mxu0
        %v6964 = vadd.f32 %v6936, %v6963
        %6965 = vmatmul.bf16.gmra.mxu0 %v6528
        %v6966 = vpop.f32.mrf.mxu0
        %v6967 = vadd.f32 %v6939, %v6966
        %v6968 = vpop.f32.mrf.mxu0
        %v6969 = vadd.f32 %v6941, %v6968
        %6970 = vmatmul.bf16.gmra.mxu0 %v6534
        %v6971 = vpop.f32.mrf.mxu0
        %v6972 = vadd.f32 %v6944, %v6971
        %v6973 = vpop.f32.mrf.mxu0
        %6974 = vdwg.mxu0
        %6975 = vmatpush.bf16.msra.mxu0 %v6765
        %6976 = vmatpush.bf16.msra.mxu0 %v6761
        %6977 = vmatpush.bf16.msra.mxu0 %v6757
        %6978 = vmatpush.bf16.msra.mxu0 %v6753
        %6979 = vmatpush.bf16.msra.mxu0 %v6749
        %6980 = vmatpush.bf16.msra.mxu0 %v6745
        %6981 = vmatpush.bf16.msra.mxu0 %v6741
        %6982 = vmatpush.bf16.msra.mxu0 %v6737
        %6983 = vmatmul.bf16.gmra.mxu0 %v6484
        %v6984 = vpop.f32.mrf.mxu0
        %v6985 = vadd.f32 0.0, %v6984
        %v6986 = vpop.f32.mrf.mxu0
        %v6987 = vadd.f32 0.0, %v6986
        %6988 = vmatmul.bf16.gmra.mxu0 %v6504
        %v6989 = vpop.f32.mrf.mxu0
        %v6990 = vadd.f32 0.0, %v6989
        %v6991 = vpop.f32.mrf.mxu0
        %v6992 = vadd.f32 0.0, %v6991
        %6993 = vmatmul.bf16.gmra.mxu0 %v6520
        %v6994 = vpop.f32.mrf.mxu0
        %v6995 = vadd.f32 0.0, %v6994
        %v6996 = vpop.f32.mrf.mxu0
        %v6997 = vadd.f32 0.0, %v6996
        %6998 = vmatmul.bf16.gmra.mxu0 %v6531
        %v6999 = vpop.f32.mrf.mxu0
        %v7000 = vadd.f32 0.0, %v6999
        %v7001 = vpop.f32.mrf.mxu0
        %7002 = vdwg.mxu0
        %7003 = vmatpush.bf16.msra.mxu0 %v6797
        %7004 = vmatpush.bf16.msra.mxu0 %v6793
        %7005 = vmatpush.bf16.msra.mxu0 %v6789
        %7006 = vmatpush.bf16.msra.mxu0 %v6785
        %7007 = vmatpush.bf16.msra.mxu0 %v6781
        %7008 = vmatpush.bf16.msra.mxu0 %v6777
        %7009 = vmatpush.bf16.msra.mxu0 %v6773
        %7010 = vmatpush.bf16.msra.mxu0 %v6769
        %7011 = vmatmul.bf16.gmra.mxu0 %v6496
        %v7012 = vpop.f32.mrf.mxu0
        %v7013 = vadd.f32 %v6985, %v7012
        %v7014 = vpop.f32.mrf.mxu0
        %v7015 = vadd.f32 %v6987, %v7014
        %7016 = vmatmul.bf16.gmra.mxu0 %v6512
        %v7017 = vpop.f32.mrf.mxu0
        %v7018 = vadd.f32 %v6990, %v7017
        %v7019 = vpop.f32.mrf.mxu0
        %v7020 = vadd.f32 %v6992, %v7019
        %7021 = vmatmul.bf16.gmra.mxu0 %v6528
        %v7022 = vpop.f32.mrf.mxu0
        %v7023 = vadd.f32 %v6995, %v7022
        %v7024 = vpop.f32.mrf.mxu0
        %v7025 = vadd.f32 %v6997, %v7024
        %7026 = vmatmul.bf16.gmra.mxu0 %v6534
        %v7027 = vpop.f32.mrf.mxu0
        %v7028 = vadd.f32 %v7000, %v7027
        %v7029 = vpop.f32.mrf.mxu0
        %7030 = vdwg.mxu0
        %7031 = vmatpush.bf16.msra.mxu0 %v6766
        %7032 = vmatpush.bf16.msra.mxu0 %v6762
        %7033 = vmatpush.bf16.msra.mxu0 %v6758
        %7034 = vmatpush.bf16.msra.mxu0 %v6754
        %7035 = vmatpush.bf16.msra.mxu0 %v6750
        %7036 = vmatpush.bf16.msra.mxu0 %v6746
        %7037 = vmatpush.bf16.msra.mxu0 %v6742
        %7038 = vmatpush.bf16.msra.mxu0 %v6738
        %7039 = vmatmul.bf16.gmra.mxu0 %v6484
        %v7040 = vpop.f32.mrf.mxu0
        %v7041 = vadd.f32 0.0, %v7040
        %v7042 = vpop.f32.mrf.mxu0
        %v7043 = vadd.f32 0.0, %v7042
        %7044 = vmatmul.bf16.gmra.mxu0 %v6504
        %v7045 = vpop.f32.mrf.mxu0
        %v7046 = vadd.f32 0.0, %v7045
        %v7047 = vpop.f32.mrf.mxu0
        %v7048 = vadd.f32 0.0, %v7047
        %7049 = vmatmul.bf16.gmra.mxu0 %v6520
        %v7050 = vpop.f32.mrf.mxu0
        %v7051 = vadd.f32 0.0, %v7050
        %v7052 = vpop.f32.mrf.mxu0
        %v7053 = vadd.f32 0.0, %v7052
        %7054 = vmatmul.bf16.gmra.mxu0 %v6531
        %v7055 = vpop.f32.mrf.mxu0
        %v7056 = vadd.f32 0.0, %v7055
        %v7057 = vpop.f32.mrf.mxu0
        %7058 = vdwg.mxu0
        %7059 = vmatpush.bf16.msra.mxu0 %v6798
        %7060 = vmatpush.bf16.msra.mxu0 %v6794
        %7061 = vmatpush.bf16.msra.mxu0 %v6790
        %7062 = vmatpush.bf16.msra.mxu0 %v6786
        %7063 = vmatpush.bf16.msra.mxu0 %v6782
        %7064 = vmatpush.bf16.msra.mxu0 %v6778
        %7065 = vmatpush.bf16.msra.mxu0 %v6774
        %7066 = vmatpush.bf16.msra.mxu0 %v6770
        %7067 = vmatmul.bf16.gmra.mxu0 %v6496
        %v7068 = vpop.f32.mrf.mxu0
        %v7069 = vadd.f32 %v7041, %v7068
        %v7070 = vpop.f32.mrf.mxu0
        %v7071 = vadd.f32 %v7043, %v7070
        %7072 = vmatmul.bf16.gmra.mxu0 %v6512
        %v7073 = vpop.f32.mrf.mxu0
        %v7074 = vadd.f32 %v7046, %v7073
        %v7075 = vpop.f32.mrf.mxu0
        %v7076 = vadd.f32 %v7048, %v7075
        %7077 = vmatmul.bf16.gmra.mxu0 %v6528
        %v7078 = vpop.f32.mrf.mxu0
        %v7079 = vadd.f32 %v7051, %v7078
        %v7080 = vpop.f32.mrf.mxu0
        %v7081 = vadd.f32 %v7053, %v7080
        %7082 = vmatmul.bf16.gmra.mxu0 %v6534
        %v7083 = vpop.f32.mrf.mxu0
        %v7084 = vadd.f32 %v7056, %v7083
        %v7085 = vpop.f32.mrf.mxu0
        %7086 = vdwg.mxu0
        %v7087 = vadd.f32 %v6197, %v6901
        %v7088 = vadd.f32 %v6253, %v6957
        %v7089 = vadd.f32 %v6309, %v7013
        %v7090 = vadd.f32 %v6365, %v7069
        %v7091 = vadd.f32 %v6199, %v6903
        %v7092 = vadd.f32 %v6255, %v6959
        %v7093 = vadd.f32 %v6311, %v7015
        %v7094 = vadd.f32 %v6367, %v7071
        %v7095 = vadd.f32 %v6202, %v6906
        %v7096 = vadd.f32 %v6258, %v6962
        %v7097 = vadd.f32 %v6314, %v7018
        %v7098 = vadd.f32 %v6370, %v7074
        %v7099 = vadd.f32 %v6204, %v6908
        %v7100 = vadd.f32 %v6260, %v6964
        %v7101 = vadd.f32 %v6316, %v7020
        %v7102 = vadd.f32 %v6372, %v7076
        %v7103 = vadd.f32 %v6207, %v6911
        %v7104 = vadd.f32 %v6263, %v6967
        %v7105 = vadd.f32 %v6319, %v7023
        %v7106 = vadd.f32 %v6375, %v7079
        %v7107 = vadd.f32 %v6209, %v6913
        %v7108 = vadd.f32 %v6265, %v6969
        %v7109 = vadd.f32 %v6321, %v7025
        %v7110 = vadd.f32 %v6377, %v7081
        %v7111 = vadd.f32 %v6212, %v6916
        %v7112 = vadd.f32 %v6268, %v6972
        %v7113 = vadd.f32 %v6324, %v7028
        %v7114 = vadd.f32 %v6380, %v7084
        %v7115 = vld [vmem:[%s311] sm:$0xfe]
        %v7116 = vld [vmem:[%s311 + $0x8] sm:$0xfe]
        %v7117 = vld [vmem:[%s311 + $0x10] sm:$0xff]
        %v7118 = vld [vmem:[%s311 + $0x18] sm:$0xff]
        %v7119 = vld [vmem:[%s311 + $0x20] sm:$0xff]
        %v7120 = vld [vmem:[%s311 + $0x28] sm:$0xff]
        %v7121 = vld [vmem:[%s311 + $0x30] sm:$0xff]
        %v7122 = vld [vmem:[%s311 + $0x38] sm:$0xff]
        %v7123 = vld [vmem:[%s311 + $0x40] sm:$0xff]
        %v7124 = vld [vmem:[%s311 + $0x48] sm:$0xff]
        %v7125 = vld [vmem:[%s311 + $0x50] sm:$0xff]
        %v7126 = vld [vmem:[%s311 + $0x58] sm:$0xff]
        %v7127 = vld [vmem:[%s311 + $0x60] sm:$0xff]
        %v7128 = vld [vmem:[%s311 + $0x68] sm:$0xff]
        %v7129 = vld [vmem:[%s311 + $0x70] sm:$0x1]
        %v7130 = vld [vmem:[%s311 + $0x78] sm:$0x1]
        %v7131 = vpack.c.bf16 %v7117, %v7115
        %v7132 = vpack.c.bf16 %v7118, %v7116
        %v7133 = vpack.c.bf16 %v7121, %v7119
        %v7134 = vpack.c.bf16 %v7122, %v7120
        %v7135 = vpack.c.bf16 %v7125, %v7123
        %v7136 = vpack.c.bf16 %v7126, %v7124
        %v7137 = vpack.c.bf16 %v7129, %v7127
        %v7138 = vpack.c.bf16 %v7130, %v7128
        %s7139 = scalar_lea.vmem %s3, 1536
        %v7140 = vld [vmem:[%s7139] sm:$0xff]
        %v7141 = vld [vmem:[%s7139 + $0x8] sm:$0xff]
        %v7142 = vld [vmem:[%s7139 + $0x10] sm:$0xff]
        %v7143 = vld [vmem:[%s7139 + $0x18] sm:$0xff]
        %v7144 = vld [vmem:[%s7139 + $0x20] sm:$0xff]
        %v7145 = vld [vmem:[%s7139 + $0x28] sm:$0xff]
        %v7146 = vld [vmem:[%s7139 + $0x30] sm:$0xff]
        %v7147 = vld [vmem:[%s7139 + $0x38] sm:$0xff]
        %v7148 = vld [vmem:[%s7139 + $0x40] sm:$0xff]
        %v7149 = vld [vmem:[%s7139 + $0x48] sm:$0xff]
        %v7150 = vld [vmem:[%s7139 + $0x50] sm:$0xff]
        %v7151 = vld [vmem:[%s7139 + $0x58] sm:$0xff]
        %v7152 = vld [vmem:[%s7139 + $0x60] sm:$0xff]
        %v7153 = vld [vmem:[%s7139 + $0x68] sm:$0xff]
        %v7154 = vld [vmem:[%s7139 + $0x70] sm:$0xff]
        %v7155 = vld [vmem:[%s7139 + $0x78] sm:$0xff]
        %v7156 = vld [vmem:[%s7139 + $0x80] sm:$0xff]
        %v7157 = vld [vmem:[%s7139 + $0x88] sm:$0xff]
        %v7158 = vld [vmem:[%s7139 + $0x90] sm:$0xff]
        %v7159 = vld [vmem:[%s7139 + $0x98] sm:$0xff]
        %v7160 = vld [vmem:[%s7139 + $0xa0] sm:$0xff]
        %v7161 = vld [vmem:[%s7139 + $0xa8] sm:$0xff]
        %v7162 = vld [vmem:[%s7139 + $0xb0] sm:$0xff]
        %v7163 = vld [vmem:[%s7139 + $0xb8] sm:$0xff]
        %v7164 = vld [vmem:[%s7139 + $0xc0] sm:$0xff]
        %v7165 = vld [vmem:[%s7139 + $0xc8] sm:$0xff]
        %v7166 = vld [vmem:[%s7139 + $0xd0] sm:$0xff]
        %v7167 = vld [vmem:[%s7139 + $0xd8] sm:$0xff]
        %v7168 = vld [vmem:[%s7139 + $0xe0] sm:$0xff]
        %v7169 = vld [vmem:[%s7139 + $0xe8] sm:$0xff]
        %v7170 = vld [vmem:[%s7139 + $0xf0] sm:$0xff]
        %v7171 = vld [vmem:[%s7139 + $0xf8] sm:$0xff]
        %v7172 = vld [vmem:[%s7139 + $0x100] sm:$0xff]
        %v7173 = vld [vmem:[%s7139 + $0x108] sm:$0xff]
        %v7174 = vld [vmem:[%s7139 + $0x110] sm:$0xff]
        %v7175 = vld [vmem:[%s7139 + $0x118] sm:$0xff]
        %v7176 = vld [vmem:[%s7139 + $0x120] sm:$0xff]
        %v7177 = vld [vmem:[%s7139 + $0x128] sm:$0xff]
        %v7178 = vld [vmem:[%s7139 + $0x130] sm:$0xff]
        %v7179 = vld [vmem:[%s7139 + $0x138] sm:$0xff]
        %v7180 = vld [vmem:[%s7139 + $0x140] sm:$0xff]
        %v7181 = vld [vmem:[%s7139 + $0x148] sm:$0xff]
        %v7182 = vld [vmem:[%s7139 + $0x150] sm:$0xff]
        %v7183 = vld [vmem:[%s7139 + $0x158] sm:$0xff]
        %v7184 = vld [vmem:[%s7139 + $0x160] sm:$0xff]
        %v7185 = vld [vmem:[%s7139 + $0x168] sm:$0xff]
        %v7186 = vld [vmem:[%s7139 + $0x170] sm:$0xff]
        %v7187 = vld [vmem:[%s7139 + $0x178] sm:$0xff]
        %v7188 = vld [vmem:[%s7139 + $0x180] sm:$0xff]
        %v7189 = vld [vmem:[%s7139 + $0x188] sm:$0xff]
        %v7190 = vld [vmem:[%s7139 + $0x190] sm:$0xff]
        %v7191 = vld [vmem:[%s7139 + $0x198] sm:$0xff]
        %v7192 = vld [vmem:[%s7139 + $0x1a0] sm:$0xff]
        %v7193 = vld [vmem:[%s7139 + $0x1a8] sm:$0xff]
        %v7194 = vld [vmem:[%s7139 + $0x1b0] sm:$0xff]
        %v7195 = vld [vmem:[%s7139 + $0x1b8] sm:$0xff]
        %v7196 = vld [vmem:[%s7139 + $0x1c0] sm:$0xff]
        %v7197 = vld [vmem:[%s7139 + $0x1c8] sm:$0xff]
        %v7198 = vld [vmem:[%s7139 + $0x1d0] sm:$0xff]
        %v7199 = vld [vmem:[%s7139 + $0x1d8] sm:$0xff]
        %v7200 = vld [vmem:[%s7139 + $0x1e0] sm:$0xff]
        %v7201 = vld [vmem:[%s7139 + $0x1e8] sm:$0xff]
        %v7202 = vld [vmem:[%s7139 + $0x1f0] sm:$0xff]
        %v7203 = vld [vmem:[%s7139 + $0x1f8] sm:$0xff]
        %v7205 = vshrl.u32 %v7131, 16
        %v7207 = vshll.u32 %v7131, 16
        %v7209 = vrot.slane %v7207, 1
        %v7210 = vor.u32 %v7205, %v7209
        %v7212 = vshll.u32 %v7133, 16
        %v7214 = vrot.slane %v7212, 1
        %v7215 = vsel %vm6472, %v7210, %v7214
        %v7217 = vshrl.u32 %v7132, 16
        %v7219 = vshll.u32 %v7132, 16
        %v7221 = vrot.slane %v7219, 1
        %v7222 = vor.u32 %v7217, %v7221
        %v7224 = vshll.u32 %v7134, 16
        %v7226 = vrot.slane %v7224, 1
        %v7227 = vsel %vm6472, %v7222, %v7226
        %v7228 = vshrl.u32 %v7133, 16
        %v7230 = vor.u32 %v7228, %v7214
        %v7232 = vshll.u32 %v7135, 16
        %v7234 = vrot.slane %v7232, 1
        %v7235 = vsel %vm6472, %v7230, %v7234
        %v7236 = vshrl.u32 %v7134, 16
        %v7238 = vor.u32 %v7236, %v7226
        %v7240 = vshll.u32 %v7136, 16
        %v7242 = vrot.slane %v7240, 1
        %v7243 = vsel %vm6472, %v7238, %v7242
        %v7244 = vshrl.u32 %v7135, 16
        %v7246 = vor.u32 %v7244, %v7234
        %v7248 = vshll.u32 %v7137, 16
        %v7250 = vrot.slane %v7248, 1
        %v7251 = vsel %vm6472, %v7246, %v7250
        %v7252 = vshrl.u32 %v7136, 16
        %v7254 = vor.u32 %v7252, %v7242
        %v7256 = vshll.u32 %v7138, 16
        %v7258 = vrot.slane %v7256, 1
        %v7259 = vsel %vm6472, %v7254, %v7258
        %v7260 = vshrl.u32 %v7137, 16
        %v7262 = vor.u32 %v7260, %v7250
        %v7263 = vshrl.u32 %v7138, 16
        %v7265 = vor.u32 %v7263, %v7258
        %v7338 = vunpack.c.l.b16 %v7140
        %v7339 = vunpack.c.h.b16 %v7140
        %v7340 = vunpack.c.l.b16 %v7141
        %v7341 = vunpack.c.h.b16 %v7141
        %v7342 = vunpack.c.l.b16 %v7142
        %v7343 = vunpack.c.h.b16 %v7142
        %v7344 = vunpack.c.l.b16 %v7143
        %v7345 = vunpack.c.h.b16 %v7143
        %v7346 = vunpack.c.l.b16 %v7144
        %v7347 = vunpack.c.h.b16 %v7144
        %v7348 = vunpack.c.l.b16 %v7145
        %v7349 = vunpack.c.h.b16 %v7145
        %v7350 = vunpack.c.l.b16 %v7146
        %v7351 = vunpack.c.h.b16 %v7146
        %v7352 = vunpack.c.l.b16 %v7147
        %v7353 = vunpack.c.h.b16 %v7147
        %v7354 = vunpack.c.l.b16 %v7148
        %v7355 = vunpack.c.h.b16 %v7148
        %v7356 = vunpack.c.l.b16 %v7149
        %v7357 = vunpack.c.h.b16 %v7149
        %v7358 = vunpack.c.l.b16 %v7150
        %v7359 = vunpack.c.h.b16 %v7150
        %v7360 = vunpack.c.l.b16 %v7151
        %v7361 = vunpack.c.h.b16 %v7151
        %v7362 = vunpack.c.l.b16 %v7152
        %v7363 = vunpack.c.h.b16 %v7152
        %v7364 = vunpack.c.l.b16 %v7153
        %v7365 = vunpack.c.h.b16 %v7153
        %v7366 = vunpack.c.l.b16 %v7154
        %v7367 = vunpack.c.h.b16 %v7154
        %v7368 = vunpack.c.l.b16 %v7155
        %v7369 = vunpack.c.h.b16 %v7155
        %v7370 = vunpack.c.l.b16 %v7156
        %v7371 = vunpack.c.h.b16 %v7156
        %v7372 = vunpack.c.l.b16 %v7157
        %v7373 = vunpack.c.h.b16 %v7157
        %v7374 = vunpack.c.l.b16 %v7158
        %v7375 = vunpack.c.h.b16 %v7158
        %v7376 = vunpack.c.l.b16 %v7159
        %v7377 = vunpack.c.h.b16 %v7159
        %v7378 = vunpack.c.l.b16 %v7160
        %v7379 = vunpack.c.h.b16 %v7160
        %v7380 = vunpack.c.l.b16 %v7161
        %v7381 = vunpack.c.h.b16 %v7161
        %v7382 = vunpack.c.l.b16 %v7162
        %v7383 = vunpack.c.h.b16 %v7162
        %v7384 = vunpack.c.l.b16 %v7163
        %v7385 = vunpack.c.h.b16 %v7163
        %v7386 = vunpack.c.l.b16 %v7164
        %v7387 = vunpack.c.h.b16 %v7164
        %v7388 = vunpack.c.l.b16 %v7165
        %v7389 = vunpack.c.h.b16 %v7165
        %v7390 = vunpack.c.l.b16 %v7166
        %v7391 = vunpack.c.h.b16 %v7166
        %v7392 = vunpack.c.l.b16 %v7167
        %v7393 = vunpack.c.h.b16 %v7167
        %v7394 = vunpack.c.l.b16 %v7168
        %v7395 = vunpack.c.h.b16 %v7168
        %v7396 = vunpack.c.l.b16 %v7169
        %v7397 = vunpack.c.h.b16 %v7169
        %v7398 = vunpack.c.l.b16 %v7170
        %v7399 = vunpack.c.h.b16 %v7170
        %v7400 = vunpack.c.l.b16 %v7171
        %v7401 = vunpack.c.h.b16 %v7171
        %v7402 = vunpack.c.l.b16 %v7172
        %v7403 = vunpack.c.h.b16 %v7172
        %v7404 = vunpack.c.l.b16 %v7173
        %v7405 = vunpack.c.h.b16 %v7173
        %v7406 = vunpack.c.l.b16 %v7174
        %v7407 = vunpack.c.h.b16 %v7174
        %v7408 = vunpack.c.l.b16 %v7175
        %v7409 = vunpack.c.h.b16 %v7175
        %v7410 = vunpack.c.l.b16 %v7176
        %v7411 = vunpack.c.h.b16 %v7176
        %v7412 = vunpack.c.l.b16 %v7177
        %v7413 = vunpack.c.h.b16 %v7177
        %v7414 = vunpack.c.l.b16 %v7178
        %v7415 = vunpack.c.h.b16 %v7178
        %v7416 = vunpack.c.l.b16 %v7179
        %v7417 = vunpack.c.h.b16 %v7179
        %v7418 = vunpack.c.l.b16 %v7180
        %v7419 = vunpack.c.h.b16 %v7180
        %v7420 = vunpack.c.l.b16 %v7181
        %v7421 = vunpack.c.h.b16 %v7181
        %v7422 = vunpack.c.l.b16 %v7182
        %v7423 = vunpack.c.h.b16 %v7182
        %v7424 = vunpack.c.l.b16 %v7183
        %v7425 = vunpack.c.h.b16 %v7183
        %v7426 = vunpack.c.l.b16 %v7184
        %v7427 = vunpack.c.h.b16 %v7184
        %v7428 = vunpack.c.l.b16 %v7185
        %v7429 = vunpack.c.h.b16 %v7185
        %v7430 = vunpack.c.l.b16 %v7186
        %v7431 = vunpack.c.h.b16 %v7186
        %v7432 = vunpack.c.l.b16 %v7187
        %v7433 = vunpack.c.h.b16 %v7187
        %v7434 = vunpack.c.l.b16 %v7188
        %v7435 = vunpack.c.h.b16 %v7188
        %v7436 = vunpack.c.l.b16 %v7189
        %v7437 = vunpack.c.h.b16 %v7189
        %v7438 = vunpack.c.l.b16 %v7190
        %v7439 = vunpack.c.h.b16 %v7190
        %v7440 = vunpack.c.l.b16 %v7191
        %v7441 = vunpack.c.h.b16 %v7191
        %v7442 = vunpack.c.l.b16 %v7192
        %v7443 = vunpack.c.h.b16 %v7192
        %v7444 = vunpack.c.l.b16 %v7193
        %v7445 = vunpack.c.h.b16 %v7193
        %v7446 = vunpack.c.l.b16 %v7194
        %v7447 = vunpack.c.h.b16 %v7194
        %v7448 = vunpack.c.l.b16 %v7195
        %v7449 = vunpack.c.h.b16 %v7195
        %v7450 = vunpack.c.l.b16 %v7196
        %v7451 = vunpack.c.h.b16 %v7196
        %v7452 = vunpack.c.l.b16 %v7197
        %v7453 = vunpack.c.h.b16 %v7197
        %v7454 = vunpack.c.l.b16 %v7198
        %v7455 = vunpack.c.h.b16 %v7198
        %v7456 = vunpack.c.l.b16 %v7199
        %v7457 = vunpack.c.h.b16 %v7199
        %v7458 = vunpack.c.l.b16 %v7200
        %v7459 = vunpack.c.h.b16 %v7200
        %v7460 = vunpack.c.l.b16 %v7201
        %v7461 = vunpack.c.h.b16 %v7201
        %v7462 = vunpack.c.l.b16 %v7202
        %v7463 = vunpack.c.h.b16 %v7202
        %v7464 = vunpack.c.l.b16 %v7203
        %v7465 = vunpack.c.h.b16 %v7203
        %v7466 = vpack.c.b16 %v7342, %v7338
        %v7467 = vpack.c.b16 %v7343, %v7339
        %v7468 = vpack.c.b16 %v7344, %v7340
        %v7469 = vpack.c.b16 %v7345, %v7341
        %v7470 = vpack.c.b16 %v7350, %v7346
        %v7471 = vpack.c.b16 %v7351, %v7347
        %v7472 = vpack.c.b16 %v7352, %v7348
        %v7473 = vpack.c.b16 %v7353, %v7349
        %v7474 = vpack.c.b16 %v7358, %v7354
        %v7475 = vpack.c.b16 %v7359, %v7355
        %v7476 = vpack.c.b16 %v7360, %v7356
        %v7477 = vpack.c.b16 %v7361, %v7357
        %v7478 = vpack.c.b16 %v7366, %v7362
        %v7479 = vpack.c.b16 %v7367, %v7363
        %v7480 = vpack.c.b16 %v7368, %v7364
        %v7481 = vpack.c.b16 %v7369, %v7365
        %v7482 = vpack.c.b16 %v7374, %v7370
        %v7483 = vpack.c.b16 %v7375, %v7371
        %v7484 = vpack.c.b16 %v7376, %v7372
        %v7485 = vpack.c.b16 %v7377, %v7373
        %v7486 = vpack.c.b16 %v7382, %v7378
        %v7487 = vpack.c.b16 %v7383, %v7379
        %v7488 = vpack.c.b16 %v7384, %v7380
        %v7489 = vpack.c.b16 %v7385, %v7381
        %v7490 = vpack.c.b16 %v7390, %v7386
        %v7491 = vpack.c.b16 %v7391, %v7387
        %v7492 = vpack.c.b16 %v7392, %v7388
        %v7493 = vpack.c.b16 %v7393, %v7389
        %v7494 = vpack.c.b16 %v7398, %v7394
        %v7495 = vpack.c.b16 %v7399, %v7395
        %v7496 = vpack.c.b16 %v7400, %v7396
        %v7497 = vpack.c.b16 %v7401, %v7397
        %v7498 = vpack.c.b16 %v7406, %v7402
        %v7499 = vpack.c.b16 %v7407, %v7403
        %v7500 = vpack.c.b16 %v7408, %v7404
        %v7501 = vpack.c.b16 %v7409, %v7405
        %v7502 = vpack.c.b16 %v7414, %v7410
        %v7503 = vpack.c.b16 %v7415, %v7411
        %v7504 = vpack.c.b16 %v7416, %v7412
        %v7505 = vpack.c.b16 %v7417, %v7413
        %v7506 = vpack.c.b16 %v7422, %v7418
        %v7507 = vpack.c.b16 %v7423, %v7419
        %v7508 = vpack.c.b16 %v7424, %v7420
        %v7509 = vpack.c.b16 %v7425, %v7421
        %v7510 = vpack.c.b16 %v7430, %v7426
        %v7511 = vpack.c.b16 %v7431, %v7427
        %v7512 = vpack.c.b16 %v7432, %v7428
        %v7513 = vpack.c.b16 %v7433, %v7429
        %v7514 = vpack.c.b16 %v7438, %v7434
        %v7515 = vpack.c.b16 %v7439, %v7435
        %v7516 = vpack.c.b16 %v7440, %v7436
        %v7517 = vpack.c.b16 %v7441, %v7437
        %v7518 = vpack.c.b16 %v7446, %v7442
        %v7519 = vpack.c.b16 %v7447, %v7443
        %v7520 = vpack.c.b16 %v7448, %v7444
        %v7521 = vpack.c.b16 %v7449, %v7445
        %v7522 = vpack.c.b16 %v7454, %v7450
        %v7523 = vpack.c.b16 %v7455, %v7451
        %v7524 = vpack.c.b16 %v7456, %v7452
        %v7525 = vpack.c.b16 %v7457, %v7453
        %v7526 = vpack.c.b16 %v7462, %v7458
        %v7527 = vpack.c.b16 %v7463, %v7459
        %v7528 = vpack.c.b16 %v7464, %v7460
        %v7529 = vpack.c.b16 %v7465, %v7461
        %7594 = vmatpush.bf16.msra.mxu0 %v7494
        %7595 = vmatpush.bf16.msra.mxu0 %v7490
        %7596 = vmatpush.bf16.msra.mxu0 %v7486
        %7597 = vmatpush.bf16.msra.mxu0 %v7482
        %7598 = vmatpush.bf16.msra.mxu0 %v7478
        %7599 = vmatpush.bf16.msra.mxu0 %v7474
        %7600 = vmatpush.bf16.msra.mxu0 %v7470
        %7601 = vmatpush.bf16.msra.mxu0 %v7466
        %7602 = vmatmul.bf16.gmra.mxu0 %v7215
        %v7603 = vpop.f32.mrf.mxu0
        %v7604 = vadd.f32 0.0, %v7603
        %v7605 = vpop.f32.mrf.mxu0
        %v7606 = vadd.f32 0.0, %v7605
        %7607 = vmatmul.bf16.gmra.mxu0 %v7235
        %v7608 = vpop.f32.mrf.mxu0
        %v7609 = vadd.f32 0.0, %v7608
        %v7610 = vpop.f32.mrf.mxu0
        %v7611 = vadd.f32 0.0, %v7610
        %7612 = vmatmul.bf16.gmra.mxu0 %v7251
        %v7613 = vpop.f32.mrf.mxu0
        %v7614 = vadd.f32 0.0, %v7613
        %v7615 = vpop.f32.mrf.mxu0
        %v7616 = vadd.f32 0.0, %v7615
        %7617 = vmatmul.bf16.gmra.mxu0 %v7262
        %v7618 = vpop.f32.mrf.mxu0
        %v7619 = vadd.f32 0.0, %v7618
        %v7620 = vpop.f32.mrf.mxu0
        %7621 = vdwg.mxu0
        %7622 = vmatpush.bf16.msra.mxu0 %v7526
        %7623 = vmatpush.bf16.msra.mxu0 %v7522
        %7624 = vmatpush.bf16.msra.mxu0 %v7518
        %7625 = vmatpush.bf16.msra.mxu0 %v7514
        %7626 = vmatpush.bf16.msra.mxu0 %v7510
        %7627 = vmatpush.bf16.msra.mxu0 %v7506
        %7628 = vmatpush.bf16.msra.mxu0 %v7502
        %7629 = vmatpush.bf16.msra.mxu0 %v7498
        %7630 = vmatmul.bf16.gmra.mxu0 %v7227
        %v7631 = vpop.f32.mrf.mxu0
        %v7632 = vadd.f32 %v7604, %v7631
        %v7633 = vpop.f32.mrf.mxu0
        %v7634 = vadd.f32 %v7606, %v7633
        %7635 = vmatmul.bf16.gmra.mxu0 %v7243
        %v7636 = vpop.f32.mrf.mxu0
        %v7637 = vadd.f32 %v7609, %v7636
        %v7638 = vpop.f32.mrf.mxu0
        %v7639 = vadd.f32 %v7611, %v7638
        %7640 = vmatmul.bf16.gmra.mxu0 %v7259
        %v7641 = vpop.f32.mrf.mxu0
        %v7642 = vadd.f32 %v7614, %v7641
        %v7643 = vpop.f32.mrf.mxu0
        %v7644 = vadd.f32 %v7616, %v7643
        %7645 = vmatmul.bf16.gmra.mxu0 %v7265
        %v7646 = vpop.f32.mrf.mxu0
        %v7647 = vadd.f32 %v7619, %v7646
        %v7648 = vpop.f32.mrf.mxu0
        %7649 = vdwg.mxu0
        %7650 = vmatpush.bf16.msra.mxu0 %v7495
        %7651 = vmatpush.bf16.msra.mxu0 %v7491
        %7652 = vmatpush.bf16.msra.mxu0 %v7487
        %7653 = vmatpush.bf16.msra.mxu0 %v7483
        %7654 = vmatpush.bf16.msra.mxu0 %v7479
        %7655 = vmatpush.bf16.msra.mxu0 %v7475
        %7656 = vmatpush.bf16.msra.mxu0 %v7471
        %7657 = vmatpush.bf16.msra.mxu0 %v7467
        %7658 = vmatmul.bf16.gmra.mxu0 %v7215
        %v7659 = vpop.f32.mrf.mxu0
        %v7660 = vadd.f32 0.0, %v7659
        %v7661 = vpop.f32.mrf.mxu0
        %v7662 = vadd.f32 0.0, %v7661
        %7663 = vmatmul.bf16.gmra.mxu0 %v7235
        %v7664 = vpop.f32.mrf.mxu0
        %v7665 = vadd.f32 0.0, %v7664
        %v7666 = vpop.f32.mrf.mxu0
        %v7667 = vadd.f32 0.0, %v7666
        %7668 = vmatmul.bf16.gmra.mxu0 %v7251
        %v7669 = vpop.f32.mrf.mxu0
        %v7670 = vadd.f32 0.0, %v7669
        %v7671 = vpop.f32.mrf.mxu0
        %v7672 = vadd.f32 0.0, %v7671
        %7673 = vmatmul.bf16.gmra.mxu0 %v7262
        %v7674 = vpop.f32.mrf.mxu0
        %v7675 = vadd.f32 0.0, %v7674
        %v7676 = vpop.f32.mrf.mxu0
        %7677 = vdwg.mxu0
        %7678 = vmatpush.bf16.msra.mxu0 %v7527
        %7679 = vmatpush.bf16.msra.mxu0 %v7523
        %7680 = vmatpush.bf16.msra.mxu0 %v7519
        %7681 = vmatpush.bf16.msra.mxu0 %v7515
        %7682 = vmatpush.bf16.msra.mxu0 %v7511
        %7683 = vmatpush.bf16.msra.mxu0 %v7507
        %7684 = vmatpush.bf16.msra.mxu0 %v7503
        %7685 = vmatpush.bf16.msra.mxu0 %v7499
        %7686 = vmatmul.bf16.gmra.mxu0 %v7227
        %v7687 = vpop.f32.mrf.mxu0
        %v7688 = vadd.f32 %v7660, %v7687
        %v7689 = vpop.f32.mrf.mxu0
        %v7690 = vadd.f32 %v7662, %v7689
        %7691 = vmatmul.bf16.gmra.mxu0 %v7243
        %v7692 = vpop.f32.mrf.mxu0
        %v7693 = vadd.f32 %v7665, %v7692
        %v7694 = vpop.f32.mrf.mxu0
        %v7695 = vadd.f32 %v7667, %v7694
        %7696 = vmatmul.bf16.gmra.mxu0 %v7259
        %v7697 = vpop.f32.mrf.mxu0
        %v7698 = vadd.f32 %v7670, %v7697
        %v7699 = vpop.f32.mrf.mxu0
        %v7700 = vadd.f32 %v7672, %v7699
        %7701 = vmatmul.bf16.gmra.mxu0 %v7265
        %v7702 = vpop.f32.mrf.mxu0
        %v7703 = vadd.f32 %v7675, %v7702
        %v7704 = vpop.f32.mrf.mxu0
        %7705 = vdwg.mxu0
        %7706 = vmatpush.bf16.msra.mxu0 %v7496
        %7707 = vmatpush.bf16.msra.mxu0 %v7492
        %7708 = vmatpush.bf16.msra.mxu0 %v7488
        %7709 = vmatpush.bf16.msra.mxu0 %v7484
        %7710 = vmatpush.bf16.msra.mxu0 %v7480
        %7711 = vmatpush.bf16.msra.mxu0 %v7476
        %7712 = vmatpush.bf16.msra.mxu0 %v7472
        %7713 = vmatpush.bf16.msra.mxu0 %v7468
        %7714 = vmatmul.bf16.gmra.mxu0 %v7215
        %v7715 = vpop.f32.mrf.mxu0
        %v7716 = vadd.f32 0.0, %v7715
        %v7717 = vpop.f32.mrf.mxu0
        %v7718 = vadd.f32 0.0, %v7717
        %7719 = vmatmul.bf16.gmra.mxu0 %v7235
        %v7720 = vpop.f32.mrf.mxu0
        %v7721 = vadd.f32 0.0, %v7720
        %v7722 = vpop.f32.mrf.mxu0
        %v7723 = vadd.f32 0.0, %v7722
        %7724 = vmatmul.bf16.gmra.mxu0 %v7251
        %v7725 = vpop.f32.mrf.mxu0
        %v7726 = vadd.f32 0.0, %v7725
        %v7727 = vpop.f32.mrf.mxu0
        %v7728 = vadd.f32 0.0, %v7727
        %7729 = vmatmul.bf16.gmra.mxu0 %v7262
        %v7730 = vpop.f32.mrf.mxu0
        %v7731 = vadd.f32 0.0, %v7730
        %v7732 = vpop.f32.mrf.mxu0
        %7733 = vdwg.mxu0
        %7734 = vmatpush.bf16.msra.mxu0 %v7528
        %7735 = vmatpush.bf16.msra.mxu0 %v7524
        %7736 = vmatpush.bf16.msra.mxu0 %v7520
        %7737 = vmatpush.bf16.msra.mxu0 %v7516
        %7738 = vmatpush.bf16.msra.mxu0 %v7512
        %7739 = vmatpush.bf16.msra.mxu0 %v7508
        %7740 = vmatpush.bf16.msra.mxu0 %v7504
        %7741 = vmatpush.bf16.msra.mxu0 %v7500
        %7742 = vmatmul.bf16.gmra.mxu0 %v7227
        %v7743 = vpop.f32.mrf.mxu0
        %v7744 = vadd.f32 %v7716, %v7743
        %v7745 = vpop.f32.mrf.mxu0
        %v7746 = vadd.f32 %v7718, %v7745
        %7747 = vmatmul.bf16.gmra.mxu0 %v7243
        %v7748 = vpop.f32.mrf.mxu0
        %v7749 = vadd.f32 %v7721, %v7748
        %v7750 = vpop.f32.mrf.mxu0
        %v7751 = vadd.f32 %v7723, %v7750
        %7752 = vmatmul.bf16.gmra.mxu0 %v7259
        %v7753 = vpop.f32.mrf.mxu0
        %v7754 = vadd.f32 %v7726, %v7753
        %v7755 = vpop.f32.mrf.mxu0
        %v7756 = vadd.f32 %v7728, %v7755
        %7757 = vmatmul.bf16.gmra.mxu0 %v7265
        %v7758 = vpop.f32.mrf.mxu0
        %v7759 = vadd.f32 %v7731, %v7758
        %v7760 = vpop.f32.mrf.mxu0
        %7761 = vdwg.mxu0
        %7762 = vmatpush.bf16.msra.mxu0 %v7497
        %7763 = vmatpush.bf16.msra.mxu0 %v7493
        %7764 = vmatpush.bf16.msra.mxu0 %v7489
        %7765 = vmatpush.bf16.msra.mxu0 %v7485
        %7766 = vmatpush.bf16.msra.mxu0 %v7481
        %7767 = vmatpush.bf16.msra.mxu0 %v7477
        %7768 = vmatpush.bf16.msra.mxu0 %v7473
        %7769 = vmatpush.bf16.msra.mxu0 %v7469
        %7770 = vmatmul.bf16.gmra.mxu0 %v7215
        %v7771 = vpop.f32.mrf.mxu0
        %v7772 = vadd.f32 0.0, %v7771
        %v7773 = vpop.f32.mrf.mxu0
        %v7774 = vadd.f32 0.0, %v7773
        %7775 = vmatmul.bf16.gmra.mxu0 %v7235
        %v7776 = vpop.f32.mrf.mxu0
        %v7777 = vadd.f32 0.0, %v7776
        %v7778 = vpop.f32.mrf.mxu0
        %v7779 = vadd.f32 0.0, %v7778
        %7780 = vmatmul.bf16.gmra.mxu0 %v7251
        %v7781 = vpop.f32.mrf.mxu0
        %v7782 = vadd.f32 0.0, %v7781
        %v7783 = vpop.f32.mrf.mxu0
        %v7784 = vadd.f32 0.0, %v7783
        %7785 = vmatmul.bf16.gmra.mxu0 %v7262
        %v7786 = vpop.f32.mrf.mxu0
        %v7787 = vadd.f32 0.0, %v7786
        %v7788 = vpop.f32.mrf.mxu0
        %7789 = vdwg.mxu0
        %7790 = vmatpush.bf16.msra.mxu0 %v7529
        %7791 = vmatpush.bf16.msra.mxu0 %v7525
        %7792 = vmatpush.bf16.msra.mxu0 %v7521
        %7793 = vmatpush.bf16.msra.mxu0 %v7517
        %7794 = vmatpush.bf16.msra.mxu0 %v7513
        %7795 = vmatpush.bf16.msra.mxu0 %v7509
        %7796 = vmatpush.bf16.msra.mxu0 %v7505
        %7797 = vmatpush.bf16.msra.mxu0 %v7501
        %7798 = vmatmul.bf16.gmra.mxu0 %v7227
        %v7799 = vpop.f32.mrf.mxu0
        %v7800 = vadd.f32 %v7772, %v7799
        %v7801 = vpop.f32.mrf.mxu0
        %v7802 = vadd.f32 %v7774, %v7801
        %7803 = vmatmul.bf16.gmra.mxu0 %v7243
        %v7804 = vpop.f32.mrf.mxu0
        %v7805 = vadd.f32 %v7777, %v7804
        %v7806 = vpop.f32.mrf.mxu0
        %v7807 = vadd.f32 %v7779, %v7806
        %7808 = vmatmul.bf16.gmra.mxu0 %v7259
        %v7809 = vpop.f32.mrf.mxu0
        %v7810 = vadd.f32 %v7782, %v7809
        %v7811 = vpop.f32.mrf.mxu0
        %v7812 = vadd.f32 %v7784, %v7811
        %7813 = vmatmul.bf16.gmra.mxu0 %v7265
        %v7814 = vpop.f32.mrf.mxu0
        %v7815 = vadd.f32 %v7787, %v7814
        %v7816 = vpop.f32.mrf.mxu0
        %7817 = vdwg.mxu0
        %v7818 = vadd.f32 %v7087, %v7632
        %v7819 = vadd.f32 %v7088, %v7688
        %v7820 = vadd.f32 %v7089, %v7744
        %v7821 = vadd.f32 %v7090, %v7800
        %v7822 = vadd.f32 %v7091, %v7634
        %v7823 = vadd.f32 %v7092, %v7690
        %v7824 = vadd.f32 %v7093, %v7746
        %v7825 = vadd.f32 %v7094, %v7802
        %v7826 = vadd.f32 %v7095, %v7637
        %v7827 = vadd.f32 %v7096, %v7693
        %v7828 = vadd.f32 %v7097, %v7749
        %v7829 = vadd.f32 %v7098, %v7805
        %v7830 = vadd.f32 %v7099, %v7639
        %v7831 = vadd.f32 %v7100, %v7695
        %v7832 = vadd.f32 %v7101, %v7751
        %v7833 = vadd.f32 %v7102, %v7807
        %v7834 = vadd.f32 %v7103, %v7642
        %v7835 = vadd.f32 %v7104, %v7698
        %v7836 = vadd.f32 %v7105, %v7754
        %v7837 = vadd.f32 %v7106, %v7810
        %v7838 = vadd.f32 %v7107, %v7644
        %v7839 = vadd.f32 %v7108, %v7700
        %v7840 = vadd.f32 %v7109, %v7756
        %v7841 = vadd.f32 %v7110, %v7812
        %v7842 = vadd.f32 %v7111, %v7647
        %v7843 = vadd.f32 %v7112, %v7703
        %v7844 = vadd.f32 %v7113, %v7759
        %v7845 = vadd.f32 %v7114, %v7815
        %v7846 = vld [vmem:[#allocation2] sm:$0xfc]
        %v7847 = vld [vmem:[#allocation2 + $0x8] sm:$0xfc]
        %v7848 = vld [vmem:[#allocation2 + $0x70] sm:$0x3]
        %v7849 = vld [vmem:[#allocation2 + $0x78] sm:$0x3]
        %v7850 = vpack.c.bf16 %v6385, %v7846
        %v7851 = vpack.c.bf16 %v6386, %v7847
        %v7852 = vpack.c.bf16 %v7848, %v6395
        %v7853 = vpack.c.bf16 %v7849, %v6396
        %s7854 = scalar_lea.vmem %s3, 2048
        %v7855 = vld [vmem:[%s7854] sm:$0xff]
        %v7856 = vld [vmem:[%s7854 + $0x8] sm:$0xff]
        %v7857 = vld [vmem:[%s7854 + $0x10] sm:$0xff]
        %v7858 = vld [vmem:[%s7854 + $0x18] sm:$0xff]
        %v7859 = vld [vmem:[%s7854 + $0x20] sm:$0xff]
        %v7860 = vld [vmem:[%s7854 + $0x28] sm:$0xff]
        %v7861 = vld [vmem:[%s7854 + $0x30] sm:$0xff]
        %v7862 = vld [vmem:[%s7854 + $0x38] sm:$0xff]
        %v7863 = vld [vmem:[%s7854 + $0x40] sm:$0xff]
        %v7864 = vld [vmem:[%s7854 + $0x48] sm:$0xff]
        %v7865 = vld [vmem:[%s7854 + $0x50] sm:$0xff]
        %v7866 = vld [vmem:[%s7854 + $0x58] sm:$0xff]
        %v7867 = vld [vmem:[%s7854 + $0x60] sm:$0xff]
        %v7868 = vld [vmem:[%s7854 + $0x68] sm:$0xff]
        %v7869 = vld [vmem:[%s7854 + $0x70] sm:$0xff]
        %v7870 = vld [vmem:[%s7854 + $0x78] sm:$0xff]
        %v7871 = vld [vmem:[%s7854 + $0x80] sm:$0xff]
        %v7872 = vld [vmem:[%s7854 + $0x88] sm:$0xff]
        %v7873 = vld [vmem:[%s7854 + $0x90] sm:$0xff]
        %v7874 = vld [vmem:[%s7854 + $0x98] sm:$0xff]
        %v7875 = vld [vmem:[%s7854 + $0xa0] sm:$0xff]
        %v7876 = vld [vmem:[%s7854 + $0xa8] sm:$0xff]
        %v7877 = vld [vmem:[%s7854 + $0xb0] sm:$0xff]
        %v7878 = vld [vmem:[%s7854 + $0xb8] sm:$0xff]
        %v7879 = vld [vmem:[%s7854 + $0xc0] sm:$0xff]
        %v7880 = vld [vmem:[%s7854 + $0xc8] sm:$0xff]
        %v7881 = vld [vmem:[%s7854 + $0xd0] sm:$0xff]
        %v7882 = vld [vmem:[%s7854 + $0xd8] sm:$0xff]
        %v7883 = vld [vmem:[%s7854 + $0xe0] sm:$0xff]
        %v7884 = vld [vmem:[%s7854 + $0xe8] sm:$0xff]
        %v7885 = vld [vmem:[%s7854 + $0xf0] sm:$0xff]
        %v7886 = vld [vmem:[%s7854 + $0xf8] sm:$0xff]
        %v7887 = vld [vmem:[%s7854 + $0x100] sm:$0xff]
        %v7888 = vld [vmem:[%s7854 + $0x108] sm:$0xff]
        %v7889 = vld [vmem:[%s7854 + $0x110] sm:$0xff]
        %v7890 = vld [vmem:[%s7854 + $0x118] sm:$0xff]
        %v7891 = vld [vmem:[%s7854 + $0x120] sm:$0xff]
        %v7892 = vld [vmem:[%s7854 + $0x128] sm:$0xff]
        %v7893 = vld [vmem:[%s7854 + $0x130] sm:$0xff]
        %v7894 = vld [vmem:[%s7854 + $0x138] sm:$0xff]
        %v7895 = vld [vmem:[%s7854 + $0x140] sm:$0xff]
        %v7896 = vld [vmem:[%s7854 + $0x148] sm:$0xff]
        %v7897 = vld [vmem:[%s7854 + $0x150] sm:$0xff]
        %v7898 = vld [vmem:[%s7854 + $0x158] sm:$0xff]
        %v7899 = vld [vmem:[%s7854 + $0x160] sm:$0xff]
        %v7900 = vld [vmem:[%s7854 + $0x168] sm:$0xff]
        %v7901 = vld [vmem:[%s7854 + $0x170] sm:$0xff]
        %v7902 = vld [vmem:[%s7854 + $0x178] sm:$0xff]
        %v7903 = vld [vmem:[%s7854 + $0x180] sm:$0xff]
        %v7904 = vld [vmem:[%s7854 + $0x188] sm:$0xff]
        %v7905 = vld [vmem:[%s7854 + $0x190] sm:$0xff]
        %v7906 = vld [vmem:[%s7854 + $0x198] sm:$0xff]
        %v7907 = vld [vmem:[%s7854 + $0x1a0] sm:$0xff]
        %v7908 = vld [vmem:[%s7854 + $0x1a8] sm:$0xff]
        %v7909 = vld [vmem:[%s7854 + $0x1b0] sm:$0xff]
        %v7910 = vld [vmem:[%s7854 + $0x1b8] sm:$0xff]
        %v7911 = vld [vmem:[%s7854 + $0x1c0] sm:$0xff]
        %v7912 = vld [vmem:[%s7854 + $0x1c8] sm:$0xff]
        %v7913 = vld [vmem:[%s7854 + $0x1d0] sm:$0xff]
        %v7914 = vld [vmem:[%s7854 + $0x1d8] sm:$0xff]
        %v7915 = vld [vmem:[%s7854 + $0x1e0] sm:$0xff]
        %v7916 = vld [vmem:[%s7854 + $0x1e8] sm:$0xff]
        %v7917 = vld [vmem:[%s7854 + $0x1f0] sm:$0xff]
        %v7918 = vld [vmem:[%s7854 + $0x1f8] sm:$0xff]
        %vm7927 = vcmask 1046528
        %v7928 = vrot.slane %v7850, 1
        %v7929 = vrot.slane %v6401, 1
        %v7930 = vsel %vm7927, %v7928, %v7929
        %v7931 = vrot.slane %v7851, 1
        %v7932 = vrot.slane %v6402, 1
        %v7933 = vsel %vm7927, %v7931, %v7932
        %v7934 = vrot.slane %v6403, 1
        %v7935 = vsel %vm7927, %v7929, %v7934
        %v7936 = vrot.slane %v6404, 1
        %v7937 = vsel %vm7927, %v7932, %v7936
        %v7938 = vrot.slane %v7852, 1
        %v7939 = vsel %vm7927, %v7934, %v7938
        %v7940 = vrot.slane %v7853, 1
        %v7941 = vsel %vm7927, %v7936, %v7940
        %v8014 = vunpack.c.l.b16 %v7855
        %v8015 = vunpack.c.h.b16 %v7855
        %v8016 = vunpack.c.l.b16 %v7856
        %v8017 = vunpack.c.h.b16 %v7856
        %v8018 = vunpack.c.l.b16 %v7857
        %v8019 = vunpack.c.h.b16 %v7857
        %v8020 = vunpack.c.l.b16 %v7858
        %v8021 = vunpack.c.h.b16 %v7858
        %v8022 = vunpack.c.l.b16 %v7859
        %v8023 = vunpack.c.h.b16 %v7859
        %v8024 = vunpack.c.l.b16 %v7860
        %v8025 = vunpack.c.h.b16 %v7860
        %v8026 = vunpack.c.l.b16 %v7861
        %v8027 = vunpack.c.h.b16 %v7861
        %v8028 = vunpack.c.l.b16 %v7862
        %v8029 = vunpack.c.h.b16 %v7862
        %v8030 = vunpack.c.l.b16 %v7863
        %v8031 = vunpack.c.h.b16 %v7863
        %v8032 = vunpack.c.l.b16 %v7864
        %v8033 = vunpack.c.h.b16 %v7864
        %v8034 = vunpack.c.l.b16 %v7865
        %v8035 = vunpack.c.h.b16 %v7865
        %v8036 = vunpack.c.l.b16 %v7866
        %v8037 = vunpack.c.h.b16 %v7866
        %v8038 = vunpack.c.l.b16 %v7867
        %v8039 = vunpack.c.h.b16 %v7867
        %v8040 = vunpack.c.l.b16 %v7868
        %v8041 = vunpack.c.h.b16 %v7868
        %v8042 = vunpack.c.l.b16 %v7869
        %v8043 = vunpack.c.h.b16 %v7869
        %v8044 = vunpack.c.l.b16 %v7870
        %v8045 = vunpack.c.h.b16 %v7870
        %v8046 = vunpack.c.l.b16 %v7871
        %v8047 = vunpack.c.h.b16 %v7871
        %v8048 = vunpack.c.l.b16 %v7872
        %v8049 = vunpack.c.h.b16 %v7872
        %v8050 = vunpack.c.l.b16 %v7873
        %v8051 = vunpack.c.h.b16 %v7873
        %v8052 = vunpack.c.l.b16 %v7874
        %v8053 = vunpack.c.h.b16 %v7874
        %v8054 = vunpack.c.l.b16 %v7875
        %v8055 = vunpack.c.h.b16 %v7875
        %v8056 = vunpack.c.l.b16 %v7876
        %v8057 = vunpack.c.h.b16 %v7876
        %v8058 = vunpack.c.l.b16 %v7877
        %v8059 = vunpack.c.h.b16 %v7877
        %v8060 = vunpack.c.l.b16 %v7878
        %v8061 = vunpack.c.h.b16 %v7878
        %v8062 = vunpack.c.l.b16 %v7879
        %v8063 = vunpack.c.h.b16 %v7879
        %v8064 = vunpack.c.l.b16 %v7880
        %v8065 = vunpack.c.h.b16 %v7880
        %v8066 = vunpack.c.l.b16 %v7881
        %v8067 = vunpack.c.h.b16 %v7881
        %v8068 = vunpack.c.l.b16 %v7882
        %v8069 = vunpack.c.h.b16 %v7882
        %v8070 = vunpack.c.l.b16 %v7883
        %v8071 = vunpack.c.h.b16 %v7883
        %v8072 = vunpack.c.l.b16 %v7884
        %v8073 = vunpack.c.h.b16 %v7884
        %v8074 = vunpack.c.l.b16 %v7885
        %v8075 = vunpack.c.h.b16 %v7885
        %v8076 = vunpack.c.l.b16 %v7886
        %v8077 = vunpack.c.h.b16 %v7886
        %v8078 = vunpack.c.l.b16 %v7887
        %v8079 = vunpack.c.h.b16 %v7887
        %v8080 = vunpack.c.l.b16 %v7888
        %v8081 = vunpack.c.h.b16 %v7888
        %v8082 = vunpack.c.l.b16 %v7889
        %v8083 = vunpack.c.h.b16 %v7889
        %v8084 = vunpack.c.l.b16 %v7890
        %v8085 = vunpack.c.h.b16 %v7890
        %v8086 = vunpack.c.l.b16 %v7891
        %v8087 = vunpack.c.h.b16 %v7891
        %v8088 = vunpack.c.l.b16 %v7892
        %v8089 = vunpack.c.h.b16 %v7892
        %v8090 = vunpack.c.l.b16 %v7893
        %v8091 = vunpack.c.h.b16 %v7893
        %v8092 = vunpack.c.l.b16 %v7894
        %v8093 = vunpack.c.h.b16 %v7894
        %v8094 = vunpack.c.l.b16 %v7895
        %v8095 = vunpack.c.h.b16 %v7895
        %v8096 = vunpack.c.l.b16 %v7896
        %v8097 = vunpack.c.h.b16 %v7896
        %v8098 = vunpack.c.l.b16 %v7897
        %v8099 = vunpack.c.h.b16 %v7897
        %v8100 = vunpack.c.l.b16 %v7898
        %v8101 = vunpack.c.h.b16 %v7898
        %v8102 = vunpack.c.l.b16 %v7899
        %v8103 = vunpack.c.h.b16 %v7899
        %v8104 = vunpack.c.l.b16 %v7900
        %v8105 = vunpack.c.h.b16 %v7900
        %v8106 = vunpack.c.l.b16 %v7901
        %v8107 = vunpack.c.h.b16 %v7901
        %v8108 = vunpack.c.l.b16 %v7902
        %v8109 = vunpack.c.h.b16 %v7902
        %v8110 = vunpack.c.l.b16 %v7903
        %v8111 = vunpack.c.h.b16 %v7903
        %v8112 = vunpack.c.l.b16 %v7904
        %v8113 = vunpack.c.h.b16 %v7904
        %v8114 = vunpack.c.l.b16 %v7905
        %v8115 = vunpack.c.h.b16 %v7905
        %v8116 = vunpack.c.l.b16 %v7906
        %v8117 = vunpack.c.h.b16 %v7906
        %v8118 = vunpack.c.l.b16 %v7907
        %v8119 = vunpack.c.h.b16 %v7907
        %v8120 = vunpack.c.l.b16 %v7908
        %v8121 = vunpack.c.h.b16 %v7908
        %v8122 = vunpack.c.l.b16 %v7909
        %v8123 = vunpack.c.h.b16 %v7909
        %v8124 = vunpack.c.l.b16 %v7910
        %v8125 = vunpack.c.h.b16 %v7910
        %v8126 = vunpack.c.l.b16 %v7911
        %v8127 = vunpack.c.h.b16 %v7911
        %v8128 = vunpack.c.l.b16 %v7912
        %v8129 = vunpack.c.h.b16 %v7912
        %v8130 = vunpack.c.l.b16 %v7913
        %v8131 = vunpack.c.h.b16 %v7913
        %v8132 = vunpack.c.l.b16 %v7914
        %v8133 = vunpack.c.h.b16 %v7914
        %v8134 = vunpack.c.l.b16 %v7915
        %v8135 = vunpack.c.h.b16 %v7915
        %v8136 = vunpack.c.l.b16 %v7916
        %v8137 = vunpack.c.h.b16 %v7916
        %v8138 = vunpack.c.l.b16 %v7917
        %v8139 = vunpack.c.h.b16 %v7917
        %v8140 = vunpack.c.l.b16 %v7918
        %v8141 = vunpack.c.h.b16 %v7918
        %v8142 = vpack.c.b16 %v8018, %v8014
        %v8143 = vpack.c.b16 %v8019, %v8015
        %v8144 = vpack.c.b16 %v8020, %v8016
        %v8145 = vpack.c.b16 %v8021, %v8017
        %v8146 = vpack.c.b16 %v8026, %v8022
        %v8147 = vpack.c.b16 %v8027, %v8023
        %v8148 = vpack.c.b16 %v8028, %v8024
        %v8149 = vpack.c.b16 %v8029, %v8025
        %v8150 = vpack.c.b16 %v8034, %v8030
        %v8151 = vpack.c.b16 %v8035, %v8031
        %v8152 = vpack.c.b16 %v8036, %v8032
        %v8153 = vpack.c.b16 %v8037, %v8033
        %v8154 = vpack.c.b16 %v8042, %v8038
        %v8155 = vpack.c.b16 %v8043, %v8039
        %v8156 = vpack.c.b16 %v8044, %v8040
        %v8157 = vpack.c.b16 %v8045, %v8041
        %v8158 = vpack.c.b16 %v8050, %v8046
        %v8159 = vpack.c.b16 %v8051, %v8047
        %v8160 = vpack.c.b16 %v8052, %v8048
        %v8161 = vpack.c.b16 %v8053, %v8049
        %v8162 = vpack.c.b16 %v8058, %v8054
        %v8163 = vpack.c.b16 %v8059, %v8055
        %v8164 = vpack.c.b16 %v8060, %v8056
        %v8165 = vpack.c.b16 %v8061, %v8057
        %v8166 = vpack.c.b16 %v8066, %v8062
        %v8167 = vpack.c.b16 %v8067, %v8063
        %v8168 = vpack.c.b16 %v8068, %v8064
        %v8169 = vpack.c.b16 %v8069, %v8065
        %v8170 = vpack.c.b16 %v8074, %v8070
        %v8171 = vpack.c.b16 %v8075, %v8071
        %v8172 = vpack.c.b16 %v8076, %v8072
        %v8173 = vpack.c.b16 %v8077, %v8073
        %v8174 = vpack.c.b16 %v8082, %v8078
        %v8175 = vpack.c.b16 %v8083, %v8079
        %v8176 = vpack.c.b16 %v8084, %v8080
        %v8177 = vpack.c.b16 %v8085, %v8081
        %v8178 = vpack.c.b16 %v8090, %v8086
        %v8179 = vpack.c.b16 %v8091, %v8087
        %v8180 = vpack.c.b16 %v8092, %v8088
        %v8181 = vpack.c.b16 %v8093, %v8089
        %v8182 = vpack.c.b16 %v8098, %v8094
        %v8183 = vpack.c.b16 %v8099, %v8095
        %v8184 = vpack.c.b16 %v8100, %v8096
        %v8185 = vpack.c.b16 %v8101, %v8097
        %v8186 = vpack.c.b16 %v8106, %v8102
        %v8187 = vpack.c.b16 %v8107, %v8103
        %v8188 = vpack.c.b16 %v8108, %v8104
        %v8189 = vpack.c.b16 %v8109, %v8105
        %v8190 = vpack.c.b16 %v8114, %v8110
        %v8191 = vpack.c.b16 %v8115, %v8111
        %v8192 = vpack.c.b16 %v8116, %v8112
        %v8193 = vpack.c.b16 %v8117, %v8113
        %v8194 = vpack.c.b16 %v8122, %v8118
        %v8195 = vpack.c.b16 %v8123, %v8119
        %v8196 = vpack.c.b16 %v8124, %v8120
        %v8197 = vpack.c.b16 %v8125, %v8121
        %v8198 = vpack.c.b16 %v8130, %v8126
        %v8199 = vpack.c.b16 %v8131, %v8127
        %v8200 = vpack.c.b16 %v8132, %v8128
        %v8201 = vpack.c.b16 %v8133, %v8129
        %v8202 = vpack.c.b16 %v8138, %v8134
        %v8203 = vpack.c.b16 %v8139, %v8135
        %v8204 = vpack.c.b16 %v8140, %v8136
        %v8205 = vpack.c.b16 %v8141, %v8137
        %8270 = vmatpush.bf16.msra.mxu0 %v8170
        %8271 = vmatpush.bf16.msra.mxu0 %v8166
        %8272 = vmatpush.bf16.msra.mxu0 %v8162
        %8273 = vmatpush.bf16.msra.mxu0 %v8158
        %8274 = vmatpush.bf16.msra.mxu0 %v8154
        %8275 = vmatpush.bf16.msra.mxu0 %v8150
        %8276 = vmatpush.bf16.msra.mxu0 %v8146
        %8277 = vmatpush.bf16.msra.mxu0 %v8142
        %8278 = vmatmul.bf16.gmra.mxu0 %v7930
        %v8279 = vpop.f32.mrf.mxu0
        %v8280 = vadd.f32 0.0, %v8279
        %v8281 = vpop.f32.mrf.mxu0
        %v8282 = vadd.f32 0.0, %v8281
        %8283 = vmatmul.bf16.gmra.mxu0 %v7935
        %v8284 = vpop.f32.mrf.mxu0
        %v8285 = vadd.f32 0.0, %v8284
        %v8286 = vpop.f32.mrf.mxu0
        %v8287 = vadd.f32 0.0, %v8286
        %8288 = vmatmul.bf16.gmra.mxu0 %v7939
        %v8289 = vpop.f32.mrf.mxu0
        %v8290 = vadd.f32 0.0, %v8289
        %v8291 = vpop.f32.mrf.mxu0
        %v8292 = vadd.f32 0.0, %v8291
        %8293 = vmatmul.bf16.gmra.mxu0 %v7938
        %v8294 = vpop.f32.mrf.mxu0
        %v8295 = vadd.f32 0.0, %v8294
        %v8296 = vpop.f32.mrf.mxu0
        %8297 = vdwg.mxu0
        %8298 = vmatpush.bf16.msra.mxu0 %v8202
        %8299 = vmatpush.bf16.msra.mxu0 %v8198
        %8300 = vmatpush.bf16.msra.mxu0 %v8194
        %8301 = vmatpush.bf16.msra.mxu0 %v8190
        %8302 = vmatpush.bf16.msra.mxu0 %v8186
        %8303 = vmatpush.bf16.msra.mxu0 %v8182
        %8304 = vmatpush.bf16.msra.mxu0 %v8178
        %8305 = vmatpush.bf16.msra.mxu0 %v8174
        %8306 = vmatmul.bf16.gmra.mxu0 %v7933
        %v8307 = vpop.f32.mrf.mxu0
        %v8308 = vadd.f32 %v8280, %v8307
        %v8309 = vpop.f32.mrf.mxu0
        %v8310 = vadd.f32 %v8282, %v8309
        %8311 = vmatmul.bf16.gmra.mxu0 %v7937
        %v8312 = vpop.f32.mrf.mxu0
        %v8313 = vadd.f32 %v8285, %v8312
        %v8314 = vpop.f32.mrf.mxu0
        %v8315 = vadd.f32 %v8287, %v8314
        %8316 = vmatmul.bf16.gmra.mxu0 %v7941
        %v8317 = vpop.f32.mrf.mxu0
        %v8318 = vadd.f32 %v8290, %v8317
        %v8319 = vpop.f32.mrf.mxu0
        %v8320 = vadd.f32 %v8292, %v8319
        %8321 = vmatmul.bf16.gmra.mxu0 %v7940
        %v8322 = vpop.f32.mrf.mxu0
        %v8323 = vadd.f32 %v8295, %v8322
        %v8324 = vpop.f32.mrf.mxu0
        %8325 = vdwg.mxu0
        %8326 = vmatpush.bf16.msra.mxu0 %v8171
        %8327 = vmatpush.bf16.msra.mxu0 %v8167
        %8328 = vmatpush.bf16.msra.mxu0 %v8163
        %8329 = vmatpush.bf16.msra.mxu0 %v8159
        %8330 = vmatpush.bf16.msra.mxu0 %v8155
        %8331 = vmatpush.bf16.msra.mxu0 %v8151
        %8332 = vmatpush.bf16.msra.mxu0 %v8147
        %8333 = vmatpush.bf16.msra.mxu0 %v8143
        %8334 = vmatmul.bf16.gmra.mxu0 %v7930
        %v8335 = vpop.f32.mrf.mxu0
        %v8336 = vadd.f32 0.0, %v8335
        %v8337 = vpop.f32.mrf.mxu0
        %v8338 = vadd.f32 0.0, %v8337
        %8339 = vmatmul.bf16.gmra.mxu0 %v7935
        %v8340 = vpop.f32.mrf.mxu0
        %v8341 = vadd.f32 0.0, %v8340
        %v8342 = vpop.f32.mrf.mxu0
        %v8343 = vadd.f32 0.0, %v8342
        %8344 = vmatmul.bf16.gmra.mxu0 %v7939
        %v8345 = vpop.f32.mrf.mxu0
        %v8346 = vadd.f32 0.0, %v8345
        %v8347 = vpop.f32.mrf.mxu0
        %v8348 = vadd.f32 0.0, %v8347
        %8349 = vmatmul.bf16.gmra.mxu0 %v7938
        %v8350 = vpop.f32.mrf.mxu0
        %v8351 = vadd.f32 0.0, %v8350
        %v8352 = vpop.f32.mrf.mxu0
        %8353 = vdwg.mxu0
        %8354 = vmatpush.bf16.msra.mxu0 %v8203
        %8355 = vmatpush.bf16.msra.mxu0 %v8199
        %8356 = vmatpush.bf16.msra.mxu0 %v8195
        %8357 = vmatpush.bf16.msra.mxu0 %v8191
        %8358 = vmatpush.bf16.msra.mxu0 %v8187
        %8359 = vmatpush.bf16.msra.mxu0 %v8183
        %8360 = vmatpush.bf16.msra.mxu0 %v8179
        %8361 = vmatpush.bf16.msra.mxu0 %v8175
        %8362 = vmatmul.bf16.gmra.mxu0 %v7933
        %v8363 = vpop.f32.mrf.mxu0
        %v8364 = vadd.f32 %v8336, %v8363
        %v8365 = vpop.f32.mrf.mxu0
        %v8366 = vadd.f32 %v8338, %v8365
        %8367 = vmatmul.bf16.gmra.mxu0 %v7937
        %v8368 = vpop.f32.mrf.mxu0
        %v8369 = vadd.f32 %v8341, %v8368
        %v8370 = vpop.f32.mrf.mxu0
        %v8371 = vadd.f32 %v8343, %v8370
        %8372 = vmatmul.bf16.gmra.mxu0 %v7941
        %v8373 = vpop.f32.mrf.mxu0
        %v8374 = vadd.f32 %v8346, %v8373
        %v8375 = vpop.f32.mrf.mxu0
        %v8376 = vadd.f32 %v8348, %v8375
        %8377 = vmatmul.bf16.gmra.mxu0 %v7940
        %v8378 = vpop.f32.mrf.mxu0
        %v8379 = vadd.f32 %v8351, %v8378
        %v8380 = vpop.f32.mrf.mxu0
        %8381 = vdwg.mxu0
        %8382 = vmatpush.bf16.msra.mxu0 %v8172
        %8383 = vmatpush.bf16.msra.mxu0 %v8168
        %8384 = vmatpush.bf16.msra.mxu0 %v8164
        %8385 = vmatpush.bf16.msra.mxu0 %v8160
        %8386 = vmatpush.bf16.msra.mxu0 %v8156
        %8387 = vmatpush.bf16.msra.mxu0 %v8152
        %8388 = vmatpush.bf16.msra.mxu0 %v8148
        %8389 = vmatpush.bf16.msra.mxu0 %v8144
        %8390 = vmatmul.bf16.gmra.mxu0 %v7930
        %v8391 = vpop.f32.mrf.mxu0
        %v8392 = vadd.f32 0.0, %v8391
        %v8393 = vpop.f32.mrf.mxu0
        %v8394 = vadd.f32 0.0, %v8393
        %8395 = vmatmul.bf16.gmra.mxu0 %v7935
        %v8396 = vpop.f32.mrf.mxu0
        %v8397 = vadd.f32 0.0, %v8396
        %v8398 = vpop.f32.mrf.mxu0
        %v8399 = vadd.f32 0.0, %v8398
        %8400 = vmatmul.bf16.gmra.mxu0 %v7939
        %v8401 = vpop.f32.mrf.mxu0
        %v8402 = vadd.f32 0.0, %v8401
        %v8403 = vpop.f32.mrf.mxu0
        %v8404 = vadd.f32 0.0, %v8403
        %8405 = vmatmul.bf16.gmra.mxu0 %v7938
        %v8406 = vpop.f32.mrf.mxu0
        %v8407 = vadd.f32 0.0, %v8406
        %v8408 = vpop.f32.mrf.mxu0
        %8409 = vdwg.mxu0
        %8410 = vmatpush.bf16.msra.mxu0 %v8204
        %8411 = vmatpush.bf16.msra.mxu0 %v8200
        %8412 = vmatpush.bf16.msra.mxu0 %v8196
        %8413 = vmatpush.bf16.msra.mxu0 %v8192
        %8414 = vmatpush.bf16.msra.mxu0 %v8188
        %8415 = vmatpush.bf16.msra.mxu0 %v8184
        %8416 = vmatpush.bf16.msra.mxu0 %v8180
        %8417 = vmatpush.bf16.msra.mxu0 %v8176
        %8418 = vmatmul.bf16.gmra.mxu0 %v7933
        %v8419 = vpop.f32.mrf.mxu0
        %v8420 = vadd.f32 %v8392, %v8419
        %v8421 = vpop.f32.mrf.mxu0
        %v8422 = vadd.f32 %v8394, %v8421
        %8423 = vmatmul.bf16.gmra.mxu0 %v7937
        %v8424 = vpop.f32.mrf.mxu0
        %v8425 = vadd.f32 %v8397, %v8424
        %v8426 = vpop.f32.mrf.mxu0
        %v8427 = vadd.f32 %v8399, %v8426
        %8428 = vmatmul.bf16.gmra.mxu0 %v7941
        %v8429 = vpop.f32.mrf.mxu0
        %v8430 = vadd.f32 %v8402, %v8429
        %v8431 = vpop.f32.mrf.mxu0
        %v8432 = vadd.f32 %v8404, %v8431
        %8433 = vmatmul.bf16.gmra.mxu0 %v7940
        %v8434 = vpop.f32.mrf.mxu0
        %v8435 = vadd.f32 %v8407, %v8434
        %v8436 = vpop.f32.mrf.mxu0
        %8437 = vdwg.mxu0
        %8438 = vmatpush.bf16.msra.mxu0 %v8173
        %8439 = vmatpush.bf16.msra.mxu0 %v8169
        %8440 = vmatpush.bf16.msra.mxu0 %v8165
        %8441 = vmatpush.bf16.msra.mxu0 %v8161
        %8442 = vmatpush.bf16.msra.mxu0 %v8157
        %8443 = vmatpush.bf16.msra.mxu0 %v8153
        %8444 = vmatpush.bf16.msra.mxu0 %v8149
        %8445 = vmatpush.bf16.msra.mxu0 %v8145
        %8446 = vmatmul.bf16.gmra.mxu0 %v7930
        %v8447 = vpop.f32.mrf.mxu0
        %v8448 = vadd.f32 0.0, %v8447
        %v8449 = vpop.f32.mrf.mxu0
        %v8450 = vadd.f32 0.0, %v8449
        %8451 = vmatmul.bf16.gmra.mxu0 %v7935
        %v8452 = vpop.f32.mrf.mxu0
        %v8453 = vadd.f32 0.0, %v8452
        %v8454 = vpop.f32.mrf.mxu0
        %v8455 = vadd.f32 0.0, %v8454
        %8456 = vmatmul.bf16.gmra.mxu0 %v7939
        %v8457 = vpop.f32.mrf.mxu0
        %v8458 = vadd.f32 0.0, %v8457
        %v8459 = vpop.f32.mrf.mxu0
        %v8460 = vadd.f32 0.0, %v8459
        %8461 = vmatmul.bf16.gmra.mxu0 %v7938
        %v8462 = vpop.f32.mrf.mxu0
        %v8463 = vadd.f32 0.0, %v8462
        %v8464 = vpop.f32.mrf.mxu0
        %8465 = vdwg.mxu0
        %8466 = vmatpush.bf16.msra.mxu0 %v8205
        %8467 = vmatpush.bf16.msra.mxu0 %v8201
        %8468 = vmatpush.bf16.msra.mxu0 %v8197
        %8469 = vmatpush.bf16.msra.mxu0 %v8193
        %8470 = vmatpush.bf16.msra.mxu0 %v8189
        %8471 = vmatpush.bf16.msra.mxu0 %v8185
        %8472 = vmatpush.bf16.msra.mxu0 %v8181
        %8473 = vmatpush.bf16.msra.mxu0 %v8177
        %8474 = vmatmul.bf16.gmra.mxu0 %v7933
        %v8475 = vpop.f32.mrf.mxu0
        %v8476 = vadd.f32 %v8448, %v8475
        %v8477 = vpop.f32.mrf.mxu0
        %v8478 = vadd.f32 %v8450, %v8477
        %8479 = vmatmul.bf16.gmra.mxu0 %v7937
        %v8480 = vpop.f32.mrf.mxu0
        %v8481 = vadd.f32 %v8453, %v8480
        %v8482 = vpop.f32.mrf.mxu0
        %v8483 = vadd.f32 %v8455, %v8482
        %8484 = vmatmul.bf16.gmra.mxu0 %v7941
        %v8485 = vpop.f32.mrf.mxu0
        %v8486 = vadd.f32 %v8458, %v8485
        %v8487 = vpop.f32.mrf.mxu0
        %v8488 = vadd.f32 %v8460, %v8487
        %8489 = vmatmul.bf16.gmra.mxu0 %v7940
        %v8490 = vpop.f32.mrf.mxu0
        %v8491 = vadd.f32 %v8463, %v8490
        %v8492 = vpop.f32.mrf.mxu0
        %8493 = vdwg.mxu0
        %v8494 = vadd.f32 %v7818, %v8308
        %v8495 = vadd.f32 %v7819, %v8364
        %v8496 = vadd.f32 %v7820, %v8420
        %v8497 = vadd.f32 %v7821, %v8476
        %v8498 = vadd.f32 %v7822, %v8310
        %v8499 = vadd.f32 %v7823, %v8366
        %v8500 = vadd.f32 %v7824, %v8422
        %v8501 = vadd.f32 %v7825, %v8478
        %v8502 = vadd.f32 %v7826, %v8313
        %v8503 = vadd.f32 %v7827, %v8369
        %v8504 = vadd.f32 %v7828, %v8425
        %v8505 = vadd.f32 %v7829, %v8481
        %v8506 = vadd.f32 %v7830, %v8315
        %v8507 = vadd.f32 %v7831, %v8371
        %v8508 = vadd.f32 %v7832, %v8427
        %v8509 = vadd.f32 %v7833, %v8483
        %v8510 = vadd.f32 %v7834, %v8318
        %v8511 = vadd.f32 %v7835, %v8374
        %v8512 = vadd.f32 %v7836, %v8430
        %v8513 = vadd.f32 %v7837, %v8486
        %v8514 = vadd.f32 %v7838, %v8320
        %v8515 = vadd.f32 %v7839, %v8376
        %v8516 = vadd.f32 %v7840, %v8432
        %v8517 = vadd.f32 %v7841, %v8488
        %v8518 = vadd.f32 %v7842, %v8323
        %v8519 = vadd.f32 %v7843, %v8379
        %v8520 = vadd.f32 %v7844, %v8435
        %v8521 = vadd.f32 %v7845, %v8491
        %v8522 = vmax.f32 %v8494, %v8496
        %v8523 = vmax.f32 %v8495, %v8497
        %v8524 = vmax.f32 %v8498, %v8500
        %v8525 = vmax.f32 %v8499, %v8501
        %v8526 = vmax.f32 %v8502, %v8504
        %v8527 = vmax.f32 %v8503, %v8505
        %v8528 = vmax.f32 %v8506, %v8508
        %v8529 = vmax.f32 %v8507, %v8509
        %v8530 = vmax.f32 %v8510, %v8512
        %v8531 = vmax.f32 %v8511, %v8513
        %v8532 = vmax.f32 %v8514, %v8516
        %v8533 = vmax.f32 %v8515, %v8517
        %v8534 = vmax.f32 %v8518, %v8520
        %v8535 = vmax.f32 %v8519, %v8521
        %v8536 = vld [vmem:[%s4] sm:$0x3]
        %v8538 = vperm.slane %v8536, 0
        %v8539 = vperm.slane %v8536, 1
        %v8542 = vadd.f32 %v8522, %v8538
        %v8543 = vadd.f32 %v8523, %v8539
        %v8544 = vadd.f32 %v8524, %v8538
        %v8545 = vadd.f32 %v8525, %v8539
        %v8546 = vadd.f32 %v8526, %v8538
        %v8547 = vadd.f32 %v8527, %v8539
        %v8548 = vadd.f32 %v8528, %v8538
        %v8549 = vadd.f32 %v8529, %v8539
        %v8550 = vadd.f32 %v8530, %v8538
        %v8551 = vadd.f32 %v8531, %v8539
        %v8552 = vadd.f32 %v8532, %v8538
        %v8553 = vadd.f32 %v8533, %v8539
        %v8554 = vadd.f32 %v8534, %v8538
        %v8555 = vadd.f32 %v8535, %v8539
        %v8556 = vmax.f32 %v8542, 0.0
        %v8557 = vmax.f32 %v8543, 0.0
        %v8558 = vmax.f32 %v8544, 0.0
        %v8559 = vmax.f32 %v8545, 0.0
        %v8560 = vmax.f32 %v8546, 0.0
        %v8561 = vmax.f32 %v8547, 0.0
        %v8562 = vmax.f32 %v8548, 0.0
        %v8563 = vmax.f32 %v8549, 0.0
        %v8564 = vmax.f32 %v8550, 0.0
        %v8565 = vmax.f32 %v8551, 0.0
        %v8566 = vmax.f32 %v8552, 0.0
        %v8567 = vmax.f32 %v8553, 0.0
        %v8568 = vmax.f32 %v8554, 0.0
        %v8569 = vmax.f32 %v8555, 0.0
        %8570 = vmatpush.bf16.msra.mxu0 %v5515
        %8571 = vmatpush.bf16.msra.mxu0 %v5511
        %8572 = vmatpush.bf16.msra.mxu0 %v5507
        %8573 = vmatpush.bf16.msra.mxu0 %v5503
        %8574 = vmatpush.bf16.msra.mxu0 %v5499
        %8575 = vmatpush.bf16.msra.mxu0 %v5495
        %8576 = vmatpush.bf16.msra.mxu0 %v5491
        %8577 = vmatpush.bf16.msra.mxu0 %v5487
        %8578 = vmatmul.bf16.gmra.mxu0 %v6484
        %v8579 = vpop.f32.mrf.mxu0
        %v8580 = vadd.f32 0.0, %v8579
        %v8581 = vpop.f32.mrf.mxu0
        %v8582 = vadd.f32 0.0, %v8581
        %8583 = vmatmul.bf16.gmra.mxu0 %v6504
        %v8584 = vpop.f32.mrf.mxu0
        %v8585 = vadd.f32 0.0, %v8584
        %v8586 = vpop.f32.mrf.mxu0
        %v8587 = vadd.f32 0.0, %v8586
        %8588 = vmatmul.bf16.gmra.mxu0 %v6520
        %v8589 = vpop.f32.mrf.mxu0
        %v8590 = vadd.f32 0.0, %v8589
        %v8591 = vpop.f32.mrf.mxu0
        %v8592 = vadd.f32 0.0, %v8591
        %8593 = vmatmul.bf16.gmra.mxu0 %v6531
        %v8594 = vpop.f32.mrf.mxu0
        %v8595 = vadd.f32 0.0, %v8594
        %v8596 = vpop.f32.mrf.mxu0
        %8597 = vdwg.mxu0
        %8598 = vmatpush.bf16.msra.mxu0 %v5547
        %8599 = vmatpush.bf16.msra.mxu0 %v5543
        %8600 = vmatpush.bf16.msra.mxu0 %v5539
        %8601 = vmatpush.bf16.msra.mxu0 %v5535
        %8602 = vmatpush.bf16.msra.mxu0 %v5531
        %8603 = vmatpush.bf16.msra.mxu0 %v5527
        %8604 = vmatpush.bf16.msra.mxu0 %v5523
        %8605 = vmatpush.bf16.msra.mxu0 %v5519
        %8606 = vmatmul.bf16.gmra.mxu0 %v6496
        %v8607 = vpop.f32.mrf.mxu0
        %v8608 = vadd.f32 %v8580, %v8607
        %v8609 = vpop.f32.mrf.mxu0
        %v8610 = vadd.f32 %v8582, %v8609
        %8611 = vmatmul.bf16.gmra.mxu0 %v6512
        %v8612 = vpop.f32.mrf.mxu0
        %v8613 = vadd.f32 %v8585, %v8612
        %v8614 = vpop.f32.mrf.mxu0
        %v8615 = vadd.f32 %v8587, %v8614
        %8616 = vmatmul.bf16.gmra.mxu0 %v6528
        %v8617 = vpop.f32.mrf.mxu0
        %v8618 = vadd.f32 %v8590, %v8617
        %v8619 = vpop.f32.mrf.mxu0
        %v8620 = vadd.f32 %v8592, %v8619
        %8621 = vmatmul.bf16.gmra.mxu0 %v6534
        %v8622 = vpop.f32.mrf.mxu0
        %v8623 = vadd.f32 %v8595, %v8622
        %v8624 = vpop.f32.mrf.mxu0
        %8625 = vdwg.mxu0
        %8626 = vmatpush.bf16.msra.mxu0 %v5516
        %8627 = vmatpush.bf16.msra.mxu0 %v5512
        %8628 = vmatpush.bf16.msra.mxu0 %v5508
        %8629 = vmatpush.bf16.msra.mxu0 %v5504
        %8630 = vmatpush.bf16.msra.mxu0 %v5500
        %8631 = vmatpush.bf16.msra.mxu0 %v5496
        %8632 = vmatpush.bf16.msra.mxu0 %v5492
        %8633 = vmatpush.bf16.msra.mxu0 %v5488
        %8634 = vmatmul.bf16.gmra.mxu0 %v6484
        %v8635 = vpop.f32.mrf.mxu0
        %v8636 = vadd.f32 0.0, %v8635
        %v8637 = vpop.f32.mrf.mxu0
        %v8638 = vadd.f32 0.0, %v8637
        %8639 = vmatmul.bf16.gmra.mxu0 %v6504
        %v8640 = vpop.f32.mrf.mxu0
        %v8641 = vadd.f32 0.0, %v8640
        %v8642 = vpop.f32.mrf.mxu0
        %v8643 = vadd.f32 0.0, %v8642
        %8644 = vmatmul.bf16.gmra.mxu0 %v6520
        %v8645 = vpop.f32.mrf.mxu0
        %v8646 = vadd.f32 0.0, %v8645
        %v8647 = vpop.f32.mrf.mxu0
        %v8648 = vadd.f32 0.0, %v8647
        %8649 = vmatmul.bf16.gmra.mxu0 %v6531
        %v8650 = vpop.f32.mrf.mxu0
        %v8651 = vadd.f32 0.0, %v8650
        %v8652 = vpop.f32.mrf.mxu0
        %8653 = vdwg.mxu0
        %8654 = vmatpush.bf16.msra.mxu0 %v5548
        %8655 = vmatpush.bf16.msra.mxu0 %v5544
        %8656 = vmatpush.bf16.msra.mxu0 %v5540
        %8657 = vmatpush.bf16.msra.mxu0 %v5536
        %8658 = vmatpush.bf16.msra.mxu0 %v5532
        %8659 = vmatpush.bf16.msra.mxu0 %v5528
        %8660 = vmatpush.bf16.msra.mxu0 %v5524
        %8661 = vmatpush.bf16.msra.mxu0 %v5520
        %8662 = vmatmul.bf16.gmra.mxu0 %v6496
        %v8663 = vpop.f32.mrf.mxu0
        %v8664 = vadd.f32 %v8636, %v8663
        %v8665 = vpop.f32.mrf.mxu0
        %v8666 = vadd.f32 %v8638, %v8665
        %8667 = vmatmul.bf16.gmra.mxu0 %v6512
        %v8668 = vpop.f32.mrf.mxu0
        %v8669 = vadd.f32 %v8641, %v8668
        %v8670 = vpop.f32.mrf.mxu0
        %v8671 = vadd.f32 %v8643, %v8670
        %8672 = vmatmul.bf16.gmra.mxu0 %v6528
        %v8673 = vpop.f32.mrf.mxu0
        %v8674 = vadd.f32 %v8646, %v8673
        %v8675 = vpop.f32.mrf.mxu0
        %v8676 = vadd.f32 %v8648, %v8675
        %8677 = vmatmul.bf16.gmra.mxu0 %v6534
        %v8678 = vpop.f32.mrf.mxu0
        %v8679 = vadd.f32 %v8651, %v8678
        %v8680 = vpop.f32.mrf.mxu0
        %8681 = vdwg.mxu0
        %8682 = vmatpush.bf16.msra.mxu0 %v5517
        %8683 = vmatpush.bf16.msra.mxu0 %v5513
        %8684 = vmatpush.bf16.msra.mxu0 %v5509
        %8685 = vmatpush.bf16.msra.mxu0 %v5505
        %8686 = vmatpush.bf16.msra.mxu0 %v5501
        %8687 = vmatpush.bf16.msra.mxu0 %v5497
        %8688 = vmatpush.bf16.msra.mxu0 %v5493
        %8689 = vmatpush.bf16.msra.mxu0 %v5489
        %8690 = vmatmul.bf16.gmra.mxu0 %v6484
        %v8691 = vpop.f32.mrf.mxu0
        %v8692 = vadd.f32 0.0, %v8691
        %v8693 = vpop.f32.mrf.mxu0
        %v8694 = vadd.f32 0.0, %v8693
        %8695 = vmatmul.bf16.gmra.mxu0 %v6504
        %v8696 = vpop.f32.mrf.mxu0
        %v8697 = vadd.f32 0.0, %v8696
        %v8698 = vpop.f32.mrf.mxu0
        %v8699 = vadd.f32 0.0, %v8698
        %8700 = vmatmul.bf16.gmra.mxu0 %v6520
        %v8701 = vpop.f32.mrf.mxu0
        %v8702 = vadd.f32 0.0, %v8701
        %v8703 = vpop.f32.mrf.mxu0
        %v8704 = vadd.f32 0.0, %v8703
        %8705 = vmatmul.bf16.gmra.mxu0 %v6531
        %v8706 = vpop.f32.mrf.mxu0
        %v8707 = vadd.f32 0.0, %v8706
        %v8708 = vpop.f32.mrf.mxu0
        %8709 = vdwg.mxu0
        %8710 = vmatpush.bf16.msra.mxu0 %v5549
        %8711 = vmatpush.bf16.msra.mxu0 %v5545
        %8712 = vmatpush.bf16.msra.mxu0 %v5541
        %8713 = vmatpush.bf16.msra.mxu0 %v5537
        %8714 = vmatpush.bf16.msra.mxu0 %v5533
        %8715 = vmatpush.bf16.msra.mxu0 %v5529
        %8716 = vmatpush.bf16.msra.mxu0 %v5525
        %8717 = vmatpush.bf16.msra.mxu0 %v5521
        %8718 = vmatmul.bf16.gmra.mxu0 %v6496
        %v8719 = vpop.f32.mrf.mxu0
        %v8720 = vadd.f32 %v8692, %v8719
        %v8721 = vpop.f32.mrf.mxu0
        %v8722 = vadd.f32 %v8694, %v8721
        %8723 = vmatmul.bf16.gmra.mxu0 %v6512
        %v8724 = vpop.f32.mrf.mxu0
        %v8725 = vadd.f32 %v8697, %v8724
        %v8726 = vpop.f32.mrf.mxu0
        %v8727 = vadd.f32 %v8699, %v8726
        %8728 = vmatmul.bf16.gmra.mxu0 %v6528
        %v8729 = vpop.f32.mrf.mxu0
        %v8730 = vadd.f32 %v8702, %v8729
        %v8731 = vpop.f32.mrf.mxu0
        %v8732 = vadd.f32 %v8704, %v8731
        %8733 = vmatmul.bf16.gmra.mxu0 %v6534
        %v8734 = vpop.f32.mrf.mxu0
        %v8735 = vadd.f32 %v8707, %v8734
        %v8736 = vpop.f32.mrf.mxu0
        %8737 = vdwg.mxu0
        %8738 = vmatpush.bf16.msra.mxu0 %v5518
        %8739 = vmatpush.bf16.msra.mxu0 %v5514
        %8740 = vmatpush.bf16.msra.mxu0 %v5510
        %8741 = vmatpush.bf16.msra.mxu0 %v5506
        %8742 = vmatpush.bf16.msra.mxu0 %v5502
        %8743 = vmatpush.bf16.msra.mxu0 %v5498
        %8744 = vmatpush.bf16.msra.mxu0 %v5494
        %8745 = vmatpush.bf16.msra.mxu0 %v5490
        %8746 = vmatmul.bf16.gmra.mxu0 %v6484
        %v8747 = vpop.f32.mrf.mxu0
        %v8748 = vadd.f32 0.0, %v8747
        %v8749 = vpop.f32.mrf.mxu0
        %v8750 = vadd.f32 0.0, %v8749
        %8751 = vmatmul.bf16.gmra.mxu0 %v6504
        %v8752 = vpop.f32.mrf.mxu0
        %v8753 = vadd.f32 0.0, %v8752
        %v8754 = vpop.f32.mrf.mxu0
        %v8755 = vadd.f32 0.0, %v8754
        %8756 = vmatmul.bf16.gmra.mxu0 %v6520
        %v8757 = vpop.f32.mrf.mxu0
        %v8758 = vadd.f32 0.0, %v8757
        %v8759 = vpop.f32.mrf.mxu0
        %v8760 = vadd.f32 0.0, %v8759
        %8761 = vmatmul.bf16.gmra.mxu0 %v6531
        %v8762 = vpop.f32.mrf.mxu0
        %v8763 = vadd.f32 0.0, %v8762
        %v8764 = vpop.f32.mrf.mxu0
        %8765 = vdwg.mxu0
        %8766 = vmatpush.bf16.msra.mxu0 %v5550
        %8767 = vmatpush.bf16.msra.mxu0 %v5546
        %8768 = vmatpush.bf16.msra.mxu0 %v5542
        %8769 = vmatpush.bf16.msra.mxu0 %v5538
        %8770 = vmatpush.bf16.msra.mxu0 %v5534
        %8771 = vmatpush.bf16.msra.mxu0 %v5530
        %8772 = vmatpush.bf16.msra.mxu0 %v5526
        %8773 = vmatpush.bf16.msra.mxu0 %v5522
        %8774 = vmatmul.bf16.gmra.mxu0 %v6496
        %v8775 = vpop.f32.mrf.mxu0
        %v8776 = vadd.f32 %v8748, %v8775
        %v8777 = vpop.f32.mrf.mxu0
        %v8778 = vadd.f32 %v8750, %v8777
        %8779 = vmatmul.bf16.gmra.mxu0 %v6512
        %v8780 = vpop.f32.mrf.mxu0
        %v8781 = vadd.f32 %v8753, %v8780
        %v8782 = vpop.f32.mrf.mxu0
        %v8783 = vadd.f32 %v8755, %v8782
        %8784 = vmatmul.bf16.gmra.mxu0 %v6528
        %v8785 = vpop.f32.mrf.mxu0
        %v8786 = vadd.f32 %v8758, %v8785
        %v8787 = vpop.f32.mrf.mxu0
        %v8788 = vadd.f32 %v8760, %v8787
        %8789 = vmatmul.bf16.gmra.mxu0 %v6534
        %v8790 = vpop.f32.mrf.mxu0
        %v8791 = vadd.f32 %v8763, %v8790
        %v8792 = vpop.f32.mrf.mxu0
        %8793 = vdwg.mxu0
        %8794 = vmatpush.bf16.msra.mxu0 %v6059
        %8795 = vmatpush.bf16.msra.mxu0 %v6055
        %8796 = vmatpush.bf16.msra.mxu0 %v6051
        %8797 = vmatpush.bf16.msra.mxu0 %v6047
        %8798 = vmatpush.bf16.msra.mxu0 %v6043
        %8799 = vmatpush.bf16.msra.mxu0 %v6039
        %8800 = vmatpush.bf16.msra.mxu0 %v6035
        %8801 = vmatpush.bf16.msra.mxu0 %v6031
        %8802 = vmatmul.bf16.gmra.mxu0 %v5222
        %v8803 = vpop.f32.mrf.mxu0
        %v8804 = vadd.f32 %v8608, %v8803
        %v8805 = vpop.f32.mrf.mxu0
        %v8806 = vadd.f32 %v8610, %v8805
        %8807 = vmatmul.bf16.gmra.mxu0 %v5224
        %v8808 = vpop.f32.mrf.mxu0
        %v8809 = vadd.f32 %v8613, %v8808
        %v8810 = vpop.f32.mrf.mxu0
        %v8811 = vadd.f32 %v8615, %v8810
        %8812 = vmatmul.bf16.gmra.mxu0 %v5226
        %v8813 = vpop.f32.mrf.mxu0
        %v8814 = vadd.f32 %v8618, %v8813
        %v8815 = vpop.f32.mrf.mxu0
        %v8816 = vadd.f32 %v8620, %v8815
        %8817 = vmatmul.bf16.gmra.mxu0 %v5228
        %v8818 = vpop.f32.mrf.mxu0
        %v8819 = vadd.f32 %v8623, %v8818
        %v8820 = vpop.f32.mrf.mxu0
        %8821 = vdwg.mxu0
        %8822 = vmatpush.bf16.msra.mxu0 %v6091
        %8823 = vmatpush.bf16.msra.mxu0 %v6087
        %8824 = vmatpush.bf16.msra.mxu0 %v6083
        %8825 = vmatpush.bf16.msra.mxu0 %v6079
        %8826 = vmatpush.bf16.msra.mxu0 %v6075
        %8827 = vmatpush.bf16.msra.mxu0 %v6071
        %8828 = vmatpush.bf16.msra.mxu0 %v6067
        %8829 = vmatpush.bf16.msra.mxu0 %v6063
        %8830 = vmatmul.bf16.gmra.mxu0 %v5223
        %v8831 = vpop.f32.mrf.mxu0
        %v8832 = vadd.f32 %v8804, %v8831
        %v8833 = vpop.f32.mrf.mxu0
        %v8834 = vadd.f32 %v8806, %v8833
        %8835 = vmatmul.bf16.gmra.mxu0 %v5225
        %v8836 = vpop.f32.mrf.mxu0
        %v8837 = vadd.f32 %v8809, %v8836
        %v8838 = vpop.f32.mrf.mxu0
        %v8839 = vadd.f32 %v8811, %v8838
        %8840 = vmatmul.bf16.gmra.mxu0 %v5227
        %v8841 = vpop.f32.mrf.mxu0
        %v8842 = vadd.f32 %v8814, %v8841
        %v8843 = vpop.f32.mrf.mxu0
        %v8844 = vadd.f32 %v8816, %v8843
        %8845 = vmatmul.bf16.gmra.mxu0 %v5229
        %v8846 = vpop.f32.mrf.mxu0
        %v8847 = vadd.f32 %v8819, %v8846
        %v8848 = vpop.f32.mrf.mxu0
        %8849 = vdwg.mxu0
        %8850 = vmatpush.bf16.msra.mxu0 %v6060
        %8851 = vmatpush.bf16.msra.mxu0 %v6056
        %8852 = vmatpush.bf16.msra.mxu0 %v6052
        %8853 = vmatpush.bf16.msra.mxu0 %v6048
        %8854 = vmatpush.bf16.msra.mxu0 %v6044
        %8855 = vmatpush.bf16.msra.mxu0 %v6040
        %8856 = vmatpush.bf16.msra.mxu0 %v6036
        %8857 = vmatpush.bf16.msra.mxu0 %v6032
        %8858 = vmatmul.bf16.gmra.mxu0 %v5222
        %v8859 = vpop.f32.mrf.mxu0
        %v8860 = vadd.f32 %v8664, %v8859
        %v8861 = vpop.f32.mrf.mxu0
        %v8862 = vadd.f32 %v8666, %v8861
        %8863 = vmatmul.bf16.gmra.mxu0 %v5224
        %v8864 = vpop.f32.mrf.mxu0
        %v8865 = vadd.f32 %v8669, %v8864
        %v8866 = vpop.f32.mrf.mxu0
        %v8867 = vadd.f32 %v8671, %v8866
        %8868 = vmatmul.bf16.gmra.mxu0 %v5226
        %v8869 = vpop.f32.mrf.mxu0
        %v8870 = vadd.f32 %v8674, %v8869
        %v8871 = vpop.f32.mrf.mxu0
        %v8872 = vadd.f32 %v8676, %v8871
        %8873 = vmatmul.bf16.gmra.mxu0 %v5228
        %v8874 = vpop.f32.mrf.mxu0
        %v8875 = vadd.f32 %v8679, %v8874
        %v8876 = vpop.f32.mrf.mxu0
        %8877 = vdwg.mxu0
        %8878 = vmatpush.bf16.msra.mxu0 %v6092
        %8879 = vmatpush.bf16.msra.mxu0 %v6088
        %8880 = vmatpush.bf16.msra.mxu0 %v6084
        %8881 = vmatpush.bf16.msra.mxu0 %v6080
        %8882 = vmatpush.bf16.msra.mxu0 %v6076
        %8883 = vmatpush.bf16.msra.mxu0 %v6072
        %8884 = vmatpush.bf16.msra.mxu0 %v6068
        %8885 = vmatpush.bf16.msra.mxu0 %v6064
        %8886 = vmatmul.bf16.gmra.mxu0 %v5223
        %v8887 = vpop.f32.mrf.mxu0
        %v8888 = vadd.f32 %v8860, %v8887
        %v8889 = vpop.f32.mrf.mxu0
        %v8890 = vadd.f32 %v8862, %v8889
        %8891 = vmatmul.bf16.gmra.mxu0 %v5225
        %v8892 = vpop.f32.mrf.mxu0
        %v8893 = vadd.f32 %v8865, %v8892
        %v8894 = vpop.f32.mrf.mxu0
        %v8895 = vadd.f32 %v8867, %v8894
        %8896 = vmatmul.bf16.gmra.mxu0 %v5227
        %v8897 = vpop.f32.mrf.mxu0
        %v8898 = vadd.f32 %v8870, %v8897
        %v8899 = vpop.f32.mrf.mxu0
        %v8900 = vadd.f32 %v8872, %v8899
        %8901 = vmatmul.bf16.gmra.mxu0 %v5229
        %v8902 = vpop.f32.mrf.mxu0
        %v8903 = vadd.f32 %v8875, %v8902
        %v8904 = vpop.f32.mrf.mxu0
        %8905 = vdwg.mxu0
        %8906 = vmatpush.bf16.msra.mxu0 %v6061
        %8907 = vmatpush.bf16.msra.mxu0 %v6057
        %8908 = vmatpush.bf16.msra.mxu0 %v6053
        %8909 = vmatpush.bf16.msra.mxu0 %v6049
        %8910 = vmatpush.bf16.msra.mxu0 %v6045
        %8911 = vmatpush.bf16.msra.mxu0 %v6041
        %8912 = vmatpush.bf16.msra.mxu0 %v6037
        %8913 = vmatpush.bf16.msra.mxu0 %v6033
        %8914 = vmatmul.bf16.gmra.mxu0 %v5222
        %v8915 = vpop.f32.mrf.mxu0
        %v8916 = vadd.f32 %v8720, %v8915
        %v8917 = vpop.f32.mrf.mxu0
        %v8918 = vadd.f32 %v8722, %v8917
        %8919 = vmatmul.bf16.gmra.mxu0 %v5224
        %v8920 = vpop.f32.mrf.mxu0
        %v8921 = vadd.f32 %v8725, %v8920
        %v8922 = vpop.f32.mrf.mxu0
        %v8923 = vadd.f32 %v8727, %v8922
        %8924 = vmatmul.bf16.gmra.mxu0 %v5226
        %v8925 = vpop.f32.mrf.mxu0
        %v8926 = vadd.f32 %v8730, %v8925
        %v8927 = vpop.f32.mrf.mxu0
        %v8928 = vadd.f32 %v8732, %v8927
        %8929 = vmatmul.bf16.gmra.mxu0 %v5228
        %v8930 = vpop.f32.mrf.mxu0
        %v8931 = vadd.f32 %v8735, %v8930
        %v8932 = vpop.f32.mrf.mxu0
        %8933 = vdwg.mxu0
        %8934 = vmatpush.bf16.msra.mxu0 %v6093
        %8935 = vmatpush.bf16.msra.mxu0 %v6089
        %8936 = vmatpush.bf16.msra.mxu0 %v6085
        %8937 = vmatpush.bf16.msra.mxu0 %v6081
        %8938 = vmatpush.bf16.msra.mxu0 %v6077
        %8939 = vmatpush.bf16.msra.mxu0 %v6073
        %8940 = vmatpush.bf16.msra.mxu0 %v6069
        %8941 = vmatpush.bf16.msra.mxu0 %v6065
        %8942 = vmatmul.bf16.gmra.mxu0 %v5223
        %v8943 = vpop.f32.mrf.mxu0
        %v8944 = vadd.f32 %v8916, %v8943
        %v8945 = vpop.f32.mrf.mxu0
        %v8946 = vadd.f32 %v8918, %v8945
        %8947 = vmatmul.bf16.gmra.mxu0 %v5225
        %v8948 = vpop.f32.mrf.mxu0
        %v8949 = vadd.f32 %v8921, %v8948
        %v8950 = vpop.f32.mrf.mxu0
        %v8951 = vadd.f32 %v8923, %v8950
        %8952 = vmatmul.bf16.gmra.mxu0 %v5227
        %v8953 = vpop.f32.mrf.mxu0
        %v8954 = vadd.f32 %v8926, %v8953
        %v8955 = vpop.f32.mrf.mxu0
        %v8956 = vadd.f32 %v8928, %v8955
        %8957 = vmatmul.bf16.gmra.mxu0 %v5229
        %v8958 = vpop.f32.mrf.mxu0
        %v8959 = vadd.f32 %v8931, %v8958
        %v8960 = vpop.f32.mrf.mxu0
        %8961 = vdwg.mxu0
        %8962 = vmatpush.bf16.msra.mxu0 %v6062
        %8963 = vmatpush.bf16.msra.mxu0 %v6058
        %8964 = vmatpush.bf16.msra.mxu0 %v6054
        %8965 = vmatpush.bf16.msra.mxu0 %v6050
        %8966 = vmatpush.bf16.msra.mxu0 %v6046
        %8967 = vmatpush.bf16.msra.mxu0 %v6042
        %8968 = vmatpush.bf16.msra.mxu0 %v6038
        %8969 = vmatpush.bf16.msra.mxu0 %v6034
        %8970 = vmatmul.bf16.gmra.mxu0 %v5222
        %v8971 = vpop.f32.mrf.mxu0
        %v8972 = vadd.f32 %v8776, %v8971
        %v8973 = vpop.f32.mrf.mxu0
        %v8974 = vadd.f32 %v8778, %v8973
        %8975 = vmatmul.bf16.gmra.mxu0 %v5224
        %v8976 = vpop.f32.mrf.mxu0
        %v8977 = vadd.f32 %v8781, %v8976
        %v8978 = vpop.f32.mrf.mxu0
        %v8979 = vadd.f32 %v8783, %v8978
        %8980 = vmatmul.bf16.gmra.mxu0 %v5226
        %v8981 = vpop.f32.mrf.mxu0
        %v8982 = vadd.f32 %v8786, %v8981
        %v8983 = vpop.f32.mrf.mxu0
        %v8984 = vadd.f32 %v8788, %v8983
        %8985 = vmatmul.bf16.gmra.mxu0 %v5228
        %v8986 = vpop.f32.mrf.mxu0
        %v8987 = vadd.f32 %v8791, %v8986
        %v8988 = vpop.f32.mrf.mxu0
        %8989 = vdwg.mxu0
        %8990 = vmatpush.bf16.msra.mxu0 %v6094
        %8991 = vmatpush.bf16.msra.mxu0 %v6090
        %8992 = vmatpush.bf16.msra.mxu0 %v6086
        %8993 = vmatpush.bf16.msra.mxu0 %v6082
        %8994 = vmatpush.bf16.msra.mxu0 %v6078
        %8995 = vmatpush.bf16.msra.mxu0 %v6074
        %8996 = vmatpush.bf16.msra.mxu0 %v6070
        %8997 = vmatpush.bf16.msra.mxu0 %v6066
        %8998 = vmatmul.bf16.gmra.mxu0 %v5223
        %v8999 = vpop.f32.mrf.mxu0
        %v9000 = vadd.f32 %v8972, %v8999
        %v9001 = vpop.f32.mrf.mxu0
        %v9002 = vadd.f32 %v8974, %v9001
        %9003 = vmatmul.bf16.gmra.mxu0 %v5225
        %v9004 = vpop.f32.mrf.mxu0
        %v9005 = vadd.f32 %v8977, %v9004
        %v9006 = vpop.f32.mrf.mxu0
        %v9007 = vadd.f32 %v8979, %v9006
        %9008 = vmatmul.bf16.gmra.mxu0 %v5227
        %v9009 = vpop.f32.mrf.mxu0
        %v9010 = vadd.f32 %v8982, %v9009
        %v9011 = vpop.f32.mrf.mxu0
        %v9012 = vadd.f32 %v8984, %v9011
        %9013 = vmatmul.bf16.gmra.mxu0 %v5229
        %v9014 = vpop.f32.mrf.mxu0
        %v9015 = vadd.f32 %v8987, %v9014
        %v9016 = vpop.f32.mrf.mxu0
        %9017 = vdwg.mxu0
        %9018 = vmatpush.bf16.msra.mxu0 %v6763
        %9019 = vmatpush.bf16.msra.mxu0 %v6759
        %9020 = vmatpush.bf16.msra.mxu0 %v6755
        %9021 = vmatpush.bf16.msra.mxu0 %v6751
        %9022 = vmatpush.bf16.msra.mxu0 %v6747
        %9023 = vmatpush.bf16.msra.mxu0 %v6743
        %9024 = vmatpush.bf16.msra.mxu0 %v6739
        %9025 = vmatpush.bf16.msra.mxu0 %v6735
        %9026 = vmatmul.bf16.gmra.mxu0 %v7215
        %v9027 = vpop.f32.mrf.mxu0
        %v9028 = vadd.f32 0.0, %v9027
        %v9029 = vpop.f32.mrf.mxu0
        %v9030 = vadd.f32 0.0, %v9029
        %9031 = vmatmul.bf16.gmra.mxu0 %v7235
        %v9032 = vpop.f32.mrf.mxu0
        %v9033 = vadd.f32 0.0, %v9032
        %v9034 = vpop.f32.mrf.mxu0
        %v9035 = vadd.f32 0.0, %v9034
        %9036 = vmatmul.bf16.gmra.mxu0 %v7251
        %v9037 = vpop.f32.mrf.mxu0
        %v9038 = vadd.f32 0.0, %v9037
        %v9039 = vpop.f32.mrf.mxu0
        %v9040 = vadd.f32 0.0, %v9039
        %9041 = vmatmul.bf16.gmra.mxu0 %v7262
        %v9042 = vpop.f32.mrf.mxu0
        %v9043 = vadd.f32 0.0, %v9042
        %v9044 = vpop.f32.mrf.mxu0
        %9045 = vdwg.mxu0
        %9046 = vmatpush.bf16.msra.mxu0 %v6795
        %9047 = vmatpush.bf16.msra.mxu0 %v6791
        %9048 = vmatpush.bf16.msra.mxu0 %v6787
        %9049 = vmatpush.bf16.msra.mxu0 %v6783
        %9050 = vmatpush.bf16.msra.mxu0 %v6779
        %9051 = vmatpush.bf16.msra.mxu0 %v6775
        %9052 = vmatpush.bf16.msra.mxu0 %v6771
        %9053 = vmatpush.bf16.msra.mxu0 %v6767
        %9054 = vmatmul.bf16.gmra.mxu0 %v7227
        %v9055 = vpop.f32.mrf.mxu0
        %v9056 = vadd.f32 %v9028, %v9055
        %v9057 = vpop.f32.mrf.mxu0
        %v9058 = vadd.f32 %v9030, %v9057
        %9059 = vmatmul.bf16.gmra.mxu0 %v7243
        %v9060 = vpop.f32.mrf.mxu0
        %v9061 = vadd.f32 %v9033, %v9060
        %v9062 = vpop.f32.mrf.mxu0
        %v9063 = vadd.f32 %v9035, %v9062
        %9064 = vmatmul.bf16.gmra.mxu0 %v7259
        %v9065 = vpop.f32.mrf.mxu0
        %v9066 = vadd.f32 %v9038, %v9065
        %v9067 = vpop.f32.mrf.mxu0
        %v9068 = vadd.f32 %v9040, %v9067
        %9069 = vmatmul.bf16.gmra.mxu0 %v7265
        %v9070 = vpop.f32.mrf.mxu0
        %v9071 = vadd.f32 %v9043, %v9070
        %v9072 = vpop.f32.mrf.mxu0
        %9073 = vdwg.mxu0
        %9074 = vmatpush.bf16.msra.mxu0 %v6764
        %9075 = vmatpush.bf16.msra.mxu0 %v6760
        %9076 = vmatpush.bf16.msra.mxu0 %v6756
        %9077 = vmatpush.bf16.msra.mxu0 %v6752
        %9078 = vmatpush.bf16.msra.mxu0 %v6748
        %9079 = vmatpush.bf16.msra.mxu0 %v6744
        %9080 = vmatpush.bf16.msra.mxu0 %v6740
        %9081 = vmatpush.bf16.msra.mxu0 %v6736
        %9082 = vmatmul.bf16.gmra.mxu0 %v7215
        %v9083 = vpop.f32.mrf.mxu0
        %v9084 = vadd.f32 0.0, %v9083
        %v9085 = vpop.f32.mrf.mxu0
        %v9086 = vadd.f32 0.0, %v9085
        %9087 = vmatmul.bf16.gmra.mxu0 %v7235
        %v9088 = vpop.f32.mrf.mxu0
        %v9089 = vadd.f32 0.0, %v9088
        %v9090 = vpop.f32.mrf.mxu0
        %v9091 = vadd.f32 0.0, %v9090
        %9092 = vmatmul.bf16.gmra.mxu0 %v7251
        %v9093 = vpop.f32.mrf.mxu0
        %v9094 = vadd.f32 0.0, %v9093
        %v9095 = vpop.f32.mrf.mxu0
        %v9096 = vadd.f32 0.0, %v9095
        %9097 = vmatmul.bf16.gmra.mxu0 %v7262
        %v9098 = vpop.f32.mrf.mxu0
        %v9099 = vadd.f32 0.0, %v9098
        %v9100 = vpop.f32.mrf.mxu0
        %9101 = vdwg.mxu0
        %9102 = vmatpush.bf16.msra.mxu0 %v6796
        %9103 = vmatpush.bf16.msra.mxu0 %v6792
        %9104 = vmatpush.bf16.msra.mxu0 %v6788
        %9105 = vmatpush.bf16.msra.mxu0 %v6784
        %9106 = vmatpush.bf16.msra.mxu0 %v6780
        %9107 = vmatpush.bf16.msra.mxu0 %v6776
        %9108 = vmatpush.bf16.msra.mxu0 %v6772
        %9109 = vmatpush.bf16.msra.mxu0 %v6768
        %9110 = vmatmul.bf16.gmra.mxu0 %v7227
        %v9111 = vpop.f32.mrf.mxu0
        %v9112 = vadd.f32 %v9084, %v9111
        %v9113 = vpop.f32.mrf.mxu0
        %v9114 = vadd.f32 %v9086, %v9113
        %9115 = vmatmul.bf16.gmra.mxu0 %v7243
        %v9116 = vpop.f32.mrf.mxu0
        %v9117 = vadd.f32 %v9089, %v9116
        %v9118 = vpop.f32.mrf.mxu0
        %v9119 = vadd.f32 %v9091, %v9118
        %9120 = vmatmul.bf16.gmra.mxu0 %v7259
        %v9121 = vpop.f32.mrf.mxu0
        %v9122 = vadd.f32 %v9094, %v9121
        %v9123 = vpop.f32.mrf.mxu0
        %v9124 = vadd.f32 %v9096, %v9123
        %9125 = vmatmul.bf16.gmra.mxu0 %v7265
        %v9126 = vpop.f32.mrf.mxu0
        %v9127 = vadd.f32 %v9099, %v9126
        %v9128 = vpop.f32.mrf.mxu0
        %9129 = vdwg.mxu0
        %9130 = vmatpush.bf16.msra.mxu0 %v6765
        %9131 = vmatpush.bf16.msra.mxu0 %v6761
        %9132 = vmatpush.bf16.msra.mxu0 %v6757
        %9133 = vmatpush.bf16.msra.mxu0 %v6753
        %9134 = vmatpush.bf16.msra.mxu0 %v6749
        %9135 = vmatpush.bf16.msra.mxu0 %v6745
        %9136 = vmatpush.bf16.msra.mxu0 %v6741
        %9137 = vmatpush.bf16.msra.mxu0 %v6737
        %9138 = vmatmul.bf16.gmra.mxu0 %v7215
        %v9139 = vpop.f32.mrf.mxu0
        %v9140 = vadd.f32 0.0, %v9139
        %v9141 = vpop.f32.mrf.mxu0
        %v9142 = vadd.f32 0.0, %v9141
        %9143 = vmatmul.bf16.gmra.mxu0 %v7235
        %v9144 = vpop.f32.mrf.mxu0
        %v9145 = vadd.f32 0.0, %v9144
        %v9146 = vpop.f32.mrf.mxu0
        %v9147 = vadd.f32 0.0, %v9146
        %9148 = vmatmul.bf16.gmra.mxu0 %v7251
        %v9149 = vpop.f32.mrf.mxu0
        %v9150 = vadd.f32 0.0, %v9149
        %v9151 = vpop.f32.mrf.mxu0
        %v9152 = vadd.f32 0.0, %v9151
        %9153 = vmatmul.bf16.gmra.mxu0 %v7262
        %v9154 = vpop.f32.mrf.mxu0
        %v9155 = vadd.f32 0.0, %v9154
        %v9156 = vpop.f32.mrf.mxu0
        %9157 = vdwg.mxu0
        %9158 = vmatpush.bf16.msra.mxu0 %v6797
        %9159 = vmatpush.bf16.msra.mxu0 %v6793
        %9160 = vmatpush.bf16.msra.mxu0 %v6789
        %9161 = vmatpush.bf16.msra.mxu0 %v6785
        %9162 = vmatpush.bf16.msra.mxu0 %v6781
        %9163 = vmatpush.bf16.msra.mxu0 %v6777
        %9164 = vmatpush.bf16.msra.mxu0 %v6773
        %9165 = vmatpush.bf16.msra.mxu0 %v6769
        %9166 = vmatmul.bf16.gmra.mxu0 %v7227
        %v9167 = vpop.f32.mrf.mxu0
        %v9168 = vadd.f32 %v9140, %v9167
        %v9169 = vpop.f32.mrf.mxu0
        %v9170 = vadd.f32 %v9142, %v9169
        %9171 = vmatmul.bf16.gmra.mxu0 %v7243
        %v9172 = vpop.f32.mrf.mxu0
        %v9173 = vadd.f32 %v9145, %v9172
        %v9174 = vpop.f32.mrf.mxu0
        %v9175 = vadd.f32 %v9147, %v9174
        %9176 = vmatmul.bf16.gmra.mxu0 %v7259
        %v9177 = vpop.f32.mrf.mxu0
        %v9178 = vadd.f32 %v9150, %v9177
        %v9179 = vpop.f32.mrf.mxu0
        %v9180 = vadd.f32 %v9152, %v9179
        %9181 = vmatmul.bf16.gmra.mxu0 %v7265
        %v9182 = vpop.f32.mrf.mxu0
        %v9183 = vadd.f32 %v9155, %v9182
        %v9184 = vpop.f32.mrf.mxu0
        %9185 = vdwg.mxu0
        %9186 = vmatpush.bf16.msra.mxu0 %v6766
        %9187 = vmatpush.bf16.msra.mxu0 %v6762
        %9188 = vmatpush.bf16.msra.mxu0 %v6758
        %9189 = vmatpush.bf16.msra.mxu0 %v6754
        %9190 = vmatpush.bf16.msra.mxu0 %v6750
        %9191 = vmatpush.bf16.msra.mxu0 %v6746
        %9192 = vmatpush.bf16.msra.mxu0 %v6742
        %9193 = vmatpush.bf16.msra.mxu0 %v6738
        %9194 = vmatmul.bf16.gmra.mxu0 %v7215
        %v9195 = vpop.f32.mrf.mxu0
        %v9196 = vadd.f32 0.0, %v9195
        %v9197 = vpop.f32.mrf.mxu0
        %v9198 = vadd.f32 0.0, %v9197
        %9199 = vmatmul.bf16.gmra.mxu0 %v7235
        %v9200 = vpop.f32.mrf.mxu0
        %v9201 = vadd.f32 0.0, %v9200
        %v9202 = vpop.f32.mrf.mxu0
        %v9203 = vadd.f32 0.0, %v9202
        %9204 = vmatmul.bf16.gmra.mxu0 %v7251
        %v9205 = vpop.f32.mrf.mxu0
        %v9206 = vadd.f32 0.0, %v9205
        %v9207 = vpop.f32.mrf.mxu0
        %v9208 = vadd.f32 0.0, %v9207
        %9209 = vmatmul.bf16.gmra.mxu0 %v7262
        %v9210 = vpop.f32.mrf.mxu0
        %v9211 = vadd.f32 0.0, %v9210
        %v9212 = vpop.f32.mrf.mxu0
        %9213 = vdwg.mxu0
        %9214 = vmatpush.bf16.msra.mxu0 %v6798
        %9215 = vmatpush.bf16.msra.mxu0 %v6794
        %9216 = vmatpush.bf16.msra.mxu0 %v6790
        %9217 = vmatpush.bf16.msra.mxu0 %v6786
        %9218 = vmatpush.bf16.msra.mxu0 %v6782
        %9219 = vmatpush.bf16.msra.mxu0 %v6778
        %9220 = vmatpush.bf16.msra.mxu0 %v6774
        %9221 = vmatpush.bf16.msra.mxu0 %v6770
        %9222 = vmatmul.bf16.gmra.mxu0 %v7227
        %v9223 = vpop.f32.mrf.mxu0
        %v9224 = vadd.f32 %v9196, %v9223
        %v9225 = vpop.f32.mrf.mxu0
        %v9226 = vadd.f32 %v9198, %v9225
        %9227 = vmatmul.bf16.gmra.mxu0 %v7243
        %v9228 = vpop.f32.mrf.mxu0
        %v9229 = vadd.f32 %v9201, %v9228
        %v9230 = vpop.f32.mrf.mxu0
        %v9231 = vadd.f32 %v9203, %v9230
        %9232 = vmatmul.bf16.gmra.mxu0 %v7259
        %v9233 = vpop.f32.mrf.mxu0
        %v9234 = vadd.f32 %v9206, %v9233
        %v9235 = vpop.f32.mrf.mxu0
        %v9236 = vadd.f32 %v9208, %v9235
        %9237 = vmatmul.bf16.gmra.mxu0 %v7265
        %v9238 = vpop.f32.mrf.mxu0
        %v9239 = vadd.f32 %v9211, %v9238
        %v9240 = vpop.f32.mrf.mxu0
        %9241 = vdwg.mxu0
        %v9242 = vadd.f32 %v8832, %v9056
        %v9243 = vadd.f32 %v8888, %v9112
        %v9244 = vadd.f32 %v8944, %v9168
        %v9245 = vadd.f32 %v9000, %v9224
        %v9246 = vadd.f32 %v8834, %v9058
        %v9247 = vadd.f32 %v8890, %v9114
        %v9248 = vadd.f32 %v8946, %v9170
        %v9249 = vadd.f32 %v9002, %v9226
        %v9250 = vadd.f32 %v8837, %v9061
        %v9251 = vadd.f32 %v8893, %v9117
        %v9252 = vadd.f32 %v8949, %v9173
        %v9253 = vadd.f32 %v9005, %v9229
        %v9254 = vadd.f32 %v8839, %v9063
        %v9255 = vadd.f32 %v8895, %v9119
        %v9256 = vadd.f32 %v8951, %v9175
        %v9257 = vadd.f32 %v9007, %v9231
        %v9258 = vadd.f32 %v8842, %v9066
        %v9259 = vadd.f32 %v8898, %v9122
        %v9260 = vadd.f32 %v8954, %v9178
        %v9261 = vadd.f32 %v9010, %v9234
        %v9262 = vadd.f32 %v8844, %v9068
        %v9263 = vadd.f32 %v8900, %v9124
        %v9264 = vadd.f32 %v8956, %v9180
        %v9265 = vadd.f32 %v9012, %v9236
        %v9266 = vadd.f32 %v8847, %v9071
        %v9267 = vadd.f32 %v8903, %v9127
        %v9268 = vadd.f32 %v8959, %v9183
        %v9269 = vadd.f32 %v9015, %v9239
        %9270 = vmatpush.bf16.msra.mxu0 %v7494
        %9271 = vmatpush.bf16.msra.mxu0 %v7490
        %9272 = vmatpush.bf16.msra.mxu0 %v7486
        %9273 = vmatpush.bf16.msra.mxu0 %v7482
        %9274 = vmatpush.bf16.msra.mxu0 %v7478
        %9275 = vmatpush.bf16.msra.mxu0 %v7474
        %9276 = vmatpush.bf16.msra.mxu0 %v7470
        %9277 = vmatpush.bf16.msra.mxu0 %v7466
        %9278 = vmatmul.bf16.gmra.mxu0 %v7930
        %v9279 = vpop.f32.mrf.mxu0
        %v9280 = vadd.f32 0.0, %v9279
        %v9281 = vpop.f32.mrf.mxu0
        %v9282 = vadd.f32 0.0, %v9281
        %9283 = vmatmul.bf16.gmra.mxu0 %v7935
        %v9284 = vpop.f32.mrf.mxu0
        %v9285 = vadd.f32 0.0, %v9284
        %v9286 = vpop.f32.mrf.mxu0
        %v9287 = vadd.f32 0.0, %v9286
        %9288 = vmatmul.bf16.gmra.mxu0 %v7939
        %v9289 = vpop.f32.mrf.mxu0
        %v9290 = vadd.f32 0.0, %v9289
        %v9291 = vpop.f32.mrf.mxu0
        %v9292 = vadd.f32 0.0, %v9291
        %9293 = vmatmul.bf16.gmra.mxu0 %v7938
        %v9294 = vpop.f32.mrf.mxu0
        %v9295 = vadd.f32 0.0, %v9294
        %v9296 = vpop.f32.mrf.mxu0
        %9297 = vdwg.mxu0
        %9298 = vmatpush.bf16.msra.mxu0 %v7526
        %9299 = vmatpush.bf16.msra.mxu0 %v7522
        %9300 = vmatpush.bf16.msra.mxu0 %v7518
        %9301 = vmatpush.bf16.msra.mxu0 %v7514
        %9302 = vmatpush.bf16.msra.mxu0 %v7510
        %9303 = vmatpush.bf16.msra.mxu0 %v7506
        %9304 = vmatpush.bf16.msra.mxu0 %v7502
        %9305 = vmatpush.bf16.msra.mxu0 %v7498
        %9306 = vmatmul.bf16.gmra.mxu0 %v7933
        %v9307 = vpop.f32.mrf.mxu0
        %v9308 = vadd.f32 %v9280, %v9307
        %v9309 = vpop.f32.mrf.mxu0
        %v9310 = vadd.f32 %v9282, %v9309
        %9311 = vmatmul.bf16.gmra.mxu0 %v7937
        %v9312 = vpop.f32.mrf.mxu0
        %v9313 = vadd.f32 %v9285, %v9312
        %v9314 = vpop.f32.mrf.mxu0
        %v9315 = vadd.f32 %v9287, %v9314
        %9316 = vmatmul.bf16.gmra.mxu0 %v7941
        %v9317 = vpop.f32.mrf.mxu0
        %v9318 = vadd.f32 %v9290, %v9317
        %v9319 = vpop.f32.mrf.mxu0
        %v9320 = vadd.f32 %v9292, %v9319
        %9321 = vmatmul.bf16.gmra.mxu0 %v7940
        %v9322 = vpop.f32.mrf.mxu0
        %v9323 = vadd.f32 %v9295, %v9322
        %v9324 = vpop.f32.mrf.mxu0
        %9325 = vdwg.mxu0
        %9326 = vmatpush.bf16.msra.mxu0 %v7495
        %9327 = vmatpush.bf16.msra.mxu0 %v7491
        %9328 = vmatpush.bf16.msra.mxu0 %v7487
        %9329 = vmatpush.bf16.msra.mxu0 %v7483
        %9330 = vmatpush.bf16.msra.mxu0 %v7479
        %9331 = vmatpush.bf16.msra.mxu0 %v7475
        %9332 = vmatpush.bf16.msra.mxu0 %v7471
        %9333 = vmatpush.bf16.msra.mxu0 %v7467
        %9334 = vmatmul.bf16.gmra.mxu0 %v7930
        %v9335 = vpop.f32.mrf.mxu0
        %v9336 = vadd.f32 0.0, %v9335
        %v9337 = vpop.f32.mrf.mxu0
        %v9338 = vadd.f32 0.0, %v9337
        %9339 = vmatmul.bf16.gmra.mxu0 %v7935
        %v9340 = vpop.f32.mrf.mxu0
        %v9341 = vadd.f32 0.0, %v9340
        %v9342 = vpop.f32.mrf.mxu0
        %v9343 = vadd.f32 0.0, %v9342
        %9344 = vmatmul.bf16.gmra.mxu0 %v7939
        %v9345 = vpop.f32.mrf.mxu0
        %v9346 = vadd.f32 0.0, %v9345
        %v9347 = vpop.f32.mrf.mxu0
        %v9348 = vadd.f32 0.0, %v9347
        %9349 = vmatmul.bf16.gmra.mxu0 %v7938
        %v9350 = vpop.f32.mrf.mxu0
        %v9351 = vadd.f32 0.0, %v9350
        %v9352 = vpop.f32.mrf.mxu0
        %9353 = vdwg.mxu0
        %9354 = vmatpush.bf16.msra.mxu0 %v7527
        %9355 = vmatpush.bf16.msra.mxu0 %v7523
        %9356 = vmatpush.bf16.msra.mxu0 %v7519
        %9357 = vmatpush.bf16.msra.mxu0 %v7515
        %9358 = vmatpush.bf16.msra.mxu0 %v7511
        %9359 = vmatpush.bf16.msra.mxu0 %v7507
        %9360 = vmatpush.bf16.msra.mxu0 %v7503
        %9361 = vmatpush.bf16.msra.mxu0 %v7499
        %9362 = vmatmul.bf16.gmra.mxu0 %v7933
        %v9363 = vpop.f32.mrf.mxu0
        %v9364 = vadd.f32 %v9336, %v9363
        %v9365 = vpop.f32.mrf.mxu0
        %v9366 = vadd.f32 %v9338, %v9365
        %9367 = vmatmul.bf16.gmra.mxu0 %v7937
        %v9368 = vpop.f32.mrf.mxu0
        %v9369 = vadd.f32 %v9341, %v9368
        %v9370 = vpop.f32.mrf.mxu0
        %v9371 = vadd.f32 %v9343, %v9370
        %9372 = vmatmul.bf16.gmra.mxu0 %v7941
        %v9373 = vpop.f32.mrf.mxu0
        %v9374 = vadd.f32 %v9346, %v9373
        %v9375 = vpop.f32.mrf.mxu0
        %v9376 = vadd.f32 %v9348, %v9375
        %9377 = vmatmul.bf16.gmra.mxu0 %v7940
        %v9378 = vpop.f32.mrf.mxu0
        %v9379 = vadd.f32 %v9351, %v9378
        %v9380 = vpop.f32.mrf.mxu0
        %9381 = vdwg.mxu0
        %9382 = vmatpush.bf16.msra.mxu0 %v7496
        %9383 = vmatpush.bf16.msra.mxu0 %v7492
        %9384 = vmatpush.bf16.msra.mxu0 %v7488
        %9385 = vmatpush.bf16.msra.mxu0 %v7484
        %9386 = vmatpush.bf16.msra.mxu0 %v7480
        %9387 = vmatpush.bf16.msra.mxu0 %v7476
        %9388 = vmatpush.bf16.msra.mxu0 %v7472
        %9389 = vmatpush.bf16.msra.mxu0 %v7468
        %9390 = vmatmul.bf16.gmra.mxu0 %v7930
        %v9391 = vpop.f32.mrf.mxu0
        %v9392 = vadd.f32 0.0, %v9391
        %v9393 = vpop.f32.mrf.mxu0
        %v9394 = vadd.f32 0.0, %v9393
        %9395 = vmatmul.bf16.gmra.mxu0 %v7935
        %v9396 = vpop.f32.mrf.mxu0
        %v9397 = vadd.f32 0.0, %v9396
        %v9398 = vpop.f32.mrf.mxu0
        %v9399 = vadd.f32 0.0, %v9398
        %9400 = vmatmul.bf16.gmra.mxu0 %v7939
        %v9401 = vpop.f32.mrf.mxu0
        %v9402 = vadd.f32 0.0, %v9401
        %v9403 = vpop.f32.mrf.mxu0
        %v9404 = vadd.f32 0.0, %v9403
        %9405 = vmatmul.bf16.gmra.mxu0 %v7938
        %v9406 = vpop.f32.mrf.mxu0
        %v9407 = vadd.f32 0.0, %v9406
        %v9408 = vpop.f32.mrf.mxu0
        %9409 = vdwg.mxu0
        %9410 = vmatpush.bf16.msra.mxu0 %v7528
        %9411 = vmatpush.bf16.msra.mxu0 %v7524
        %9412 = vmatpush.bf16.msra.mxu0 %v7520
        %9413 = vmatpush.bf16.msra.mxu0 %v7516
        %9414 = vmatpush.bf16.msra.mxu0 %v7512
        %9415 = vmatpush.bf16.msra.mxu0 %v7508
        %9416 = vmatpush.bf16.msra.mxu0 %v7504
        %9417 = vmatpush.bf16.msra.mxu0 %v7500
        %9418 = vmatmul.bf16.gmra.mxu0 %v7933
        %v9419 = vpop.f32.mrf.mxu0
        %v9420 = vadd.f32 %v9392, %v9419
        %v9421 = vpop.f32.mrf.mxu0
        %v9422 = vadd.f32 %v9394, %v9421
        %9423 = vmatmul.bf16.gmra.mxu0 %v7937
        %v9424 = vpop.f32.mrf.mxu0
        %v9425 = vadd.f32 %v9397, %v9424
        %v9426 = vpop.f32.mrf.mxu0
        %v9427 = vadd.f32 %v9399, %v9426
        %9428 = vmatmul.bf16.gmra.mxu0 %v7941
        %v9429 = vpop.f32.mrf.mxu0
        %v9430 = vadd.f32 %v9402, %v9429
        %v9431 = vpop.f32.mrf.mxu0
        %v9432 = vadd.f32 %v9404, %v9431
        %9433 = vmatmul.bf16.gmra.mxu0 %v7940
        %v9434 = vpop.f32.mrf.mxu0
        %v9435 = vadd.f32 %v9407, %v9434
        %v9436 = vpop.f32.mrf.mxu0
        %9437 = vdwg.mxu0
        %9438 = vmatpush.bf16.msra.mxu0 %v7497
        %9439 = vmatpush.bf16.msra.mxu0 %v7493
        %9440 = vmatpush.bf16.msra.mxu0 %v7489
        %9441 = vmatpush.bf16.msra.mxu0 %v7485
        %9442 = vmatpush.bf16.msra.mxu0 %v7481
        %9443 = vmatpush.bf16.msra.mxu0 %v7477
        %9444 = vmatpush.bf16.msra.mxu0 %v7473
        %9445 = vmatpush.bf16.msra.mxu0 %v7469
        %9446 = vmatmul.bf16.gmra.mxu0 %v7930
        %v9447 = vpop.f32.mrf.mxu0
        %v9448 = vadd.f32 0.0, %v9447
        %v9449 = vpop.f32.mrf.mxu0
        %v9450 = vadd.f32 0.0, %v9449
        %9451 = vmatmul.bf16.gmra.mxu0 %v7935
        %v9452 = vpop.f32.mrf.mxu0
        %v9453 = vadd.f32 0.0, %v9452
        %v9454 = vpop.f32.mrf.mxu0
        %v9455 = vadd.f32 0.0, %v9454
        %9456 = vmatmul.bf16.gmra.mxu0 %v7939
        %v9457 = vpop.f32.mrf.mxu0
        %v9458 = vadd.f32 0.0, %v9457
        %v9459 = vpop.f32.mrf.mxu0
        %v9460 = vadd.f32 0.0, %v9459
        %9461 = vmatmul.bf16.gmra.mxu0 %v7938
        %v9462 = vpop.f32.mrf.mxu0
        %v9463 = vadd.f32 0.0, %v9462
        %v9464 = vpop.f32.mrf.mxu0
        %9465 = vdwg.mxu0
        %9466 = vmatpush.bf16.msra.mxu0 %v7529
        %9467 = vmatpush.bf16.msra.mxu0 %v7525
        %9468 = vmatpush.bf16.msra.mxu0 %v7521
        %9469 = vmatpush.bf16.msra.mxu0 %v7517
        %9470 = vmatpush.bf16.msra.mxu0 %v7513
        %9471 = vmatpush.bf16.msra.mxu0 %v7509
        %9472 = vmatpush.bf16.msra.mxu0 %v7505
        %9473 = vmatpush.bf16.msra.mxu0 %v7501
        %9474 = vmatmul.bf16.gmra.mxu0 %v7933
        %v9475 = vpop.f32.mrf.mxu0
        %v9476 = vadd.f32 %v9448, %v9475
        %v9477 = vpop.f32.mrf.mxu0
        %v9478 = vadd.f32 %v9450, %v9477
        %9479 = vmatmul.bf16.gmra.mxu0 %v7937
        %v9480 = vpop.f32.mrf.mxu0
        %v9481 = vadd.f32 %v9453, %v9480
        %v9482 = vpop.f32.mrf.mxu0
        %v9483 = vadd.f32 %v9455, %v9482
        %9484 = vmatmul.bf16.gmra.mxu0 %v7941
        %v9485 = vpop.f32.mrf.mxu0
        %v9486 = vadd.f32 %v9458, %v9485
        %v9487 = vpop.f32.mrf.mxu0
        %v9488 = vadd.f32 %v9460, %v9487
        %9489 = vmatmul.bf16.gmra.mxu0 %v7940
        %v9490 = vpop.f32.mrf.mxu0
        %v9491 = vadd.f32 %v9463, %v9490
        %v9492 = vpop.f32.mrf.mxu0
        %9493 = vdwg.mxu0
        %v9494 = vadd.f32 %v9242, %v9308
        %v9495 = vadd.f32 %v9243, %v9364
        %v9496 = vadd.f32 %v9244, %v9420
        %v9497 = vadd.f32 %v9245, %v9476
        %v9498 = vadd.f32 %v9246, %v9310
        %v9499 = vadd.f32 %v9247, %v9366
        %v9500 = vadd.f32 %v9248, %v9422
        %v9501 = vadd.f32 %v9249, %v9478
        %v9502 = vadd.f32 %v9250, %v9313
        %v9503 = vadd.f32 %v9251, %v9369
        %v9504 = vadd.f32 %v9252, %v9425
        %v9505 = vadd.f32 %v9253, %v9481
        %v9506 = vadd.f32 %v9254, %v9315
        %v9507 = vadd.f32 %v9255, %v9371
        %v9508 = vadd.f32 %v9256, %v9427
        %v9509 = vadd.f32 %v9257, %v9483
        %v9510 = vadd.f32 %v9258, %v9318
        %v9511 = vadd.f32 %v9259, %v9374
        %v9512 = vadd.f32 %v9260, %v9430
        %v9513 = vadd.f32 %v9261, %v9486
        %v9514 = vadd.f32 %v9262, %v9320
        %v9515 = vadd.f32 %v9263, %v9376
        %v9516 = vadd.f32 %v9264, %v9432
        %v9517 = vadd.f32 %v9265, %v9488
        %v9518 = vadd.f32 %v9266, %v9323
        %v9519 = vadd.f32 %v9267, %v9379
        %v9520 = vadd.f32 %v9268, %v9435
        %v9521 = vadd.f32 %v9269, %v9491
        %v9522 = vld [vmem:[%s311] sm:$0xfc]
        %v9523 = vld [vmem:[%s311 + $0x8] sm:$0xfc]
        %v9524 = vld [vmem:[%s311 + $0x70] sm:$0x3]
        %v9525 = vld [vmem:[%s311 + $0x78] sm:$0x3]
        %v9526 = vpack.c.bf16 %v7117, %v9522
        %v9527 = vpack.c.bf16 %v7118, %v9523
        %v9528 = vpack.c.bf16 %v9524, %v7127
        %v9529 = vpack.c.bf16 %v9525, %v7128
        %v9538 = vrot.slane %v9526, 1
        %v9539 = vrot.slane %v7133, 1
        %v9540 = vsel %vm7927, %v9538, %v9539
        %v9541 = vrot.slane %v9527, 1
        %v9542 = vrot.slane %v7134, 1
        %v9543 = vsel %vm7927, %v9541, %v9542
        %v9544 = vrot.slane %v7135, 1
        %v9545 = vsel %vm7927, %v9539, %v9544
        %v9546 = vrot.slane %v7136, 1
        %v9547 = vsel %vm7927, %v9542, %v9546
        %v9548 = vrot.slane %v9528, 1
        %v9549 = vsel %vm7927, %v9544, %v9548
        %v9550 = vrot.slane %v9529, 1
        %v9551 = vsel %vm7927, %v9546, %v9550
        %9560 = vmatpush.bf16.msra.mxu0 %v8170
        %9561 = vmatpush.bf16.msra.mxu0 %v8166
        %9562 = vmatpush.bf16.msra.mxu0 %v8162
        %9563 = vmatpush.bf16.msra.mxu0 %v8158
        %9564 = vmatpush.bf16.msra.mxu0 %v8154
        %9565 = vmatpush.bf16.msra.mxu0 %v8150
        %9566 = vmatpush.bf16.msra.mxu0 %v8146
        %9567 = vmatpush.bf16.msra.mxu0 %v8142
        %9568 = vmatmul.bf16.gmra.mxu0 %v9540
        %v9569 = vpop.f32.mrf.mxu0
        %v9570 = vadd.f32 0.0, %v9569
        %v9571 = vpop.f32.mrf.mxu0
        %v9572 = vadd.f32 0.0, %v9571
        %9573 = vmatmul.bf16.gmra.mxu0 %v9545
        %v9574 = vpop.f32.mrf.mxu0
        %v9575 = vadd.f32 0.0, %v9574
        %v9576 = vpop.f32.mrf.mxu0
        %v9577 = vadd.f32 0.0, %v9576
        %9578 = vmatmul.bf16.gmra.mxu0 %v9549
        %v9579 = vpop.f32.mrf.mxu0
        %v9580 = vadd.f32 0.0, %v9579
        %v9581 = vpop.f32.mrf.mxu0
        %v9582 = vadd.f32 0.0, %v9581
        %9583 = vmatmul.bf16.gmra.mxu0 %v9548
        %v9584 = vpop.f32.mrf.mxu0
        %v9585 = vadd.f32 0.0, %v9584
        %v9586 = vpop.f32.mrf.mxu0
        %9587 = vdwg.mxu0
        %9588 = vmatpush.bf16.msra.mxu0 %v8202
        %9589 = vmatpush.bf16.msra.mxu0 %v8198
        %9590 = vmatpush.bf16.msra.mxu0 %v8194
        %9591 = vmatpush.bf16.msra.mxu0 %v8190
        %9592 = vmatpush.bf16.msra.mxu0 %v8186
        %9593 = vmatpush.bf16.msra.mxu0 %v8182
        %9594 = vmatpush.bf16.msra.mxu0 %v8178
        %9595 = vmatpush.bf16.msra.mxu0 %v8174
        %9596 = vmatmul.bf16.gmra.mxu0 %v9543
        %v9597 = vpop.f32.mrf.mxu0
        %v9598 = vadd.f32 %v9570, %v9597
        %v9599 = vpop.f32.mrf.mxu0
        %v9600 = vadd.f32 %v9572, %v9599
        %9601 = vmatmul.bf16.gmra.mxu0 %v9547
        %v9602 = vpop.f32.mrf.mxu0
        %v9603 = vadd.f32 %v9575, %v9602
        %v9604 = vpop.f32.mrf.mxu0
        %v9605 = vadd.f32 %v9577, %v9604
        %9606 = vmatmul.bf16.gmra.mxu0 %v9551
        %v9607 = vpop.f32.mrf.mxu0
        %v9608 = vadd.f32 %v9580, %v9607
        %v9609 = vpop.f32.mrf.mxu0
        %v9610 = vadd.f32 %v9582, %v9609
        %9611 = vmatmul.bf16.gmra.mxu0 %v9550
        %v9612 = vpop.f32.mrf.mxu0
        %v9613 = vadd.f32 %v9585, %v9612
        %v9614 = vpop.f32.mrf.mxu0
        %9615 = vdwg.mxu0
        %9616 = vmatpush.bf16.msra.mxu0 %v8171
        %9617 = vmatpush.bf16.msra.mxu0 %v8167
        %9618 = vmatpush.bf16.msra.mxu0 %v8163
        %9619 = vmatpush.bf16.msra.mxu0 %v8159
        %9620 = vmatpush.bf16.msra.mxu0 %v8155
        %9621 = vmatpush.bf16.msra.mxu0 %v8151
        %9622 = vmatpush.bf16.msra.mxu0 %v8147
        %9623 = vmatpush.bf16.msra.mxu0 %v8143
        %9624 = vmatmul.bf16.gmra.mxu0 %v9540
        %v9625 = vpop.f32.mrf.mxu0
        %v9626 = vadd.f32 0.0, %v9625
        %v9627 = vpop.f32.mrf.mxu0
        %v9628 = vadd.f32 0.0, %v9627
        %9629 = vmatmul.bf16.gmra.mxu0 %v9545
        %v9630 = vpop.f32.mrf.mxu0
        %v9631 = vadd.f32 0.0, %v9630
        %v9632 = vpop.f32.mrf.mxu0
        %v9633 = vadd.f32 0.0, %v9632
        %9634 = vmatmul.bf16.gmra.mxu0 %v9549
        %v9635 = vpop.f32.mrf.mxu0
        %v9636 = vadd.f32 0.0, %v9635
        %v9637 = vpop.f32.mrf.mxu0
        %v9638 = vadd.f32 0.0, %v9637
        %9639 = vmatmul.bf16.gmra.mxu0 %v9548
        %v9640 = vpop.f32.mrf.mxu0
        %v9641 = vadd.f32 0.0, %v9640
        %v9642 = vpop.f32.mrf.mxu0
        %9643 = vdwg.mxu0
        %9644 = vmatpush.bf16.msra.mxu0 %v8203
        %9645 = vmatpush.bf16.msra.mxu0 %v8199
        %9646 = vmatpush.bf16.msra.mxu0 %v8195
        %9647 = vmatpush.bf16.msra.mxu0 %v8191
        %9648 = vmatpush.bf16.msra.mxu0 %v8187
        %9649 = vmatpush.bf16.msra.mxu0 %v8183
        %9650 = vmatpush.bf16.msra.mxu0 %v8179
        %9651 = vmatpush.bf16.msra.mxu0 %v8175
        %9652 = vmatmul.bf16.gmra.mxu0 %v9543
        %v9653 = vpop.f32.mrf.mxu0
        %v9654 = vadd.f32 %v9626, %v9653
        %v9655 = vpop.f32.mrf.mxu0
        %v9656 = vadd.f32 %v9628, %v9655
        %9657 = vmatmul.bf16.gmra.mxu0 %v9547
        %v9658 = vpop.f32.mrf.mxu0
        %v9659 = vadd.f32 %v9631, %v9658
        %v9660 = vpop.f32.mrf.mxu0
        %v9661 = vadd.f32 %v9633, %v9660
        %9662 = vmatmul.bf16.gmra.mxu0 %v9551
        %v9663 = vpop.f32.mrf.mxu0
        %v9664 = vadd.f32 %v9636, %v9663
        %v9665 = vpop.f32.mrf.mxu0
        %v9666 = vadd.f32 %v9638, %v9665
        %9667 = vmatmul.bf16.gmra.mxu0 %v9550
        %v9668 = vpop.f32.mrf.mxu0
        %v9669 = vadd.f32 %v9641, %v9668
        %v9670 = vpop.f32.mrf.mxu0
        %9671 = vdwg.mxu0
        %9672 = vmatpush.bf16.msra.mxu0 %v8172
        %9673 = vmatpush.bf16.msra.mxu0 %v8168
        %9674 = vmatpush.bf16.msra.mxu0 %v8164
        %9675 = vmatpush.bf16.msra.mxu0 %v8160
        %9676 = vmatpush.bf16.msra.mxu0 %v8156
        %9677 = vmatpush.bf16.msra.mxu0 %v8152
        %9678 = vmatpush.bf16.msra.mxu0 %v8148
        %9679 = vmatpush.bf16.msra.mxu0 %v8144
        %9680 = vmatmul.bf16.gmra.mxu0 %v9540
        %v9681 = vpop.f32.mrf.mxu0
        %v9682 = vadd.f32 0.0, %v9681
        %v9683 = vpop.f32.mrf.mxu0
        %v9684 = vadd.f32 0.0, %v9683
        %9685 = vmatmul.bf16.gmra.mxu0 %v9545
        %v9686 = vpop.f32.mrf.mxu0
        %v9687 = vadd.f32 0.0, %v9686
        %v9688 = vpop.f32.mrf.mxu0
        %v9689 = vadd.f32 0.0, %v9688
        %9690 = vmatmul.bf16.gmra.mxu0 %v9549
        %v9691 = vpop.f32.mrf.mxu0
        %v9692 = vadd.f32 0.0, %v9691
        %v9693 = vpop.f32.mrf.mxu0
        %v9694 = vadd.f32 0.0, %v9693
        %9695 = vmatmul.bf16.gmra.mxu0 %v9548
        %v9696 = vpop.f32.mrf.mxu0
        %v9697 = vadd.f32 0.0, %v9696
        %v9698 = vpop.f32.mrf.mxu0
        %9699 = vdwg.mxu0
        %9700 = vmatpush.bf16.msra.mxu0 %v8204
        %9701 = vmatpush.bf16.msra.mxu0 %v8200
        %9702 = vmatpush.bf16.msra.mxu0 %v8196
        %9703 = vmatpush.bf16.msra.mxu0 %v8192
        %9704 = vmatpush.bf16.msra.mxu0 %v8188
        %9705 = vmatpush.bf16.msra.mxu0 %v8184
        %9706 = vmatpush.bf16.msra.mxu0 %v8180
        %9707 = vmatpush.bf16.msra.mxu0 %v8176
        %9708 = vmatmul.bf16.gmra.mxu0 %v9543
        %v9709 = vpop.f32.mrf.mxu0
        %v9710 = vadd.f32 %v9682, %v9709
        %v9711 = vpop.f32.mrf.mxu0
        %v9712 = vadd.f32 %v9684, %v9711
        %9713 = vmatmul.bf16.gmra.mxu0 %v9547
        %v9714 = vpop.f32.mrf.mxu0
        %v9715 = vadd.f32 %v9687, %v9714
        %v9716 = vpop.f32.mrf.mxu0
        %v9717 = vadd.f32 %v9689, %v9716
        %9718 = vmatmul.bf16.gmra.mxu0 %v9551
        %v9719 = vpop.f32.mrf.mxu0
        %v9720 = vadd.f32 %v9692, %v9719
        %v9721 = vpop.f32.mrf.mxu0
        %v9722 = vadd.f32 %v9694, %v9721
        %9723 = vmatmul.bf16.gmra.mxu0 %v9550
        %v9724 = vpop.f32.mrf.mxu0
        %v9725 = vadd.f32 %v9697, %v9724
        %v9726 = vpop.f32.mrf.mxu0
        %9727 = vdwg.mxu0
        %9728 = vmatpush.bf16.msra.mxu0 %v8173
        %9729 = vmatpush.bf16.msra.mxu0 %v8169
        %9730 = vmatpush.bf16.msra.mxu0 %v8165
        %9731 = vmatpush.bf16.msra.mxu0 %v8161
        %9732 = vmatpush.bf16.msra.mxu0 %v8157
        %9733 = vmatpush.bf16.msra.mxu0 %v8153
        %9734 = vmatpush.bf16.msra.mxu0 %v8149
        %9735 = vmatpush.bf16.msra.mxu0 %v8145
        %9736 = vmatmul.bf16.gmra.mxu0 %v9540
        %v9737 = vpop.f32.mrf.mxu0
        %v9738 = vadd.f32 0.0, %v9737
        %v9739 = vpop.f32.mrf.mxu0
        %v9740 = vadd.f32 0.0, %v9739
        %9741 = vmatmul.bf16.gmra.mxu0 %v9545
        %v9742 = vpop.f32.mrf.mxu0
        %v9743 = vadd.f32 0.0, %v9742
        %v9744 = vpop.f32.mrf.mxu0
        %v9745 = vadd.f32 0.0, %v9744
        %9746 = vmatmul.bf16.gmra.mxu0 %v9549
        %v9747 = vpop.f32.mrf.mxu0
        %v9748 = vadd.f32 0.0, %v9747
        %v9749 = vpop.f32.mrf.mxu0
        %v9750 = vadd.f32 0.0, %v9749
        %9751 = vmatmul.bf16.gmra.mxu0 %v9548
        %v9752 = vpop.f32.mrf.mxu0
        %v9753 = vadd.f32 0.0, %v9752
        %v9754 = vpop.f32.mrf.mxu0
        %9755 = vdwg.mxu0
        %9756 = vmatpush.bf16.msra.mxu0 %v8205
        %9757 = vmatpush.bf16.msra.mxu0 %v8201
        %9758 = vmatpush.bf16.msra.mxu0 %v8197
        %9759 = vmatpush.bf16.msra.mxu0 %v8193
        %9760 = vmatpush.bf16.msra.mxu0 %v8189
        %9761 = vmatpush.bf16.msra.mxu0 %v8185
        %9762 = vmatpush.bf16.msra.mxu0 %v8181
        %9763 = vmatpush.bf16.msra.mxu0 %v8177
        %9764 = vmatmul.bf16.gmra.mxu0 %v9543
        %v9765 = vpop.f32.mrf.mxu0
        %v9766 = vadd.f32 %v9738, %v9765
        %v9767 = vpop.f32.mrf.mxu0
        %v9768 = vadd.f32 %v9740, %v9767
        %9769 = vmatmul.bf16.gmra.mxu0 %v9547
        %v9770 = vpop.f32.mrf.mxu0
        %v9771 = vadd.f32 %v9743, %v9770
        %v9772 = vpop.f32.mrf.mxu0
        %v9773 = vadd.f32 %v9745, %v9772
        %9774 = vmatmul.bf16.gmra.mxu0 %v9551
        %v9775 = vpop.f32.mrf.mxu0
        %v9776 = vadd.f32 %v9748, %v9775
        %v9777 = vpop.f32.mrf.mxu0
        %v9778 = vadd.f32 %v9750, %v9777
        %9779 = vmatmul.bf16.gmra.mxu0 %v9550
        %v9780 = vpop.f32.mrf.mxu0
        %v9781 = vadd.f32 %v9753, %v9780
        %v9782 = vpop.f32.mrf.mxu0
        %9783 = vdwg.mxu0
        %v9784 = vadd.f32 %v9494, %v9598
        %v9785 = vadd.f32 %v9495, %v9654
        %v9786 = vadd.f32 %v9496, %v9710
        %v9787 = vadd.f32 %v9497, %v9766
        %v9788 = vadd.f32 %v9498, %v9600
        %v9789 = vadd.f32 %v9499, %v9656
        %v9790 = vadd.f32 %v9500, %v9712
        %v9791 = vadd.f32 %v9501, %v9768
        %v9792 = vadd.f32 %v9502, %v9603
        %v9793 = vadd.f32 %v9503, %v9659
        %v9794 = vadd.f32 %v9504, %v9715
        %v9795 = vadd.f32 %v9505, %v9771
        %v9796 = vadd.f32 %v9506, %v9605
        %v9797 = vadd.f32 %v9507, %v9661
        %v9798 = vadd.f32 %v9508, %v9717
        %v9799 = vadd.f32 %v9509, %v9773
        %v9800 = vadd.f32 %v9510, %v9608
        %v9801 = vadd.f32 %v9511, %v9664
        %v9802 = vadd.f32 %v9512, %v9720
        %v9803 = vadd.f32 %v9513, %v9776
        %v9804 = vadd.f32 %v9514, %v9610
        %v9805 = vadd.f32 %v9515, %v9666
        %v9806 = vadd.f32 %v9516, %v9722
        %v9807 = vadd.f32 %v9517, %v9778
        %v9808 = vadd.f32 %v9518, %v9613
        %v9809 = vadd.f32 %v9519, %v9669
        %v9810 = vadd.f32 %v9520, %v9725
        %v9811 = vadd.f32 %v9521, %v9781
        %v9812 = vmax.f32 %v9784, %v9786
        %v9813 = vmax.f32 %v9785, %v9787
        %v9814 = vmax.f32 %v9788, %v9790
        %v9815 = vmax.f32 %v9789, %v9791
        %v9816 = vmax.f32 %v9792, %v9794
        %v9817 = vmax.f32 %v9793, %v9795
        %v9818 = vmax.f32 %v9796, %v9798
        %v9819 = vmax.f32 %v9797, %v9799
        %v9820 = vmax.f32 %v9800, %v9802
        %v9821 = vmax.f32 %v9801, %v9803
        %v9822 = vmax.f32 %v9804, %v9806
        %v9823 = vmax.f32 %v9805, %v9807
        %v9824 = vmax.f32 %v9808, %v9810
        %v9825 = vmax.f32 %v9809, %v9811
        %v9826 = vadd.f32 %v9812, %v8538
        %v9827 = vadd.f32 %v9813, %v8539
        %v9828 = vadd.f32 %v9814, %v8538
        %v9829 = vadd.f32 %v9815, %v8539
        %v9830 = vadd.f32 %v9816, %v8538
        %v9831 = vadd.f32 %v9817, %v8539
        %v9832 = vadd.f32 %v9818, %v8538
        %v9833 = vadd.f32 %v9819, %v8539
        %v9834 = vadd.f32 %v9820, %v8538
        %v9835 = vadd.f32 %v9821, %v8539
        %v9836 = vadd.f32 %v9822, %v8538
        %v9837 = vadd.f32 %v9823, %v8539
        %v9838 = vadd.f32 %v9824, %v8538
        %v9839 = vadd.f32 %v9825, %v8539
        %v9840 = vmax.f32 %v9826, 0.0
        %v9841 = vmax.f32 %v9827, 0.0
        %v9842 = vmax.f32 %v9828, 0.0
        %v9843 = vmax.f32 %v9829, 0.0
        %v9844 = vmax.f32 %v9830, 0.0
        %v9845 = vmax.f32 %v9831, 0.0
        %v9846 = vmax.f32 %v9832, 0.0
        %v9847 = vmax.f32 %v9833, 0.0
        %v9848 = vmax.f32 %v9834, 0.0
        %v9849 = vmax.f32 %v9835, 0.0
        %v9850 = vmax.f32 %v9836, 0.0
        %v9851 = vmax.f32 %v9837, 0.0
        %v9852 = vmax.f32 %v9838, 0.0
        %v9853 = vmax.f32 %v9839, 0.0
        %v9854 = vmax.f32 %v8556, %v9840
        %v9855 = vmax.f32 %v8557, %v9841
        %v9856 = vmax.f32 %v8558, %v9842
        %v9857 = vmax.f32 %v8559, %v9843
        %v9858 = vmax.f32 %v8560, %v9844
        %v9859 = vmax.f32 %v8561, %v9845
        %v9860 = vmax.f32 %v8562, %v9846
        %v9861 = vmax.f32 %v8563, %v9847
        %v9862 = vmax.f32 %v8564, %v9848
        %v9863 = vmax.f32 %v8565, %v9849
        %v9864 = vmax.f32 %v8566, %v9850
        %v9865 = vmax.f32 %v8567, %v9851
        %v9866 = vmax.f32 %v8568, %v9852
        %v9867 = vmax.f32 %v8569, %v9853
        %v9868 = vpack.c.bf16 %v9856, %v9854
        %v9869 = vpack.c.bf16 %v9857, %v9855
        %v9870 = vpack.c.bf16 %v9860, %v9858
        %v9871 = vpack.c.bf16 %v9861, %v9859
        %v9872 = vpack.c.bf16 %v9864, %v9862
        %v9873 = vpack.c.bf16 %v9865, %v9863
        %v9874 = vpack.c.bf16 %v9866, %v9866
        %v9875 = vpack.c.bf16 %v9867, %v9867
        %v9876 = vld [vmem:[%s5] sm:$0xf]
        %v9877 = vld [vmem:[%s5 + $0x4] sm:$0xf]
        %v9878 = vld [vmem:[%s5 + $0x8] sm:$0xf]
        %v9879 = vld [vmem:[%s5 + $0xc] sm:$0xf]
        %v9880 = vld [vmem:[%s5 + $0x10] sm:$0xf]
        %v9881 = vld [vmem:[%s5 + $0x14] sm:$0xf]
        %v9882 = vld [vmem:[%s5 + $0x18] sm:$0xf]
        %v9883 = vld [vmem:[%s5 + $0x1c] sm:$0xf]
        %v9884 = vld [vmem:[%s5 + $0x20] sm:$0xf]
        %v9885 = vld [vmem:[%s5 + $0x24] sm:$0xf]
        %v9886 = vld [vmem:[%s5 + $0x28] sm:$0xf]
        %v9887 = vld [vmem:[%s5 + $0x2c] sm:$0xf]
        %v9888 = vld [vmem:[%s5 + $0x30] sm:$0xf]
        %v9889 = vld [vmem:[%s5 + $0x34] sm:$0xf]
        %v9890 = vld [vmem:[%s5 + $0x38] sm:$0xf]
        %v9891 = vld [vmem:[%s5 + $0x3c] sm:$0xf]
        %v9892 = vld [vmem:[%s5 + $0x40] sm:$0xf]
        %v9893 = vld [vmem:[%s5 + $0x44] sm:$0xf]
        %v9894 = vld [vmem:[%s5 + $0x48] sm:$0xf]
        %v9895 = vld [vmem:[%s5 + $0x4c] sm:$0xf]
        %v9896 = vld [vmem:[%s5 + $0x50] sm:$0xf]
        %v9897 = vld [vmem:[%s5 + $0x54] sm:$0xf]
        %v9898 = vld [vmem:[%s5 + $0x58] sm:$0xf]
        %v9899 = vld [vmem:[%s5 + $0x5c] sm:$0xf]
        %v9900 = vld [vmem:[%s5 + $0x60] sm:$0xf]
        %v9901 = vld [vmem:[%s5 + $0x64] sm:$0xf]
        %v9902 = vld [vmem:[%s5 + $0x68] sm:$0xf]
        %v9903 = vld [vmem:[%s5 + $0x6c] sm:$0xf]
        %v9904 = vld [vmem:[%s5 + $0x70] sm:$0xf]
        %v9905 = vld [vmem:[%s5 + $0x74] sm:$0xf]
        %v9906 = vld [vmem:[%s5 + $0x78] sm:$0xf]
        %v9907 = vld [vmem:[%s5 + $0x7c] sm:$0xf]
        %v9940 = vunpack.c.l.b16 %v9876
        %v9941 = vunpack.c.l.b16 %v9877
        %v9942 = vunpack.c.l.b16 %v9878
        %v9943 = vunpack.c.l.b16 %v9879
        %v9944 = vunpack.c.l.b16 %v9880
        %v9945 = vunpack.c.l.b16 %v9881
        %v9946 = vunpack.c.l.b16 %v9882
        %v9947 = vunpack.c.l.b16 %v9883
        %v9948 = vunpack.c.l.b16 %v9884
        %v9949 = vunpack.c.l.b16 %v9885
        %v9950 = vunpack.c.l.b16 %v9886
        %v9951 = vunpack.c.l.b16 %v9887
        %v9952 = vunpack.c.l.b16 %v9888
        %v9953 = vunpack.c.l.b16 %v9889
        %v9954 = vunpack.c.l.b16 %v9890
        %v9955 = vunpack.c.l.b16 %v9891
        %v9956 = vunpack.c.l.b16 %v9892
        %v9957 = vunpack.c.l.b16 %v9893
        %v9958 = vunpack.c.l.b16 %v9894
        %v9959 = vunpack.c.l.b16 %v9895
        %v9960 = vunpack.c.l.b16 %v9896
        %v9961 = vunpack.c.l.b16 %v9897
        %v9962 = vunpack.c.l.b16 %v9898
        %v9963 = vunpack.c.l.b16 %v9899
        %v9964 = vunpack.c.l.b16 %v9900
        %v9965 = vunpack.c.l.b16 %v9901
        %v9966 = vunpack.c.l.b16 %v9902
        %v9967 = vunpack.c.l.b16 %v9903
        %v9968 = vunpack.c.l.b16 %v9904
        %v9969 = vunpack.c.l.b16 %v9905
        %v9970 = vunpack.c.l.b16 %v9906
        %v9971 = vunpack.c.l.b16 %v9907
        %v9972 = vpack.c.b16 %v9941, %v9940
        %v9973 = vpack.c.b16 %v9943, %v9942
        %v9974 = vpack.c.b16 %v9945, %v9944
        %v9975 = vpack.c.b16 %v9947, %v9946
        %v9976 = vpack.c.b16 %v9949, %v9948
        %v9977 = vpack.c.b16 %v9951, %v9950
        %v9978 = vpack.c.b16 %v9953, %v9952
        %v9979 = vpack.c.b16 %v9955, %v9954
        %v9980 = vpack.c.b16 %v9957, %v9956
        %v9981 = vpack.c.b16 %v9959, %v9958
        %v9982 = vpack.c.b16 %v9961, %v9960
        %v9983 = vpack.c.b16 %v9963, %v9962
        %v9984 = vpack.c.b16 %v9965, %v9964
        %v9985 = vpack.c.b16 %v9967, %v9966
        %v9986 = vpack.c.b16 %v9969, %v9968
        %v9987 = vpack.c.b16 %v9971, %v9970
        %10004 = vmatpush.bf16.msra.mxu0 %v9979
        %10005 = vmatpush.bf16.msra.mxu0 %v9978
        %10006 = vmatpush.bf16.msra.mxu0 %v9977
        %10007 = vmatpush.bf16.msra.mxu0 %v9976
        %10008 = vmatpush.bf16.msra.mxu0 %v9975
        %10009 = vmatpush.bf16.msra.mxu0 %v9974
        %10010 = vmatpush.bf16.msra.mxu0 %v9973
        %10011 = vmatpush.bf16.msra.mxu0 %v9972
        %10012 = vmatmul.bf16.gmra.mxu0 %v9868
        %v10013 = vpop.f32.mrf.mxu0
        %v10014 = vadd.f32 0.0, %v10013
        %v10015 = vpop.f32.mrf.mxu0
        %v10016 = vadd.f32 0.0, %v10015
        %10017 = vmatmul.bf16.gmra.mxu0 %v9870
        %v10018 = vpop.f32.mrf.mxu0
        %v10019 = vadd.f32 0.0, %v10018
        %v10020 = vpop.f32.mrf.mxu0
        %v10021 = vadd.f32 0.0, %v10020
        %10022 = vmatmul.bf16.gmra.mxu0 %v9872
        %v10023 = vpop.f32.mrf.mxu0
        %v10024 = vadd.f32 0.0, %v10023
        %v10025 = vpop.f32.mrf.mxu0
        %v10026 = vadd.f32 0.0, %v10025
        %10027 = vmatmul.bf16.gmra.mxu0 %v9874
        %v10028 = vpop.f32.mrf.mxu0
        %v10029 = vadd.f32 0.0, %v10028
        %v10030 = vpop.f32.mrf.mxu0
        %10031 = vdwg.mxu0
        %10032 = vmatpush.bf16.msra.mxu0 %v9987
        %10033 = vmatpush.bf16.msra.mxu0 %v9986
        %10034 = vmatpush.bf16.msra.mxu0 %v9985
        %10035 = vmatpush.bf16.msra.mxu0 %v9984
        %10036 = vmatpush.bf16.msra.mxu0 %v9983
        %10037 = vmatpush.bf16.msra.mxu0 %v9982
        %10038 = vmatpush.bf16.msra.mxu0 %v9981
        %10039 = vmatpush.bf16.msra.mxu0 %v9980
        %10040 = vmatmul.bf16.gmra.mxu0 %v9869
        %v10041 = vpop.f32.mrf.mxu0
        %v10042 = vadd.f32 %v10014, %v10041
        %v10043 = vpop.f32.mrf.mxu0
        %v10044 = vadd.f32 %v10016, %v10043
        %10045 = vmatmul.bf16.gmra.mxu0 %v9871
        %v10046 = vpop.f32.mrf.mxu0
        %v10047 = vadd.f32 %v10019, %v10046
        %v10048 = vpop.f32.mrf.mxu0
        %v10049 = vadd.f32 %v10021, %v10048
        %10050 = vmatmul.bf16.gmra.mxu0 %v9873
        %v10051 = vpop.f32.mrf.mxu0
        %v10052 = vadd.f32 %v10024, %v10051
        %v10053 = vpop.f32.mrf.mxu0
        %v10054 = vadd.f32 %v10026, %v10053
        %10055 = vmatmul.bf16.gmra.mxu0 %v9875
        %v10056 = vpop.f32.mrf.mxu0
        %v10057 = vadd.f32 %v10029, %v10056
        %v10058 = vpop.f32.mrf.mxu0
        %10059 = vdwg.mxu0
        %v10060 = vld [vmem:[%s6] sm:$0xff]
        %v10061 = vld [vmem:[%s7] sm:$0x1]
        %v10063 = vperm.slane %v10061, 0
        %vm10065 = vcmask 457728
        %v10067 = vsel %vm10065, %v10060, 0
        %10069 = vmatpush.msra.mxu0 0.0
        %10070 = vmatpush.msra.mxu0 0.0
        %10071 = vmatpush.msra.mxu0 0.0
        %10072 = vmatpush.msra.mxu0 0.0
        %10073 = vmatpush.msra.mxu0 0.0
        %10074 = vmatpush.msra.mxu0 0.0
        %10075 = vmatpush.msra.mxu0 0.0
        %10076 = vmatpush.msra.mxu0 0.0
        %10077 = vmatpush.msra.mxu0 0.0
        %10078 = vmatpush.msra.mxu0 %v10057
        %10079 = vmatpush.msra.mxu0 %v10054
        %10080 = vmatpush.msra.mxu0 %v10052
        %10081 = vmatpush.msra.mxu0 %v10049
        %10082 = vmatpush.msra.mxu0 %v10047
        %10083 = vmatpush.msra.mxu0 %v10044
        %10084 = vmatpush.msra.mxu0 %v10042
        %10085 = vmatmul.f32.gmra.mxu0 %v10067
        %v10086 = vpop.f32.mrf.mxu0
        %v10087 = vadd.f32 %v10063, %v10086
        %10088 = vdwg.mxu0
        %10089 = vst [vmem:[%s301] sm:$0xff] %v10087
        %s10090 = sand.u32 %s203, 1
        %s10091 = scalar_lea.sflag [#allocation4], %s10090
        %s10092 = sand.u32 %s203, 1
        %s10093 = smul.addr %s10092, 8
        %s10094 = scalar_lea.vmem [#allocation3], %s10093
        // Predicated region
        $region53: #{cnn_net_aap_forward.1} parent=51 // pred_check
          %p10095 = pneg %p213
        $region54: #{cnn_net_aap_forward.1} parent=51 // pred_check_branch
          %10097 = sbr.rel (%p10095) target = $region56
        $region55: #{cnn_net_aap_forward.1} parent=51 // pred_region
          %10099 = vsyncadd %s10091, 0
          %s10100 = smul.addr %s22, 8
          %s10101 = scalar_lea.hbm %s8, %s10100
          %s10103 = sshll.u32 %s10094, 4
          %s10104 = int_to_ptr.vmem [resolvable:$true] %s10103
          %s10105 = sshll.u32 %s10101, 4
          %s10106 = int_to_ptr.hbm [resolvable:$true] %s10105
          %10108 = dma.vmem_to_hbm [thread:$0]  %s10104, 128, %s10106, %s10091
        $region56: #{cnn_net_aap_forward.1} parent=51 // pred_fallthru
          _
      $region52: #{cnn_net_aap_forward.1} parent=5 // pred_fallthru
        _
      %p10109 = scmp.le.s32.totalorder 2, %s17
      // Predicated region
      $region57: #{cnn_net_aap_forward.1} parent=5 // pred_check
        %p10110 = pneg %p10109
      $region58: #{cnn_net_aap_forward.1} parent=5 // pred_check_branch
        %10112 = sbr.rel (%p10110) target = $region60
      $region59: #{cnn_net_aap_forward.1} parent=5 // pred_region
        %s10113 = ssub.s32 %s17, 2
        // Predicated region
        $region61: #{cnn_net_aap_forward.1} parent=59 // pred_check
          %p10114 = pneg %p219
        $region62: #{cnn_net_aap_forward.1} parent=59 // pred_check_branch
          %10116 = sbr.rel (%p10114) target = $region64
        $region63: #{cnn_net_aap_forward.1} parent=59 // pred_region
          %s10117 = sand.u32 %s204, 1
          %s10118 = scalar_lea.sflag [#allocation4], %s10117
          %s10119 = sand.u32 %s204, 1
          %s10120 = smul.addr %s10119, 8
          %s10121 = scalar_lea.vmem [#allocation3], %s10120
          %10123 = dma.done %s10118, 128
        $region64: #{cnn_net_aap_forward.1} parent=59 // pred_fallthru
          _
      $region60: #{cnn_net_aap_forward.1} parent=5 // pred_fallthru
        _
    $region6: #{cnn_net_aap_forward.1} parent=1 // loop_footer
      %s21 = sadd.s32 1, %s17
    $region7: #{cnn_net_aap_forward.1} parent=1 // loop_footer_branch
      %16 = sbr.rel target = $region3
    $region8: #{cnn_net_aap_forward.1} parent=1 // loop_exit
      _
    %10124 = vsyncpa [#allocation4], 1
    %s10125 = scalar_lea.sflag [#allocation4], 1
    %10126 = vsyncpa %s10125, 1

</llo_original>
